<compile_context>
chip_gen: v7x
topology: tpu7x:2x2x1
jax: 0.10.0
libtpu: 0.0.40
codegen_flags: <defaults>
</compile_context>

<pallas_src>
import math
import functools

import jax
import jax.numpy as jnp
from jax.experimental import pallas as pl
from jax.experimental.pallas import tpu as pltpu

LN_EPS = 1e-5


# ----------------------------------------------------------------------------
# In-kernel math helpers
# ----------------------------------------------------------------------------
def _layer_norm(x, gamma, beta):
    # x: (S, D) f32; gamma/beta broadcastable (1, D) f32
    mean = jnp.mean(x, axis=-1, keepdims=True)
    var = jnp.mean((x - mean) ** 2, axis=-1, keepdims=True)
    return (x - mean) * jax.lax.rsqrt(var + LN_EPS) * gamma + beta


def _encoder_layer_math(x, wqkv, bqkv, wo, bo, g1, be1, w1, b1, w2, b2, g2, be2,
                        *, num_heads):
    """One post-norm encoder layer on a (S, D) f32 activation.

    Returns (h2, p, denom): layer output plus the un-normalized softmax
    numerator / denominator so the caller can emit exactly-normalized
    attention weights for the last layer only."""
    S, D = x.shape
    H = num_heads
    Dh = D // H
    scale = 1.0 / math.sqrt(Dh)
    bf16 = jnp.bfloat16

    xb = x.astype(bf16)

    # --- fused Q/K/V projection: one (S,D)x(D,3D) MXU pass, f32 accumulation ---
    qkv = jnp.dot(xb, wqkv, preferred_element_type=jnp.float32) + bqkv   # (S, 3D)
    q = qkv[:, :D]
    k = qkv[:, D:2 * D]
    v = qkv[:, 2 * D:]

    qh = q.reshape(S, H, Dh)
    kh = k.reshape(S, H, Dh)
    vh = v.reshape(S, H, Dh)

    # --- batched scaled dot-product attention (no explicit head transposes) ---
    s = jnp.einsum("qhd,khd->hqk", qh.astype(bf16), kh.astype(bf16),
                   preferred_element_type=jnp.float32) * scale          # (H,S,S) f32
    s = s - jnp.max(s, axis=-1, keepdims=True)
    p = jnp.exp(s)
    denom = jnp.sum(p, axis=-1, keepdims=True)
    # Internal-only normalization via the EUP approximate reciprocal (free slot).
    p_int = p * pl.reciprocal(denom, approx=True)

    ctx = jnp.einsum("hqk,khd->qhd", p_int.astype(bf16), vh.astype(bf16),
                     preferred_element_type=jnp.float32)                # (S,H,Dh)
    attn = ctx.reshape(S, D)                                            # head-concat order

    o = jnp.dot(attn.astype(bf16), wo, preferred_element_type=jnp.float32) + bo

    # --- residual + LayerNorm 1 ---
    h1 = _layer_norm(x + o, g1, be1)

    # --- feed-forward (ReLU) ---
    f = jnp.dot(h1.astype(bf16), w1, preferred_element_type=jnp.float32) + b1
    f = jnp.maximum(f, 0.0)
    f = jnp.dot(f.astype(bf16), w2, preferred_element_type=jnp.float32) + b2

    # --- residual + LayerNorm 2 ---
    h2 = _layer_norm(h1 + f, g2, be2)
    return h2, p, denom


# ----------------------------------------------------------------------------
# Fused all-layers kernel
# ----------------------------------------------------------------------------
def fused_encoder_kernel(
    x_ref,
    wqkv_ref, bqkv_ref, wo_ref, bo_ref,
    g1_ref, be1_ref, w1_ref, b1_ref, w2_ref, b2_ref, g2_ref, be2_ref,
    gf_ref, bf_ref,
    out_ref, attw_ref,
    act_ref,
    *, num_heads, num_layers, apply_final_norm,
):
    l = pl.program_id(1)

    # Load the input activation into the cross-layer VMEM carry at layer 0.
    @pl.when(l == 0)
    def _():
        act_ref[...] = x_ref[0].astype(jnp.float32)

    x = act_ref[...]
    h2, p, denom = _encoder_layer_math(
        x,
        wqkv_ref[0], bqkv_ref[0], wo_ref[0], bo_ref[0],
        g1_ref[0], be1_ref[0], w1_ref[0], b1_ref[0],
        w2_ref[0], b2_ref[0], g2_ref[0], be2_ref[0],
        num_heads=num_heads,
    )
    act_ref[...] = h2

    # Only the LAST layer writes attention weights / the output block; the
    # output buffers are resident across the L axis so the HBM writeback
    # happens once per batch element.
    @pl.when(l == num_layers - 1)
    def _():
        attw_ref[0] = p / denom          # exact normalization for weights leaving the kernel
        y = h2
        if apply_final_norm:
            y = _layer_norm(y, gf_ref[...], bf_ref[...])
        out_ref[0] = y.astype(out_ref.dtype)


# ----------------------------------------------------------------------------
# Host-side wrappers
# ----------------------------------------------------------------------------
def prepare_encoder_params(layer_params, final_norm_params, d_model):
    """One-time packing: stack per-layer params along a leading L axis, fuse
    Wq/Wk/Wv into (L, D, 3D), cast matmul weights to bf16 ONCE. Biases / LN
    params stay f32 as (L, 1, X) for sublane broadcast."""
    bf16 = jnp.bfloat16
    stack = lambda k: jnp.stack([p[k] for p in layer_params], axis=0)
    col = lambda k: stack(k)[:, None, :]                      # (L, 1, X) f32

    wqkv = jnp.concatenate([stack("wq"), stack("wk"), stack("wv")], axis=-1)
    bqkv = jnp.concatenate([stack("bq"), stack("bk"), stack("bv")], axis=-1)[:, None, :]

    params = {
        "wqkv": wqkv.astype(bf16), "bqkv": bqkv,
        "wo": stack("wo").astype(bf16), "bo": col("bo"),
        "g1": col("g1"), "be1": col("be1"),
        "w1": stack("w1").astype(bf16), "b1": col("b1"),
        "w2": stack("w2").astype(bf16), "b2": col("b2"),
        "g2": col("g2"), "be2": col("be2"),
    }
    if final_norm_params is not None:
        params["gf"] = final_norm_params["g"].reshape(1, d_model).astype(jnp.float32)
        params["bf"] = final_norm_params["b"].reshape(1, d_model).astype(jnp.float32)
    else:
        params["gf"] = jnp.ones((1, d_model), jnp.float32)
        params["bf"] = jnp.zeros((1, d_model), jnp.float32)
    return params


def _compiler_params(S, D, FF, H):
    # Generation-aware VMEM budget: per-layer bf16 weights (double-buffered
    # along the streamed L axis), pipelined I/O blocks (x, out, attw), live f32
    # intermediates + the cross-layer scratch, plus headroom; capped at 75% of
    # the chip's physical VMEM (64 MiB on v7x, 128 MiB on v5e/v6e).
    try:
        cap = int(pltpu.get_tpu_info().vmem_capacity_bytes)
    except Exception:
        cap = 64 << 20                                    # conservative (v7x)
    weight_bytes = (4 * D * D + 2 * D * FF) * 2           # per-layer bf16
    io_bytes = (4 * S * D) * 4 + (2 * H * S * S) * 4      # x+out (2x buf) + attw (2x buf)
    act_bytes = (11 * S * D + 2 * S * FF + 4 * H * S * S) * 4
    budget = 2 * weight_bytes + io_bytes + act_bytes + (4 << 20)
    budget = max(budget, 16 << 20)
    budget = min(budget, (cap * 3) // 4)
    return pltpu.CompilerParams(
        dimension_semantics=("parallel", "arbitrary"),
        vmem_limit_bytes=int(budget),
    )


def transformer_encoder_forward(src, params, *, num_heads, apply_final_norm,
                                mask=None, query_mask=None):
    """Mirrors TransformerEncoder.forward: all L layers fused into one
    pallas_call (grid=(B, L), L innermost), returns the LAST layer's attention
    weights; the optional final LayerNorm is fused into the same kernel."""
    # TODO(synk): mask / query_mask handling not implemented (None path only).
    assert mask is None and query_mask is None
    B, S, D = src.shape
    L = params["wqkv"].shape[0]
    FF = params["w1"].shape[-1]
    H = num_heads

    xmap = lambda b, l: (b, 0, 0)        # per-batch activation blocks
    lmap = lambda b, l: (l, 0, 0)        # per-layer streamed weights
    cmap = lambda b, l: (0, 0)           # grid-invariant final-norm params

    in_specs = [
        pl.BlockSpec((1, S, D), xmap),            # src
        pl.BlockSpec((1, D, 3 * D), lmap),        # wqkv (bf16)
        pl.BlockSpec((1, 1, 3 * D), lmap),        # bqkv
        pl.BlockSpec((1, D, D), lmap),            # wo   (bf16)
        pl.BlockSpec((1, 1, D), lmap),            # bo
        pl.BlockSpec((1, 1, D), lmap),            # ln1 gamma
        pl.BlockSpec((1, 1, D), lmap),            # ln1 beta
        pl.BlockSpec((1, D, FF), lmap),           # w1   (bf16)
        pl.BlockSpec((1, 1, FF), lmap),           # b1
        pl.BlockSpec((1, FF, D), lmap),           # w2   (bf16)
        pl.BlockSpec((1, 1, D), lmap),            # b2
        pl.BlockSpec((1, 1, D), lmap),            # ln2 gamma
        pl.BlockSpec((1, 1, D), lmap),            # ln2 beta
        pl.BlockSpec((1, D), cmap),               # final-norm gamma
        pl.BlockSpec((1, D), cmap),               # final-norm beta
    ]
    out_specs = (
        pl.BlockSpec((1, S, D), xmap),
        pl.BlockSpec((1, H, S, S), lambda b, l: (b, 0, 0, 0)),
    )

    kern = functools.partial(
        fused_encoder_kernel, num_heads=H, num_layers=L,
        apply_final_norm=apply_final_norm,
    )
    out, attw = pl.pallas_call(
        kern,
        out_shape=(
            jax.ShapeDtypeStruct((B, S, D), src.dtype),
            jax.ShapeDtypeStruct((B, H, S, S), jnp.float32),
        ),
        grid=(B, L),
        in_specs=in_specs,
        out_specs=out_specs,
        scratch_shapes=[pltpu.VMEM((S, D), jnp.float32)],   # cross-layer carry
        compiler_params=_compiler_params(S, D, FF, H),
    )(src,
      params["wqkv"], params["bqkv"], params["wo"], params["bo"],
      params["g1"], params["be1"], params["w1"], params["b1"],
      params["w2"], params["b2"], params["g2"], params["be2"],
      params["gf"], params["bf"])
    return out, attw


# ----------------------------------------------------------------------------
# Pure-JAX f32 reference (for parity check)
# ----------------------------------------------------------------------------
def _ref_layer_norm(x, g, b):
    mean = jnp.mean(x, axis=-1, keepdims=True)
    var = jnp.mean((x - mean) ** 2, axis=-1, keepdims=True)
    return (x - mean) / jnp.sqrt(var + LN_EPS) * g + b


def reference_forward(src, layer_params, final_norm_params, num_heads):
    B, S, D = src.shape
    H = num_heads
    Dh = D // H
    x = src
    attw = None
    for p in layer_params:
        q = (x @ p["wq"] + p["bq"]).reshape(B, S, H, Dh).transpose(0, 2, 1, 3)
        k = (x @ p["wk"] + p["bk"]).reshape(B, S, H, Dh).transpose(0, 2, 1, 3)
        v = (x @ p["wv"] + p["bv"]).reshape(B, S, H, Dh).transpose(0, 2, 1, 3)
        s = jnp.einsum("bhqd,bhkd->bhqk", q, k) / math.sqrt(Dh)
        attw = jax.nn.softmax(s, axis=-1)
        ctx = jnp.einsum("bhqk,bhkd->bhqd", attw, v)
        attn = ctx.transpose(0, 2, 1, 3).reshape(B, S, D)
        o = attn @ p["wo"] + p["bo"]
        h1 = _ref_layer_norm(x + o, p["g1"], p["be1"])
        f = jnp.maximum(h1 @ p["w1"] + p["b1"], 0.0)
        f = f @ p["w2"] + p["b2"]
        x = _ref_layer_norm(h1 + f, p["g2"], p["be2"])
    if final_norm_params is not None:
        x = _ref_layer_norm(x, final_norm_params["g"], final_norm_params["b"])
    return x, attw


# ----------------------------------------------------------------------------
# Deterministic parameter init
# ----------------------------------------------------------------------------
def xavier(key, shape):
    fan_in, fan_out = shape[0], shape[1]
    bound = math.sqrt(6.0 / (fan_in + fan_out))
    return jax.random.uniform(key, shape, jnp.float32, -bound, bound)


def make_layer_params(key, d_model, dim_ff):
    ks = jax.random.split(key, 6)
    return {
        "wq": xavier(ks[0], (d_model, d_model)), "bq": jnp.zeros((d_model,), jnp.float32),
        "wk": xavier(ks[1], (d_model, d_model)), "bk": jnp.zeros((d_model,), jnp.float32),
        "wv": xavier(ks[2], (d_model, d_model)), "bv": jnp.zeros((d_model,), jnp.float32),
        "wo": xavier(ks[3], (d_model, d_model)), "bo": jnp.zeros((d_model,), jnp.float32),
        "g1": jnp.ones((d_model,), jnp.float32), "be1": jnp.zeros((d_model,), jnp.float32),
        "w1": xavier(ks[4], (d_model, dim_ff)),  "b1": jnp.zeros((dim_ff,), jnp.float32),
        "w2": xavier(ks[5], (dim_ff, d_model)),  "b2": jnp.zeros((d_model,), jnp.float32),
        "g2": jnp.ones((d_model,), jnp.float32), "be2": jnp.zeros((d_model,), jnp.float32),
    }


# ----------------------------------------------------------------------------
if __name__ == "__main__":
    # Small but lane-dense shapes (D multiple of 128 keeps activation stores unmasked).
    B, S, D = 2, 16, 128
    H, FF = 4, 256
    NUM_LAYERS = 2

    root = jax.random.PRNGKey(0)
    k_in, *k_layers = jax.random.split(root, NUM_LAYERS + 1)

    src = jax.random.normal(k_in, (B, S, D), jnp.float32)
    layer_params = [make_layer_params(k, D, FF) for k in k_layers]
    final_norm = {"g": jnp.ones((D,), jnp.float32), "b": jnp.zeros((D,), jnp.float32)}

    # One-time weight packing / bf16 cast (outside the per-call path), jitted forward.
    params = prepare_encoder_params(layer_params, final_norm, D)
    fwd = jax.jit(functools.partial(transformer_encoder_forward,
                                    num_heads=H, apply_final_norm=True))

    out, attw = fwd(src, params)
    out = jax.block_until_ready(out)
    attw = jax.block_until_ready(attw)

    assert out.shape == (B, S, D)
    assert attw.shape == (B, H, S, S)
    assert bool(jnp.all(jnp.isfinite(out)))
    # softmax rows of the returned (last-layer) attention weights sum to 1
    assert bool(jnp.allclose(jnp.sum(attw, axis=-1), 1.0, atol=1e-4))

    # Parity vs. pure-JAX f32 reference (kernel uses bf16 MXU operands -> loose tol).
    ref_out, ref_attw = reference_forward(src, layer_params, final_norm, H)
    assert float(jnp.max(jnp.abs(out - ref_out))) < 1e-1
    assert float(jnp.max(jnp.abs(attw - ref_attw))) < 5e-2

    print("KERNEL_OK")
</pallas_src>

<mosaic_0001>
module attributes {stable_mosaic.version = 11 : i64} {
  func.func @fused_encoder_kernel(%arg0: i32, %arg1: i32, %arg2: memref<1x16x128xf32, #tpu.memory_space<vmem>>, %arg3: memref<1x128x384xbf16, #tpu.memory_space<vmem>>, %arg4: memref<1x1x384xf32, #tpu.memory_space<vmem>>, %arg5: memref<1x128x128xbf16, #tpu.memory_space<vmem>>, %arg6: memref<1x1x128xf32, #tpu.memory_space<vmem>>, %arg7: memref<1x1x128xf32, #tpu.memory_space<vmem>>, %arg8: memref<1x1x128xf32, #tpu.memory_space<vmem>>, %arg9: memref<1x128x256xbf16, #tpu.memory_space<vmem>>, %arg10: memref<1x1x256xf32, #tpu.memory_space<vmem>>, %arg11: memref<1x256x128xbf16, #tpu.memory_space<vmem>>, %arg12: memref<1x1x128xf32, #tpu.memory_space<vmem>>, %arg13: memref<1x1x128xf32, #tpu.memory_space<vmem>>, %arg14: memref<1x1x128xf32, #tpu.memory_space<vmem>>, %arg15: memref<1x128xf32, #tpu.memory_space<vmem>>, %arg16: memref<1x128xf32, #tpu.memory_space<vmem>>, %arg17: memref<1x16x128xf32, #tpu.memory_space<vmem>>, %arg18: memref<1x4x16x16xf32, #tpu.memory_space<vmem>>, %arg19: memref<16x128xf32, #tpu.memory_space<vmem>>) attributes {dimension_semantics = [#tpu.dimension_semantics<parallel>, #tpu.dimension_semantics<arbitrary>], iteration_bounds = array<i64: 2, 2>, scalar_prefetch = 0 : i64, scratch_operands = 1 : i64, tpu.core_type = #tpu.core_type<tc>, window_params = [{transform_indices = @transform_0, window_bounds = array<i64: 1, 16, 128>}, {transform_indices = @transform_1, window_bounds = array<i64: 1, 128, 384>}, {transform_indices = @transform_2, window_bounds = array<i64: 1, 1, 384>}, {transform_indices = @transform_3, window_bounds = array<i64: 1, 128, 128>}, {transform_indices = @transform_4, window_bounds = array<i64: 1, 1, 128>}, {transform_indices = @transform_5, window_bounds = array<i64: 1, 1, 128>}, {transform_indices = @transform_6, window_bounds = array<i64: 1, 1, 128>}, {transform_indices = @transform_7, window_bounds = array<i64: 1, 128, 256>}, {transform_indices = @transform_8, window_bounds = array<i64: 1, 1, 256>}, {transform_indices = @transform_9, window_bounds = array<i64: 1, 256, 128>}, {transform_indices = @transform_10, window_bounds = array<i64: 1, 1, 128>}, {transform_indices = @transform_11, window_bounds = array<i64: 1, 1, 128>}, {transform_indices = @transform_12, window_bounds = array<i64: 1, 1, 128>}, {pipeline_mode = #tpu.pipeline_mode<synchronous>, transform_indices = @transform_13, window_bounds = array<i64: 1, 128>}, {pipeline_mode = #tpu.pipeline_mode<synchronous>, transform_indices = @transform_14, window_bounds = array<i64: 1, 128>}, {transform_indices = @transform_15, window_bounds = array<i64: 1, 16, 128>}, {transform_indices = @transform_16, window_bounds = array<i64: 1, 4, 16, 16>}]} {
    %c0_i32 = arith.constant 0 : i32
    %0 = arith.cmpi eq, %arg1, %c0_i32 : i32
    %1 = arith.extui %0 : i1 to i32
    %c0_i32_0 = arith.constant 0 : i32
    %2 = arith.cmpi ne, %1, %c0_i32_0 : i32
    scf.if %2 {
      %c0_60 = arith.constant 0 : index
      %c0_61 = arith.constant 0 : index
      %c0_62 = arith.constant 0 : index
      %122 = vector.load %arg2[%c0_60, %c0_61, %c0_62] : memref<1x16x128xf32, #tpu.memory_space<vmem>>, vector<1x16x128xf32>
      %123 = vector.shape_cast %122 : vector<1x16x128xf32> to vector<16x128xf32>
      %c0_63 = arith.constant 0 : index
      %c0_64 = arith.constant 0 : index
      %124 = vector.load %arg19[%c0_63, %c0_64] : memref<16x128xf32, #tpu.memory_space<vmem>>, vector<16x128xf32>
      tpu.vector_store %arg19[%c0_63, %c0_64], %123 {strides = array<i32>} : memref<16x128xf32, #tpu.memory_space<vmem>>, vector<16x128xf32>,
    } else {
    }
    %c0 = arith.constant 0 : index
    %c0_1 = arith.constant 0 : index
    %3 = vector.load %arg19[%c0, %c0_1] : memref<16x128xf32, #tpu.memory_space<vmem>>, vector<16x128xf32>
    %c0_2 = arith.constant 0 : index
    %c0_3 = arith.constant 0 : index
    %c0_4 = arith.constant 0 : index
    %4 = vector.load %arg3[%c0_2, %c0_3, %c0_4] : memref<1x128x384xbf16, #tpu.memory_space<vmem>>, vector<1x128x384xbf16>
    %5 = vector.shape_cast %4 : vector<1x128x384xbf16> to vector<128x384xbf16>
    %c0_5 = arith.constant 0 : index
    %c0_6 = arith.constant 0 : index
    %c0_7 = arith.constant 0 : index
    %6 = vector.load %arg4[%c0_5, %c0_6, %c0_7] : memref<1x1x384xf32, #tpu.memory_space<vmem>>, vector<1x1x384xf32>
    %7 = vector.shape_cast %6 : vector<1x1x384xf32> to vector<1x384xf32>
    %c0_8 = arith.constant 0 : index
    %c0_9 = arith.constant 0 : index
    %c0_10 = arith.constant 0 : index
    %8 = vector.load %arg5[%c0_8, %c0_9, %c0_10] : memref<1x128x128xbf16, #tpu.memory_space<vmem>>, vector<1x128x128xbf16>
    %9 = vector.shape_cast %8 : vector<1x128x128xbf16> to vector<128x128xbf16>
    %c0_11 = arith.constant 0 : index
    %c0_12 = arith.constant 0 : index
    %c0_13 = arith.constant 0 : index
    %10 = vector.load %arg6[%c0_11, %c0_12, %c0_13] : memref<1x1x128xf32, #tpu.memory_space<vmem>>, vector<1x1x128xf32>
    %11 = vector.shape_cast %10 : vector<1x1x128xf32> to vector<1x128xf32>
    %c0_14 = arith.constant 0 : index
    %c0_15 = arith.constant 0 : index
    %c0_16 = arith.constant 0 : index
    %12 = vector.load %arg7[%c0_14, %c0_15, %c0_16] : memref<1x1x128xf32, #tpu.memory_space<vmem>>, vector<1x1x128xf32>
    %13 = vector.shape_cast %12 : vector<1x1x128xf32> to vector<1x128xf32>
    %c0_17 = arith.constant 0 : index
    %c0_18 = arith.constant 0 : index
    %c0_19 = arith.constant 0 : index
    %14 = vector.load %arg8[%c0_17, %c0_18, %c0_19] : memref<1x1x128xf32, #tpu.memory_space<vmem>>, vector<1x1x128xf32>
    %15 = vector.shape_cast %14 : vector<1x1x128xf32> to vector<1x128xf32>
    %c0_20 = arith.constant 0 : index
    %c0_21 = arith.constant 0 : index
    %c0_22 = arith.constant 0 : index
    %16 = vector.load %arg9[%c0_20, %c0_21, %c0_22] : memref<1x128x256xbf16, #tpu.memory_space<vmem>>, vector<1x128x256xbf16>
    %17 = vector.shape_cast %16 : vector<1x128x256xbf16> to vector<128x256xbf16>
    %c0_23 = arith.constant 0 : index
    %c0_24 = arith.constant 0 : index
    %c0_25 = arith.constant 0 : index
    %18 = vector.load %arg10[%c0_23, %c0_24, %c0_25] : memref<1x1x256xf32, #tpu.memory_space<vmem>>, vector<1x1x256xf32>
    %19 = vector.shape_cast %18 : vector<1x1x256xf32> to vector<1x256xf32>
    %c0_26 = arith.constant 0 : index
    %c0_27 = arith.constant 0 : index
    %c0_28 = arith.constant 0 : index
    %20 = vector.load %arg11[%c0_26, %c0_27, %c0_28] : memref<1x256x128xbf16, #tpu.memory_space<vmem>>, vector<1x256x128xbf16>
    %21 = vector.shape_cast %20 : vector<1x256x128xbf16> to vector<256x128xbf16>
    %c0_29 = arith.constant 0 : index
    %c0_30 = arith.constant 0 : index
    %c0_31 = arith.constant 0 : index
    %22 = vector.load %arg12[%c0_29, %c0_30, %c0_31] : memref<1x1x128xf32, #tpu.memory_space<vmem>>, vector<1x1x128xf32>
    %23 = vector.shape_cast %22 : vector<1x1x128xf32> to vector<1x128xf32>
    %c0_32 = arith.constant 0 : index
    %c0_33 = arith.constant 0 : index
    %c0_34 = arith.constant 0 : index
    %24 = vector.load %arg13[%c0_32, %c0_33, %c0_34] : memref<1x1x128xf32, #tpu.memory_space<vmem>>, vector<1x1x128xf32>
    %25 = vector.shape_cast %24 : vector<1x1x128xf32> to vector<1x128xf32>
    %c0_35 = arith.constant 0 : index
    %c0_36 = arith.constant 0 : index
    %c0_37 = arith.constant 0 : index
    %26 = vector.load %arg14[%c0_35, %c0_36, %c0_37] : memref<1x1x128xf32, #tpu.memory_space<vmem>>, vector<1x1x128xf32>
    %27 = vector.shape_cast %26 : vector<1x1x128xf32> to vector<1x128xf32>
    %28 = arith.truncf %3 : vector<16x128xf32> to vector<16x128xbf16>
    %cst = arith.constant dense<0.000000e+00> : vector<16x384xf32>
    %29 = tpu.matmul %28, %5, %cst {dimension_numbers = #tpu.dot_dimension_numbers<[1], [0], [0], [1], [0, 0, 1, 1], [], []>} : vector<16x128xbf16>, vector<128x384xbf16>, vector<16x384xf32> -> vector<16x384xf32>
    %30 = vector.broadcast %7 : vector<1x384xf32> to vector<16x384xf32>
    %31 = arith.addf %29, %30 : vector<16x384xf32>
    %32 = vector.extract_strided_slice %31 {offsets = [0, 0], sizes = [16, 128], strides = [1, 1]} : vector<16x384xf32> to vector<16x128xf32>
    %33 = vector.extract_strided_slice %31 {offsets = [0, 128], sizes = [16, 128], strides = [1, 1]} : vector<16x384xf32> to vector<16x128xf32>
    %34 = vector.extract_strided_slice %31 {offsets = [0, 256], sizes = [16, 128], strides = [1, 1]} : vector<16x384xf32> to vector<16x128xf32>
    %35 = vector.shape_cast %32 : vector<16x128xf32> to vector<16x4x32xf32>
    %36 = vector.shape_cast %33 : vector<16x128xf32> to vector<16x4x32xf32>
    %37 = vector.shape_cast %34 : vector<16x128xf32> to vector<16x4x32xf32>
    %38 = arith.truncf %35 : vector<16x4x32xf32> to vector<16x4x32xbf16>
    %39 = arith.truncf %36 : vector<16x4x32xf32> to vector<16x4x32xbf16>
    "tpu.trace_start"() <{level = 10 : i32, message = "qhd,khd->hqk"}> : () -> ()
    %cst_38 = arith.constant dense<0.000000e+00> : vector<4x16x16xf32>
    %40 = tpu.matmul %38, %39, %cst_38 {dimension_numbers = #tpu.dot_dimension_numbers<[2], [2], [0], [0], [0, 1, 0, 0, 1, 0], [1], [1]>} : vector<16x4x32xbf16>, vector<16x4x32xbf16>, vector<4x16x16xf32> -> vector<4x16x16xf32>
    "tpu.trace_stop"() : () -> ()
    %cst_39 = arith.constant 0.176776692 : f32
    %41 = vector.broadcast %cst_39 : f32 to vector<4x16x16xf32>
    %42 = arith.mulf %40, %41 : vector<4x16x16xf32>
    %cst_40 = arith.constant dense<0xFF800000> : vector<4x16xf32>
    %43 = vector.multi_reduction <maximumf>, %42, %cst_40 [2] : vector<4x16x16xf32> to vector<4x16xf32>
    %44 = vector.shape_cast %43 : vector<4x16xf32> to vector<4x16x1xf32>
    %45 = vector.broadcast %44 : vector<4x16x1xf32> to vector<4x16x16xf32>
    %46 = arith.subf %42, %45 : vector<4x16x16xf32>
    %47 = math.exp %46 : vector<4x16x16xf32>
    %cst_41 = arith.constant dense<0.000000e+00> : vector<4x16xf32>
    %48 = vector.multi_reduction <add>, %47, %cst_41 [2] : vector<4x16x16xf32> to vector<4x16xf32>
    %49 = vector.shape_cast %48 : vector<4x16xf32> to vector<4x16x1xf32>
    %50 = tpu.reciprocal %49 {approx = true} : vector<4x16x1xf32> -> vector<4x16x1xf32>
    %51 = vector.broadcast %50 : vector<4x16x1xf32> to vector<4x16x16xf32>
    %52 = arith.mulf %47, %51 : vector<4x16x16xf32>
    %53 = arith.truncf %52 : vector<4x16x16xf32> to vector<4x16x16xbf16>
    %54 = arith.truncf %37 : vector<16x4x32xf32> to vector<16x4x32xbf16>
    "tpu.trace_start"() <{level = 10 : i32, message = "hqk,khd->qhd"}> : () -> ()
    %cst_42 = arith.constant dense<0.000000e+00> : vector<4x32x16xf32>
    %55 = tpu.matmul %54, %53, %cst_42 {dimension_numbers = #tpu.dot_dimension_numbers<[0], [2], [2], [1], [0, 1, 0, 2, 1, 1], [1], [0]>} : vector<16x4x32xbf16>, vector<4x16x16xbf16>, vector<4x32x16xf32> -> vector<4x32x16xf32>
    %56 = tpu.transpose %55, [2, 0, 1] : vector<4x32x16xf32> -> vector<16x4x32xf32>
    "tpu.trace_stop"() : () -> ()
    %57 = vector.shape_cast %56 : vector<16x4x32xf32> to vector<16x128xf32>
    %58 = arith.truncf %57 : vector<16x128xf32> to vector<16x128xbf16>
    %cst_43 = arith.constant dense<0.000000e+00> : vector<16x128xf32>
    %59 = tpu.matmul %58, %9, %cst_43 {dimension_numbers = #tpu.dot_dimension_numbers<[1], [0], [0], [1], [0, 0, 1, 1], [], []>} : vector<16x128xbf16>, vector<128x128xbf16>, vector<16x128xf32> -> vector<16x128xf32>
    %60 = vector.broadcast %11 : vector<1x128xf32> to vector<16x128xf32>
    %61 = arith.addf %59, %60 : vector<16x128xf32>
    %62 = arith.addf %3, %61 : vector<16x128xf32>
    %cst_44 = arith.constant dense<0.000000e+00> : vector<16xf32>
    %63 = vector.multi_reduction <add>, %62, %cst_44 [1] : vector<16x128xf32> to vector<16xf32>
    %64 = vector.shape_cast %63 : vector<16xf32> to vector<16x1xf32>
    %cst_45 = arith.constant 1.280000e+02 : f32
    %65 = vector.broadcast %cst_45 : f32 to vector<16x1xf32>
    %66 = arith.divf %64, %65 : vector<16x1xf32>
    %67 = vector.broadcast %66 : vector<16x1xf32> to vector<16x128xf32>
    %68 = arith.subf %62, %67 : vector<16x128xf32>
    %69 = arith.mulf %68, %68 : vector<16x128xf32>
    %cst_46 = arith.constant dense<0.000000e+00> : vector<16xf32>
    %70 = vector.multi_reduction <add>, %69, %cst_46 [1] : vector<16x128xf32> to vector<16xf32>
    %71 = vector.shape_cast %70 : vector<16xf32> to vector<16x1xf32>
    %cst_47 = arith.constant 1.280000e+02 : f32
    %72 = vector.broadcast %cst_47 : f32 to vector<16x1xf32>
    %73 = arith.divf %71, %72 : vector<16x1xf32>
    %74 = vector.broadcast %66 : vector<16x1xf32> to vector<16x128xf32>
    %75 = arith.subf %62, %74 : vector<16x128xf32>
    %cst_48 = arith.constant 9.99999974E-6 : f32
    %76 = vector.broadcast %cst_48 : f32 to vector<16x1xf32>
    %77 = arith.addf %73, %76 : vector<16x1xf32>
    %78 = math.rsqrt %77 : vector<16x1xf32>
    %79 = vector.broadcast %78 : vector<16x1xf32> to vector<16x128xf32>
    %80 = arith.mulf %75, %79 : vector<16x128xf32>
    %81 = vector.broadcast %13 : vector<1x128xf32> to vector<16x128xf32>
    %82 = arith.mulf %80, %81 : vector<16x128xf32>
    %83 = vector.broadcast %15 : vector<1x128xf32> to vector<16x128xf32>
    %84 = arith.addf %82, %83 : vector<16x128xf32>
    %85 = arith.truncf %84 : vector<16x128xf32> to vector<16x128xbf16>
    %cst_49 = arith.constant dense<0.000000e+00> : vector<16x256xf32>
    %86 = tpu.matmul %85, %17, %cst_49 {dimension_numbers = #tpu.dot_dimension_numbers<[1], [0], [0], [1], [0, 0, 1, 1], [], []>} : vector<16x128xbf16>, vector<128x256xbf16>, vector<16x256xf32> -> vector<16x256xf32>
    %87 = vector.broadcast %19 : vector<1x256xf32> to vector<16x256xf32>
    %88 = arith.addf %86, %87 : vector<16x256xf32>
    %cst_50 = arith.constant 0.000000e+00 : f32
    %89 = vector.broadcast %cst_50 : f32 to vector<16x256xf32>
    %90 = arith.maximumf %88, %89 : vector<16x256xf32>
    %91 = arith.truncf %90 : vector<16x256xf32> to vector<16x256xbf16>
    %cst_51 = arith.constant dense<0.000000e+00> : vector<16x128xf32>
    %92 = tpu.matmul %91, %21, %cst_51 {dimension_numbers = #tpu.dot_dimension_numbers<[1], [0], [0], [1], [0, 0, 1, 1], [], []>} : vector<16x256xbf16>, vector<256x128xbf16>, vector<16x128xf32> -> vector<16x128xf32>
    %93 = vector.broadcast %23 : vector<1x128xf32> to vector<16x128xf32>
    %94 = arith.addf %92, %93 : vector<16x128xf32>
    %95 = arith.addf %84, %94 : vector<16x128xf32>
    %cst_52 = arith.constant dense<0.000000e+00> : vector<16xf32>
    %96 = vector.multi_reduction <add>, %95, %cst_52 [1] : vector<16x128xf32> to vector<16xf32>
    %97 = vector.shape_cast %96 : vector<16xf32> to vector<16x1xf32>
    %cst_53 = arith.constant 1.280000e+02 : f32
    %98 = vector.broadcast %cst_53 : f32 to vector<16x1xf32>
    %99 = arith.divf %97, %98 : vector<16x1xf32>
    %100 = vector.broadcast %99 : vector<16x1xf32> to vector<16x128xf32>
    %101 = arith.subf %95, %100 : vector<16x128xf32>
    %102 = arith.mulf %101, %101 : vector<16x128xf32>
    %cst_54 = arith.constant dense<0.000000e+00> : vector<16xf32>
    %103 = vector.multi_reduction <add>, %102, %cst_54 [1] : vector<16x128xf32> to vector<16xf32>
    %104 = vector.shape_cast %103 : vector<16xf32> to vector<16x1xf32>
    %cst_55 = arith.constant 1.280000e+02 : f32
    %105 = vector.broadcast %cst_55 : f32 to vector<16x1xf32>
    %106 = arith.divf %104, %105 : vector<16x1xf32>
    %107 = vector.broadcast %99 : vector<16x1xf32> to vector<16x128xf32>
    %108 = arith.subf %95, %107 : vector<16x128xf32>
    %cst_56 = arith.constant 9.99999974E-6 : f32
    %109 = vector.broadcast %cst_56 : f32 to vector<16x1xf32>
    %110 = arith.addf %106, %109 : vector<16x1xf32>
    %111 = math.rsqrt %110 : vector<16x1xf32>
    %112 = vector.broadcast %111 : vector<16x1xf32> to vector<16x128xf32>
    %113 = arith.mulf %108, %112 : vector<16x128xf32>
    %114 = vector.broadcast %25 : vector<1x128xf32> to vector<16x128xf32>
    %115 = arith.mulf %113, %114 : vector<16x128xf32>
    %116 = vector.broadcast %27 : vector<1x128xf32> to vector<16x128xf32>
    %117 = arith.addf %115, %116 : vector<16x128xf32>
    %c0_57 = arith.constant 0 : index
    %c0_58 = arith.constant 0 : index
    %118 = vector.load %arg19[%c0_57, %c0_58] : memref<16x128xf32, #tpu.memory_space<vmem>>, vector<16x128xf32>
    tpu.vector_store %arg19[%c0_57, %c0_58], %117 {strides = array<i32>} : memref<16x128xf32, #tpu.memory_space<vmem>>, vector<16x128xf32>,
    %c1_i32 = arith.constant 1 : i32
    %119 = arith.cmpi eq, %arg1, %c1_i32 : i32
    %120 = arith.extui %119 : i1 to i32
    %c0_i32_59 = arith.constant 0 : i32
    %121 = arith.cmpi ne, %120, %c0_i32_59 : i32
    scf.if %121 {
      %122 = vector.broadcast %49 : vector<4x16x1xf32> to vector<4x16x16xf32>
      %123 = arith.divf %47, %122 : vector<4x16x16xf32>
      %c0_60 = arith.constant 0 : index
      %c0_61 = arith.constant 0 : index
      %c0_62 = arith.constant 0 : index
      %c0_63 = arith.constant 0 : index
      %124 = vector.load %arg18[%c0_60, %c0_61, %c0_62, %c0_63] : memref<1x4x16x16xf32, #tpu.memory_space<vmem>>, vector<1x4x16x16xf32>
      %125 = vector.shape_cast %124 : vector<1x4x16x16xf32> to vector<4x16x16xf32>
      %126 = vector.shape_cast %123 : vector<4x16x16xf32> to vector<1x4x16x16xf32>
      tpu.vector_store %arg18[%c0_60, %c0_61, %c0_62, %c0_63], %126 {strides = array<i32>} : memref<1x4x16x16xf32, #tpu.memory_space<vmem>>, vector<1x4x16x16xf32>,
      %c0_64 = arith.constant 0 : index
      %c0_65 = arith.constant 0 : index
      %127 = vector.load %arg15[%c0_64, %c0_65] : memref<1x128xf32, #tpu.memory_space<vmem>>, vector<1x128xf32>
      %c0_66 = arith.constant 0 : index
      %c0_67 = arith.constant 0 : index
      %128 = vector.load %arg16[%c0_66, %c0_67] : memref<1x128xf32, #tpu.memory_space<vmem>>, vector<1x128xf32>
      %cst_68 = arith.constant dense<0.000000e+00> : vector<16xf32>
      %129 = vector.multi_reduction <add>, %117, %cst_68 [1] : vector<16x128xf32> to vector<16xf32>
      %130 = vector.shape_cast %129 : vector<16xf32> to vector<16x1xf32>
      %cst_69 = arith.constant 1.280000e+02 : f32
      %131 = vector.broadcast %cst_69 : f32 to vector<16x1xf32>
      %132 = arith.divf %130, %131 : vector<16x1xf32>
      %133 = vector.broadcast %132 : vector<16x1xf32> to vector<16x128xf32>
      %134 = arith.subf %117, %133 : vector<16x128xf32>
      %135 = arith.mulf %134, %134 : vector<16x128xf32>
      %cst_70 = arith.constant dense<0.000000e+00> : vector<16xf32>
      %136 = vector.multi_reduction <add>, %135, %cst_70 [1] : vector<16x128xf32> to vector<16xf32>
      %137 = vector.shape_cast %136 : vector<16xf32> to vector<16x1xf32>
      %cst_71 = arith.constant 1.280000e+02 : f32
      %138 = vector.broadcast %cst_71 : f32 to vector<16x1xf32>
      %139 = arith.divf %137, %138 : vector<16x1xf32>
      %140 = vector.broadcast %132 : vector<16x1xf32> to vector<16x128xf32>
      %141 = arith.subf %117, %140 : vector<16x128xf32>
      %cst_72 = arith.constant 9.99999974E-6 : f32
      %142 = vector.broadcast %cst_72 : f32 to vector<16x1xf32>
      %143 = arith.addf %139, %142 : vector<16x1xf32>
      %144 = math.rsqrt %143 : vector<16x1xf32>
      %145 = vector.broadcast %144 : vector<16x1xf32> to vector<16x128xf32>
      %146 = arith.mulf %141, %145 : vector<16x128xf32>
      %147 = vector.broadcast %127 : vector<1x128xf32> to vector<16x128xf32>
      %148 = arith.mulf %146, %147 : vector<16x128xf32>
      %149 = vector.broadcast %128 : vector<1x128xf32> to vector<16x128xf32>
      %150 = arith.addf %148, %149 : vector<16x128xf32>
      %c0_73 = arith.constant 0 : index
      %c0_74 = arith.constant 0 : index
      %c0_75 = arith.constant 0 : index
      %151 = vector.load %arg17[%c0_73, %c0_74, %c0_75] : memref<1x16x128xf32, #tpu.memory_space<vmem>>, vector<1x16x128xf32>
      %152 = vector.shape_cast %151 : vector<1x16x128xf32> to vector<16x128xf32>
      %153 = vector.shape_cast %150 : vector<16x128xf32> to vector<1x16x128xf32>
      tpu.vector_store %arg17[%c0_73, %c0_74, %c0_75], %153 {strides = array<i32>} : memref<1x16x128xf32, #tpu.memory_space<vmem>>, vector<1x16x128xf32>,
    } else {
    }
    return
  }
  func.func @transform_0(%arg0: i32, %arg1: i32) -> (i32, i32, i32) {
    %c0_i32 = arith.constant 0 : i32
    %c0_i32_0 = arith.constant 0 : i32
    %c0_i32_1 = arith.constant 0 : i32
    return %arg0, %c0_i32, %c0_i32_0 : i32, i32, i32
  }
  func.func @transform_1(%arg0: i32, %arg1: i32) -> (i32, i32, i32) {
    %c0_i32 = arith.constant 0 : i32
    %c0_i32_0 = arith.constant 0 : i32
    %c0_i32_1 = arith.constant 0 : i32
    return %arg1, %c0_i32, %c0_i32_0 : i32, i32, i32
  }
  func.func @transform_2(%arg0: i32, %arg1: i32) -> (i32, i32, i32) {
    %c0_i32 = arith.constant 0 : i32
    %c0_i32_0 = arith.constant 0 : i32
    %c0_i32_1 = arith.constant 0 : i32
    return %arg1, %c0_i32, %c0_i32_0 : i32, i32, i32
  }
  func.func @transform_3(%arg0: i32, %arg1: i32) -> (i32, i32, i32) {
    %c0_i32 = arith.constant 0 : i32
    %c0_i32_0 = arith.constant 0 : i32
    %c0_i32_1 = arith.constant 0 : i32
    return %arg1, %c0_i32, %c0_i32_0 : i32, i32, i32
  }
  func.func @transform_4(%arg0: i32, %arg1: i32) -> (i32, i32, i32) {
    %c0_i32 = arith.constant 0 : i32
    %c0_i32_0 = arith.constant 0 : i32
    %c0_i32_1 = arith.constant 0 : i32
    return %arg1, %c0_i32, %c0_i32_0 : i32, i32, i32
  }
  func.func @transform_5(%arg0: i32, %arg1: i32) -> (i32, i32, i32) {
    %c0_i32 = arith.constant 0 : i32
    %c0_i32_0 = arith.constant 0 : i32
    %c0_i32_1 = arith.constant 0 : i32
    return %arg1, %c0_i32, %c0_i32_0 : i32, i32, i32
  }
  func.func @transform_6(%arg0: i32, %arg1: i32) -> (i32, i32, i32) {
    %c0_i32 = arith.constant 0 : i32
    %c0_i32_0 = arith.constant 0 : i32
    %c0_i32_1 = arith.constant 0 : i32
    return %arg1, %c0_i32, %c0_i32_0 : i32, i32, i32
  }
  func.func @transform_7(%arg0: i32, %arg1: i32) -> (i32, i32, i32) {
    %c0_i32 = arith.constant 0 : i32
    %c0_i32_0 = arith.constant 0 : i32
    %c0_i32_1 = arith.constant 0 : i32
    return %arg1, %c0_i32, %c0_i32_0 : i32, i32, i32
  }
  func.func @transform_8(%arg0: i32, %arg1: i32) -> (i32, i32, i32) {
    %c0_i32 = arith.constant 0 : i32
    %c0_i32_0 = arith.constant 0 : i32
    %c0_i32_1 = arith.constant 0 : i32
    return %arg1, %c0_i32, %c0_i32_0 : i32, i32, i32
  }
  func.func @transform_9(%arg0: i32, %arg1: i32) -> (i32, i32, i32) {
    %c0_i32 = arith.constant 0 : i32
    %c0_i32_0 = arith.constant 0 : i32
    %c0_i32_1 = arith.constant 0 : i32
    return %arg1, %c0_i32, %c0_i32_0 : i32, i32, i32
  }
  func.func @transform_10(%arg0: i32, %arg1: i32) -> (i32, i32, i32) {
    %c0_i32 = arith.constant 0 : i32
    %c0_i32_0 = arith.constant 0 : i32
    %c0_i32_1 = arith.constant 0 : i32
    return %arg1, %c0_i32, %c0_i32_0 : i32, i32, i32
  }
  func.func @transform_11(%arg0: i32, %arg1: i32) -> (i32, i32, i32) {
    %c0_i32 = arith.constant 0 : i32
    %c0_i32_0 = arith.constant 0 : i32
    %c0_i32_1 = arith.constant 0 : i32
    return %arg1, %c0_i32, %c0_i32_0 : i32, i32, i32
  }
  func.func @transform_12(%arg0: i32, %arg1: i32) -> (i32, i32, i32) {
    %c0_i32 = arith.constant 0 : i32
    %c0_i32_0 = arith.constant 0 : i32
    %c0_i32_1 = arith.constant 0 : i32
    return %arg1, %c0_i32, %c0_i32_0 : i32, i32, i32
  }
  func.func @transform_13(%arg0: i32, %arg1: i32) -> (i32, i32) {
    %c0_i32 = arith.constant 0 : i32
    %c0_i32_0 = arith.constant 0 : i32
    %c0_i32_1 = arith.constant 0 : i32
    return %c0_i32, %c0_i32_0 : i32, i32
  }
  func.func @transform_14(%arg0: i32, %arg1: i32) -> (i32, i32) {
    %c0_i32 = arith.constant 0 : i32
    %c0_i32_0 = arith.constant 0 : i32
    %c0_i32_1 = arith.constant 0 : i32
    return %c0_i32, %c0_i32_0 : i32, i32
  }
  func.func @transform_15(%arg0: i32, %arg1: i32) -> (i32, i32, i32) {
    %c0_i32 = arith.constant 0 : i32
    %c0_i32_0 = arith.constant 0 : i32
    %c0_i32_1 = arith.constant 0 : i32
    return %arg0, %c0_i32, %c0_i32_0 : i32, i32, i32
  }
  func.func @transform_16(%arg0: i32, %arg1: i32) -> (i32, i32, i32, i32) {
    %c0_i32 = arith.constant 0 : i32
    %c0_i32_0 = arith.constant 0 : i32
    %c0_i32_1 = arith.constant 0 : i32
    %c0_i32_2 = arith.constant 0 : i32
    return %arg0, %c0_i32, %c0_i32_0, %c0_i32_1 : i32, i32, i32, i32
  }
}

</mosaic_0001>

<llo_original>
// kernel: transformer_encoder_forward.1
$region0: #{transformer_encoder_forward.1}
  #allocation0 [shape = 'u32[]', space=smem, size = 0x4, offset = 0x4, fixed_abs, tag = 'smem constant byte address 0x4 - core index']
  #allocation1 [shape = 'u32[144,128]{1,0:T(1,128)}', space=vmem, size = 0x12000, scoped, tag = 'internal scratch']
  #allocation2 [shape = 'f32[16,128]{1,0:T(8,128)}', space=vmem, size = 0x2000, scoped, tag = 'scratch operand']
  %s0 = inlined_call_operand.hbm [shape: f32[2,16,128], index: 0, kind: input, shape index: {}]
  %s1 = inlined_call_operand.hbm [shape: bf16[2,128,384], index: 1, kind: input, shape index: {}]
  %s2 = inlined_call_operand.vmem [shape: f32[2,1,384], index: 2, kind: input, shape index: {}]
  %s3 = inlined_call_operand.hbm [shape: bf16[2,128,128], index: 3, kind: input, shape index: {}]
  %s4 = inlined_call_operand.vmem [shape: f32[2,1,128], index: 4, kind: input, shape index: {}]
  %s5 = inlined_call_operand.vmem [shape: f32[2,1,128], index: 5, kind: input, shape index: {}]
  %s6 = inlined_call_operand.hbm [shape: f32[2,1,128], index: 6, kind: input, shape index: {}]
  %s7 = inlined_call_operand.hbm [shape: bf16[2,128,256], index: 7, kind: input, shape index: {}]
  %s8 = inlined_call_operand.hbm [shape: f32[2,1,256], index: 8, kind: input, shape index: {}]
  %s9 = inlined_call_operand.hbm [shape: bf16[2,256,128], index: 9, kind: input, shape index: {}]
  %s10 = inlined_call_operand.hbm [shape: f32[2,1,128], index: 10, kind: input, shape index: {}]
  %s11 = inlined_call_operand.vmem [shape: f32[2,1,128], index: 11, kind: input, shape index: {}]
  %s12 = inlined_call_operand.vmem [shape: f32[2,1,128], index: 12, kind: input, shape index: {}]
  %s13 = inlined_call_operand.vmem [shape: f32[1,128], index: 13, kind: input, shape index: {}]
  %s14 = inlined_call_operand.vmem [shape: f32[1,128], index: 14, kind: input, shape index: {}]
  %s15 = inlined_call_operand.hbm [shape: f32[2,16,128], index: 15, kind: output, shape index: {0}]
  %s16 = inlined_call_operand.hbm [shape: f32[2,4,16,16], index: 16, kind: output, shape index: {1}]
  %17 = xla_tuple %s15, %s16
  %s18 = sld [smem:[#allocation0]]
  $region141: #{transformer_encoder_forward.1} parent=0
    _
  %s20 = ssub.s32 1, %s18
  %s21 = scalar_select 0, %s20, %s18
  $region1: #{transformer_encoder_forward.1} parent=0
    #allocation3 [shape = 'u8[16384]{0}', space=vmem, size = 0x4000, scoped, tag = 'input window, operand 0']
    #allocation4 [shape = 's32[2]{0}', space=sflag, size = 0x8, scoped, tag = 'scoped memory for transformer_encoder_forward.1']
    #allocation5 [shape = 's32[2]{0}', space=sflag, size = 0x8, scoped, tag = 'scoped memory for transformer_encoder_forward.1']
    #allocation6 [shape = 'u8[196608]{0}', space=vmem, size = 0x30000, scoped, tag = 'input window, operand 1']
    #allocation7 [shape = 's32[2]{0}', space=sflag, size = 0x8, scoped, tag = 'scoped memory for transformer_encoder_forward.1']
    #allocation8 [shape = 'u8[65536]{0}', space=vmem, size = 0x10000, scoped, tag = 'input window, operand 3']
    #allocation9 [shape = 'u8[1024]{0}', space=vmem, size = 0x400, scoped, tag = 'input window, operand 6']
    #allocation10 [shape = 's32[2]{0}', space=sflag, size = 0x8, scoped, tag = 'scoped memory for transformer_encoder_forward.1']
    #allocation11 [shape = 'u8[131072]{0}', space=vmem, size = 0x20000, scoped, tag = 'input window, operand 7']
    #allocation12 [shape = 'u8[2048]{0}', space=vmem, size = 0x800, scoped, tag = 'input window, operand 8']
    #allocation13 [shape = 's32[2]{0}', space=sflag, size = 0x8, scoped, tag = 'scoped memory for transformer_encoder_forward.1']
    #allocation14 [shape = 'u8[131072]{0}', space=vmem, size = 0x20000, scoped, tag = 'input window, operand 9']
    #allocation15 [shape = 'u8[1024]{0}', space=vmem, size = 0x400, scoped, tag = 'input window, operand 10']
    #allocation16 [shape = 's32[2]{0}', space=sflag, size = 0x8, scoped, tag = 'scoped memory for transformer_encoder_forward.1']
    #allocation17 [shape = 'u8[16384]{0}', space=vmem, size = 0x4000, scoped, tag = 'output window, operand 0']
    #allocation18 [shape = 'u8[65536]{0}', space=vmem, size = 0x10000, scoped, tag = 'output window, operand 1']
    #allocation19 [shape = 's32[2]{0}', space=sflag, size = 0x8, scoped, tag = 'scoped memory for transformer_encoder_forward.1']
    %22 = vsyncpa [#allocation4], 0
    %s23 = scalar_lea.sflag [#allocation4], 1
    %24 = vsyncpa %s23, 0
    %25 = vsyncpa [#allocation7], 0
    %s26 = scalar_lea.sflag [#allocation7], 1
    %27 = vsyncpa %s26, 0
    %28 = vsyncpa [#allocation10], 0
    %s29 = scalar_lea.sflag [#allocation10], 1
    %30 = vsyncpa %s29, 0
    %31 = vsyncpa [#allocation13], 0
    %s32 = scalar_lea.sflag [#allocation13], 1
    %33 = vsyncpa %s32, 0
    %34 = vsyncpa [#allocation16], 0
    %s35 = scalar_lea.sflag [#allocation16], 1
    %36 = vsyncpa %s35, 0
    %37 = vsyncpa [#allocation5], 0
    %s38 = scalar_lea.sflag [#allocation5], 1
    %39 = vsyncpa %s38, 0
    %40 = vsyncpa [#allocation19], 0
    %s41 = scalar_lea.sflag [#allocation19], 1
    %42 = vsyncpa %s41, 0
    loop: start=0, step=1, limit=6
    $region2: #{transformer_encoder_forward.1} parent=1 // loop_pre_header
      _
    $region3: #{transformer_encoder_forward.1} parent=1 // loop_header
      %s44 = sphi 0, %s48
      %p45 = scmp.ge.s32.totalorder %s44, 6
      %s51 = sphi 0, %s63
      %s52 = sphi 0, %s59
      %s53 = sphi 0, %s51
      %s54 = sphi 0, %s52
      %s55 = sphi 0, %s53
      %s56 = sphi 0, %s54
      %s66 = sphi 0, %s68
      %s69 = sphi 0, %s66
      %s70 = sphi 0, %s69
      %s86 = sphi 0, %s70
      %s92 = sphi 0, %s94
      %s95 = sphi 0, %s92
      %s96 = sphi 0, %s95
      %s112 = sphi 0, %s96
      %s118 = sphi 0, %s120
      %s121 = sphi 0, %s118
      %s122 = sphi 0, %s121
      %s138 = sphi 0, %s122
      %s144 = sphi 0, %s146
      %s147 = sphi 0, %s144
      %s148 = sphi 0, %s147
      %s164 = sphi 0, %s148
      %s170 = sphi 0, %s172
      %s173 = sphi 0, %s170
      %s174 = sphi 0, %s173
      %s190 = sphi 0, %s174
      %s196 = sphi 0, %s198
      %s199 = sphi 0, %s196
      %s200 = sphi 0, %s199
      %s216 = sphi 0, %s200
      %s222 = sphi 0, %s224
      %s225 = sphi 0, %s222
      %s226 = sphi 0, %s225
      %s242 = sphi 0, %s226
      %s248 = sphi 0, %s250
      %s251 = sphi 0, %s248
      %s252 = sphi 0, %s251
      %s268 = sphi 0, %s252
      %s274 = sphi 0, %s276
      %s277 = sphi 0, %s274
      %s278 = sphi 0, %s277
      %s294 = sphi 0, %s278
      %s300 = sphi 0, %s302
      %s303 = sphi 0, %s300
      %s304 = sphi 0, %s303
      %s320 = sphi 0, %s304
      %s326 = sphi 0, %s328
      %s329 = sphi 0, %s326
      %s330 = sphi 0, %s329
      %s346 = sphi 0, %s330
      %s352 = sphi 0, %s354
      %s355 = sphi 0, %s352
      %s356 = sphi 0, %s355
      %s372 = sphi 0, %s356
      %s378 = sphi 0, %s380
      %s381 = sphi 0, %s378
      %s382 = sphi 0, %s381
      %s398 = sphi 0, %s382
      %s402 = sphi 0, %s402
      %s404 = sphi 0, %s402
      %s405 = sphi 0, %s404
      %s419 = sphi 0, %s405
      %s423 = sphi 0, %s423
      %s425 = sphi 0, %s423
      %s426 = sphi 0, %s425
      %s440 = sphi 0, %s426
      %s446 = sphi 0, %s448
      %s449 = sphi 0, %s446
      %s450 = sphi 0, %s449
      %s466 = sphi 0, %s450
      %s472 = sphi 0, %s474
      %s475 = sphi 0, %s472
      %s476 = sphi 0, %s475
      %s492 = sphi 0, %s476
    $region4: #{transformer_encoder_forward.1} parent=1 // loop_header_branch
      %47 = sbr.rel (%p45) target = $region8
    $region5: #{transformer_encoder_forward.1} parent=1 // loop_body
      %s49 = ssub.s32 %s44, 1
      %s50 = ssub.s32 %s44, 2
      %s57 = sadd.s32 1, %s52
      %p58 = scmp.ge.s32.totalorder %s57, 2
      %s59 = scalar_select %p58, 0, %s57
      %s60 = sadd.s32 1, %s51
      %s61 = scalar_select %p58, %s60, %s51
      %p62 = scmp.ge.s32.totalorder %s61, 2
      %s63 = scalar_select %p62, 0, %s61
      %s64 = ssub.s32 %s51, %s63
      %p65 = scmp.eq.s32.totalorder %s64, 0
      %s67 = sadd.s32 %s66, 1
      %s68 = scalar_select %p65, %s66, %s67
      %p71 = pneg %p65
      %p72 = scmp.eq.s32.totalorder %s44, 3
      %p73 = por %p71, %p72
      %p74 = scmp.ne.s32.totalorder %s66, %s69
      %p75 = scmp.eq.s32.totalorder %s44, 0
      %p76 = por %p74, %p75
      %p77 = scmp.ne.s32.totalorder %s66, %s69
      %p78 = scmp.eq.s32.totalorder %s49, 3
      %p79 = por %p77, %p78
      %p80 = scmp.ne.s32.totalorder %s69, %s70
      %p81 = scmp.eq.s32.totalorder %s49, 0
      %p82 = por %p80, %p81
      %p83 = scmp.ne.s32.totalorder %s69, %s70
      %p84 = scmp.eq.s32.totalorder %s50, 3
      %p85 = por %p83, %p84
      %p87 = scmp.ne.s32.totalorder %s70, %s86
      %p88 = scmp.eq.s32.totalorder %s50, 0
      %p89 = por %p87, %p88
      %s90 = ssub.s32 %s52, %s59
      %p91 = scmp.eq.s32.totalorder %s90, 0
      %s93 = sadd.s32 %s92, 1
      %s94 = scalar_select %p91, %s92, %s93
      %p97 = pneg %p91
      %p98 = scmp.eq.s32.totalorder %s44, 3
      %p99 = por %p97, %p98
      %p100 = scmp.ne.s32.totalorder %s92, %s95
      %p101 = scmp.eq.s32.totalorder %s44, 0
      %p102 = por %p100, %p101
      %p103 = scmp.ne.s32.totalorder %s92, %s95
      %p104 = scmp.eq.s32.totalorder %s49, 3
      %p105 = por %p103, %p104
      %p106 = scmp.ne.s32.totalorder %s95, %s96
      %p107 = scmp.eq.s32.totalorder %s49, 0
      %p108 = por %p106, %p107
      %p109 = scmp.ne.s32.totalorder %s95, %s96
      %p110 = scmp.eq.s32.totalorder %s50, 3
      %p111 = por %p109, %p110
      %p113 = scmp.ne.s32.totalorder %s96, %s112
      %p114 = scmp.eq.s32.totalorder %s50, 0
      %p115 = por %p113, %p114
      %s116 = ssub.s32 %s52, %s59
      %p117 = scmp.eq.s32.totalorder %s116, 0
      %s119 = sadd.s32 %s118, 1
      %s120 = scalar_select %p117, %s118, %s119
      %p123 = pneg %p117
      %p124 = scmp.eq.s32.totalorder %s44, 3
      %p125 = por %p123, %p124
      %p126 = scmp.ne.s32.totalorder %s118, %s121
      %p127 = scmp.eq.s32.totalorder %s44, 0
      %p128 = por %p126, %p127
      %p129 = scmp.ne.s32.totalorder %s118, %s121
      %p130 = scmp.eq.s32.totalorder %s49, 3
      %p131 = por %p129, %p130
      %p132 = scmp.ne.s32.totalorder %s121, %s122
      %p133 = scmp.eq.s32.totalorder %s49, 0
      %p134 = por %p132, %p133
      %p135 = scmp.ne.s32.totalorder %s121, %s122
      %p136 = scmp.eq.s32.totalorder %s50, 3
      %p137 = por %p135, %p136
      %p139 = scmp.ne.s32.totalorder %s122, %s138
      %p140 = scmp.eq.s32.totalorder %s50, 0
      %p141 = por %p139, %p140
      %s142 = ssub.s32 %s52, %s59
      %p143 = scmp.eq.s32.totalorder %s142, 0
      %s145 = sadd.s32 %s144, 1
      %s146 = scalar_select %p143, %s144, %s145
      %p149 = pneg %p143
      %p150 = scmp.eq.s32.totalorder %s44, 3
      %p151 = por %p149, %p150
      %p152 = scmp.ne.s32.totalorder %s144, %s147
      %p153 = scmp.eq.s32.totalorder %s44, 0
      %p154 = por %p152, %p153
      %p155 = scmp.ne.s32.totalorder %s144, %s147
      %p156 = scmp.eq.s32.totalorder %s49, 3
      %p157 = por %p155, %p156
      %p158 = scmp.ne.s32.totalorder %s147, %s148
      %p159 = scmp.eq.s32.totalorder %s49, 0
      %p160 = por %p158, %p159
      %p161 = scmp.ne.s32.totalorder %s147, %s148
      %p162 = scmp.eq.s32.totalorder %s50, 3
      %p163 = por %p161, %p162
      %p165 = scmp.ne.s32.totalorder %s148, %s164
      %p166 = scmp.eq.s32.totalorder %s50, 0
      %p167 = por %p165, %p166
      %s168 = ssub.s32 %s52, %s59
      %p169 = scmp.eq.s32.totalorder %s168, 0
      %s171 = sadd.s32 %s170, 1
      %s172 = scalar_select %p169, %s170, %s171
      %p175 = pneg %p169
      %p176 = scmp.eq.s32.totalorder %s44, 3
      %p177 = por %p175, %p176
      %p178 = scmp.ne.s32.totalorder %s170, %s173
      %p179 = scmp.eq.s32.totalorder %s44, 0
      %p180 = por %p178, %p179
      %p181 = scmp.ne.s32.totalorder %s170, %s173
      %p182 = scmp.eq.s32.totalorder %s49, 3
      %p183 = por %p181, %p182
      %p184 = scmp.ne.s32.totalorder %s173, %s174
      %p185 = scmp.eq.s32.totalorder %s49, 0
      %p186 = por %p184, %p185
      %p187 = scmp.ne.s32.totalorder %s173, %s174
      %p188 = scmp.eq.s32.totalorder %s50, 3
      %p189 = por %p187, %p188
      %p191 = scmp.ne.s32.totalorder %s174, %s190
      %p192 = scmp.eq.s32.totalorder %s50, 0
      %p193 = por %p191, %p192
      %s194 = ssub.s32 %s52, %s59
      %p195 = scmp.eq.s32.totalorder %s194, 0
      %s197 = sadd.s32 %s196, 1
      %s198 = scalar_select %p195, %s196, %s197
      %p201 = pneg %p195
      %p202 = scmp.eq.s32.totalorder %s44, 3
      %p203 = por %p201, %p202
      %p204 = scmp.ne.s32.totalorder %s196, %s199
      %p205 = scmp.eq.s32.totalorder %s44, 0
      %p206 = por %p204, %p205
      %p207 = scmp.ne.s32.totalorder %s196, %s199
      %p208 = scmp.eq.s32.totalorder %s49, 3
      %p209 = por %p207, %p208
      %p210 = scmp.ne.s32.totalorder %s199, %s200
      %p211 = scmp.eq.s32.totalorder %s49, 0
      %p212 = por %p210, %p211
      %p213 = scmp.ne.s32.totalorder %s199, %s200
      %p214 = scmp.eq.s32.totalorder %s50, 3
      %p215 = por %p213, %p214
      %p217 = scmp.ne.s32.totalorder %s200, %s216
      %p218 = scmp.eq.s32.totalorder %s50, 0
      %p219 = por %p217, %p218
      %s220 = ssub.s32 %s52, %s59
      %p221 = scmp.eq.s32.totalorder %s220, 0
      %s223 = sadd.s32 %s222, 1
      %s224 = scalar_select %p221, %s222, %s223
      %p227 = pneg %p221
      %p228 = scmp.eq.s32.totalorder %s44, 3
      %p229 = por %p227, %p228
      %p230 = scmp.ne.s32.totalorder %s222, %s225
      %p231 = scmp.eq.s32.totalorder %s44, 0
      %p232 = por %p230, %p231
      %p233 = scmp.ne.s32.totalorder %s222, %s225
      %p234 = scmp.eq.s32.totalorder %s49, 3
      %p235 = por %p233, %p234
      %p236 = scmp.ne.s32.totalorder %s225, %s226
      %p237 = scmp.eq.s32.totalorder %s49, 0
      %p238 = por %p236, %p237
      %p239 = scmp.ne.s32.totalorder %s225, %s226
      %p240 = scmp.eq.s32.totalorder %s50, 3
      %p241 = por %p239, %p240
      %p243 = scmp.ne.s32.totalorder %s226, %s242
      %p244 = scmp.eq.s32.totalorder %s50, 0
      %p245 = por %p243, %p244
      %s246 = ssub.s32 %s52, %s59
      %p247 = scmp.eq.s32.totalorder %s246, 0
      %s249 = sadd.s32 %s248, 1
      %s250 = scalar_select %p247, %s248, %s249
      %p253 = pneg %p247
      %p254 = scmp.eq.s32.totalorder %s44, 3
      %p255 = por %p253, %p254
      %p256 = scmp.ne.s32.totalorder %s248, %s251
      %p257 = scmp.eq.s32.totalorder %s44, 0
      %p258 = por %p256, %p257
      %p259 = scmp.ne.s32.totalorder %s248, %s251
      %p260 = scmp.eq.s32.totalorder %s49, 3
      %p261 = por %p259, %p260
      %p262 = scmp.ne.s32.totalorder %s251, %s252
      %p263 = scmp.eq.s32.totalorder %s49, 0
      %p264 = por %p262, %p263
      %p265 = scmp.ne.s32.totalorder %s251, %s252
      %p266 = scmp.eq.s32.totalorder %s50, 3
      %p267 = por %p265, %p266
      %p269 = scmp.ne.s32.totalorder %s252, %s268
      %p270 = scmp.eq.s32.totalorder %s50, 0
      %p271 = por %p269, %p270
      %s272 = ssub.s32 %s52, %s59
      %p273 = scmp.eq.s32.totalorder %s272, 0
      %s275 = sadd.s32 %s274, 1
      %s276 = scalar_select %p273, %s274, %s275
      %p279 = pneg %p273
      %p280 = scmp.eq.s32.totalorder %s44, 3
      %p281 = por %p279, %p280
      %p282 = scmp.ne.s32.totalorder %s274, %s277
      %p283 = scmp.eq.s32.totalorder %s44, 0
      %p284 = por %p282, %p283
      %p285 = scmp.ne.s32.totalorder %s274, %s277
      %p286 = scmp.eq.s32.totalorder %s49, 3
      %p287 = por %p285, %p286
      %p288 = scmp.ne.s32.totalorder %s277, %s278
      %p289 = scmp.eq.s32.totalorder %s49, 0
      %p290 = por %p288, %p289
      %p291 = scmp.ne.s32.totalorder %s277, %s278
      %p292 = scmp.eq.s32.totalorder %s50, 3
      %p293 = por %p291, %p292
      %p295 = scmp.ne.s32.totalorder %s278, %s294
      %p296 = scmp.eq.s32.totalorder %s50, 0
      %p297 = por %p295, %p296
      %s298 = ssub.s32 %s52, %s59
      %p299 = scmp.eq.s32.totalorder %s298, 0
      %s301 = sadd.s32 %s300, 1
      %s302 = scalar_select %p299, %s300, %s301
      %p305 = pneg %p299
      %p306 = scmp.eq.s32.totalorder %s44, 3
      %p307 = por %p305, %p306
      %p308 = scmp.ne.s32.totalorder %s300, %s303
      %p309 = scmp.eq.s32.totalorder %s44, 0
      %p310 = por %p308, %p309
      %p311 = scmp.ne.s32.totalorder %s300, %s303
      %p312 = scmp.eq.s32.totalorder %s49, 3
      %p313 = por %p311, %p312
      %p314 = scmp.ne.s32.totalorder %s303, %s304
      %p315 = scmp.eq.s32.totalorder %s49, 0
      %p316 = por %p314, %p315
      %p317 = scmp.ne.s32.totalorder %s303, %s304
      %p318 = scmp.eq.s32.totalorder %s50, 3
      %p319 = por %p317, %p318
      %p321 = scmp.ne.s32.totalorder %s304, %s320
      %p322 = scmp.eq.s32.totalorder %s50, 0
      %p323 = por %p321, %p322
      %s324 = ssub.s32 %s52, %s59
      %p325 = scmp.eq.s32.totalorder %s324, 0
      %s327 = sadd.s32 %s326, 1
      %s328 = scalar_select %p325, %s326, %s327
      %p331 = pneg %p325
      %p332 = scmp.eq.s32.totalorder %s44, 3
      %p333 = por %p331, %p332
      %p334 = scmp.ne.s32.totalorder %s326, %s329
      %p335 = scmp.eq.s32.totalorder %s44, 0
      %p336 = por %p334, %p335
      %p337 = scmp.ne.s32.totalorder %s326, %s329
      %p338 = scmp.eq.s32.totalorder %s49, 3
      %p339 = por %p337, %p338
      %p340 = scmp.ne.s32.totalorder %s329, %s330
      %p341 = scmp.eq.s32.totalorder %s49, 0
      %p342 = por %p340, %p341
      %p343 = scmp.ne.s32.totalorder %s329, %s330
      %p344 = scmp.eq.s32.totalorder %s50, 3
      %p345 = por %p343, %p344
      %p347 = scmp.ne.s32.totalorder %s330, %s346
      %p348 = scmp.eq.s32.totalorder %s50, 0
      %p349 = por %p347, %p348
      %s350 = ssub.s32 %s52, %s59
      %p351 = scmp.eq.s32.totalorder %s350, 0
      %s353 = sadd.s32 %s352, 1
      %s354 = scalar_select %p351, %s352, %s353
      %p357 = pneg %p351
      %p358 = scmp.eq.s32.totalorder %s44, 3
      %p359 = por %p357, %p358
      %p360 = scmp.ne.s32.totalorder %s352, %s355
      %p361 = scmp.eq.s32.totalorder %s44, 0
      %p362 = por %p360, %p361
      %p363 = scmp.ne.s32.totalorder %s352, %s355
      %p364 = scmp.eq.s32.totalorder %s49, 3
      %p365 = por %p363, %p364
      %p366 = scmp.ne.s32.totalorder %s355, %s356
      %p367 = scmp.eq.s32.totalorder %s49, 0
      %p368 = por %p366, %p367
      %p369 = scmp.ne.s32.totalorder %s355, %s356
      %p370 = scmp.eq.s32.totalorder %s50, 3
      %p371 = por %p369, %p370
      %p373 = scmp.ne.s32.totalorder %s356, %s372
      %p374 = scmp.eq.s32.totalorder %s50, 0
      %p375 = por %p373, %p374
      %s376 = ssub.s32 %s52, %s59
      %p377 = scmp.eq.s32.totalorder %s376, 0
      %s379 = sadd.s32 %s378, 1
      %s380 = scalar_select %p377, %s378, %s379
      %p383 = pneg %p377
      %p384 = scmp.eq.s32.totalorder %s44, 3
      %p385 = por %p383, %p384
      %p386 = scmp.ne.s32.totalorder %s378, %s381
      %p387 = scmp.eq.s32.totalorder %s44, 0
      %p388 = por %p386, %p387
      %p389 = scmp.ne.s32.totalorder %s378, %s381
      %p390 = scmp.eq.s32.totalorder %s49, 3
      %p391 = por %p389, %p390
      %p392 = scmp.ne.s32.totalorder %s381, %s382
      %p393 = scmp.eq.s32.totalorder %s49, 0
      %p394 = por %p392, %p393
      %p395 = scmp.ne.s32.totalorder %s381, %s382
      %p396 = scmp.eq.s32.totalorder %s50, 3
      %p397 = por %p395, %p396
      %p399 = scmp.ne.s32.totalorder %s382, %s398
      %p400 = scmp.eq.s32.totalorder %s50, 0
      %p401 = por %p399, %p400
      %s403 = sadd.s32 %s402, 1
      %p406 = scmp.eq.s32.totalorder %s44, 3
      %p407 = scmp.ne.s32.totalorder %s402, %s404
      %p408 = scmp.eq.s32.totalorder %s44, 0
      %p409 = por %p407, %p408
      %p410 = scmp.ne.s32.totalorder %s402, %s404
      %p411 = scmp.eq.s32.totalorder %s49, 3
      %p412 = por %p410, %p411
      %p413 = scmp.ne.s32.totalorder %s404, %s405
      %p414 = scmp.eq.s32.totalorder %s49, 0
      %p415 = por %p413, %p414
      %p416 = scmp.ne.s32.totalorder %s404, %s405
      %p417 = scmp.eq.s32.totalorder %s50, 3
      %p418 = por %p416, %p417
      %p420 = scmp.ne.s32.totalorder %s405, %s419
      %p421 = scmp.eq.s32.totalorder %s50, 0
      %p422 = por %p420, %p421
      %s424 = sadd.s32 %s423, 1
      %p427 = scmp.eq.s32.totalorder %s44, 3
      %p428 = scmp.ne.s32.totalorder %s423, %s425
      %p429 = scmp.eq.s32.totalorder %s44, 0
      %p430 = por %p428, %p429
      %p431 = scmp.ne.s32.totalorder %s423, %s425
      %p432 = scmp.eq.s32.totalorder %s49, 3
      %p433 = por %p431, %p432
      %p434 = scmp.ne.s32.totalorder %s425, %s426
      %p435 = scmp.eq.s32.totalorder %s49, 0
      %p436 = por %p434, %p435
      %p437 = scmp.ne.s32.totalorder %s425, %s426
      %p438 = scmp.eq.s32.totalorder %s50, 3
      %p439 = por %p437, %p438
      %p441 = scmp.ne.s32.totalorder %s426, %s440
      %p442 = scmp.eq.s32.totalorder %s50, 0
      %p443 = por %p441, %p442
      %s444 = ssub.s32 %s51, %s63
      %p445 = scmp.eq.s32.totalorder %s444, 0
      %s447 = sadd.s32 %s446, 1
      %s448 = scalar_select %p445, %s446, %s447
      %p451 = pneg %p445
      %p452 = scmp.eq.s32.totalorder %s44, 3
      %p453 = por %p451, %p452
      %p454 = scmp.ne.s32.totalorder %s446, %s449
      %p455 = scmp.eq.s32.totalorder %s44, 0
      %p456 = por %p454, %p455
      %p457 = scmp.ne.s32.totalorder %s446, %s449
      %p458 = scmp.eq.s32.totalorder %s49, 3
      %p459 = por %p457, %p458
      %p460 = scmp.ne.s32.totalorder %s449, %s450
      %p461 = scmp.eq.s32.totalorder %s49, 0
      %p462 = por %p460, %p461
      %p463 = scmp.ne.s32.totalorder %s449, %s450
      %p464 = scmp.eq.s32.totalorder %s50, 3
      %p465 = por %p463, %p464
      %p467 = scmp.ne.s32.totalorder %s450, %s466
      %p468 = scmp.eq.s32.totalorder %s50, 0
      %p469 = por %p467, %p468
      %s470 = ssub.s32 %s51, %s63
      %p471 = scmp.eq.s32.totalorder %s470, 0
      %s473 = sadd.s32 %s472, 1
      %s474 = scalar_select %p471, %s472, %s473
      %p477 = pneg %p471
      %p478 = scmp.eq.s32.totalorder %s44, 3
      %p479 = por %p477, %p478
      %p480 = scmp.ne.s32.totalorder %s472, %s475
      %p481 = scmp.eq.s32.totalorder %s44, 0
      %p482 = por %p480, %p481
      %p483 = scmp.ne.s32.totalorder %s472, %s475
      %p484 = scmp.eq.s32.totalorder %s49, 3
      %p485 = por %p483, %p484
      %p486 = scmp.ne.s32.totalorder %s475, %s476
      %p487 = scmp.eq.s32.totalorder %s49, 0
      %p488 = por %p486, %p487
      %p489 = scmp.ne.s32.totalorder %s475, %s476
      %p490 = scmp.eq.s32.totalorder %s50, 3
      %p491 = por %p489, %p490
      %p493 = scmp.ne.s32.totalorder %s476, %s492
      %p494 = scmp.eq.s32.totalorder %s50, 0
      %p495 = por %p493, %p494
      %p496 = scmp.le.s32.totalorder 1, %s44
      %p497 = scmp.lt.s32.totalorder %s44, 5
      %p498 = pnand %p496, %p497
      %p499 = pneg %p498
      // Predicated region
      $region9: #{transformer_encoder_forward.1} parent=5 // pred_check
        _
      $region10: #{transformer_encoder_forward.1} parent=5 // pred_check_branch
        %501 = sbr.rel (%p498) target = $region12
      $region11: #{transformer_encoder_forward.1} parent=5 // pred_region
        %s502 = ssub.s32 %s44, 1
        // Predicated region
        $region13: #{transformer_encoder_forward.1} parent=11 // pred_check
          %p503 = pneg %p415
        $region14: #{transformer_encoder_forward.1} parent=11 // pred_check_branch
          %505 = sbr.rel (%p503) target = $region16
        $region15: #{transformer_encoder_forward.1} parent=11 // pred_region
          _
        $region16: #{transformer_encoder_forward.1} parent=11 // pred_fallthru
          _
        // Predicated region
        $region17: #{transformer_encoder_forward.1} parent=11 // pred_check
          %p506 = pneg %p436
        $region18: #{transformer_encoder_forward.1} parent=11 // pred_check_branch
          %508 = sbr.rel (%p506) target = $region20
        $region19: #{transformer_encoder_forward.1} parent=11 // pred_region
          _
        $region20: #{transformer_encoder_forward.1} parent=11 // pred_fallthru
          _
      $region12: #{transformer_encoder_forward.1} parent=5 // pred_fallthru
        _
      %p509 = scmp.lt.s32.totalorder %s44, 4
      // Predicated region
      $region21: #{transformer_encoder_forward.1} parent=5 // pred_check
        %p510 = pneg %p509
      $region22: #{transformer_encoder_forward.1} parent=5 // pred_check_branch
        %512 = sbr.rel (%p510) target = $region24
      $region23: #{transformer_encoder_forward.1} parent=5 // pred_region
        // Predicated region
        $region25: #{transformer_encoder_forward.1} parent=23 // pred_check
          %p513 = pneg %p76
        $region26: #{transformer_encoder_forward.1} parent=23 // pred_check_branch
          %515 = sbr.rel (%p513) target = $region28
        $region27: #{transformer_encoder_forward.1} parent=23 // pred_region
          %s516 = sand.u32 %s66, 1
          %s517 = scalar_lea.sflag [#allocation4], %s516
          %s518 = sand.u32 %s66, 1
          %s519 = smul.addr %s518, 16
          %s520 = scalar_lea.vmem [#allocation3], %s519
          %s522 = ssub.s32 256, 256
          %523 = vsyncadd %s517, %s522
          %s524 = smul.addr %s51, 2
          %s525 = smul.addr %s524, 128
          %s526 = scalar_lea.hbm %s0, %s525
          %s527 = sshll.u32 %s520, 4
          %s528 = int_to_ptr.vmem [resolvable:$true] %s527
          %533 = dma.hbm_to_vmem [thread:$0]  %s526, 256, %s528, %s517, 128, 128, 8
        $region28: #{transformer_encoder_forward.1} parent=23 // pred_fallthru
          _
        // Predicated region
        $region29: #{transformer_encoder_forward.1} parent=23 // pred_check
          %p534 = pneg %p102
        $region30: #{transformer_encoder_forward.1} parent=23 // pred_check_branch
          %536 = sbr.rel (%p534) target = $region32
        $region31: #{transformer_encoder_forward.1} parent=23 // pred_region
          %s537 = sand.u32 %s44, 1
          %s538 = scalar_lea.sflag [#allocation7], %s537
          %s539 = sand.u32 %s92, 1
          %s540 = smul.addr %s539, 192
          %s541 = scalar_lea.vmem [#allocation6], %s540
          %s543 = ssub.s32 3072, 3072
          %544 = vsyncadd %s538, %s543
          %s545 = smul.addr %s52, 48
          %s546 = smul.addr %s545, 64
          %s547 = scalar_lea.hbm %s1, %s546
          %s548 = sshll.u32 %s541, 4
          %s549 = int_to_ptr.vmem [resolvable:$true] %s548
          %554 = dma.hbm_to_vmem [thread:$0]  %s547, 3072, %s549, %s538, 192, 192, 12
        $region32: #{transformer_encoder_forward.1} parent=23 // pred_fallthru
          _
        // Predicated region
        $region33: #{transformer_encoder_forward.1} parent=23 // pred_check
          %p555 = pneg %p128
        $region34: #{transformer_encoder_forward.1} parent=23 // pred_check_branch
          %557 = sbr.rel (%p555) target = $region36
        $region35: #{transformer_encoder_forward.1} parent=23 // pred_region
          %p558 = scmp.lt.s32.totalorder %s52, 1
          %s559 = scalar_select %p558, %s52, 1
          %s560 = smul.addr %s559, 3
          %s561 = scalar_lea.vmem %s2, %s560
        $region36: #{transformer_encoder_forward.1} parent=23 // pred_fallthru
          _
        // Predicated region
        $region37: #{transformer_encoder_forward.1} parent=23 // pred_check
          %p562 = pneg %p154
        $region38: #{transformer_encoder_forward.1} parent=23 // pred_check_branch
          %564 = sbr.rel (%p562) target = $region40
        $region39: #{transformer_encoder_forward.1} parent=23 // pred_region
          %s565 = sand.u32 %s44, 1
          %s566 = scalar_lea.sflag [#allocation7], %s565
          %s567 = sand.u32 %s144, 1
          %s568 = smul.addr %s567, 64
          %s569 = scalar_lea.vmem [#allocation8], %s568
          %s571 = ssub.s32 1024, 1024
          %572 = vsyncadd %s566, %s571
          %s573 = smul.addr %s52, 16
          %s574 = smul.addr %s573, 64
          %s575 = scalar_lea.hbm %s3, %s574
          %s576 = sshll.u32 %s569, 4
          %s577 = int_to_ptr.vmem [resolvable:$true] %s576
          %582 = dma.hbm_to_vmem [thread:$0]  %s575, 1024, %s577, %s566, 64, 64, 4
        $region40: #{transformer_encoder_forward.1} parent=23 // pred_fallthru
          _
        // Predicated region
        $region41: #{transformer_encoder_forward.1} parent=23 // pred_check
          %p583 = pneg %p180
        $region42: #{transformer_encoder_forward.1} parent=23 // pred_check_branch
          %585 = sbr.rel (%p583) target = $region44
        $region43: #{transformer_encoder_forward.1} parent=23 // pred_region
          %p586 = scmp.lt.s32.totalorder %s52, 1
          %s587 = scalar_select %p586, %s52, 1
          %s588 = scalar_lea.vmem %s4, %s587
        $region44: #{transformer_encoder_forward.1} parent=23 // pred_fallthru
          _
        // Predicated region
        $region45: #{transformer_encoder_forward.1} parent=23 // pred_check
          %p589 = pneg %p206
        $region46: #{transformer_encoder_forward.1} parent=23 // pred_check_branch
          %591 = sbr.rel (%p589) target = $region48
        $region47: #{transformer_encoder_forward.1} parent=23 // pred_region
          %p592 = scmp.lt.s32.totalorder %s52, 1
          %s593 = scalar_select %p592, %s52, 1
          %s594 = scalar_lea.vmem %s5, %s593
        $region48: #{transformer_encoder_forward.1} parent=23 // pred_fallthru
          _
        // Predicated region
        $region49: #{transformer_encoder_forward.1} parent=23 // pred_check
          %p595 = pneg %p232
        $region50: #{transformer_encoder_forward.1} parent=23 // pred_check_branch
          %597 = sbr.rel (%p595) target = $region52
        $region51: #{transformer_encoder_forward.1} parent=23 // pred_region
          %s598 = sand.u32 %s44, 1
          %s599 = scalar_lea.sflag [#allocation10], %s598
          %s600 = sand.u32 %s222, 1
          %s601 = scalar_lea.vmem [#allocation9], %s600
          %s603 = ssub.s32 16, 16
          %604 = vsyncadd %s599, %s603
          %s605 = smul.addr %s52, 16
          %s606 = scalar_lea.hbm %s6, %s605
          %s608 = sshll.u32 %s601, 4
          %s609 = int_to_ptr.vmem [resolvable:$true] %s608
          %611 = dma.hbm_to_vmem [thread:$0]  %s606, 16, %s609, %s599
        $region52: #{transformer_encoder_forward.1} parent=23 // pred_fallthru
          _
        // Predicated region
        $region53: #{transformer_encoder_forward.1} parent=23 // pred_check
          %p612 = pneg %p258
        $region54: #{transformer_encoder_forward.1} parent=23 // pred_check_branch
          %614 = sbr.rel (%p612) target = $region56
        $region55: #{transformer_encoder_forward.1} parent=23 // pred_region
          %s615 = sand.u32 %s44, 1
          %s616 = scalar_lea.sflag [#allocation10], %s615
          %s617 = sand.u32 %s248, 1
          %s618 = smul.addr %s617, 128
          %s619 = scalar_lea.vmem [#allocation11], %s618
          %s621 = ssub.s32 2048, 2048
          %622 = vsyncadd %s616, %s621
          %s623 = smul.addr %s52, 32
          %s624 = smul.addr %s623, 64
          %s625 = scalar_lea.hbm %s7, %s624
          %s626 = sshll.u32 %s619, 4
          %s627 = int_to_ptr.vmem [resolvable:$true] %s626
          %632 = dma.hbm_to_vmem [thread:$0]  %s625, 2048, %s627, %s616, 128, 128, 8
        $region56: #{transformer_encoder_forward.1} parent=23 // pred_fallthru
          _
        // Predicated region
        $region57: #{transformer_encoder_forward.1} parent=23 // pred_check
          %p633 = pneg %p284
        $region58: #{transformer_encoder_forward.1} parent=23 // pred_check_branch
          %635 = sbr.rel (%p633) target = $region60
        $region59: #{transformer_encoder_forward.1} parent=23 // pred_region
          %s636 = sand.u32 %s44, 1
          %s637 = scalar_lea.sflag [#allocation13], %s636
          %s638 = sand.u32 %s274, 1
          %s639 = smul.addr %s638, 2
          %s640 = scalar_lea.vmem [#allocation12], %s639
          %s642 = ssub.s32 32, 32
          %643 = vsyncadd %s637, %s642
          %s644 = smul.addr %s52, 2
          %s645 = smul.addr %s644, 16
          %s646 = scalar_lea.hbm %s8, %s645
          %s648 = sshll.u32 %s640, 4
          %s649 = int_to_ptr.vmem [resolvable:$true] %s648
          %651 = dma.hbm_to_vmem [thread:$0]  %s646, 32, %s649, %s637
        $region60: #{transformer_encoder_forward.1} parent=23 // pred_fallthru
          _
        // Predicated region
        $region61: #{transformer_encoder_forward.1} parent=23 // pred_check
          %p652 = pneg %p310
        $region62: #{transformer_encoder_forward.1} parent=23 // pred_check_branch
          %654 = sbr.rel (%p652) target = $region64
        $region63: #{transformer_encoder_forward.1} parent=23 // pred_region
          %s655 = sand.u32 %s44, 1
          %s656 = scalar_lea.sflag [#allocation13], %s655
          %s657 = sand.u32 %s300, 1
          %s658 = smul.addr %s657, 128
          %s659 = scalar_lea.vmem [#allocation14], %s658
          %s661 = ssub.s32 2048, 2048
          %662 = vsyncadd %s656, %s661
          %s663 = smul.addr %s52, 32
          %s664 = smul.addr %s663, 64
          %s665 = scalar_lea.hbm %s9, %s664
          %s666 = sshll.u32 %s659, 4
          %s667 = int_to_ptr.vmem [resolvable:$true] %s666
          %672 = dma.hbm_to_vmem [thread:$0]  %s665, 2048, %s667, %s656, 64, 64, 4
        $region64: #{transformer_encoder_forward.1} parent=23 // pred_fallthru
          _
        // Predicated region
        $region65: #{transformer_encoder_forward.1} parent=23 // pred_check
          %p673 = pneg %p336
        $region66: #{transformer_encoder_forward.1} parent=23 // pred_check_branch
          %675 = sbr.rel (%p673) target = $region68
        $region67: #{transformer_encoder_forward.1} parent=23 // pred_region
          %s676 = sand.u32 %s326, 1
          %s677 = scalar_lea.sflag [#allocation16], %s676
          %s678 = sand.u32 %s326, 1
          %s679 = scalar_lea.vmem [#allocation15], %s678
          %s681 = ssub.s32 16, 16
          %682 = vsyncadd %s677, %s681
          %s683 = smul.addr %s52, 16
          %s684 = scalar_lea.hbm %s10, %s683
          %s686 = sshll.u32 %s679, 4
          %s687 = int_to_ptr.vmem [resolvable:$true] %s686
          %689 = dma.hbm_to_vmem [thread:$0]  %s684, 16, %s687, %s677
        $region68: #{transformer_encoder_forward.1} parent=23 // pred_fallthru
          _
        // Predicated region
        $region69: #{transformer_encoder_forward.1} parent=23 // pred_check
          %p690 = pneg %p362
        $region70: #{transformer_encoder_forward.1} parent=23 // pred_check_branch
          %692 = sbr.rel (%p690) target = $region72
        $region71: #{transformer_encoder_forward.1} parent=23 // pred_region
          %p693 = scmp.lt.s32.totalorder %s52, 1
          %s694 = scalar_select %p693, %s52, 1
          %s695 = scalar_lea.vmem %s11, %s694
        $region72: #{transformer_encoder_forward.1} parent=23 // pred_fallthru
          _
        // Predicated region
        $region73: #{transformer_encoder_forward.1} parent=23 // pred_check
          %p696 = pneg %p388
        $region74: #{transformer_encoder_forward.1} parent=23 // pred_check_branch
          %698 = sbr.rel (%p696) target = $region76
        $region75: #{transformer_encoder_forward.1} parent=23 // pred_region
          %p699 = scmp.lt.s32.totalorder %s52, 1
          %s700 = scalar_select %p699, %s52, 1
          %s701 = scalar_lea.vmem %s12, %s700
        $region76: #{transformer_encoder_forward.1} parent=23 // pred_fallthru
          _
      $region24: #{transformer_encoder_forward.1} parent=5 // pred_fallthru
        _
      %p702 = scmp.le.s32.totalorder 1, %s44
      %p703 = scmp.lt.s32.totalorder %s44, 5
      %p704 = pnand %p702, %p703
      %p705 = pneg %p704
      // Predicated region
      $region77: #{transformer_encoder_forward.1} parent=5 // pred_check
        _
      $region78: #{transformer_encoder_forward.1} parent=5 // pred_check_branch
        %707 = sbr.rel (%p704) target = $region80
      $region79: #{transformer_encoder_forward.1} parent=5 // pred_region
        %s708 = ssub.s32 %s44, 1
        %s709 = sand.u32 %s69, 1
        %s710 = scalar_lea.sflag [#allocation4], %s709
        %s711 = sand.u32 %s69, 1
        %s712 = smul.addr %s711, 16
        %s713 = scalar_lea.vmem [#allocation3], %s712
        // Predicated region
        $region81: #{transformer_encoder_forward.1} parent=79 // pred_check
          %p714 = pneg %p82
        $region82: #{transformer_encoder_forward.1} parent=79 // pred_check_branch
          %716 = sbr.rel (%p714) target = $region84
        $region83: #{transformer_encoder_forward.1} parent=79 // pred_region
          %717 = dma.done %s710, 256
        $region84: #{transformer_encoder_forward.1} parent=79 // pred_fallthru
          _
        %s718 = sand.u32 %s49, 1
        %s719 = scalar_lea.sflag [#allocation7], %s718
        %s720 = sand.u32 %s95, 1
        %s721 = smul.addr %s720, 192
        %s722 = scalar_lea.vmem [#allocation6], %s721
        // Predicated region
        $region85: #{transformer_encoder_forward.1} parent=79 // pred_check
          %p723 = pneg %p108
        $region86: #{transformer_encoder_forward.1} parent=79 // pred_check_branch
          %725 = sbr.rel (%p723) target = $region88
        $region87: #{transformer_encoder_forward.1} parent=79 // pred_region
          %726 = dma.done %s719, 3072
        $region88: #{transformer_encoder_forward.1} parent=79 // pred_fallthru
          _
        %s727 = sand.u32 %s49, 1
        %s728 = scalar_lea.sflag [#allocation7], %s727
        %s729 = sand.u32 %s147, 1
        %s730 = smul.addr %s729, 64
        %s731 = scalar_lea.vmem [#allocation8], %s730
        // Predicated region
        $region89: #{transformer_encoder_forward.1} parent=79 // pred_check
          %p732 = pneg %p160
        $region90: #{transformer_encoder_forward.1} parent=79 // pred_check_branch
          %734 = sbr.rel (%p732) target = $region92
        $region91: #{transformer_encoder_forward.1} parent=79 // pred_region
          %735 = dma.done %s728, 1024
        $region92: #{transformer_encoder_forward.1} parent=79 // pred_fallthru
          _
        %s736 = sand.u32 %s49, 1
        %s737 = scalar_lea.sflag [#allocation10], %s736
        %s738 = sand.u32 %s225, 1
        %s739 = scalar_lea.vmem [#allocation9], %s738
        // Predicated region
        $region93: #{transformer_encoder_forward.1} parent=79 // pred_check
          %p740 = pneg %p238
        $region94: #{transformer_encoder_forward.1} parent=79 // pred_check_branch
          %742 = sbr.rel (%p740) target = $region96
        $region95: #{transformer_encoder_forward.1} parent=79 // pred_region
          %743 = dma.done %s737, 16
        $region96: #{transformer_encoder_forward.1} parent=79 // pred_fallthru
          _
        %s744 = sand.u32 %s49, 1
        %s745 = scalar_lea.sflag [#allocation10], %s744
        %s746 = sand.u32 %s251, 1
        %s747 = smul.addr %s746, 128
        %s748 = scalar_lea.vmem [#allocation11], %s747
        // Predicated region
        $region97: #{transformer_encoder_forward.1} parent=79 // pred_check
          %p749 = pneg %p264
        $region98: #{transformer_encoder_forward.1} parent=79 // pred_check_branch
          %751 = sbr.rel (%p749) target = $region100
        $region99: #{transformer_encoder_forward.1} parent=79 // pred_region
          %752 = dma.done %s745, 2048
        $region100: #{transformer_encoder_forward.1} parent=79 // pred_fallthru
          _
        %s753 = sand.u32 %s49, 1
        %s754 = scalar_lea.sflag [#allocation13], %s753
        %s755 = sand.u32 %s277, 1
        %s756 = smul.addr %s755, 2
        %s757 = scalar_lea.vmem [#allocation12], %s756
        // Predicated region
        $region101: #{transformer_encoder_forward.1} parent=79 // pred_check
          %p758 = pneg %p290
        $region102: #{transformer_encoder_forward.1} parent=79 // pred_check_branch
          %760 = sbr.rel (%p758) target = $region104
        $region103: #{transformer_encoder_forward.1} parent=79 // pred_region
          %761 = dma.done %s754, 32
        $region104: #{transformer_encoder_forward.1} parent=79 // pred_fallthru
          _
        %s762 = sand.u32 %s49, 1
        %s763 = scalar_lea.sflag [#allocation13], %s762
        %s764 = sand.u32 %s303, 1
        %s765 = smul.addr %s764, 128
        %s766 = scalar_lea.vmem [#allocation14], %s765
        // Predicated region
        $region105: #{transformer_encoder_forward.1} parent=79 // pred_check
          %p767 = pneg %p316
        $region106: #{transformer_encoder_forward.1} parent=79 // pred_check_branch
          %769 = sbr.rel (%p767) target = $region108
        $region107: #{transformer_encoder_forward.1} parent=79 // pred_region
          %770 = dma.done %s763, 2048
        $region108: #{transformer_encoder_forward.1} parent=79 // pred_fallthru
          _
        %s771 = sand.u32 %s329, 1
        %s772 = scalar_lea.sflag [#allocation16], %s771
        %s773 = sand.u32 %s329, 1
        %s774 = scalar_lea.vmem [#allocation15], %s773
        // Predicated region
        $region109: #{transformer_encoder_forward.1} parent=79 // pred_check
          %p775 = pneg %p342
        $region110: #{transformer_encoder_forward.1} parent=79 // pred_check_branch
          %777 = sbr.rel (%p775) target = $region112
        $region111: #{transformer_encoder_forward.1} parent=79 // pred_region
          %778 = dma.done %s772, 16
        $region112: #{transformer_encoder_forward.1} parent=79 // pred_fallthru
          _
        %s779 = sand.u32 %s69, 1
        %s780 = scalar_lea.sflag [#allocation4], %s779
        %s781 = sand.u32 %s69, 1
        %s782 = smul.addr %s781, 16
        %s783 = scalar_lea.vmem [#allocation3], %s782
        %p784 = pneg %p82
        %p785 = pneg %p79
        %s786 = sand.u32 %s49, 1
        %s787 = scalar_lea.sflag [#allocation7], %s786
        %s788 = sand.u32 %s95, 1
        %s789 = smul.addr %s788, 192
        %s790 = scalar_lea.vmem [#allocation6], %s789
        %p791 = pneg %p108
        %p792 = pneg %p105
        %p793 = scmp.lt.s32.totalorder %s54, 1
        %s794 = scalar_select %p793, %s54, 1
        %s795 = smul.addr %s794, 3
        %s796 = scalar_lea.vmem %s2, %s795
        %p797 = pneg %p134
        %p798 = pneg %p131
        %s799 = sand.u32 %s49, 1
        %s800 = scalar_lea.sflag [#allocation7], %s799
        %s801 = sand.u32 %s147, 1
        %s802 = smul.addr %s801, 64
        %s803 = scalar_lea.vmem [#allocation8], %s802
        %p804 = pneg %p160
        %p805 = pneg %p157
        %p806 = scmp.lt.s32.totalorder %s54, 1
        %s807 = scalar_select %p806, %s54, 1
        %s808 = scalar_lea.vmem %s4, %s807
        %p809 = pneg %p186
        %p810 = pneg %p183
        %p811 = scmp.lt.s32.totalorder %s54, 1
        %s812 = scalar_select %p811, %s54, 1
        %s813 = scalar_lea.vmem %s5, %s812
        %p814 = pneg %p212
        %p815 = pneg %p209
        %s816 = sand.u32 %s49, 1
        %s817 = scalar_lea.sflag [#allocation10], %s816
        %s818 = sand.u32 %s225, 1
        %s819 = scalar_lea.vmem [#allocation9], %s818
        %p820 = pneg %p238
        %p821 = pneg %p235
        %s822 = sand.u32 %s49, 1
        %s823 = scalar_lea.sflag [#allocation10], %s822
        %s824 = sand.u32 %s251, 1
        %s825 = smul.addr %s824, 128
        %s826 = scalar_lea.vmem [#allocation11], %s825
        %p827 = pneg %p264
        %p828 = pneg %p261
        %s829 = sand.u32 %s49, 1
        %s830 = scalar_lea.sflag [#allocation13], %s829
        %s831 = sand.u32 %s277, 1
        %s832 = smul.addr %s831, 2
        %s833 = scalar_lea.vmem [#allocation12], %s832
        %p834 = pneg %p290
        %p835 = pneg %p287
        %s836 = sand.u32 %s49, 1
        %s837 = scalar_lea.sflag [#allocation13], %s836
        %s838 = sand.u32 %s303, 1
        %s839 = smul.addr %s838, 128
        %s840 = scalar_lea.vmem [#allocation14], %s839
        %p841 = pneg %p316
        %p842 = pneg %p313
        %s843 = sand.u32 %s329, 1
        %s844 = scalar_lea.sflag [#allocation16], %s843
        %s845 = sand.u32 %s329, 1
        %s846 = scalar_lea.vmem [#allocation15], %s845
        %p847 = pneg %p342
        %p848 = pneg %p339
        %p849 = scmp.lt.s32.totalorder %s54, 1
        %s850 = scalar_select %p849, %s54, 1
        %s851 = scalar_lea.vmem %s11, %s850
        %p852 = pneg %p368
        %p853 = pneg %p365
        %p854 = scmp.lt.s32.totalorder %s54, 1
        %s855 = scalar_select %p854, %s54, 1
        %s856 = scalar_lea.vmem %s12, %s855
        %p857 = pneg %p394
        %p858 = pneg %p391
        %p859 = pneg %p415
        %p860 = pneg %p412
        %p861 = pneg %p436
        %p862 = pneg %p433
        %p863 = pneg %p462
        %p864 = pneg %p459
        %s865 = sand.u32 %s449, 1
        %s866 = scalar_lea.sflag [#allocation5], %s865
        %s867 = sand.u32 %s449, 1
        %s868 = smul.addr %s867, 16
        %s869 = scalar_lea.vmem [#allocation17], %s868
        %p870 = pneg %p488
        %p871 = pneg %p485
        %s872 = sand.u32 %s475, 1
        %s873 = scalar_lea.sflag [#allocation19], %s872
        %s874 = sand.u32 %s475, 1
        %s875 = smul.addr %s874, 64
        %s876 = scalar_lea.vmem [#allocation18], %s875
        %p877 = scmp.lt.s32.totalorder %s54, 1
        %s878 = scalar_select %p877, %s54, 1
        %s879 = smul.addr %s878, 3
        %s880 = scalar_lea.vmem %s2, %s879
        %p881 = scmp.lt.s32.totalorder %s54, 1
        %s882 = scalar_select %p881, %s54, 1
        %s883 = scalar_lea.vmem %s4, %s882
        %p884 = scmp.lt.s32.totalorder %s54, 1
        %s885 = scalar_select %p884, %s54, 1
        %s886 = scalar_lea.vmem %s5, %s885
        %p887 = scmp.lt.s32.totalorder %s54, 1
        %s888 = scalar_select %p887, %s54, 1
        %s889 = scalar_lea.vmem %s11, %s888
        %p890 = scmp.lt.s32.totalorder %s54, 1
        %s891 = scalar_select %p890, %s54, 1
        %s892 = scalar_lea.vmem %s12, %s891
        %p894 = scmp.eq.s32.totalorder %s54, 0
        // Predicated region
        $region113: #{transformer_encoder_forward.1} parent=79 // pred_check
          %p895 = pneg %p894
        $region114: #{transformer_encoder_forward.1} parent=79 // pred_check_branch
          %897 = sbr.rel (%p895) target = $region116
        $region115: #{transformer_encoder_forward.1} parent=79 // pred_region
          %v898 = vld [vmem:[%s713] sm:$0xff]
          %v899 = vld [vmem:[%s713 + $0x8] sm:$0xff]
          %900 = vst [vmem:[#allocation2] sm:$0xff] %v898
          %901 = vst [vmem:[#allocation2 + $0x8] sm:$0xff] %v899
        $region116: #{transformer_encoder_forward.1} parent=79 // pred_fallthru
          _
        %v902 = vld [vmem:[#allocation2] sm:$0xff]
        %v903 = vld [vmem:[#allocation2 + $0x8] sm:$0xff]
        %v904 = vld [vmem:[%s722] sm:$0xff]
        %v905 = vld [vmem:[%s722 + $0x8] sm:$0xf]
        %v906 = vld [vmem:[%s722 + $0xc] sm:$0xff]
        %v907 = vld [vmem:[%s722 + $0x14] sm:$0xf]
        %v908 = vld [vmem:[%s722 + $0x18] sm:$0xff]
        %v909 = vld [vmem:[%s722 + $0x20] sm:$0xf]
        %v910 = vld [vmem:[%s722 + $0x24] sm:$0xff]
        %v911 = vld [vmem:[%s722 + $0x2c] sm:$0xf]
        %v912 = vld [vmem:[%s722 + $0x30] sm:$0xff]
        %v913 = vld [vmem:[%s722 + $0x38] sm:$0xf]
        %v914 = vld [vmem:[%s722 + $0x3c] sm:$0xff]
        %v915 = vld [vmem:[%s722 + $0x44] sm:$0xf]
        %v916 = vld [vmem:[%s722 + $0x48] sm:$0xff]
        %v917 = vld [vmem:[%s722 + $0x50] sm:$0xf]
        %v918 = vld [vmem:[%s722 + $0x54] sm:$0xff]
        %v919 = vld [vmem:[%s722 + $0x5c] sm:$0xf]
        %v920 = vld [vmem:[%s722 + $0x60] sm:$0xff]
        %v921 = vld [vmem:[%s722 + $0x68] sm:$0xf]
        %v922 = vld [vmem:[%s722 + $0x6c] sm:$0xff]
        %v923 = vld [vmem:[%s722 + $0x74] sm:$0xf]
        %v924 = vld [vmem:[%s722 + $0x78] sm:$0xff]
        %v925 = vld [vmem:[%s722 + $0x80] sm:$0xf]
        %v926 = vld [vmem:[%s722 + $0x84] sm:$0xff]
        %v927 = vld [vmem:[%s722 + $0x8c] sm:$0xf]
        %v928 = vld [vmem:[%s722 + $0x90] sm:$0xff]
        %v929 = vld [vmem:[%s722 + $0x98] sm:$0xf]
        %v930 = vld [vmem:[%s722 + $0x9c] sm:$0xff]
        %v931 = vld [vmem:[%s722 + $0xa4] sm:$0xf]
        %v932 = vld [vmem:[%s722 + $0xa8] sm:$0xff]
        %v933 = vld [vmem:[%s722 + $0xb0] sm:$0xf]
        %v934 = vld [vmem:[%s722 + $0xb4] sm:$0xff]
        %v935 = vld [vmem:[%s722 + $0xbc] sm:$0xf]
        %v936 = vld [vmem:[%s880] sm:$0x7]
        %v937 = vld [vmem:[%s731] sm:$0xf]
        %v938 = vld [vmem:[%s731 + $0x4] sm:$0xf]
        %v939 = vld [vmem:[%s731 + $0x8] sm:$0xf]
        %v940 = vld [vmem:[%s731 + $0xc] sm:$0xf]
        %v941 = vld [vmem:[%s731 + $0x10] sm:$0xf]
        %v942 = vld [vmem:[%s731 + $0x14] sm:$0xf]
        %v943 = vld [vmem:[%s731 + $0x18] sm:$0xf]
        %v944 = vld [vmem:[%s731 + $0x1c] sm:$0xf]
        %v945 = vld [vmem:[%s731 + $0x20] sm:$0xf]
        %v946 = vld [vmem:[%s731 + $0x24] sm:$0xf]
        %v947 = vld [vmem:[%s731 + $0x28] sm:$0xf]
        %v948 = vld [vmem:[%s731 + $0x2c] sm:$0xf]
        %v949 = vld [vmem:[%s731 + $0x30] sm:$0xf]
        %v950 = vld [vmem:[%s731 + $0x34] sm:$0xf]
        %v951 = vld [vmem:[%s731 + $0x38] sm:$0xf]
        %v952 = vld [vmem:[%s731 + $0x3c] sm:$0xf]
        %v953 = vld [vmem:[%s883] sm:$0x1]
        %v954 = vld [vmem:[%s886] sm:$0x1]
        %v955 = vld [vmem:[%s739] sm:$0x1]
        %v956 = vld [vmem:[%s748] sm:$0xff]
        %v957 = vld [vmem:[%s748 + $0x8] sm:$0xff]
        %v958 = vld [vmem:[%s748 + $0x10] sm:$0xff]
        %v959 = vld [vmem:[%s748 + $0x18] sm:$0xff]
        %v960 = vld [vmem:[%s748 + $0x20] sm:$0xff]
        %v961 = vld [vmem:[%s748 + $0x28] sm:$0xff]
        %v962 = vld [vmem:[%s748 + $0x30] sm:$0xff]
        %v963 = vld [vmem:[%s748 + $0x38] sm:$0xff]
        %v964 = vld [vmem:[%s748 + $0x40] sm:$0xff]
        %v965 = vld [vmem:[%s748 + $0x48] sm:$0xff]
        %v966 = vld [vmem:[%s748 + $0x50] sm:$0xff]
        %v967 = vld [vmem:[%s748 + $0x58] sm:$0xff]
        %v968 = vld [vmem:[%s748 + $0x60] sm:$0xff]
        %v969 = vld [vmem:[%s748 + $0x68] sm:$0xff]
        %v970 = vld [vmem:[%s748 + $0x70] sm:$0xff]
        %v971 = vld [vmem:[%s748 + $0x78] sm:$0xff]
        %v972 = vld [vmem:[%s757] sm:$0x3]
        %v973 = vld [vmem:[%s766] sm:$0xf]
        %v974 = vld [vmem:[%s766 + $0x4] sm:$0xf]
        %v975 = vld [vmem:[%s766 + $0x8] sm:$0xf]
        %v976 = vld [vmem:[%s766 + $0xc] sm:$0xf]
        %v977 = vld [vmem:[%s766 + $0x10] sm:$0xf]
        %v978 = vld [vmem:[%s766 + $0x14] sm:$0xf]
        %v979 = vld [vmem:[%s766 + $0x18] sm:$0xf]
        %v980 = vld [vmem:[%s766 + $0x1c] sm:$0xf]
        %v981 = vld [vmem:[%s766 + $0x20] sm:$0xf]
        %v982 = vld [vmem:[%s766 + $0x24] sm:$0xf]
        %v983 = vld [vmem:[%s766 + $0x28] sm:$0xf]
        %v984 = vld [vmem:[%s766 + $0x2c] sm:$0xf]
        %v985 = vld [vmem:[%s766 + $0x30] sm:$0xf]
        %v986 = vld [vmem:[%s766 + $0x34] sm:$0xf]
        %v987 = vld [vmem:[%s766 + $0x38] sm:$0xf]
        %v988 = vld [vmem:[%s766 + $0x3c] sm:$0xf]
        %v989 = vld [vmem:[%s766 + $0x40] sm:$0xf]
        %v990 = vld [vmem:[%s766 + $0x44] sm:$0xf]
        %v991 = vld [vmem:[%s766 + $0x48] sm:$0xf]
        %v992 = vld [vmem:[%s766 + $0x4c] sm:$0xf]
        %v993 = vld [vmem:[%s766 + $0x50] sm:$0xf]
        %v994 = vld [vmem:[%s766 + $0x54] sm:$0xf]
        %v995 = vld [vmem:[%s766 + $0x58] sm:$0xf]
        %v996 = vld [vmem:[%s766 + $0x5c] sm:$0xf]
        %v997 = vld [vmem:[%s766 + $0x60] sm:$0xf]
        %v998 = vld [vmem:[%s766 + $0x64] sm:$0xf]
        %v999 = vld [vmem:[%s766 + $0x68] sm:$0xf]
        %v1000 = vld [vmem:[%s766 + $0x6c] sm:$0xf]
        %v1001 = vld [vmem:[%s766 + $0x70] sm:$0xf]
        %v1002 = vld [vmem:[%s766 + $0x74] sm:$0xf]
        %v1003 = vld [vmem:[%s766 + $0x78] sm:$0xf]
        %v1004 = vld [vmem:[%s766 + $0x7c] sm:$0xf]
        %v1005 = vld [vmem:[%s774] sm:$0x1]
        %v1006 = vld [vmem:[%s889] sm:$0x1]
        %v1007 = vld [vmem:[%s892] sm:$0x1]
        %v1008 = vpack.c.bf16 %v903, %v902
        %v1010 = vlaneseq
        %v1011 = vshrl.u32 %v1010, 7
        %v1012 = vsub.s32 0, %v1011
        %v1013 = vrot.slane %v936, %v1012
        %v1014 = vlaneseq
        %v1015 = vshrl.u32 %v1014, 7
        %v1016 = vsub.s32 1, %v1015
        %v1017 = vrot.slane %v936, %v1016
        %v1018 = vlaneseq
        %v1019 = vshrl.u32 %v1018, 7
        %v1020 = vsub.s32 2, %v1019
        %v1021 = vrot.slane %v936, %v1020
        %v1057 = vunpack.c.l.b16 %v904
        %v1058 = vunpack.c.h.b16 %v904
        %v1059 = vunpack.c.l.b16 %v905
        %v1060 = vunpack.c.l.b16 %v906
        %v1061 = vunpack.c.h.b16 %v906
        %v1062 = vunpack.c.l.b16 %v907
        %v1063 = vunpack.c.l.b16 %v908
        %v1064 = vunpack.c.h.b16 %v908
        %v1065 = vunpack.c.l.b16 %v909
        %v1066 = vunpack.c.l.b16 %v910
        %v1067 = vunpack.c.h.b16 %v910
        %v1068 = vunpack.c.l.b16 %v911
        %v1069 = vunpack.c.l.b16 %v912
        %v1070 = vunpack.c.h.b16 %v912
        %v1071 = vunpack.c.l.b16 %v913
        %v1072 = vunpack.c.l.b16 %v914
        %v1073 = vunpack.c.h.b16 %v914
        %v1074 = vunpack.c.l.b16 %v915
        %v1075 = vunpack.c.l.b16 %v916
        %v1076 = vunpack.c.h.b16 %v916
        %v1077 = vunpack.c.l.b16 %v917
        %v1078 = vunpack.c.l.b16 %v918
        %v1079 = vunpack.c.h.b16 %v918
        %v1080 = vunpack.c.l.b16 %v919
        %v1081 = vunpack.c.l.b16 %v920
        %v1082 = vunpack.c.h.b16 %v920
        %v1083 = vunpack.c.l.b16 %v921
        %v1084 = vunpack.c.l.b16 %v922
        %v1085 = vunpack.c.h.b16 %v922
        %v1086 = vunpack.c.l.b16 %v923
        %v1087 = vunpack.c.l.b16 %v924
        %v1088 = vunpack.c.h.b16 %v924
        %v1089 = vunpack.c.l.b16 %v925
        %v1090 = vunpack.c.l.b16 %v926
        %v1091 = vunpack.c.h.b16 %v926
        %v1092 = vunpack.c.l.b16 %v927
        %v1093 = vunpack.c.l.b16 %v928
        %v1094 = vunpack.c.h.b16 %v928
        %v1095 = vunpack.c.l.b16 %v929
        %v1096 = vunpack.c.l.b16 %v930
        %v1097 = vunpack.c.h.b16 %v930
        %v1098 = vunpack.c.l.b16 %v931
        %v1099 = vunpack.c.l.b16 %v932
        %v1100 = vunpack.c.h.b16 %v932
        %v1101 = vunpack.c.l.b16 %v933
        %v1102 = vunpack.c.l.b16 %v934
        %v1103 = vunpack.c.h.b16 %v934
        %v1104 = vunpack.c.l.b16 %v935
        %v1105 = vpack.c.b16 %v1060, %v1057
        %v1106 = vpack.c.b16 %v1061, %v1058
        %v1107 = vpack.c.b16 %v1062, %v1059
        %v1108 = vpack.c.b16 %v1066, %v1063
        %v1109 = vpack.c.b16 %v1067, %v1064
        %v1110 = vpack.c.b16 %v1068, %v1065
        %v1111 = vpack.c.b16 %v1072, %v1069
        %v1112 = vpack.c.b16 %v1073, %v1070
        %v1113 = vpack.c.b16 %v1074, %v1071
        %v1114 = vpack.c.b16 %v1078, %v1075
        %v1115 = vpack.c.b16 %v1079, %v1076
        %v1116 = vpack.c.b16 %v1080, %v1077
        %v1117 = vpack.c.b16 %v1084, %v1081
        %v1118 = vpack.c.b16 %v1085, %v1082
        %v1119 = vpack.c.b16 %v1086, %v1083
        %v1120 = vpack.c.b16 %v1090, %v1087
        %v1121 = vpack.c.b16 %v1091, %v1088
        %v1122 = vpack.c.b16 %v1092, %v1089
        %v1123 = vpack.c.b16 %v1096, %v1093
        %v1124 = vpack.c.b16 %v1097, %v1094
        %v1125 = vpack.c.b16 %v1098, %v1095
        %v1126 = vpack.c.b16 %v1102, %v1099
        %v1127 = vpack.c.b16 %v1103, %v1100
        %v1128 = vpack.c.b16 %v1104, %v1101
        %1153 = vmatprep.subr.bf16.mxu0 %v1106
        %1154 = vmatpush1.bf16.msra.mxu0 %v1105
        %1155 = vmatprep.subr.bf16.mxu0 %v1109
        %1156 = vmatpush1.bf16.msra.mxu0 %v1108
        %1157 = vmatprep.subr.bf16.mxu0 %v1112
        %1158 = vmatpush1.bf16.msra.mxu0 %v1111
        %1159 = vmatprep.subr.bf16.mxu0 %v1115
        %1160 = vmatpush1.bf16.msra.mxu0 %v1114
        %1161 = vmatprep.subr.bf16.mxu0 %v1118
        %1162 = vmatpush1.bf16.msra.mxu0 %v1117
        %1163 = vmatprep.subr.bf16.mxu0 %v1121
        %1164 = vmatpush1.bf16.msra.mxu0 %v1120
        %1165 = vmatprep.subr.bf16.mxu0 %v1124
        %1166 = vmatpush1.bf16.msra.mxu0 %v1123
        %1167 = vmatprep.subr.bf16.mxu0 %v1127
        %1168 = vmatpush1.bf16.msra.mxu0 %v1126
        %1169 = vmatprep.subr.bf16.mxu0 0
        %1170 = vmatpush1.bf16.msra.mxu0 0
        %1171 = vmatprep.subr.bf16.mxu0 0
        %1172 = vmatpush1.bf16.msra.mxu0 0
        %1173 = vmatprep.subr.bf16.mxu0 0
        %1174 = vmatpush1.bf16.msra.mxu0 0
        %1175 = vmatprep.subr.bf16.mxu0 0
        %1176 = vmatpush1.bf16.msra.mxu0 0
        %1177 = vmatprep.subr.bf16.mxu0 0
        %1178 = vmatpush1.bf16.msra.mxu0 0
        %1179 = vmatprep.subr.bf16.mxu0 0
        %1180 = vmatpush1.bf16.msra.mxu0 0
        %1181 = vmatprep.subr.bf16.mxu0 0
        %1182 = vmatpush1.bf16.msra.mxu0 0
        %1183 = vmatprep.subr.bf16.mxu0 0
        %1184 = vmatpush1.bf16.msra.mxu0 0
        %1185 = vmatprep.mubr.bf16.mxu0 0
        %1186 = vmatmul.mubr.bf16.gmra.mrb[0].mxu0 %v1008
        %v1187 = vpop.f32.mrb[0].mxu0
        %v1188 = vadd.f32 %v1013, %v1187
        %v1189 = vpop.f32.mrb[0].mxu0
        %v1190 = vadd.f32 %v1017, %v1189
        %v1191 = vpop.f32.mrb[0].mxu0
        %v1192 = vadd.f32 %v1013, %v1191
        %v1193 = vpop.f32.mrb[0].mxu0
        %v1194 = vadd.f32 %v1017, %v1193
        %1195 = vdwg.mxu0
        %1196 = vmatprep.subr.bf16.mxu0 0
        %1197 = vmatpush1.bf16.msra.mxu0 %v1107
        %1198 = vmatprep.subr.bf16.mxu0 0
        %1199 = vmatpush1.bf16.msra.mxu0 %v1110
        %1200 = vmatprep.subr.bf16.mxu0 0
        %1201 = vmatpush1.bf16.msra.mxu0 %v1113
        %1202 = vmatprep.subr.bf16.mxu0 0
        %1203 = vmatpush1.bf16.msra.mxu0 %v1116
        %1204 = vmatprep.subr.bf16.mxu0 0
        %1205 = vmatpush1.bf16.msra.mxu0 %v1119
        %1206 = vmatprep.subr.bf16.mxu0 0
        %1207 = vmatpush1.bf16.msra.mxu0 %v1122
        %1208 = vmatprep.subr.bf16.mxu0 0
        %1209 = vmatpush1.bf16.msra.mxu0 %v1125
        %1210 = vmatprep.subr.bf16.mxu0 0
        %1211 = vmatpush1.bf16.msra.mxu0 %v1128
        %1212 = vmatprep.subr.bf16.mxu0 0
        %1213 = vmatpush1.bf16.msra.mxu0 0
        %1214 = vmatprep.subr.bf16.mxu0 0
        %1215 = vmatpush1.bf16.msra.mxu0 0
        %1216 = vmatprep.subr.bf16.mxu0 0
        %1217 = vmatpush1.bf16.msra.mxu0 0
        %1218 = vmatprep.subr.bf16.mxu0 0
        %1219 = vmatpush1.bf16.msra.mxu0 0
        %1220 = vmatprep.subr.bf16.mxu0 0
        %1221 = vmatpush1.bf16.msra.mxu0 0
        %1222 = vmatprep.subr.bf16.mxu0 0
        %1223 = vmatpush1.bf16.msra.mxu0 0
        %1224 = vmatprep.subr.bf16.mxu0 0
        %1225 = vmatpush1.bf16.msra.mxu0 0
        %1226 = vmatprep.subr.bf16.mxu0 0
        %1227 = vmatpush1.bf16.msra.mxu0 0
        %1228 = vmatprep.mubr.bf16.mxu0 0
        %1229 = vmatmul.mubr.bf16.gmra.mrb[0].mxu0 %v1008
        %v1230 = vpop.f32.mrb[0].mxu0
        %v1231 = vadd.f32 %v1021, %v1230
        %v1232 = vpop.f32.mrb[0].mxu0
        %v1233 = vpop.f32.mrb[0].mxu0
        %v1234 = vadd.f32 %v1021, %v1233
        %v1235 = vpop.f32.mrb[0].mxu0
        %1236 = vdwg.mxu0
        %1239 = vrot.lane.b32.xlu0 %v1188, 96
        %v1240 = vpop.permute.xlu0 %1239
        %1241 = vrot.lane.b32.xlu0 %v1192, 96
        %v1242 = vpop.permute.xlu0 %1241
        %1245 = vrot.lane.b32.xlu0 %v1188, 64
        %v1246 = vpop.permute.xlu0 %1245
        %1247 = vrot.lane.b32.xlu0 %v1192, 64
        %v1248 = vpop.permute.xlu0 %1247
        %1251 = vrot.lane.b32.xlu0 %v1188, 32
        %v1252 = vpop.permute.xlu0 %1251
        %1253 = vrot.lane.b32.xlu0 %v1192, 32
        %v1254 = vpop.permute.xlu0 %1253
        %v1257 = vcombine.low %v1188, %v1246
        %v1258 = vcombine.high %v1188, %v1246
        %v1260 = vunpack.c.l.s4 1983009808
        %v1261 = vunpack.c.0.s8 %v1260
        %v1262 = vlaneseq
        %v1263 = vshrl.u32 %v1262, 7
        %v1264 = vsub.s32 %v1261, %v1263
        %v1265 = vrot.slane %v1257, %v1264
        %v1267 = vunpack.c.l.s4 1983009808
        %v1268 = vunpack.c.0.s8 %v1267
        %v1269 = vlaneseq
        %v1270 = vshrl.u32 %v1269, 7
        %v1271 = vsub.s32 %v1268, %v1270
        %v1272 = vrot.slane %v1258, %v1271
        %v1273 = vcombine.low %v1240, %v1252
        %v1274 = vcombine.high %v1240, %v1252
        %v1276 = vunpack.c.l.s4 1983009808
        %v1277 = vunpack.c.0.s8 %v1276
        %v1278 = vlaneseq
        %v1279 = vshrl.u32 %v1278, 7
        %v1280 = vsub.s32 %v1277, %v1279
        %v1281 = vrot.slane %v1273, %v1280
        %v1283 = vunpack.c.l.s4 1983009808
        %v1284 = vunpack.c.0.s8 %v1283
        %v1285 = vlaneseq
        %v1286 = vshrl.u32 %v1285, 7
        %v1287 = vsub.s32 %v1284, %v1286
        %v1288 = vrot.slane %v1274, %v1287
        %v1289 = vcombine.low %v1265, %v1281
        %v1290 = vcombine.high %v1265, %v1281
        %v1292 = vunpack.c.l.s4 1934713408
        %v1293 = vunpack.c.0.s8 %v1292
        %v1294 = vlaneseq
        %v1295 = vshrl.u32 %v1294, 7
        %v1296 = vsub.s32 %v1293, %v1295
        %v1297 = vrot.slane %v1289, %v1296
        %v1299 = vunpack.c.l.s4 1934713408
        %v1300 = vunpack.c.0.s8 %v1299
        %v1301 = vlaneseq
        %v1302 = vshrl.u32 %v1301, 7
        %v1303 = vsub.s32 %v1300, %v1302
        %v1304 = vrot.slane %v1290, %v1303
        %v1305 = vcombine.low %v1272, %v1288
        %v1306 = vcombine.high %v1272, %v1288
        %v1308 = vunpack.c.l.s4 1934713408
        %v1309 = vunpack.c.0.s8 %v1308
        %v1310 = vlaneseq
        %v1311 = vshrl.u32 %v1310, 7
        %v1312 = vsub.s32 %v1309, %v1311
        %v1313 = vrot.slane %v1305, %v1312
        %v1315 = vunpack.c.l.s4 1934713408
        %v1316 = vunpack.c.0.s8 %v1315
        %v1317 = vlaneseq
        %v1318 = vshrl.u32 %v1317, 7
        %v1319 = vsub.s32 %v1316, %v1318
        %v1320 = vrot.slane %v1306, %v1319
        %v1321 = vcombine.high %v1297, 0.0
        %v1322 = vcombine.high %v1304, 0.0
        %v1323 = vcombine.high %v1313, 0.0
        %v1324 = vcombine.high %v1320, 0.0
        %v1325 = vcombine.low %v1192, %v1248
        %v1326 = vcombine.high %v1192, %v1248
        %v1328 = vunpack.c.l.s4 1983009808
        %v1329 = vunpack.c.0.s8 %v1328
        %v1330 = vlaneseq
        %v1331 = vshrl.u32 %v1330, 7
        %v1332 = vsub.s32 %v1329, %v1331
        %v1333 = vrot.slane %v1325, %v1332
        %v1335 = vunpack.c.l.s4 1983009808
        %v1336 = vunpack.c.0.s8 %v1335
        %v1337 = vlaneseq
        %v1338 = vshrl.u32 %v1337, 7
        %v1339 = vsub.s32 %v1336, %v1338
        %v1340 = vrot.slane %v1326, %v1339
        %v1341 = vcombine.low %v1242, %v1254
        %v1342 = vcombine.high %v1242, %v1254
        %v1344 = vunpack.c.l.s4 1983009808
        %v1345 = vunpack.c.0.s8 %v1344
        %v1346 = vlaneseq
        %v1347 = vshrl.u32 %v1346, 7
        %v1348 = vsub.s32 %v1345, %v1347
        %v1349 = vrot.slane %v1341, %v1348
        %v1351 = vunpack.c.l.s4 1983009808
        %v1352 = vunpack.c.0.s8 %v1351
        %v1353 = vlaneseq
        %v1354 = vshrl.u32 %v1353, 7
        %v1355 = vsub.s32 %v1352, %v1354
        %v1356 = vrot.slane %v1342, %v1355
        %v1357 = vcombine.low %v1333, %v1349
        %v1358 = vcombine.high %v1333, %v1349
        %v1360 = vunpack.c.l.s4 1934713408
        %v1361 = vunpack.c.0.s8 %v1360
        %v1362 = vlaneseq
        %v1363 = vshrl.u32 %v1362, 7
        %v1364 = vsub.s32 %v1361, %v1363
        %v1365 = vrot.slane %v1357, %v1364
        %v1367 = vunpack.c.l.s4 1934713408
        %v1368 = vunpack.c.0.s8 %v1367
        %v1369 = vlaneseq
        %v1370 = vshrl.u32 %v1369, 7
        %v1371 = vsub.s32 %v1368, %v1370
        %v1372 = vrot.slane %v1358, %v1371
        %v1373 = vcombine.low %v1340, %v1356
        %v1374 = vcombine.high %v1340, %v1356
        %v1376 = vunpack.c.l.s4 1934713408
        %v1377 = vunpack.c.0.s8 %v1376
        %v1378 = vlaneseq
        %v1379 = vshrl.u32 %v1378, 7
        %v1380 = vsub.s32 %v1377, %v1379
        %v1381 = vrot.slane %v1373, %v1380
        %v1383 = vunpack.c.l.s4 1934713408
        %v1384 = vunpack.c.0.s8 %v1383
        %v1385 = vlaneseq
        %v1386 = vshrl.u32 %v1385, 7
        %v1387 = vsub.s32 %v1384, %v1386
        %v1388 = vrot.slane %v1374, %v1387
        %v1389 = vcombine.high %v1365, 0.0
        %v1390 = vcombine.high %v1372, 0.0
        %v1391 = vcombine.high %v1381, 0.0
        %v1392 = vcombine.high %v1388, 0.0
        %1395 = vrot.lane.b32.xlu0 %v1190, 96
        %v1396 = vpop.permute.xlu0 %1395
        %1397 = vrot.lane.b32.xlu0 %v1194, 96
        %v1398 = vpop.permute.xlu0 %1397
        %1401 = vrot.lane.b32.xlu0 %v1190, 64
        %v1402 = vpop.permute.xlu0 %1401
        %1403 = vrot.lane.b32.xlu0 %v1194, 64
        %v1404 = vpop.permute.xlu0 %1403
        %1407 = vrot.lane.b32.xlu0 %v1190, 32
        %v1408 = vpop.permute.xlu0 %1407
        %1409 = vrot.lane.b32.xlu0 %v1194, 32
        %v1410 = vpop.permute.xlu0 %1409
        %v1413 = vcombine.low %v1190, %v1402
        %v1414 = vcombine.high %v1190, %v1402
        %v1416 = vunpack.c.l.s4 1983009808
        %v1417 = vunpack.c.0.s8 %v1416
        %v1418 = vlaneseq
        %v1419 = vshrl.u32 %v1418, 7
        %v1420 = vsub.s32 %v1417, %v1419
        %v1421 = vrot.slane %v1413, %v1420
        %v1423 = vunpack.c.l.s4 1983009808
        %v1424 = vunpack.c.0.s8 %v1423
        %v1425 = vlaneseq
        %v1426 = vshrl.u32 %v1425, 7
        %v1427 = vsub.s32 %v1424, %v1426
        %v1428 = vrot.slane %v1414, %v1427
        %v1429 = vcombine.low %v1396, %v1408
        %v1430 = vcombine.high %v1396, %v1408
        %v1432 = vunpack.c.l.s4 1983009808
        %v1433 = vunpack.c.0.s8 %v1432
        %v1434 = vlaneseq
        %v1435 = vshrl.u32 %v1434, 7
        %v1436 = vsub.s32 %v1433, %v1435
        %v1437 = vrot.slane %v1429, %v1436
        %v1439 = vunpack.c.l.s4 1983009808
        %v1440 = vunpack.c.0.s8 %v1439
        %v1441 = vlaneseq
        %v1442 = vshrl.u32 %v1441, 7
        %v1443 = vsub.s32 %v1440, %v1442
        %v1444 = vrot.slane %v1430, %v1443
        %v1445 = vcombine.low %v1421, %v1437
        %v1446 = vcombine.high %v1421, %v1437
        %v1448 = vunpack.c.l.s4 1934713408
        %v1449 = vunpack.c.0.s8 %v1448
        %v1450 = vlaneseq
        %v1451 = vshrl.u32 %v1450, 7
        %v1452 = vsub.s32 %v1449, %v1451
        %v1453 = vrot.slane %v1445, %v1452
        %v1455 = vunpack.c.l.s4 1934713408
        %v1456 = vunpack.c.0.s8 %v1455
        %v1457 = vlaneseq
        %v1458 = vshrl.u32 %v1457, 7
        %v1459 = vsub.s32 %v1456, %v1458
        %v1460 = vrot.slane %v1446, %v1459
        %v1461 = vcombine.low %v1428, %v1444
        %v1462 = vcombine.high %v1428, %v1444
        %v1464 = vunpack.c.l.s4 1934713408
        %v1465 = vunpack.c.0.s8 %v1464
        %v1466 = vlaneseq
        %v1467 = vshrl.u32 %v1466, 7
        %v1468 = vsub.s32 %v1465, %v1467
        %v1469 = vrot.slane %v1461, %v1468
        %v1471 = vunpack.c.l.s4 1934713408
        %v1472 = vunpack.c.0.s8 %v1471
        %v1473 = vlaneseq
        %v1474 = vshrl.u32 %v1473, 7
        %v1475 = vsub.s32 %v1472, %v1474
        %v1476 = vrot.slane %v1462, %v1475
        %v1477 = vcombine.high %v1453, 0.0
        %v1478 = vcombine.high %v1460, 0.0
        %v1479 = vcombine.high %v1469, 0.0
        %v1480 = vcombine.high %v1476, 0.0
        %v1481 = vcombine.low %v1194, %v1404
        %v1482 = vcombine.high %v1194, %v1404
        %v1484 = vunpack.c.l.s4 1983009808
        %v1485 = vunpack.c.0.s8 %v1484
        %v1486 = vlaneseq
        %v1487 = vshrl.u32 %v1486, 7
        %v1488 = vsub.s32 %v1485, %v1487
        %v1489 = vrot.slane %v1481, %v1488
        %v1491 = vunpack.c.l.s4 1983009808
        %v1492 = vunpack.c.0.s8 %v1491
        %v1493 = vlaneseq
        %v1494 = vshrl.u32 %v1493, 7
        %v1495 = vsub.s32 %v1492, %v1494
        %v1496 = vrot.slane %v1482, %v1495
        %v1497 = vcombine.low %v1398, %v1410
        %v1498 = vcombine.high %v1398, %v1410
        %v1500 = vunpack.c.l.s4 1983009808
        %v1501 = vunpack.c.0.s8 %v1500
        %v1502 = vlaneseq
        %v1503 = vshrl.u32 %v1502, 7
        %v1504 = vsub.s32 %v1501, %v1503
        %v1505 = vrot.slane %v1497, %v1504
        %v1507 = vunpack.c.l.s4 1983009808
        %v1508 = vunpack.c.0.s8 %v1507
        %v1509 = vlaneseq
        %v1510 = vshrl.u32 %v1509, 7
        %v1511 = vsub.s32 %v1508, %v1510
        %v1512 = vrot.slane %v1498, %v1511
        %v1513 = vcombine.low %v1489, %v1505
        %v1514 = vcombine.high %v1489, %v1505
        %v1516 = vunpack.c.l.s4 1934713408
        %v1517 = vunpack.c.0.s8 %v1516
        %v1518 = vlaneseq
        %v1519 = vshrl.u32 %v1518, 7
        %v1520 = vsub.s32 %v1517, %v1519
        %v1521 = vrot.slane %v1513, %v1520
        %v1523 = vunpack.c.l.s4 1934713408
        %v1524 = vunpack.c.0.s8 %v1523
        %v1525 = vlaneseq
        %v1526 = vshrl.u32 %v1525, 7
        %v1527 = vsub.s32 %v1524, %v1526
        %v1528 = vrot.slane %v1514, %v1527
        %v1529 = vcombine.low %v1496, %v1512
        %v1530 = vcombine.high %v1496, %v1512
        %v1532 = vunpack.c.l.s4 1934713408
        %v1533 = vunpack.c.0.s8 %v1532
        %v1534 = vlaneseq
        %v1535 = vshrl.u32 %v1534, 7
        %v1536 = vsub.s32 %v1533, %v1535
        %v1537 = vrot.slane %v1529, %v1536
        %v1539 = vunpack.c.l.s4 1934713408
        %v1540 = vunpack.c.0.s8 %v1539
        %v1541 = vlaneseq
        %v1542 = vshrl.u32 %v1541, 7
        %v1543 = vsub.s32 %v1540, %v1542
        %v1544 = vrot.slane %v1530, %v1543
        %v1545 = vcombine.high %v1521, 0.0
        %v1546 = vcombine.high %v1528, 0.0
        %v1547 = vcombine.high %v1537, 0.0
        %v1548 = vcombine.high %v1544, 0.0
        %1551 = vrot.lane.b32.xlu0 %v1231, 96
        %v1552 = vpop.permute.xlu0 %1551
        %1553 = vrot.lane.b32.xlu0 %v1234, 96
        %v1554 = vpop.permute.xlu0 %1553
        %1557 = vrot.lane.b32.xlu0 %v1231, 64
        %v1558 = vpop.permute.xlu0 %1557
        %1559 = vrot.lane.b32.xlu0 %v1234, 64
        %v1560 = vpop.permute.xlu0 %1559
        %1563 = vrot.lane.b32.xlu0 %v1231, 32
        %v1564 = vpop.permute.xlu0 %1563
        %1565 = vrot.lane.b32.xlu0 %v1234, 32
        %v1566 = vpop.permute.xlu0 %1565
        %v1569 = vcombine.low %v1231, %v1558
        %v1570 = vcombine.high %v1231, %v1558
        %v1572 = vunpack.c.l.s4 1983009808
        %v1573 = vunpack.c.0.s8 %v1572
        %v1574 = vlaneseq
        %v1575 = vshrl.u32 %v1574, 7
        %v1576 = vsub.s32 %v1573, %v1575
        %v1577 = vrot.slane %v1569, %v1576
        %v1579 = vunpack.c.l.s4 1983009808
        %v1580 = vunpack.c.0.s8 %v1579
        %v1581 = vlaneseq
        %v1582 = vshrl.u32 %v1581, 7
        %v1583 = vsub.s32 %v1580, %v1582
        %v1584 = vrot.slane %v1570, %v1583
        %v1585 = vcombine.low %v1552, %v1564
        %v1586 = vcombine.high %v1552, %v1564
        %v1588 = vunpack.c.l.s4 1983009808
        %v1589 = vunpack.c.0.s8 %v1588
        %v1590 = vlaneseq
        %v1591 = vshrl.u32 %v1590, 7
        %v1592 = vsub.s32 %v1589, %v1591
        %v1593 = vrot.slane %v1585, %v1592
        %v1595 = vunpack.c.l.s4 1983009808
        %v1596 = vunpack.c.0.s8 %v1595
        %v1597 = vlaneseq
        %v1598 = vshrl.u32 %v1597, 7
        %v1599 = vsub.s32 %v1596, %v1598
        %v1600 = vrot.slane %v1586, %v1599
        %v1601 = vcombine.low %v1577, %v1593
        %v1602 = vcombine.high %v1577, %v1593
        %v1604 = vunpack.c.l.s4 1934713408
        %v1605 = vunpack.c.0.s8 %v1604
        %v1606 = vlaneseq
        %v1607 = vshrl.u32 %v1606, 7
        %v1608 = vsub.s32 %v1605, %v1607
        %v1609 = vrot.slane %v1601, %v1608
        %v1611 = vunpack.c.l.s4 1934713408
        %v1612 = vunpack.c.0.s8 %v1611
        %v1613 = vlaneseq
        %v1614 = vshrl.u32 %v1613, 7
        %v1615 = vsub.s32 %v1612, %v1614
        %v1616 = vrot.slane %v1602, %v1615
        %v1617 = vcombine.low %v1584, %v1600
        %v1618 = vcombine.high %v1584, %v1600
        %v1620 = vunpack.c.l.s4 1934713408
        %v1621 = vunpack.c.0.s8 %v1620
        %v1622 = vlaneseq
        %v1623 = vshrl.u32 %v1622, 7
        %v1624 = vsub.s32 %v1621, %v1623
        %v1625 = vrot.slane %v1617, %v1624
        %v1627 = vunpack.c.l.s4 1934713408
        %v1628 = vunpack.c.0.s8 %v1627
        %v1629 = vlaneseq
        %v1630 = vshrl.u32 %v1629, 7
        %v1631 = vsub.s32 %v1628, %v1630
        %v1632 = vrot.slane %v1618, %v1631
        %v1633 = vcombine.high %v1609, 0.0
        %v1634 = vcombine.high %v1616, 0.0
        %v1635 = vcombine.high %v1625, 0.0
        %v1636 = vcombine.high %v1632, 0.0
        %v1637 = vcombine.low %v1234, %v1560
        %v1638 = vcombine.high %v1234, %v1560
        %v1640 = vunpack.c.l.s4 1983009808
        %v1641 = vunpack.c.0.s8 %v1640
        %v1642 = vlaneseq
        %v1643 = vshrl.u32 %v1642, 7
        %v1644 = vsub.s32 %v1641, %v1643
        %v1645 = vrot.slane %v1637, %v1644
        %v1647 = vunpack.c.l.s4 1983009808
        %v1648 = vunpack.c.0.s8 %v1647
        %v1649 = vlaneseq
        %v1650 = vshrl.u32 %v1649, 7
        %v1651 = vsub.s32 %v1648, %v1650
        %v1652 = vrot.slane %v1638, %v1651
        %v1653 = vcombine.low %v1554, %v1566
        %v1654 = vcombine.high %v1554, %v1566
        %v1656 = vunpack.c.l.s4 1983009808
        %v1657 = vunpack.c.0.s8 %v1656
        %v1658 = vlaneseq
        %v1659 = vshrl.u32 %v1658, 7
        %v1660 = vsub.s32 %v1657, %v1659
        %v1661 = vrot.slane %v1653, %v1660
        %v1663 = vunpack.c.l.s4 1983009808
        %v1664 = vunpack.c.0.s8 %v1663
        %v1665 = vlaneseq
        %v1666 = vshrl.u32 %v1665, 7
        %v1667 = vsub.s32 %v1664, %v1666
        %v1668 = vrot.slane %v1654, %v1667
        %v1669 = vcombine.low %v1645, %v1661
        %v1670 = vcombine.high %v1645, %v1661
        %v1672 = vunpack.c.l.s4 1934713408
        %v1673 = vunpack.c.0.s8 %v1672
        %v1674 = vlaneseq
        %v1675 = vshrl.u32 %v1674, 7
        %v1676 = vsub.s32 %v1673, %v1675
        %v1677 = vrot.slane %v1669, %v1676
        %v1679 = vunpack.c.l.s4 1934713408
        %v1680 = vunpack.c.0.s8 %v1679
        %v1681 = vlaneseq
        %v1682 = vshrl.u32 %v1681, 7
        %v1683 = vsub.s32 %v1680, %v1682
        %v1684 = vrot.slane %v1670, %v1683
        %v1685 = vcombine.low %v1652, %v1668
        %v1686 = vcombine.high %v1652, %v1668
        %v1688 = vunpack.c.l.s4 1934713408
        %v1689 = vunpack.c.0.s8 %v1688
        %v1690 = vlaneseq
        %v1691 = vshrl.u32 %v1690, 7
        %v1692 = vsub.s32 %v1689, %v1691
        %v1693 = vrot.slane %v1685, %v1692
        %v1695 = vunpack.c.l.s4 1934713408
        %v1696 = vunpack.c.0.s8 %v1695
        %v1697 = vlaneseq
        %v1698 = vshrl.u32 %v1697, 7
        %v1699 = vsub.s32 %v1696, %v1698
        %v1700 = vrot.slane %v1686, %v1699
        %v1701 = vcombine.high %v1677, 0.0
        %v1702 = vcombine.high %v1684, 0.0
        %v1703 = vcombine.high %v1693, 0.0
        %v1704 = vcombine.high %v1700, 0.0
        %v1705 = vpack.c.bf16 %v1297, %v1297
        %v1706 = vpack.c.bf16 %v1321, %v1321
        %v1707 = vpack.c.bf16 %v1304, %v1304
        %v1708 = vpack.c.bf16 %v1322, %v1322
        %v1709 = vpack.c.bf16 %v1313, %v1313
        %v1710 = vpack.c.bf16 %v1323, %v1323
        %v1711 = vpack.c.bf16 %v1320, %v1320
        %v1712 = vpack.c.bf16 %v1324, %v1324
        %v1713 = vpack.c.bf16 %v1365, %v1365
        %v1714 = vpack.c.bf16 %v1389, %v1389
        %v1715 = vpack.c.bf16 %v1372, %v1372
        %v1716 = vpack.c.bf16 %v1390, %v1390
        %v1717 = vpack.c.bf16 %v1381, %v1381
        %v1718 = vpack.c.bf16 %v1391, %v1391
        %v1719 = vpack.c.bf16 %v1388, %v1388
        %v1720 = vpack.c.bf16 %v1392, %v1392
        %v1721 = vpack.c.bf16 %v1453, %v1453
        %v1722 = vpack.c.bf16 %v1477, %v1477
        %v1723 = vpack.c.bf16 %v1460, %v1460
        %v1724 = vpack.c.bf16 %v1478, %v1478
        %v1725 = vpack.c.bf16 %v1469, %v1469
        %v1726 = vpack.c.bf16 %v1479, %v1479
        %v1727 = vpack.c.bf16 %v1476, %v1476
        %v1728 = vpack.c.bf16 %v1480, %v1480
        %v1729 = vpack.c.bf16 %v1521, %v1521
        %v1730 = vpack.c.bf16 %v1545, %v1545
        %v1731 = vpack.c.bf16 %v1528, %v1528
        %v1732 = vpack.c.bf16 %v1546, %v1546
        %v1733 = vpack.c.bf16 %v1537, %v1537
        %v1734 = vpack.c.bf16 %v1547, %v1547
        %v1735 = vpack.c.bf16 %v1544, %v1544
        %v1736 = vpack.c.bf16 %v1548, %v1548
        %v1737 = vcombine.low %v1705, %v1709
        %v1739 = vunpack.c.l.s4 1983009808
        %v1740 = vunpack.c.0.s8 %v1739
        %v1741 = vlaneseq
        %v1742 = vshrl.u32 %v1741, 7
        %v1743 = vsub.s32 %v1740, %v1742
        %v1744 = vrot.slane %v1737, %v1743
        %v1745 = vcombine.low %v1707, %v1711
        %v1747 = vunpack.c.l.s4 1983009808
        %v1748 = vunpack.c.0.s8 %v1747
        %v1749 = vlaneseq
        %v1750 = vshrl.u32 %v1749, 7
        %v1751 = vsub.s32 %v1748, %v1750
        %v1752 = vrot.slane %v1745, %v1751
        %v1753 = vcombine.low %v1713, %v1717
        %v1755 = vunpack.c.l.s4 1983009808
        %v1756 = vunpack.c.0.s8 %v1755
        %v1757 = vlaneseq
        %v1758 = vshrl.u32 %v1757, 7
        %v1759 = vsub.s32 %v1756, %v1758
        %v1760 = vrot.slane %v1753, %v1759
        %v1761 = vcombine.low %v1715, %v1719
        %v1763 = vunpack.c.l.s4 1983009808
        %v1764 = vunpack.c.0.s8 %v1763
        %v1765 = vlaneseq
        %v1766 = vshrl.u32 %v1765, 7
        %v1767 = vsub.s32 %v1764, %v1766
        %v1768 = vrot.slane %v1761, %v1767
        %v1769 = vcombine.low %v1744, %v1752
        %v1771 = vunpack.c.l.s4 1934713408
        %v1772 = vunpack.c.0.s8 %v1771
        %v1773 = vlaneseq
        %v1774 = vshrl.u32 %v1773, 7
        %v1775 = vsub.s32 %v1772, %v1774
        %v1776 = vrot.slane %v1769, %v1775
        %v1777 = vcombine.low %v1760, %v1768
        %v1779 = vunpack.c.l.s4 1934713408
        %v1780 = vunpack.c.0.s8 %v1779
        %v1781 = vlaneseq
        %v1782 = vshrl.u32 %v1781, 7
        %v1783 = vsub.s32 %v1780, %v1782
        %v1784 = vrot.slane %v1777, %v1783
        %v1785 = vcombine.low %v1776, %v1784
        %v1786 = vcombine.high %v1776, %v1784
        %v1787 = vcombine.low %v1706, %v1710
        %v1789 = vunpack.c.l.s4 1983009808
        %v1790 = vunpack.c.0.s8 %v1789
        %v1791 = vlaneseq
        %v1792 = vshrl.u32 %v1791, 7
        %v1793 = vsub.s32 %v1790, %v1792
        %v1794 = vrot.slane %v1787, %v1793
        %v1795 = vcombine.low %v1708, %v1712
        %v1797 = vunpack.c.l.s4 1983009808
        %v1798 = vunpack.c.0.s8 %v1797
        %v1799 = vlaneseq
        %v1800 = vshrl.u32 %v1799, 7
        %v1801 = vsub.s32 %v1798, %v1800
        %v1802 = vrot.slane %v1795, %v1801
        %v1803 = vcombine.low %v1714, %v1718
        %v1805 = vunpack.c.l.s4 1983009808
        %v1806 = vunpack.c.0.s8 %v1805
        %v1807 = vlaneseq
        %v1808 = vshrl.u32 %v1807, 7
        %v1809 = vsub.s32 %v1806, %v1808
        %v1810 = vrot.slane %v1803, %v1809
        %v1811 = vcombine.low %v1716, %v1720
        %v1813 = vunpack.c.l.s4 1983009808
        %v1814 = vunpack.c.0.s8 %v1813
        %v1815 = vlaneseq
        %v1816 = vshrl.u32 %v1815, 7
        %v1817 = vsub.s32 %v1814, %v1816
        %v1818 = vrot.slane %v1811, %v1817
        %v1819 = vcombine.low %v1794, %v1802
        %v1821 = vunpack.c.l.s4 1934713408
        %v1822 = vunpack.c.0.s8 %v1821
        %v1823 = vlaneseq
        %v1824 = vshrl.u32 %v1823, 7
        %v1825 = vsub.s32 %v1822, %v1824
        %v1826 = vrot.slane %v1819, %v1825
        %v1827 = vcombine.low %v1810, %v1818
        %v1829 = vunpack.c.l.s4 1934713408
        %v1830 = vunpack.c.0.s8 %v1829
        %v1831 = vlaneseq
        %v1832 = vshrl.u32 %v1831, 7
        %v1833 = vsub.s32 %v1830, %v1832
        %v1834 = vrot.slane %v1827, %v1833
        %v1835 = vcombine.low %v1826, %v1834
        %v1836 = vcombine.high %v1826, %v1834
        %v1839 = vpack.i.b16 %v1835, %v1785
        %v1840 = vshrl.u32 %v1785, 16
        %v1841 = vshrl.u32 %v1835, 16
        %v1842 = vpack.i.b16 %v1841, %v1840
        %v1845 = vpack.i.b16 %v1836, %v1786
        %v1846 = vshrl.u32 %v1786, 16
        %v1847 = vshrl.u32 %v1836, 16
        %v1848 = vpack.i.b16 %v1847, %v1846
        %1849 = vxpose.xlu0.c.b16.start [1/8] %v1721, 128
        %1850 = vxpose.xlu0.c.b16.cont [2/8] 0, 128
        %1851 = vxpose.xlu0.c.b16.cont [3/8] 0, 128
        %1852 = vxpose.xlu0.c.b16.cont [4/8] 0, 128
        %1853 = vxpose.xlu0.c.b16.cont [5/8] 0, 128
        %1854 = vxpose.xlu0.c.b16.cont [6/8] 0, 128
        %1855 = vxpose.xlu0.c.b16.cont [7/8] 0, 128
        %1856 = vxpose.xlu0.c.b16.end [8/8] 0, 128
        %v1857 = vpop.trf.xlu0
        %v1858 = vpop.trf.xlu0
        %v1859 = vpop.trf.xlu0
        %v1860 = vpop.trf.xlu0
        %v1861 = vpop.trf.xlu0
        %v1862 = vpop.trf.xlu0
        %v1863 = vpop.trf.xlu0
        %v1864 = vpop.trf.xlu0
        %1865 = vxpose.xlu0.c.b16.start [1/8] %v1722, 128
        %1866 = vxpose.xlu0.c.b16.cont [2/8] 0, 128
        %1867 = vxpose.xlu0.c.b16.cont [3/8] 0, 128
        %1868 = vxpose.xlu0.c.b16.cont [4/8] 0, 128
        %1869 = vxpose.xlu0.c.b16.cont [5/8] 0, 128
        %1870 = vxpose.xlu0.c.b16.cont [6/8] 0, 128
        %1871 = vxpose.xlu0.c.b16.cont [7/8] 0, 128
        %1872 = vxpose.xlu0.c.b16.end [8/8] 0, 128
        %v1873 = vpop.trf.xlu0
        %v1874 = vpop.trf.xlu0
        %v1875 = vpop.trf.xlu0
        %v1876 = vpop.trf.xlu0
        %v1877 = vpop.trf.xlu0
        %v1878 = vpop.trf.xlu0
        %v1879 = vpop.trf.xlu0
        %v1880 = vpop.trf.xlu0
        %1881 = vxpose.xlu0.c.b16.start [1/8] %v1723, 128
        %1882 = vxpose.xlu0.c.b16.cont [2/8] 0, 128
        %1883 = vxpose.xlu0.c.b16.cont [3/8] 0, 128
        %1884 = vxpose.xlu0.c.b16.cont [4/8] 0, 128
        %1885 = vxpose.xlu0.c.b16.cont [5/8] 0, 128
        %1886 = vxpose.xlu0.c.b16.cont [6/8] 0, 128
        %1887 = vxpose.xlu0.c.b16.cont [7/8] 0, 128
        %1888 = vxpose.xlu0.c.b16.end [8/8] 0, 128
        %v1889 = vpop.trf.xlu0
        %v1890 = vpop.trf.xlu0
        %v1891 = vpop.trf.xlu0
        %v1892 = vpop.trf.xlu0
        %v1893 = vpop.trf.xlu0
        %v1894 = vpop.trf.xlu0
        %v1895 = vpop.trf.xlu0
        %v1896 = vpop.trf.xlu0
        %1897 = vxpose.xlu0.c.b16.start [1/8] %v1724, 128
        %1898 = vxpose.xlu0.c.b16.cont [2/8] 0, 128
        %1899 = vxpose.xlu0.c.b16.cont [3/8] 0, 128
        %1900 = vxpose.xlu0.c.b16.cont [4/8] 0, 128
        %1901 = vxpose.xlu0.c.b16.cont [5/8] 0, 128
        %1902 = vxpose.xlu0.c.b16.cont [6/8] 0, 128
        %1903 = vxpose.xlu0.c.b16.cont [7/8] 0, 128
        %1904 = vxpose.xlu0.c.b16.end [8/8] 0, 128
        %v1905 = vpop.trf.xlu0
        %v1906 = vpop.trf.xlu0
        %v1907 = vpop.trf.xlu0
        %v1908 = vpop.trf.xlu0
        %v1909 = vpop.trf.xlu0
        %v1910 = vpop.trf.xlu0
        %v1911 = vpop.trf.xlu0
        %v1912 = vpop.trf.xlu0
        %1913 = vxpose.xlu0.c.b16.start [1/8] %v1725, 128
        %1914 = vxpose.xlu0.c.b16.cont [2/8] 0, 128
        %1915 = vxpose.xlu0.c.b16.cont [3/8] 0, 128
        %1916 = vxpose.xlu0.c.b16.cont [4/8] 0, 128
        %1917 = vxpose.xlu0.c.b16.cont [5/8] 0, 128
        %1918 = vxpose.xlu0.c.b16.cont [6/8] 0, 128
        %1919 = vxpose.xlu0.c.b16.cont [7/8] 0, 128
        %1920 = vxpose.xlu0.c.b16.end [8/8] 0, 128
        %v1921 = vpop.trf.xlu0
        %v1922 = vpop.trf.xlu0
        %v1923 = vpop.trf.xlu0
        %v1924 = vpop.trf.xlu0
        %v1925 = vpop.trf.xlu0
        %v1926 = vpop.trf.xlu0
        %v1927 = vpop.trf.xlu0
        %v1928 = vpop.trf.xlu0
        %1929 = vxpose.xlu0.c.b16.start [1/8] %v1726, 128
        %1930 = vxpose.xlu0.c.b16.cont [2/8] 0, 128
        %1931 = vxpose.xlu0.c.b16.cont [3/8] 0, 128
        %1932 = vxpose.xlu0.c.b16.cont [4/8] 0, 128
        %1933 = vxpose.xlu0.c.b16.cont [5/8] 0, 128
        %1934 = vxpose.xlu0.c.b16.cont [6/8] 0, 128
        %1935 = vxpose.xlu0.c.b16.cont [7/8] 0, 128
        %1936 = vxpose.xlu0.c.b16.end [8/8] 0, 128
        %v1937 = vpop.trf.xlu0
        %v1938 = vpop.trf.xlu0
        %v1939 = vpop.trf.xlu0
        %v1940 = vpop.trf.xlu0
        %v1941 = vpop.trf.xlu0
        %v1942 = vpop.trf.xlu0
        %v1943 = vpop.trf.xlu0
        %v1944 = vpop.trf.xlu0
        %1945 = vxpose.xlu0.c.b16.start [1/8] %v1727, 128
        %1946 = vxpose.xlu0.c.b16.cont [2/8] 0, 128
        %1947 = vxpose.xlu0.c.b16.cont [3/8] 0, 128
        %1948 = vxpose.xlu0.c.b16.cont [4/8] 0, 128
        %1949 = vxpose.xlu0.c.b16.cont [5/8] 0, 128
        %1950 = vxpose.xlu0.c.b16.cont [6/8] 0, 128
        %1951 = vxpose.xlu0.c.b16.cont [7/8] 0, 128
        %1952 = vxpose.xlu0.c.b16.end [8/8] 0, 128
        %v1953 = vpop.trf.xlu0
        %v1954 = vpop.trf.xlu0
        %v1955 = vpop.trf.xlu0
        %v1956 = vpop.trf.xlu0
        %v1957 = vpop.trf.xlu0
        %v1958 = vpop.trf.xlu0
        %v1959 = vpop.trf.xlu0
        %v1960 = vpop.trf.xlu0
        %1961 = vxpose.xlu0.c.b16.start [1/8] %v1728, 128
        %1962 = vxpose.xlu0.c.b16.cont [2/8] 0, 128
        %1963 = vxpose.xlu0.c.b16.cont [3/8] 0, 128
        %1964 = vxpose.xlu0.c.b16.cont [4/8] 0, 128
        %1965 = vxpose.xlu0.c.b16.cont [5/8] 0, 128
        %1966 = vxpose.xlu0.c.b16.cont [6/8] 0, 128
        %1967 = vxpose.xlu0.c.b16.cont [7/8] 0, 128
        %1968 = vxpose.xlu0.c.b16.end [8/8] 0, 128
        %v1969 = vpop.trf.xlu0
        %v1970 = vpop.trf.xlu0
        %v1971 = vpop.trf.xlu0
        %v1972 = vpop.trf.xlu0
        %v1973 = vpop.trf.xlu0
        %v1974 = vpop.trf.xlu0
        %v1975 = vpop.trf.xlu0
        %v1976 = vpop.trf.xlu0
        %1977 = vxpose.xlu0.c.b16.start [1/8] %v1729, 128
        %1978 = vxpose.xlu0.c.b16.cont [2/8] 0, 128
        %1979 = vxpose.xlu0.c.b16.cont [3/8] 0, 128
        %1980 = vxpose.xlu0.c.b16.cont [4/8] 0, 128
        %1981 = vxpose.xlu0.c.b16.cont [5/8] 0, 128
        %1982 = vxpose.xlu0.c.b16.cont [6/8] 0, 128
        %1983 = vxpose.xlu0.c.b16.cont [7/8] 0, 128
        %1984 = vxpose.xlu0.c.b16.end [8/8] 0, 128
        %v1985 = vpop.trf.xlu0
        %v1986 = vpop.trf.xlu0
        %v1987 = vpop.trf.xlu0
        %v1988 = vpop.trf.xlu0
        %v1989 = vpop.trf.xlu0
        %v1990 = vpop.trf.xlu0
        %v1991 = vpop.trf.xlu0
        %v1992 = vpop.trf.xlu0
        %1993 = vxpose.xlu0.c.b16.start [1/8] %v1730, 128
        %1994 = vxpose.xlu0.c.b16.cont [2/8] 0, 128
        %1995 = vxpose.xlu0.c.b16.cont [3/8] 0, 128
        %1996 = vxpose.xlu0.c.b16.cont [4/8] 0, 128
        %1997 = vxpose.xlu0.c.b16.cont [5/8] 0, 128
        %1998 = vxpose.xlu0.c.b16.cont [6/8] 0, 128
        %1999 = vxpose.xlu0.c.b16.cont [7/8] 0, 128
        %2000 = vxpose.xlu0.c.b16.end [8/8] 0, 128
        %v2001 = vpop.trf.xlu0
        %v2002 = vpop.trf.xlu0
        %v2003 = vpop.trf.xlu0
        %v2004 = vpop.trf.xlu0
        %v2005 = vpop.trf.xlu0
        %v2006 = vpop.trf.xlu0
        %v2007 = vpop.trf.xlu0
        %v2008 = vpop.trf.xlu0
        %2009 = vxpose.xlu0.c.b16.start [1/8] %v1731, 128
        %2010 = vxpose.xlu0.c.b16.cont [2/8] 0, 128
        %2011 = vxpose.xlu0.c.b16.cont [3/8] 0, 128
        %2012 = vxpose.xlu0.c.b16.cont [4/8] 0, 128
        %2013 = vxpose.xlu0.c.b16.cont [5/8] 0, 128
        %2014 = vxpose.xlu0.c.b16.cont [6/8] 0, 128
        %2015 = vxpose.xlu0.c.b16.cont [7/8] 0, 128
        %2016 = vxpose.xlu0.c.b16.end [8/8] 0, 128
        %v2017 = vpop.trf.xlu0
        %v2018 = vpop.trf.xlu0
        %v2019 = vpop.trf.xlu0
        %v2020 = vpop.trf.xlu0
        %v2021 = vpop.trf.xlu0
        %v2022 = vpop.trf.xlu0
        %v2023 = vpop.trf.xlu0
        %v2024 = vpop.trf.xlu0
        %2025 = vxpose.xlu0.c.b16.start [1/8] %v1732, 128
        %2026 = vxpose.xlu0.c.b16.cont [2/8] 0, 128
        %2027 = vxpose.xlu0.c.b16.cont [3/8] 0, 128
        %2028 = vxpose.xlu0.c.b16.cont [4/8] 0, 128
        %2029 = vxpose.xlu0.c.b16.cont [5/8] 0, 128
        %2030 = vxpose.xlu0.c.b16.cont [6/8] 0, 128
        %2031 = vxpose.xlu0.c.b16.cont [7/8] 0, 128
        %2032 = vxpose.xlu0.c.b16.end [8/8] 0, 128
        %v2033 = vpop.trf.xlu0
        %v2034 = vpop.trf.xlu0
        %v2035 = vpop.trf.xlu0
        %v2036 = vpop.trf.xlu0
        %v2037 = vpop.trf.xlu0
        %v2038 = vpop.trf.xlu0
        %v2039 = vpop.trf.xlu0
        %v2040 = vpop.trf.xlu0
        %2041 = vxpose.xlu0.c.b16.start [1/8] %v1733, 128
        %2042 = vxpose.xlu0.c.b16.cont [2/8] 0, 128
        %2043 = vxpose.xlu0.c.b16.cont [3/8] 0, 128
        %2044 = vxpose.xlu0.c.b16.cont [4/8] 0, 128
        %2045 = vxpose.xlu0.c.b16.cont [5/8] 0, 128
        %2046 = vxpose.xlu0.c.b16.cont [6/8] 0, 128
        %2047 = vxpose.xlu0.c.b16.cont [7/8] 0, 128
        %2048 = vxpose.xlu0.c.b16.end [8/8] 0, 128
        %v2049 = vpop.trf.xlu0
        %v2050 = vpop.trf.xlu0
        %v2051 = vpop.trf.xlu0
        %v2052 = vpop.trf.xlu0
        %v2053 = vpop.trf.xlu0
        %v2054 = vpop.trf.xlu0
        %v2055 = vpop.trf.xlu0
        %v2056 = vpop.trf.xlu0
        %2057 = vxpose.xlu0.c.b16.start [1/8] %v1734, 128
        %2058 = vxpose.xlu0.c.b16.cont [2/8] 0, 128
        %2059 = vxpose.xlu0.c.b16.cont [3/8] 0, 128
        %2060 = vxpose.xlu0.c.b16.cont [4/8] 0, 128
        %2061 = vxpose.xlu0.c.b16.cont [5/8] 0, 128
        %2062 = vxpose.xlu0.c.b16.cont [6/8] 0, 128
        %2063 = vxpose.xlu0.c.b16.cont [7/8] 0, 128
        %2064 = vxpose.xlu0.c.b16.end [8/8] 0, 128
        %v2065 = vpop.trf.xlu0
        %v2066 = vpop.trf.xlu0
        %v2067 = vpop.trf.xlu0
        %v2068 = vpop.trf.xlu0
        %v2069 = vpop.trf.xlu0
        %v2070 = vpop.trf.xlu0
        %v2071 = vpop.trf.xlu0
        %v2072 = vpop.trf.xlu0
        %2073 = vxpose.xlu0.c.b16.start [1/8] %v1735, 128
        %2074 = vxpose.xlu0.c.b16.cont [2/8] 0, 128
        %2075 = vxpose.xlu0.c.b16.cont [3/8] 0, 128
        %2076 = vxpose.xlu0.c.b16.cont [4/8] 0, 128
        %2077 = vxpose.xlu0.c.b16.cont [5/8] 0, 128
        %2078 = vxpose.xlu0.c.b16.cont [6/8] 0, 128
        %2079 = vxpose.xlu0.c.b16.cont [7/8] 0, 128
        %2080 = vxpose.xlu0.c.b16.end [8/8] 0, 128
        %v2081 = vpop.trf.xlu0
        %v2082 = vpop.trf.xlu0
        %v2083 = vpop.trf.xlu0
        %v2084 = vpop.trf.xlu0
        %v2085 = vpop.trf.xlu0
        %v2086 = vpop.trf.xlu0
        %v2087 = vpop.trf.xlu0
        %v2088 = vpop.trf.xlu0
        %2089 = vxpose.xlu0.c.b16.start [1/8] %v1736, 128
        %2090 = vxpose.xlu0.c.b16.cont [2/8] 0, 128
        %2091 = vxpose.xlu0.c.b16.cont [3/8] 0, 128
        %2092 = vxpose.xlu0.c.b16.cont [4/8] 0, 128
        %2093 = vxpose.xlu0.c.b16.cont [5/8] 0, 128
        %2094 = vxpose.xlu0.c.b16.cont [6/8] 0, 128
        %2095 = vxpose.xlu0.c.b16.cont [7/8] 0, 128
        %2096 = vxpose.xlu0.c.b16.end [8/8] 0, 128
        %v2097 = vpop.trf.xlu0
        %v2098 = vpop.trf.xlu0
        %v2099 = vpop.trf.xlu0
        %v2100 = vpop.trf.xlu0
        %v2101 = vpop.trf.xlu0
        %v2102 = vpop.trf.xlu0
        %v2103 = vpop.trf.xlu0
        %v2104 = vpop.trf.xlu0
        %v2105 = vcombine.low %v1857, %v1921
        %v2106 = vcombine.high %v1857, %v1921
        %v2108 = vunpack.c.l.s4 1983009808
        %v2109 = vunpack.c.0.s8 %v2108
        %v2110 = vlaneseq
        %v2111 = vshrl.u32 %v2110, 7
        %v2112 = vsub.s32 %v2109, %v2111
        %v2113 = vrot.slane %v2105, %v2112
        %v2115 = vunpack.c.l.s4 1983009808
        %v2116 = vunpack.c.0.s8 %v2115
        %v2117 = vlaneseq
        %v2118 = vshrl.u32 %v2117, 7
        %v2119 = vsub.s32 %v2116, %v2118
        %v2120 = vrot.slane %v2106, %v2119
        %v2121 = vcombine.low %v1889, %v1953
        %v2122 = vcombine.high %v1889, %v1953
        %v2124 = vunpack.c.l.s4 1983009808
        %v2125 = vunpack.c.0.s8 %v2124
        %v2126 = vlaneseq
        %v2127 = vshrl.u32 %v2126, 7
        %v2128 = vsub.s32 %v2125, %v2127
        %v2129 = vrot.slane %v2121, %v2128
        %v2131 = vunpack.c.l.s4 1983009808
        %v2132 = vunpack.c.0.s8 %v2131
        %v2133 = vlaneseq
        %v2134 = vshrl.u32 %v2133, 7
        %v2135 = vsub.s32 %v2132, %v2134
        %v2136 = vrot.slane %v2122, %v2135
        %v2137 = vcombine.low %v1985, %v2049
        %v2138 = vcombine.high %v1985, %v2049
        %v2140 = vunpack.c.l.s4 1983009808
        %v2141 = vunpack.c.0.s8 %v2140
        %v2142 = vlaneseq
        %v2143 = vshrl.u32 %v2142, 7
        %v2144 = vsub.s32 %v2141, %v2143
        %v2145 = vrot.slane %v2137, %v2144
        %v2147 = vunpack.c.l.s4 1983009808
        %v2148 = vunpack.c.0.s8 %v2147
        %v2149 = vlaneseq
        %v2150 = vshrl.u32 %v2149, 7
        %v2151 = vsub.s32 %v2148, %v2150
        %v2152 = vrot.slane %v2138, %v2151
        %v2153 = vcombine.low %v2017, %v2081
        %v2154 = vcombine.high %v2017, %v2081
        %v2156 = vunpack.c.l.s4 1983009808
        %v2157 = vunpack.c.0.s8 %v2156
        %v2158 = vlaneseq
        %v2159 = vshrl.u32 %v2158, 7
        %v2160 = vsub.s32 %v2157, %v2159
        %v2161 = vrot.slane %v2153, %v2160
        %v2163 = vunpack.c.l.s4 1983009808
        %v2164 = vunpack.c.0.s8 %v2163
        %v2165 = vlaneseq
        %v2166 = vshrl.u32 %v2165, 7
        %v2167 = vsub.s32 %v2164, %v2166
        %v2168 = vrot.slane %v2154, %v2167
        %v2169 = vcombine.low %v2113, %v2129
        %v2170 = vcombine.high %v2113, %v2129
        %v2172 = vunpack.c.l.s4 1934713408
        %v2173 = vunpack.c.0.s8 %v2172
        %v2174 = vlaneseq
        %v2175 = vshrl.u32 %v2174, 7
        %v2176 = vsub.s32 %v2173, %v2175
        %v2177 = vrot.slane %v2169, %v2176
        %v2179 = vunpack.c.l.s4 1934713408
        %v2180 = vunpack.c.0.s8 %v2179
        %v2181 = vlaneseq
        %v2182 = vshrl.u32 %v2181, 7
        %v2183 = vsub.s32 %v2180, %v2182
        %v2184 = vrot.slane %v2170, %v2183
        %v2185 = vcombine.low %v2120, %v2136
        %v2186 = vcombine.high %v2120, %v2136
        %v2188 = vunpack.c.l.s4 1934713408
        %v2189 = vunpack.c.0.s8 %v2188
        %v2190 = vlaneseq
        %v2191 = vshrl.u32 %v2190, 7
        %v2192 = vsub.s32 %v2189, %v2191
        %v2193 = vrot.slane %v2185, %v2192
        %v2195 = vunpack.c.l.s4 1934713408
        %v2196 = vunpack.c.0.s8 %v2195
        %v2197 = vlaneseq
        %v2198 = vshrl.u32 %v2197, 7
        %v2199 = vsub.s32 %v2196, %v2198
        %v2200 = vrot.slane %v2186, %v2199
        %v2201 = vcombine.low %v2145, %v2161
        %v2202 = vcombine.high %v2145, %v2161
        %v2204 = vunpack.c.l.s4 1934713408
        %v2205 = vunpack.c.0.s8 %v2204
        %v2206 = vlaneseq
        %v2207 = vshrl.u32 %v2206, 7
        %v2208 = vsub.s32 %v2205, %v2207
        %v2209 = vrot.slane %v2201, %v2208
        %v2211 = vunpack.c.l.s4 1934713408
        %v2212 = vunpack.c.0.s8 %v2211
        %v2213 = vlaneseq
        %v2214 = vshrl.u32 %v2213, 7
        %v2215 = vsub.s32 %v2212, %v2214
        %v2216 = vrot.slane %v2202, %v2215
        %v2217 = vcombine.low %v2152, %v2168
        %v2218 = vcombine.high %v2152, %v2168
        %v2220 = vunpack.c.l.s4 1934713408
        %v2221 = vunpack.c.0.s8 %v2220
        %v2222 = vlaneseq
        %v2223 = vshrl.u32 %v2222, 7
        %v2224 = vsub.s32 %v2221, %v2223
        %v2225 = vrot.slane %v2217, %v2224
        %v2227 = vunpack.c.l.s4 1934713408
        %v2228 = vunpack.c.0.s8 %v2227
        %v2229 = vlaneseq
        %v2230 = vshrl.u32 %v2229, 7
        %v2231 = vsub.s32 %v2228, %v2230
        %v2232 = vrot.slane %v2218, %v2231
        %v2233 = vcombine.low %v2177, %v2209
        %v2234 = vcombine.high %v2177, %v2209
        %v2235 = vcombine.low %v2184, %v2216
        %v2236 = vcombine.high %v2184, %v2216
        %v2237 = vcombine.low %v2193, %v2225
        %v2238 = vcombine.high %v2193, %v2225
        %v2239 = vcombine.low %v2200, %v2232
        %v2240 = vcombine.high %v2200, %v2232
        %v2241 = vcombine.low %v1873, %v1937
        %v2242 = vcombine.high %v1873, %v1937
        %v2244 = vunpack.c.l.s4 1983009808
        %v2245 = vunpack.c.0.s8 %v2244
        %v2246 = vlaneseq
        %v2247 = vshrl.u32 %v2246, 7
        %v2248 = vsub.s32 %v2245, %v2247
        %v2249 = vrot.slane %v2241, %v2248
        %v2251 = vunpack.c.l.s4 1983009808
        %v2252 = vunpack.c.0.s8 %v2251
        %v2253 = vlaneseq
        %v2254 = vshrl.u32 %v2253, 7
        %v2255 = vsub.s32 %v2252, %v2254
        %v2256 = vrot.slane %v2242, %v2255
        %v2257 = vcombine.low %v1905, %v1969
        %v2258 = vcombine.high %v1905, %v1969
        %v2260 = vunpack.c.l.s4 1983009808
        %v2261 = vunpack.c.0.s8 %v2260
        %v2262 = vlaneseq
        %v2263 = vshrl.u32 %v2262, 7
        %v2264 = vsub.s32 %v2261, %v2263
        %v2265 = vrot.slane %v2257, %v2264
        %v2267 = vunpack.c.l.s4 1983009808
        %v2268 = vunpack.c.0.s8 %v2267
        %v2269 = vlaneseq
        %v2270 = vshrl.u32 %v2269, 7
        %v2271 = vsub.s32 %v2268, %v2270
        %v2272 = vrot.slane %v2258, %v2271
        %v2273 = vcombine.low %v2001, %v2065
        %v2274 = vcombine.high %v2001, %v2065
        %v2276 = vunpack.c.l.s4 1983009808
        %v2277 = vunpack.c.0.s8 %v2276
        %v2278 = vlaneseq
        %v2279 = vshrl.u32 %v2278, 7
        %v2280 = vsub.s32 %v2277, %v2279
        %v2281 = vrot.slane %v2273, %v2280
        %v2283 = vunpack.c.l.s4 1983009808
        %v2284 = vunpack.c.0.s8 %v2283
        %v2285 = vlaneseq
        %v2286 = vshrl.u32 %v2285, 7
        %v2287 = vsub.s32 %v2284, %v2286
        %v2288 = vrot.slane %v2274, %v2287
        %v2289 = vcombine.low %v2033, %v2097
        %v2290 = vcombine.high %v2033, %v2097
        %v2292 = vunpack.c.l.s4 1983009808
        %v2293 = vunpack.c.0.s8 %v2292
        %v2294 = vlaneseq
        %v2295 = vshrl.u32 %v2294, 7
        %v2296 = vsub.s32 %v2293, %v2295
        %v2297 = vrot.slane %v2289, %v2296
        %v2299 = vunpack.c.l.s4 1983009808
        %v2300 = vunpack.c.0.s8 %v2299
        %v2301 = vlaneseq
        %v2302 = vshrl.u32 %v2301, 7
        %v2303 = vsub.s32 %v2300, %v2302
        %v2304 = vrot.slane %v2290, %v2303
        %v2305 = vcombine.low %v2249, %v2265
        %v2306 = vcombine.high %v2249, %v2265
        %v2308 = vunpack.c.l.s4 1934713408
        %v2309 = vunpack.c.0.s8 %v2308
        %v2310 = vlaneseq
        %v2311 = vshrl.u32 %v2310, 7
        %v2312 = vsub.s32 %v2309, %v2311
        %v2313 = vrot.slane %v2305, %v2312
        %v2315 = vunpack.c.l.s4 1934713408
        %v2316 = vunpack.c.0.s8 %v2315
        %v2317 = vlaneseq
        %v2318 = vshrl.u32 %v2317, 7
        %v2319 = vsub.s32 %v2316, %v2318
        %v2320 = vrot.slane %v2306, %v2319
        %v2321 = vcombine.low %v2256, %v2272
        %v2322 = vcombine.high %v2256, %v2272
        %v2324 = vunpack.c.l.s4 1934713408
        %v2325 = vunpack.c.0.s8 %v2324
        %v2326 = vlaneseq
        %v2327 = vshrl.u32 %v2326, 7
        %v2328 = vsub.s32 %v2325, %v2327
        %v2329 = vrot.slane %v2321, %v2328
        %v2331 = vunpack.c.l.s4 1934713408
        %v2332 = vunpack.c.0.s8 %v2331
        %v2333 = vlaneseq
        %v2334 = vshrl.u32 %v2333, 7
        %v2335 = vsub.s32 %v2332, %v2334
        %v2336 = vrot.slane %v2322, %v2335
        %v2337 = vcombine.low %v2281, %v2297
        %v2338 = vcombine.high %v2281, %v2297
        %v2340 = vunpack.c.l.s4 1934713408
        %v2341 = vunpack.c.0.s8 %v2340
        %v2342 = vlaneseq
        %v2343 = vshrl.u32 %v2342, 7
        %v2344 = vsub.s32 %v2341, %v2343
        %v2345 = vrot.slane %v2337, %v2344
        %v2347 = vunpack.c.l.s4 1934713408
        %v2348 = vunpack.c.0.s8 %v2347
        %v2349 = vlaneseq
        %v2350 = vshrl.u32 %v2349, 7
        %v2351 = vsub.s32 %v2348, %v2350
        %v2352 = vrot.slane %v2338, %v2351
        %v2353 = vcombine.low %v2288, %v2304
        %v2354 = vcombine.high %v2288, %v2304
        %v2356 = vunpack.c.l.s4 1934713408
        %v2357 = vunpack.c.0.s8 %v2356
        %v2358 = vlaneseq
        %v2359 = vshrl.u32 %v2358, 7
        %v2360 = vsub.s32 %v2357, %v2359
        %v2361 = vrot.slane %v2353, %v2360
        %v2363 = vunpack.c.l.s4 1934713408
        %v2364 = vunpack.c.0.s8 %v2363
        %v2365 = vlaneseq
        %v2366 = vshrl.u32 %v2365, 7
        %v2367 = vsub.s32 %v2364, %v2366
        %v2368 = vrot.slane %v2354, %v2367
        %v2369 = vcombine.low %v2313, %v2345
        %v2370 = vcombine.high %v2313, %v2345
        %v2371 = vcombine.low %v2320, %v2352
        %v2372 = vcombine.high %v2320, %v2352
        %v2373 = vcombine.low %v2329, %v2361
        %v2374 = vcombine.high %v2329, %v2361
        %v2375 = vcombine.low %v2336, %v2368
        %v2376 = vcombine.high %v2336, %v2368
        %v2377 = vcombine.low %v1858, %v1922
        %v2378 = vcombine.high %v1858, %v1922
        %v2380 = vunpack.c.l.s4 1983009808
        %v2381 = vunpack.c.0.s8 %v2380
        %v2382 = vlaneseq
        %v2383 = vshrl.u32 %v2382, 7
        %v2384 = vsub.s32 %v2381, %v2383
        %v2385 = vrot.slane %v2377, %v2384
        %v2387 = vunpack.c.l.s4 1983009808
        %v2388 = vunpack.c.0.s8 %v2387
        %v2389 = vlaneseq
        %v2390 = vshrl.u32 %v2389, 7
        %v2391 = vsub.s32 %v2388, %v2390
        %v2392 = vrot.slane %v2378, %v2391
        %v2393 = vcombine.low %v1890, %v1954
        %v2394 = vcombine.high %v1890, %v1954
        %v2396 = vunpack.c.l.s4 1983009808
        %v2397 = vunpack.c.0.s8 %v2396
        %v2398 = vlaneseq
        %v2399 = vshrl.u32 %v2398, 7
        %v2400 = vsub.s32 %v2397, %v2399
        %v2401 = vrot.slane %v2393, %v2400
        %v2403 = vunpack.c.l.s4 1983009808
        %v2404 = vunpack.c.0.s8 %v2403
        %v2405 = vlaneseq
        %v2406 = vshrl.u32 %v2405, 7
        %v2407 = vsub.s32 %v2404, %v2406
        %v2408 = vrot.slane %v2394, %v2407
        %v2409 = vcombine.low %v1986, %v2050
        %v2410 = vcombine.high %v1986, %v2050
        %v2412 = vunpack.c.l.s4 1983009808
        %v2413 = vunpack.c.0.s8 %v2412
        %v2414 = vlaneseq
        %v2415 = vshrl.u32 %v2414, 7
        %v2416 = vsub.s32 %v2413, %v2415
        %v2417 = vrot.slane %v2409, %v2416
        %v2419 = vunpack.c.l.s4 1983009808
        %v2420 = vunpack.c.0.s8 %v2419
        %v2421 = vlaneseq
        %v2422 = vshrl.u32 %v2421, 7
        %v2423 = vsub.s32 %v2420, %v2422
        %v2424 = vrot.slane %v2410, %v2423
        %v2425 = vcombine.low %v2018, %v2082
        %v2426 = vcombine.high %v2018, %v2082
        %v2428 = vunpack.c.l.s4 1983009808
        %v2429 = vunpack.c.0.s8 %v2428
        %v2430 = vlaneseq
        %v2431 = vshrl.u32 %v2430, 7
        %v2432 = vsub.s32 %v2429, %v2431
        %v2433 = vrot.slane %v2425, %v2432
        %v2435 = vunpack.c.l.s4 1983009808
        %v2436 = vunpack.c.0.s8 %v2435
        %v2437 = vlaneseq
        %v2438 = vshrl.u32 %v2437, 7
        %v2439 = vsub.s32 %v2436, %v2438
        %v2440 = vrot.slane %v2426, %v2439
        %v2441 = vcombine.low %v2385, %v2401
        %v2442 = vcombine.high %v2385, %v2401
        %v2444 = vunpack.c.l.s4 1934713408
        %v2445 = vunpack.c.0.s8 %v2444
        %v2446 = vlaneseq
        %v2447 = vshrl.u32 %v2446, 7
        %v2448 = vsub.s32 %v2445, %v2447
        %v2449 = vrot.slane %v2441, %v2448
        %v2451 = vunpack.c.l.s4 1934713408
        %v2452 = vunpack.c.0.s8 %v2451
        %v2453 = vlaneseq
        %v2454 = vshrl.u32 %v2453, 7
        %v2455 = vsub.s32 %v2452, %v2454
        %v2456 = vrot.slane %v2442, %v2455
        %v2457 = vcombine.low %v2392, %v2408
        %v2458 = vcombine.high %v2392, %v2408
        %v2460 = vunpack.c.l.s4 1934713408
        %v2461 = vunpack.c.0.s8 %v2460
        %v2462 = vlaneseq
        %v2463 = vshrl.u32 %v2462, 7
        %v2464 = vsub.s32 %v2461, %v2463
        %v2465 = vrot.slane %v2457, %v2464
        %v2467 = vunpack.c.l.s4 1934713408
        %v2468 = vunpack.c.0.s8 %v2467
        %v2469 = vlaneseq
        %v2470 = vshrl.u32 %v2469, 7
        %v2471 = vsub.s32 %v2468, %v2470
        %v2472 = vrot.slane %v2458, %v2471
        %v2473 = vcombine.low %v2417, %v2433
        %v2474 = vcombine.high %v2417, %v2433
        %v2476 = vunpack.c.l.s4 1934713408
        %v2477 = vunpack.c.0.s8 %v2476
        %v2478 = vlaneseq
        %v2479 = vshrl.u32 %v2478, 7
        %v2480 = vsub.s32 %v2477, %v2479
        %v2481 = vrot.slane %v2473, %v2480
        %v2483 = vunpack.c.l.s4 1934713408
        %v2484 = vunpack.c.0.s8 %v2483
        %v2485 = vlaneseq
        %v2486 = vshrl.u32 %v2485, 7
        %v2487 = vsub.s32 %v2484, %v2486
        %v2488 = vrot.slane %v2474, %v2487
        %v2489 = vcombine.low %v2424, %v2440
        %v2490 = vcombine.high %v2424, %v2440
        %v2492 = vunpack.c.l.s4 1934713408
        %v2493 = vunpack.c.0.s8 %v2492
        %v2494 = vlaneseq
        %v2495 = vshrl.u32 %v2494, 7
        %v2496 = vsub.s32 %v2493, %v2495
        %v2497 = vrot.slane %v2489, %v2496
        %v2499 = vunpack.c.l.s4 1934713408
        %v2500 = vunpack.c.0.s8 %v2499
        %v2501 = vlaneseq
        %v2502 = vshrl.u32 %v2501, 7
        %v2503 = vsub.s32 %v2500, %v2502
        %v2504 = vrot.slane %v2490, %v2503
        %v2505 = vcombine.low %v2449, %v2481
        %v2506 = vcombine.high %v2449, %v2481
        %v2507 = vcombine.low %v2456, %v2488
        %v2508 = vcombine.high %v2456, %v2488
        %v2509 = vcombine.low %v2465, %v2497
        %v2510 = vcombine.high %v2465, %v2497
        %v2511 = vcombine.low %v2472, %v2504
        %v2512 = vcombine.high %v2472, %v2504
        %v2513 = vcombine.low %v1874, %v1938
        %v2514 = vcombine.high %v1874, %v1938
        %v2516 = vunpack.c.l.s4 1983009808
        %v2517 = vunpack.c.0.s8 %v2516
        %v2518 = vlaneseq
        %v2519 = vshrl.u32 %v2518, 7
        %v2520 = vsub.s32 %v2517, %v2519
        %v2521 = vrot.slane %v2513, %v2520
        %v2523 = vunpack.c.l.s4 1983009808
        %v2524 = vunpack.c.0.s8 %v2523
        %v2525 = vlaneseq
        %v2526 = vshrl.u32 %v2525, 7
        %v2527 = vsub.s32 %v2524, %v2526
        %v2528 = vrot.slane %v2514, %v2527
        %v2529 = vcombine.low %v1906, %v1970
        %v2530 = vcombine.high %v1906, %v1970
        %v2532 = vunpack.c.l.s4 1983009808
        %v2533 = vunpack.c.0.s8 %v2532
        %v2534 = vlaneseq
        %v2535 = vshrl.u32 %v2534, 7
        %v2536 = vsub.s32 %v2533, %v2535
        %v2537 = vrot.slane %v2529, %v2536
        %v2539 = vunpack.c.l.s4 1983009808
        %v2540 = vunpack.c.0.s8 %v2539
        %v2541 = vlaneseq
        %v2542 = vshrl.u32 %v2541, 7
        %v2543 = vsub.s32 %v2540, %v2542
        %v2544 = vrot.slane %v2530, %v2543
        %v2545 = vcombine.low %v2002, %v2066
        %v2546 = vcombine.high %v2002, %v2066
        %v2548 = vunpack.c.l.s4 1983009808
        %v2549 = vunpack.c.0.s8 %v2548
        %v2550 = vlaneseq
        %v2551 = vshrl.u32 %v2550, 7
        %v2552 = vsub.s32 %v2549, %v2551
        %v2553 = vrot.slane %v2545, %v2552
        %v2555 = vunpack.c.l.s4 1983009808
        %v2556 = vunpack.c.0.s8 %v2555
        %v2557 = vlaneseq
        %v2558 = vshrl.u32 %v2557, 7
        %v2559 = vsub.s32 %v2556, %v2558
        %v2560 = vrot.slane %v2546, %v2559
        %v2561 = vcombine.low %v2034, %v2098
        %v2562 = vcombine.high %v2034, %v2098
        %v2564 = vunpack.c.l.s4 1983009808
        %v2565 = vunpack.c.0.s8 %v2564
        %v2566 = vlaneseq
        %v2567 = vshrl.u32 %v2566, 7
        %v2568 = vsub.s32 %v2565, %v2567
        %v2569 = vrot.slane %v2561, %v2568
        %v2571 = vunpack.c.l.s4 1983009808
        %v2572 = vunpack.c.0.s8 %v2571
        %v2573 = vlaneseq
        %v2574 = vshrl.u32 %v2573, 7
        %v2575 = vsub.s32 %v2572, %v2574
        %v2576 = vrot.slane %v2562, %v2575
        %v2577 = vcombine.low %v2521, %v2537
        %v2578 = vcombine.high %v2521, %v2537
        %v2580 = vunpack.c.l.s4 1934713408
        %v2581 = vunpack.c.0.s8 %v2580
        %v2582 = vlaneseq
        %v2583 = vshrl.u32 %v2582, 7
        %v2584 = vsub.s32 %v2581, %v2583
        %v2585 = vrot.slane %v2577, %v2584
        %v2587 = vunpack.c.l.s4 1934713408
        %v2588 = vunpack.c.0.s8 %v2587
        %v2589 = vlaneseq
        %v2590 = vshrl.u32 %v2589, 7
        %v2591 = vsub.s32 %v2588, %v2590
        %v2592 = vrot.slane %v2578, %v2591
        %v2593 = vcombine.low %v2528, %v2544
        %v2594 = vcombine.high %v2528, %v2544
        %v2596 = vunpack.c.l.s4 1934713408
        %v2597 = vunpack.c.0.s8 %v2596
        %v2598 = vlaneseq
        %v2599 = vshrl.u32 %v2598, 7
        %v2600 = vsub.s32 %v2597, %v2599
        %v2601 = vrot.slane %v2593, %v2600
        %v2603 = vunpack.c.l.s4 1934713408
        %v2604 = vunpack.c.0.s8 %v2603
        %v2605 = vlaneseq
        %v2606 = vshrl.u32 %v2605, 7
        %v2607 = vsub.s32 %v2604, %v2606
        %v2608 = vrot.slane %v2594, %v2607
        %v2609 = vcombine.low %v2553, %v2569
        %v2610 = vcombine.high %v2553, %v2569
        %v2612 = vunpack.c.l.s4 1934713408
        %v2613 = vunpack.c.0.s8 %v2612
        %v2614 = vlaneseq
        %v2615 = vshrl.u32 %v2614, 7
        %v2616 = vsub.s32 %v2613, %v2615
        %v2617 = vrot.slane %v2609, %v2616
        %v2619 = vunpack.c.l.s4 1934713408
        %v2620 = vunpack.c.0.s8 %v2619
        %v2621 = vlaneseq
        %v2622 = vshrl.u32 %v2621, 7
        %v2623 = vsub.s32 %v2620, %v2622
        %v2624 = vrot.slane %v2610, %v2623
        %v2625 = vcombine.low %v2560, %v2576
        %v2626 = vcombine.high %v2560, %v2576
        %v2628 = vunpack.c.l.s4 1934713408
        %v2629 = vunpack.c.0.s8 %v2628
        %v2630 = vlaneseq
        %v2631 = vshrl.u32 %v2630, 7
        %v2632 = vsub.s32 %v2629, %v2631
        %v2633 = vrot.slane %v2625, %v2632
        %v2635 = vunpack.c.l.s4 1934713408
        %v2636 = vunpack.c.0.s8 %v2635
        %v2637 = vlaneseq
        %v2638 = vshrl.u32 %v2637, 7
        %v2639 = vsub.s32 %v2636, %v2638
        %v2640 = vrot.slane %v2626, %v2639
        %v2641 = vcombine.low %v2585, %v2617
        %v2642 = vcombine.high %v2585, %v2617
        %v2643 = vcombine.low %v2592, %v2624
        %v2644 = vcombine.high %v2592, %v2624
        %v2645 = vcombine.low %v2601, %v2633
        %v2646 = vcombine.high %v2601, %v2633
        %v2647 = vcombine.low %v2608, %v2640
        %v2648 = vcombine.high %v2608, %v2640
        %v2651 = vpack.i.b16 %v2369, %v2233
        %v2653 = vshrl.u32 %v2233, 16
        %v2654 = vshrl.u32 %v2369, 16
        %v2655 = vpack.i.b16 %v2654, %v2653
        %v2659 = vpack.i.b16 %v2370, %v2234
        %v2661 = vshrl.u32 %v2234, 16
        %v2662 = vshrl.u32 %v2370, 16
        %v2663 = vpack.i.b16 %v2662, %v2661
        %v2667 = vpack.i.b16 %v2371, %v2235
        %v2669 = vshrl.u32 %v2235, 16
        %v2670 = vshrl.u32 %v2371, 16
        %v2671 = vpack.i.b16 %v2670, %v2669
        %v2675 = vpack.i.b16 %v2372, %v2236
        %v2677 = vshrl.u32 %v2236, 16
        %v2678 = vshrl.u32 %v2372, 16
        %v2679 = vpack.i.b16 %v2678, %v2677
        %v2683 = vpack.i.b16 %v2373, %v2237
        %v2685 = vshrl.u32 %v2237, 16
        %v2686 = vshrl.u32 %v2373, 16
        %v2687 = vpack.i.b16 %v2686, %v2685
        %v2691 = vpack.i.b16 %v2374, %v2238
        %v2693 = vshrl.u32 %v2238, 16
        %v2694 = vshrl.u32 %v2374, 16
        %v2695 = vpack.i.b16 %v2694, %v2693
        %v2699 = vpack.i.b16 %v2375, %v2239
        %v2701 = vshrl.u32 %v2239, 16
        %v2702 = vshrl.u32 %v2375, 16
        %v2703 = vpack.i.b16 %v2702, %v2701
        %v2707 = vpack.i.b16 %v2376, %v2240
        %v2709 = vshrl.u32 %v2240, 16
        %v2710 = vshrl.u32 %v2376, 16
        %v2711 = vpack.i.b16 %v2710, %v2709
        %v2715 = vpack.i.b16 %v2641, %v2505
        %v2717 = vshrl.u32 %v2505, 16
        %v2718 = vshrl.u32 %v2641, 16
        %v2719 = vpack.i.b16 %v2718, %v2717
        %v2723 = vpack.i.b16 %v2642, %v2506
        %v2725 = vshrl.u32 %v2506, 16
        %v2726 = vshrl.u32 %v2642, 16
        %v2727 = vpack.i.b16 %v2726, %v2725
        %v2731 = vpack.i.b16 %v2643, %v2507
        %v2733 = vshrl.u32 %v2507, 16
        %v2734 = vshrl.u32 %v2643, 16
        %v2735 = vpack.i.b16 %v2734, %v2733
        %v2739 = vpack.i.b16 %v2644, %v2508
        %v2741 = vshrl.u32 %v2508, 16
        %v2742 = vshrl.u32 %v2644, 16
        %v2743 = vpack.i.b16 %v2742, %v2741
        %v2747 = vpack.i.b16 %v2645, %v2509
        %v2749 = vshrl.u32 %v2509, 16
        %v2750 = vshrl.u32 %v2645, 16
        %v2751 = vpack.i.b16 %v2750, %v2749
        %v2755 = vpack.i.b16 %v2646, %v2510
        %v2757 = vshrl.u32 %v2510, 16
        %v2758 = vshrl.u32 %v2646, 16
        %v2759 = vpack.i.b16 %v2758, %v2757
        %v2763 = vpack.i.b16 %v2647, %v2511
        %v2765 = vshrl.u32 %v2511, 16
        %v2766 = vshrl.u32 %v2647, 16
        %v2767 = vpack.i.b16 %v2766, %v2765
        %v2771 = vpack.i.b16 %v2648, %v2512
        %v2773 = vshrl.u32 %v2512, 16
        %v2774 = vshrl.u32 %v2648, 16
        %v2775 = vpack.i.b16 %v2774, %v2773
        %2777 = vxpose.xlu0.c.b16.start [1/8] %v2651, 128
        %2778 = vxpose.xlu0.c.b16.cont [2/8] 0, 128
        %2779 = vxpose.xlu0.c.b16.cont [3/8] 0, 128
        %2780 = vxpose.xlu0.c.b16.cont [4/8] 0, 128
        %2781 = vxpose.xlu0.c.b16.cont [5/8] 0, 128
        %2782 = vxpose.xlu0.c.b16.cont [6/8] 0, 128
        %2783 = vxpose.xlu0.c.b16.cont [7/8] 0, 128
        %2784 = vxpose.xlu0.c.b16.end [8/8] 0, 128
        %v2785 = vpop.trf.xlu0
        %v2786 = vpop.trf.xlu0
        %v2787 = vpop.trf.xlu0
        %v2788 = vpop.trf.xlu0
        %v2789 = vpop.trf.xlu0
        %v2790 = vpop.trf.xlu0
        %v2791 = vpop.trf.xlu0
        %v2792 = vpop.trf.xlu0
        %2793 = vxpose.xlu0.c.b16.start [1/8] %v2655, 128
        %2794 = vxpose.xlu0.c.b16.cont [2/8] 0, 128
        %2795 = vxpose.xlu0.c.b16.cont [3/8] 0, 128
        %2796 = vxpose.xlu0.c.b16.cont [4/8] 0, 128
        %2797 = vxpose.xlu0.c.b16.cont [5/8] 0, 128
        %2798 = vxpose.xlu0.c.b16.cont [6/8] 0, 128
        %2799 = vxpose.xlu0.c.b16.cont [7/8] 0, 128
        %2800 = vxpose.xlu0.c.b16.end [8/8] 0, 128
        %v2801 = vpop.trf.xlu0
        %v2802 = vpop.trf.xlu0
        %v2803 = vpop.trf.xlu0
        %v2804 = vpop.trf.xlu0
        %v2805 = vpop.trf.xlu0
        %v2806 = vpop.trf.xlu0
        %v2807 = vpop.trf.xlu0
        %v2808 = vpop.trf.xlu0
        %2809 = vxpose.xlu0.c.b16.start [1/8] %v2659, 128
        %2810 = vxpose.xlu0.c.b16.cont [2/8] 0, 128
        %2811 = vxpose.xlu0.c.b16.cont [3/8] 0, 128
        %2812 = vxpose.xlu0.c.b16.cont [4/8] 0, 128
        %2813 = vxpose.xlu0.c.b16.cont [5/8] 0, 128
        %2814 = vxpose.xlu0.c.b16.cont [6/8] 0, 128
        %2815 = vxpose.xlu0.c.b16.cont [7/8] 0, 128
        %2816 = vxpose.xlu0.c.b16.end [8/8] 0, 128
        %v2817 = vpop.trf.xlu0
        %v2818 = vpop.trf.xlu0
        %v2819 = vpop.trf.xlu0
        %v2820 = vpop.trf.xlu0
        %v2821 = vpop.trf.xlu0
        %v2822 = vpop.trf.xlu0
        %v2823 = vpop.trf.xlu0
        %v2824 = vpop.trf.xlu0
        %2825 = vxpose.xlu0.c.b16.start [1/8] %v2663, 128
        %2826 = vxpose.xlu0.c.b16.cont [2/8] 0, 128
        %2827 = vxpose.xlu0.c.b16.cont [3/8] 0, 128
        %2828 = vxpose.xlu0.c.b16.cont [4/8] 0, 128
        %2829 = vxpose.xlu0.c.b16.cont [5/8] 0, 128
        %2830 = vxpose.xlu0.c.b16.cont [6/8] 0, 128
        %2831 = vxpose.xlu0.c.b16.cont [7/8] 0, 128
        %2832 = vxpose.xlu0.c.b16.end [8/8] 0, 128
        %v2833 = vpop.trf.xlu0
        %v2834 = vpop.trf.xlu0
        %v2835 = vpop.trf.xlu0
        %v2836 = vpop.trf.xlu0
        %v2837 = vpop.trf.xlu0
        %v2838 = vpop.trf.xlu0
        %v2839 = vpop.trf.xlu0
        %v2840 = vpop.trf.xlu0
        %2841 = vxpose.xlu0.c.b16.start [1/8] %v2667, 128
        %2842 = vxpose.xlu0.c.b16.cont [2/8] 0, 128
        %2843 = vxpose.xlu0.c.b16.cont [3/8] 0, 128
        %2844 = vxpose.xlu0.c.b16.cont [4/8] 0, 128
        %2845 = vxpose.xlu0.c.b16.cont [5/8] 0, 128
        %2846 = vxpose.xlu0.c.b16.cont [6/8] 0, 128
        %2847 = vxpose.xlu0.c.b16.cont [7/8] 0, 128
        %2848 = vxpose.xlu0.c.b16.end [8/8] 0, 128
        %v2849 = vpop.trf.xlu0
        %v2850 = vpop.trf.xlu0
        %v2851 = vpop.trf.xlu0
        %v2852 = vpop.trf.xlu0
        %v2853 = vpop.trf.xlu0
        %v2854 = vpop.trf.xlu0
        %v2855 = vpop.trf.xlu0
        %v2856 = vpop.trf.xlu0
        %2857 = vxpose.xlu0.c.b16.start [1/8] %v2671, 128
        %2858 = vxpose.xlu0.c.b16.cont [2/8] 0, 128
        %2859 = vxpose.xlu0.c.b16.cont [3/8] 0, 128
        %2860 = vxpose.xlu0.c.b16.cont [4/8] 0, 128
        %2861 = vxpose.xlu0.c.b16.cont [5/8] 0, 128
        %2862 = vxpose.xlu0.c.b16.cont [6/8] 0, 128
        %2863 = vxpose.xlu0.c.b16.cont [7/8] 0, 128
        %2864 = vxpose.xlu0.c.b16.end [8/8] 0, 128
        %v2865 = vpop.trf.xlu0
        %v2866 = vpop.trf.xlu0
        %v2867 = vpop.trf.xlu0
        %v2868 = vpop.trf.xlu0
        %v2869 = vpop.trf.xlu0
        %v2870 = vpop.trf.xlu0
        %v2871 = vpop.trf.xlu0
        %v2872 = vpop.trf.xlu0
        %2873 = vxpose.xlu0.c.b16.start [1/8] %v2675, 128
        %2874 = vxpose.xlu0.c.b16.cont [2/8] 0, 128
        %2875 = vxpose.xlu0.c.b16.cont [3/8] 0, 128
        %2876 = vxpose.xlu0.c.b16.cont [4/8] 0, 128
        %2877 = vxpose.xlu0.c.b16.cont [5/8] 0, 128
        %2878 = vxpose.xlu0.c.b16.cont [6/8] 0, 128
        %2879 = vxpose.xlu0.c.b16.cont [7/8] 0, 128
        %2880 = vxpose.xlu0.c.b16.end [8/8] 0, 128
        %v2881 = vpop.trf.xlu0
        %v2882 = vpop.trf.xlu0
        %v2883 = vpop.trf.xlu0
        %v2884 = vpop.trf.xlu0
        %v2885 = vpop.trf.xlu0
        %v2886 = vpop.trf.xlu0
        %v2887 = vpop.trf.xlu0
        %v2888 = vpop.trf.xlu0
        %2889 = vxpose.xlu0.c.b16.start [1/8] %v2679, 128
        %2890 = vxpose.xlu0.c.b16.cont [2/8] 0, 128
        %2891 = vxpose.xlu0.c.b16.cont [3/8] 0, 128
        %2892 = vxpose.xlu0.c.b16.cont [4/8] 0, 128
        %2893 = vxpose.xlu0.c.b16.cont [5/8] 0, 128
        %2894 = vxpose.xlu0.c.b16.cont [6/8] 0, 128
        %2895 = vxpose.xlu0.c.b16.cont [7/8] 0, 128
        %2896 = vxpose.xlu0.c.b16.end [8/8] 0, 128
        %v2897 = vpop.trf.xlu0
        %v2898 = vpop.trf.xlu0
        %v2899 = vpop.trf.xlu0
        %v2900 = vpop.trf.xlu0
        %v2901 = vpop.trf.xlu0
        %v2902 = vpop.trf.xlu0
        %v2903 = vpop.trf.xlu0
        %v2904 = vpop.trf.xlu0
        %2905 = vxpose.xlu0.c.b16.start [1/8] %v2683, 128
        %2906 = vxpose.xlu0.c.b16.cont [2/8] 0, 128
        %2907 = vxpose.xlu0.c.b16.cont [3/8] 0, 128
        %2908 = vxpose.xlu0.c.b16.cont [4/8] 0, 128
        %2909 = vxpose.xlu0.c.b16.cont [5/8] 0, 128
        %2910 = vxpose.xlu0.c.b16.cont [6/8] 0, 128
        %2911 = vxpose.xlu0.c.b16.cont [7/8] 0, 128
        %2912 = vxpose.xlu0.c.b16.end [8/8] 0, 128
        %v2913 = vpop.trf.xlu0
        %v2914 = vpop.trf.xlu0
        %v2915 = vpop.trf.xlu0
        %v2916 = vpop.trf.xlu0
        %v2917 = vpop.trf.xlu0
        %v2918 = vpop.trf.xlu0
        %v2919 = vpop.trf.xlu0
        %v2920 = vpop.trf.xlu0
        %2921 = vxpose.xlu0.c.b16.start [1/8] %v2687, 128
        %2922 = vxpose.xlu0.c.b16.cont [2/8] 0, 128
        %2923 = vxpose.xlu0.c.b16.cont [3/8] 0, 128
        %2924 = vxpose.xlu0.c.b16.cont [4/8] 0, 128
        %2925 = vxpose.xlu0.c.b16.cont [5/8] 0, 128
        %2926 = vxpose.xlu0.c.b16.cont [6/8] 0, 128
        %2927 = vxpose.xlu0.c.b16.cont [7/8] 0, 128
        %2928 = vxpose.xlu0.c.b16.end [8/8] 0, 128
        %v2929 = vpop.trf.xlu0
        %v2930 = vpop.trf.xlu0
        %v2931 = vpop.trf.xlu0
        %v2932 = vpop.trf.xlu0
        %v2933 = vpop.trf.xlu0
        %v2934 = vpop.trf.xlu0
        %v2935 = vpop.trf.xlu0
        %v2936 = vpop.trf.xlu0
        %2937 = vxpose.xlu0.c.b16.start [1/8] %v2691, 128
        %2938 = vxpose.xlu0.c.b16.cont [2/8] 0, 128
        %2939 = vxpose.xlu0.c.b16.cont [3/8] 0, 128
        %2940 = vxpose.xlu0.c.b16.cont [4/8] 0, 128
        %2941 = vxpose.xlu0.c.b16.cont [5/8] 0, 128
        %2942 = vxpose.xlu0.c.b16.cont [6/8] 0, 128
        %2943 = vxpose.xlu0.c.b16.cont [7/8] 0, 128
        %2944 = vxpose.xlu0.c.b16.end [8/8] 0, 128
        %v2945 = vpop.trf.xlu0
        %v2946 = vpop.trf.xlu0
        %v2947 = vpop.trf.xlu0
        %v2948 = vpop.trf.xlu0
        %v2949 = vpop.trf.xlu0
        %v2950 = vpop.trf.xlu0
        %v2951 = vpop.trf.xlu0
        %v2952 = vpop.trf.xlu0
        %2953 = vxpose.xlu0.c.b16.start [1/8] %v2695, 128
        %2954 = vxpose.xlu0.c.b16.cont [2/8] 0, 128
        %2955 = vxpose.xlu0.c.b16.cont [3/8] 0, 128
        %2956 = vxpose.xlu0.c.b16.cont [4/8] 0, 128
        %2957 = vxpose.xlu0.c.b16.cont [5/8] 0, 128
        %2958 = vxpose.xlu0.c.b16.cont [6/8] 0, 128
        %2959 = vxpose.xlu0.c.b16.cont [7/8] 0, 128
        %2960 = vxpose.xlu0.c.b16.end [8/8] 0, 128
        %v2961 = vpop.trf.xlu0
        %v2962 = vpop.trf.xlu0
        %v2963 = vpop.trf.xlu0
        %v2964 = vpop.trf.xlu0
        %v2965 = vpop.trf.xlu0
        %v2966 = vpop.trf.xlu0
        %v2967 = vpop.trf.xlu0
        %v2968 = vpop.trf.xlu0
        %2969 = vxpose.xlu0.c.b16.start [1/8] %v2699, 128
        %2970 = vxpose.xlu0.c.b16.cont [2/8] 0, 128
        %2971 = vxpose.xlu0.c.b16.cont [3/8] 0, 128
        %2972 = vxpose.xlu0.c.b16.cont [4/8] 0, 128
        %2973 = vxpose.xlu0.c.b16.cont [5/8] 0, 128
        %2974 = vxpose.xlu0.c.b16.cont [6/8] 0, 128
        %2975 = vxpose.xlu0.c.b16.cont [7/8] 0, 128
        %2976 = vxpose.xlu0.c.b16.end [8/8] 0, 128
        %v2977 = vpop.trf.xlu0
        %v2978 = vpop.trf.xlu0
        %v2979 = vpop.trf.xlu0
        %v2980 = vpop.trf.xlu0
        %v2981 = vpop.trf.xlu0
        %v2982 = vpop.trf.xlu0
        %v2983 = vpop.trf.xlu0
        %v2984 = vpop.trf.xlu0
        %2985 = vxpose.xlu0.c.b16.start [1/8] %v2703, 128
        %2986 = vxpose.xlu0.c.b16.cont [2/8] 0, 128
        %2987 = vxpose.xlu0.c.b16.cont [3/8] 0, 128
        %2988 = vxpose.xlu0.c.b16.cont [4/8] 0, 128
        %2989 = vxpose.xlu0.c.b16.cont [5/8] 0, 128
        %2990 = vxpose.xlu0.c.b16.cont [6/8] 0, 128
        %2991 = vxpose.xlu0.c.b16.cont [7/8] 0, 128
        %2992 = vxpose.xlu0.c.b16.end [8/8] 0, 128
        %v2993 = vpop.trf.xlu0
        %v2994 = vpop.trf.xlu0
        %v2995 = vpop.trf.xlu0
        %v2996 = vpop.trf.xlu0
        %v2997 = vpop.trf.xlu0
        %v2998 = vpop.trf.xlu0
        %v2999 = vpop.trf.xlu0
        %v3000 = vpop.trf.xlu0
        %3001 = vxpose.xlu0.c.b16.start [1/8] %v2707, 128
        %3002 = vxpose.xlu0.c.b16.cont [2/8] 0, 128
        %3003 = vxpose.xlu0.c.b16.cont [3/8] 0, 128
        %3004 = vxpose.xlu0.c.b16.cont [4/8] 0, 128
        %3005 = vxpose.xlu0.c.b16.cont [5/8] 0, 128
        %3006 = vxpose.xlu0.c.b16.cont [6/8] 0, 128
        %3007 = vxpose.xlu0.c.b16.cont [7/8] 0, 128
        %3008 = vxpose.xlu0.c.b16.end [8/8] 0, 128
        %v3009 = vpop.trf.xlu0
        %v3010 = vpop.trf.xlu0
        %v3011 = vpop.trf.xlu0
        %v3012 = vpop.trf.xlu0
        %v3013 = vpop.trf.xlu0
        %v3014 = vpop.trf.xlu0
        %v3015 = vpop.trf.xlu0
        %v3016 = vpop.trf.xlu0
        %3017 = vxpose.xlu0.c.b16.start [1/8] %v2711, 128
        %3018 = vxpose.xlu0.c.b16.cont [2/8] 0, 128
        %3019 = vxpose.xlu0.c.b16.cont [3/8] 0, 128
        %3020 = vxpose.xlu0.c.b16.cont [4/8] 0, 128
        %3021 = vxpose.xlu0.c.b16.cont [5/8] 0, 128
        %3022 = vxpose.xlu0.c.b16.cont [6/8] 0, 128
        %3023 = vxpose.xlu0.c.b16.cont [7/8] 0, 128
        %3024 = vxpose.xlu0.c.b16.end [8/8] 0, 128
        %v3025 = vpop.trf.xlu0
        %v3026 = vpop.trf.xlu0
        %v3027 = vpop.trf.xlu0
        %v3028 = vpop.trf.xlu0
        %v3029 = vpop.trf.xlu0
        %v3030 = vpop.trf.xlu0
        %v3031 = vpop.trf.xlu0
        %v3032 = vpop.trf.xlu0
        %3033 = vxpose.xlu0.c.b16.start [1/8] %v2715, 128
        %3034 = vxpose.xlu0.c.b16.cont [2/8] 0, 128
        %3035 = vxpose.xlu0.c.b16.cont [3/8] 0, 128
        %3036 = vxpose.xlu0.c.b16.cont [4/8] 0, 128
        %3037 = vxpose.xlu0.c.b16.cont [5/8] 0, 128
        %3038 = vxpose.xlu0.c.b16.cont [6/8] 0, 128
        %3039 = vxpose.xlu0.c.b16.cont [7/8] 0, 128
        %3040 = vxpose.xlu0.c.b16.end [8/8] 0, 128
        %v3041 = vpop.trf.xlu0
        %v3042 = vpop.trf.xlu0
        %v3043 = vpop.trf.xlu0
        %v3044 = vpop.trf.xlu0
        %v3045 = vpop.trf.xlu0
        %v3046 = vpop.trf.xlu0
        %v3047 = vpop.trf.xlu0
        %v3048 = vpop.trf.xlu0
        %3049 = vxpose.xlu0.c.b16.start [1/8] %v2719, 128
        %3050 = vxpose.xlu0.c.b16.cont [2/8] 0, 128
        %3051 = vxpose.xlu0.c.b16.cont [3/8] 0, 128
        %3052 = vxpose.xlu0.c.b16.cont [4/8] 0, 128
        %3053 = vxpose.xlu0.c.b16.cont [5/8] 0, 128
        %3054 = vxpose.xlu0.c.b16.cont [6/8] 0, 128
        %3055 = vxpose.xlu0.c.b16.cont [7/8] 0, 128
        %3056 = vxpose.xlu0.c.b16.end [8/8] 0, 128
        %v3057 = vpop.trf.xlu0
        %v3058 = vpop.trf.xlu0
        %v3059 = vpop.trf.xlu0
        %v3060 = vpop.trf.xlu0
        %v3061 = vpop.trf.xlu0
        %v3062 = vpop.trf.xlu0
        %v3063 = vpop.trf.xlu0
        %v3064 = vpop.trf.xlu0
        %3065 = vxpose.xlu0.c.b16.start [1/8] %v2723, 128
        %3066 = vxpose.xlu0.c.b16.cont [2/8] 0, 128
        %3067 = vxpose.xlu0.c.b16.cont [3/8] 0, 128
        %3068 = vxpose.xlu0.c.b16.cont [4/8] 0, 128
        %3069 = vxpose.xlu0.c.b16.cont [5/8] 0, 128
        %3070 = vxpose.xlu0.c.b16.cont [6/8] 0, 128
        %3071 = vxpose.xlu0.c.b16.cont [7/8] 0, 128
        %3072 = vxpose.xlu0.c.b16.end [8/8] 0, 128
        %v3073 = vpop.trf.xlu0
        %v3074 = vpop.trf.xlu0
        %v3075 = vpop.trf.xlu0
        %v3076 = vpop.trf.xlu0
        %v3077 = vpop.trf.xlu0
        %v3078 = vpop.trf.xlu0
        %v3079 = vpop.trf.xlu0
        %v3080 = vpop.trf.xlu0
        %3081 = vxpose.xlu0.c.b16.start [1/8] %v2727, 128
        %3082 = vxpose.xlu0.c.b16.cont [2/8] 0, 128
        %3083 = vxpose.xlu0.c.b16.cont [3/8] 0, 128
        %3084 = vxpose.xlu0.c.b16.cont [4/8] 0, 128
        %3085 = vxpose.xlu0.c.b16.cont [5/8] 0, 128
        %3086 = vxpose.xlu0.c.b16.cont [6/8] 0, 128
        %3087 = vxpose.xlu0.c.b16.cont [7/8] 0, 128
        %3088 = vxpose.xlu0.c.b16.end [8/8] 0, 128
        %v3089 = vpop.trf.xlu0
        %v3090 = vpop.trf.xlu0
        %v3091 = vpop.trf.xlu0
        %v3092 = vpop.trf.xlu0
        %v3093 = vpop.trf.xlu0
        %v3094 = vpop.trf.xlu0
        %v3095 = vpop.trf.xlu0
        %v3096 = vpop.trf.xlu0
        %3097 = vxpose.xlu0.c.b16.start [1/8] %v2731, 128
        %3098 = vxpose.xlu0.c.b16.cont [2/8] 0, 128
        %3099 = vxpose.xlu0.c.b16.cont [3/8] 0, 128
        %3100 = vxpose.xlu0.c.b16.cont [4/8] 0, 128
        %3101 = vxpose.xlu0.c.b16.cont [5/8] 0, 128
        %3102 = vxpose.xlu0.c.b16.cont [6/8] 0, 128
        %3103 = vxpose.xlu0.c.b16.cont [7/8] 0, 128
        %3104 = vxpose.xlu0.c.b16.end [8/8] 0, 128
        %v3105 = vpop.trf.xlu0
        %v3106 = vpop.trf.xlu0
        %v3107 = vpop.trf.xlu0
        %v3108 = vpop.trf.xlu0
        %v3109 = vpop.trf.xlu0
        %v3110 = vpop.trf.xlu0
        %v3111 = vpop.trf.xlu0
        %v3112 = vpop.trf.xlu0
        %3113 = vxpose.xlu0.c.b16.start [1/8] %v2735, 128
        %3114 = vxpose.xlu0.c.b16.cont [2/8] 0, 128
        %3115 = vxpose.xlu0.c.b16.cont [3/8] 0, 128
        %3116 = vxpose.xlu0.c.b16.cont [4/8] 0, 128
        %3117 = vxpose.xlu0.c.b16.cont [5/8] 0, 128
        %3118 = vxpose.xlu0.c.b16.cont [6/8] 0, 128
        %3119 = vxpose.xlu0.c.b16.cont [7/8] 0, 128
        %3120 = vxpose.xlu0.c.b16.end [8/8] 0, 128
        %v3121 = vpop.trf.xlu0
        %v3122 = vpop.trf.xlu0
        %v3123 = vpop.trf.xlu0
        %v3124 = vpop.trf.xlu0
        %v3125 = vpop.trf.xlu0
        %v3126 = vpop.trf.xlu0
        %v3127 = vpop.trf.xlu0
        %v3128 = vpop.trf.xlu0
        %3129 = vxpose.xlu0.c.b16.start [1/8] %v2739, 128
        %3130 = vxpose.xlu0.c.b16.cont [2/8] 0, 128
        %3131 = vxpose.xlu0.c.b16.cont [3/8] 0, 128
        %3132 = vxpose.xlu0.c.b16.cont [4/8] 0, 128
        %3133 = vxpose.xlu0.c.b16.cont [5/8] 0, 128
        %3134 = vxpose.xlu0.c.b16.cont [6/8] 0, 128
        %3135 = vxpose.xlu0.c.b16.cont [7/8] 0, 128
        %3136 = vxpose.xlu0.c.b16.end [8/8] 0, 128
        %v3137 = vpop.trf.xlu0
        %v3138 = vpop.trf.xlu0
        %v3139 = vpop.trf.xlu0
        %v3140 = vpop.trf.xlu0
        %v3141 = vpop.trf.xlu0
        %v3142 = vpop.trf.xlu0
        %v3143 = vpop.trf.xlu0
        %v3144 = vpop.trf.xlu0
        %3145 = vxpose.xlu0.c.b16.start [1/8] %v2743, 128
        %3146 = vxpose.xlu0.c.b16.cont [2/8] 0, 128
        %3147 = vxpose.xlu0.c.b16.cont [3/8] 0, 128
        %3148 = vxpose.xlu0.c.b16.cont [4/8] 0, 128
        %3149 = vxpose.xlu0.c.b16.cont [5/8] 0, 128
        %3150 = vxpose.xlu0.c.b16.cont [6/8] 0, 128
        %3151 = vxpose.xlu0.c.b16.cont [7/8] 0, 128
        %3152 = vxpose.xlu0.c.b16.end [8/8] 0, 128
        %v3153 = vpop.trf.xlu0
        %v3154 = vpop.trf.xlu0
        %v3155 = vpop.trf.xlu0
        %v3156 = vpop.trf.xlu0
        %v3157 = vpop.trf.xlu0
        %v3158 = vpop.trf.xlu0
        %v3159 = vpop.trf.xlu0
        %v3160 = vpop.trf.xlu0
        %3161 = vxpose.xlu0.c.b16.start [1/8] %v2747, 128
        %3162 = vxpose.xlu0.c.b16.cont [2/8] 0, 128
        %3163 = vxpose.xlu0.c.b16.cont [3/8] 0, 128
        %3164 = vxpose.xlu0.c.b16.cont [4/8] 0, 128
        %3165 = vxpose.xlu0.c.b16.cont [5/8] 0, 128
        %3166 = vxpose.xlu0.c.b16.cont [6/8] 0, 128
        %3167 = vxpose.xlu0.c.b16.cont [7/8] 0, 128
        %3168 = vxpose.xlu0.c.b16.end [8/8] 0, 128
        %v3169 = vpop.trf.xlu0
        %v3170 = vpop.trf.xlu0
        %v3171 = vpop.trf.xlu0
        %v3172 = vpop.trf.xlu0
        %v3173 = vpop.trf.xlu0
        %v3174 = vpop.trf.xlu0
        %v3175 = vpop.trf.xlu0
        %v3176 = vpop.trf.xlu0
        %3177 = vxpose.xlu0.c.b16.start [1/8] %v2751, 128
        %3178 = vxpose.xlu0.c.b16.cont [2/8] 0, 128
        %3179 = vxpose.xlu0.c.b16.cont [3/8] 0, 128
        %3180 = vxpose.xlu0.c.b16.cont [4/8] 0, 128
        %3181 = vxpose.xlu0.c.b16.cont [5/8] 0, 128
        %3182 = vxpose.xlu0.c.b16.cont [6/8] 0, 128
        %3183 = vxpose.xlu0.c.b16.cont [7/8] 0, 128
        %3184 = vxpose.xlu0.c.b16.end [8/8] 0, 128
        %v3185 = vpop.trf.xlu0
        %v3186 = vpop.trf.xlu0
        %v3187 = vpop.trf.xlu0
        %v3188 = vpop.trf.xlu0
        %v3189 = vpop.trf.xlu0
        %v3190 = vpop.trf.xlu0
        %v3191 = vpop.trf.xlu0
        %v3192 = vpop.trf.xlu0
        %3193 = vxpose.xlu0.c.b16.start [1/8] %v2755, 128
        %3194 = vxpose.xlu0.c.b16.cont [2/8] 0, 128
        %3195 = vxpose.xlu0.c.b16.cont [3/8] 0, 128
        %3196 = vxpose.xlu0.c.b16.cont [4/8] 0, 128
        %3197 = vxpose.xlu0.c.b16.cont [5/8] 0, 128
        %3198 = vxpose.xlu0.c.b16.cont [6/8] 0, 128
        %3199 = vxpose.xlu0.c.b16.cont [7/8] 0, 128
        %3200 = vxpose.xlu0.c.b16.end [8/8] 0, 128
        %v3201 = vpop.trf.xlu0
        %v3202 = vpop.trf.xlu0
        %v3203 = vpop.trf.xlu0
        %v3204 = vpop.trf.xlu0
        %v3205 = vpop.trf.xlu0
        %v3206 = vpop.trf.xlu0
        %v3207 = vpop.trf.xlu0
        %v3208 = vpop.trf.xlu0
        %3209 = vxpose.xlu0.c.b16.start [1/8] %v2759, 128
        %3210 = vxpose.xlu0.c.b16.cont [2/8] 0, 128
        %3211 = vxpose.xlu0.c.b16.cont [3/8] 0, 128
        %3212 = vxpose.xlu0.c.b16.cont [4/8] 0, 128
        %3213 = vxpose.xlu0.c.b16.cont [5/8] 0, 128
        %3214 = vxpose.xlu0.c.b16.cont [6/8] 0, 128
        %3215 = vxpose.xlu0.c.b16.cont [7/8] 0, 128
        %3216 = vxpose.xlu0.c.b16.end [8/8] 0, 128
        %v3217 = vpop.trf.xlu0
        %v3218 = vpop.trf.xlu0
        %v3219 = vpop.trf.xlu0
        %v3220 = vpop.trf.xlu0
        %v3221 = vpop.trf.xlu0
        %v3222 = vpop.trf.xlu0
        %v3223 = vpop.trf.xlu0
        %v3224 = vpop.trf.xlu0
        %3225 = vxpose.xlu0.c.b16.start [1/8] %v2763, 128
        %3226 = vxpose.xlu0.c.b16.cont [2/8] 0, 128
        %3227 = vxpose.xlu0.c.b16.cont [3/8] 0, 128
        %3228 = vxpose.xlu0.c.b16.cont [4/8] 0, 128
        %3229 = vxpose.xlu0.c.b16.cont [5/8] 0, 128
        %3230 = vxpose.xlu0.c.b16.cont [6/8] 0, 128
        %3231 = vxpose.xlu0.c.b16.cont [7/8] 0, 128
        %3232 = vxpose.xlu0.c.b16.end [8/8] 0, 128
        %v3233 = vpop.trf.xlu0
        %v3234 = vpop.trf.xlu0
        %v3235 = vpop.trf.xlu0
        %v3236 = vpop.trf.xlu0
        %v3237 = vpop.trf.xlu0
        %v3238 = vpop.trf.xlu0
        %v3239 = vpop.trf.xlu0
        %v3240 = vpop.trf.xlu0
        %3241 = vxpose.xlu0.c.b16.start [1/8] %v2767, 128
        %3242 = vxpose.xlu0.c.b16.cont [2/8] 0, 128
        %3243 = vxpose.xlu0.c.b16.cont [3/8] 0, 128
        %3244 = vxpose.xlu0.c.b16.cont [4/8] 0, 128
        %3245 = vxpose.xlu0.c.b16.cont [5/8] 0, 128
        %3246 = vxpose.xlu0.c.b16.cont [6/8] 0, 128
        %3247 = vxpose.xlu0.c.b16.cont [7/8] 0, 128
        %3248 = vxpose.xlu0.c.b16.end [8/8] 0, 128
        %v3249 = vpop.trf.xlu0
        %v3250 = vpop.trf.xlu0
        %v3251 = vpop.trf.xlu0
        %v3252 = vpop.trf.xlu0
        %v3253 = vpop.trf.xlu0
        %v3254 = vpop.trf.xlu0
        %v3255 = vpop.trf.xlu0
        %v3256 = vpop.trf.xlu0
        %3257 = vxpose.xlu0.c.b16.start [1/8] %v2771, 128
        %3258 = vxpose.xlu0.c.b16.cont [2/8] 0, 128
        %3259 = vxpose.xlu0.c.b16.cont [3/8] 0, 128
        %3260 = vxpose.xlu0.c.b16.cont [4/8] 0, 128
        %3261 = vxpose.xlu0.c.b16.cont [5/8] 0, 128
        %3262 = vxpose.xlu0.c.b16.cont [6/8] 0, 128
        %3263 = vxpose.xlu0.c.b16.cont [7/8] 0, 128
        %3264 = vxpose.xlu0.c.b16.end [8/8] 0, 128
        %v3265 = vpop.trf.xlu0
        %v3266 = vpop.trf.xlu0
        %v3267 = vpop.trf.xlu0
        %v3268 = vpop.trf.xlu0
        %v3269 = vpop.trf.xlu0
        %v3270 = vpop.trf.xlu0
        %v3271 = vpop.trf.xlu0
        %v3272 = vpop.trf.xlu0
        %3273 = vxpose.xlu0.c.b16.start [1/8] %v2775, 128
        %3274 = vxpose.xlu0.c.b16.cont [2/8] 0, 128
        %3275 = vxpose.xlu0.c.b16.cont [3/8] 0, 128
        %3276 = vxpose.xlu0.c.b16.cont [4/8] 0, 128
        %3277 = vxpose.xlu0.c.b16.cont [5/8] 0, 128
        %3278 = vxpose.xlu0.c.b16.cont [6/8] 0, 128
        %3279 = vxpose.xlu0.c.b16.cont [7/8] 0, 128
        %3280 = vxpose.xlu0.c.b16.end [8/8] 0, 128
        %v3281 = vpop.trf.xlu0
        %v3282 = vpop.trf.xlu0
        %v3283 = vpop.trf.xlu0
        %v3284 = vpop.trf.xlu0
        %v3285 = vpop.trf.xlu0
        %v3286 = vpop.trf.xlu0
        %v3287 = vpop.trf.xlu0
        %v3288 = vpop.trf.xlu0
        %v3289 = vcombine.low %v2785, %v2849
        %v3291 = vunpack.c.l.s4 1983009808
        %v3292 = vunpack.c.0.s8 %v3291
        %v3293 = vlaneseq
        %v3294 = vshrl.u32 %v3293, 7
        %v3295 = vsub.s32 %v3292, %v3294
        %v3296 = vrot.slane %v3289, %v3295
        %v3297 = vcombine.low %v2817, %v2881
        %v3299 = vunpack.c.l.s4 1983009808
        %v3300 = vunpack.c.0.s8 %v3299
        %v3301 = vlaneseq
        %v3302 = vshrl.u32 %v3301, 7
        %v3303 = vsub.s32 %v3300, %v3302
        %v3304 = vrot.slane %v3297, %v3303
        %v3305 = vcombine.low %v2913, %v2977
        %v3307 = vunpack.c.l.s4 1983009808
        %v3308 = vunpack.c.0.s8 %v3307
        %v3309 = vlaneseq
        %v3310 = vshrl.u32 %v3309, 7
        %v3311 = vsub.s32 %v3308, %v3310
        %v3312 = vrot.slane %v3305, %v3311
        %v3313 = vcombine.low %v2945, %v3009
        %v3315 = vunpack.c.l.s4 1983009808
        %v3316 = vunpack.c.0.s8 %v3315
        %v3317 = vlaneseq
        %v3318 = vshrl.u32 %v3317, 7
        %v3319 = vsub.s32 %v3316, %v3318
        %v3320 = vrot.slane %v3313, %v3319
        %v3321 = vcombine.low %v3296, %v3304
        %v3323 = vunpack.c.l.s4 1934713408
        %v3324 = vunpack.c.0.s8 %v3323
        %v3325 = vlaneseq
        %v3326 = vshrl.u32 %v3325, 7
        %v3327 = vsub.s32 %v3324, %v3326
        %v3328 = vrot.slane %v3321, %v3327
        %v3329 = vcombine.low %v3312, %v3320
        %v3331 = vunpack.c.l.s4 1934713408
        %v3332 = vunpack.c.0.s8 %v3331
        %v3333 = vlaneseq
        %v3334 = vshrl.u32 %v3333, 7
        %v3335 = vsub.s32 %v3332, %v3334
        %v3336 = vrot.slane %v3329, %v3335
        %v3337 = vcombine.low %v3328, %v3336
        %v3338 = vcombine.high %v3328, %v3336
        %v3339 = vcombine.low %v2801, %v2865
        %v3341 = vunpack.c.l.s4 1983009808
        %v3342 = vunpack.c.0.s8 %v3341
        %v3343 = vlaneseq
        %v3344 = vshrl.u32 %v3343, 7
        %v3345 = vsub.s32 %v3342, %v3344
        %v3346 = vrot.slane %v3339, %v3345
        %v3347 = vcombine.low %v2833, %v2897
        %v3349 = vunpack.c.l.s4 1983009808
        %v3350 = vunpack.c.0.s8 %v3349
        %v3351 = vlaneseq
        %v3352 = vshrl.u32 %v3351, 7
        %v3353 = vsub.s32 %v3350, %v3352
        %v3354 = vrot.slane %v3347, %v3353
        %v3355 = vcombine.low %v2929, %v2993
        %v3357 = vunpack.c.l.s4 1983009808
        %v3358 = vunpack.c.0.s8 %v3357
        %v3359 = vlaneseq
        %v3360 = vshrl.u32 %v3359, 7
        %v3361 = vsub.s32 %v3358, %v3360
        %v3362 = vrot.slane %v3355, %v3361
        %v3363 = vcombine.low %v2961, %v3025
        %v3365 = vunpack.c.l.s4 1983009808
        %v3366 = vunpack.c.0.s8 %v3365
        %v3367 = vlaneseq
        %v3368 = vshrl.u32 %v3367, 7
        %v3369 = vsub.s32 %v3366, %v3368
        %v3370 = vrot.slane %v3363, %v3369
        %v3371 = vcombine.low %v3346, %v3354
        %v3373 = vunpack.c.l.s4 1934713408
        %v3374 = vunpack.c.0.s8 %v3373
        %v3375 = vlaneseq
        %v3376 = vshrl.u32 %v3375, 7
        %v3377 = vsub.s32 %v3374, %v3376
        %v3378 = vrot.slane %v3371, %v3377
        %v3379 = vcombine.low %v3362, %v3370
        %v3381 = vunpack.c.l.s4 1934713408
        %v3382 = vunpack.c.0.s8 %v3381
        %v3383 = vlaneseq
        %v3384 = vshrl.u32 %v3383, 7
        %v3385 = vsub.s32 %v3382, %v3384
        %v3386 = vrot.slane %v3379, %v3385
        %v3387 = vcombine.low %v3378, %v3386
        %v3388 = vcombine.high %v3378, %v3386
        %v3389 = vcombine.low %v3041, %v3105
        %v3391 = vunpack.c.l.s4 1983009808
        %v3392 = vunpack.c.0.s8 %v3391
        %v3393 = vlaneseq
        %v3394 = vshrl.u32 %v3393, 7
        %v3395 = vsub.s32 %v3392, %v3394
        %v3396 = vrot.slane %v3389, %v3395
        %v3397 = vcombine.low %v3073, %v3137
        %v3399 = vunpack.c.l.s4 1983009808
        %v3400 = vunpack.c.0.s8 %v3399
        %v3401 = vlaneseq
        %v3402 = vshrl.u32 %v3401, 7
        %v3403 = vsub.s32 %v3400, %v3402
        %v3404 = vrot.slane %v3397, %v3403
        %v3405 = vcombine.low %v3169, %v3233
        %v3407 = vunpack.c.l.s4 1983009808
        %v3408 = vunpack.c.0.s8 %v3407
        %v3409 = vlaneseq
        %v3410 = vshrl.u32 %v3409, 7
        %v3411 = vsub.s32 %v3408, %v3410
        %v3412 = vrot.slane %v3405, %v3411
        %v3413 = vcombine.low %v3201, %v3265
        %v3415 = vunpack.c.l.s4 1983009808
        %v3416 = vunpack.c.0.s8 %v3415
        %v3417 = vlaneseq
        %v3418 = vshrl.u32 %v3417, 7
        %v3419 = vsub.s32 %v3416, %v3418
        %v3420 = vrot.slane %v3413, %v3419
        %v3421 = vcombine.low %v3396, %v3404
        %v3423 = vunpack.c.l.s4 1934713408
        %v3424 = vunpack.c.0.s8 %v3423
        %v3425 = vlaneseq
        %v3426 = vshrl.u32 %v3425, 7
        %v3427 = vsub.s32 %v3424, %v3426
        %v3428 = vrot.slane %v3421, %v3427
        %v3429 = vcombine.low %v3412, %v3420
        %v3431 = vunpack.c.l.s4 1934713408
        %v3432 = vunpack.c.0.s8 %v3431
        %v3433 = vlaneseq
        %v3434 = vshrl.u32 %v3433, 7
        %v3435 = vsub.s32 %v3432, %v3434
        %v3436 = vrot.slane %v3429, %v3435
        %v3437 = vcombine.low %v3428, %v3436
        %v3438 = vcombine.high %v3428, %v3436
        %v3439 = vcombine.low %v3057, %v3121
        %v3441 = vunpack.c.l.s4 1983009808
        %v3442 = vunpack.c.0.s8 %v3441
        %v3443 = vlaneseq
        %v3444 = vshrl.u32 %v3443, 7
        %v3445 = vsub.s32 %v3442, %v3444
        %v3446 = vrot.slane %v3439, %v3445
        %v3447 = vcombine.low %v3089, %v3153
        %v3449 = vunpack.c.l.s4 1983009808
        %v3450 = vunpack.c.0.s8 %v3449
        %v3451 = vlaneseq
        %v3452 = vshrl.u32 %v3451, 7
        %v3453 = vsub.s32 %v3450, %v3452
        %v3454 = vrot.slane %v3447, %v3453
        %v3455 = vcombine.low %v3185, %v3249
        %v3457 = vunpack.c.l.s4 1983009808
        %v3458 = vunpack.c.0.s8 %v3457
        %v3459 = vlaneseq
        %v3460 = vshrl.u32 %v3459, 7
        %v3461 = vsub.s32 %v3458, %v3460
        %v3462 = vrot.slane %v3455, %v3461
        %v3463 = vcombine.low %v3217, %v3281
        %v3465 = vunpack.c.l.s4 1983009808
        %v3466 = vunpack.c.0.s8 %v3465
        %v3467 = vlaneseq
        %v3468 = vshrl.u32 %v3467, 7
        %v3469 = vsub.s32 %v3466, %v3468
        %v3470 = vrot.slane %v3463, %v3469
        %v3471 = vcombine.low %v3446, %v3454
        %v3473 = vunpack.c.l.s4 1934713408
        %v3474 = vunpack.c.0.s8 %v3473
        %v3475 = vlaneseq
        %v3476 = vshrl.u32 %v3475, 7
        %v3477 = vsub.s32 %v3474, %v3476
        %v3478 = vrot.slane %v3471, %v3477
        %v3479 = vcombine.low %v3462, %v3470
        %v3481 = vunpack.c.l.s4 1934713408
        %v3482 = vunpack.c.0.s8 %v3481
        %v3483 = vlaneseq
        %v3484 = vshrl.u32 %v3483, 7
        %v3485 = vsub.s32 %v3482, %v3484
        %v3486 = vrot.slane %v3479, %v3485
        %v3487 = vcombine.low %v3478, %v3486
        %v3488 = vcombine.high %v3478, %v3486
        %v3491 = vpack.i.b16 %v3387, %v3337
        %v3493 = vshrl.u32 %v3337, 16
        %v3494 = vshrl.u32 %v3387, 16
        %v3495 = vpack.i.b16 %v3494, %v3493
        %v3499 = vpack.i.b16 %v3388, %v3338
        %v3501 = vshrl.u32 %v3338, 16
        %v3502 = vshrl.u32 %v3388, 16
        %v3503 = vpack.i.b16 %v3502, %v3501
        %v3507 = vpack.i.b16 %v3487, %v3437
        %v3509 = vshrl.u32 %v3437, 16
        %v3510 = vshrl.u32 %v3487, 16
        %v3511 = vpack.i.b16 %v3510, %v3509
        %v3515 = vpack.i.b16 %v3488, %v3438
        %v3517 = vshrl.u32 %v3438, 16
        %v3518 = vshrl.u32 %v3488, 16
        %v3519 = vpack.i.b16 %v3518, %v3517
        %vm3521 = vcmask 261120
        %v3523 = vsel %vm3521, %v1839, 0
        %3525 = vmatprep.subr.bf16.mxu0 0
        %3526 = vmatpush1.bf16.msra.mxu0 %v3491
        %3527 = vmatprep.subr.bf16.mxu0 0
        %3528 = vmatpush1.bf16.msra.mxu0 %v3507
        %3529 = vmatprep.subr.bf16.mxu0 0
        %3530 = vmatpush1.bf16.msra.mxu0 0
        %3531 = vmatprep.subr.bf16.mxu0 0
        %3532 = vmatpush1.bf16.msra.mxu0 0
        %3533 = vmatprep.subr.bf16.mxu0 0
        %3534 = vmatpush1.bf16.msra.mxu0 0
        %3535 = vmatprep.subr.bf16.mxu0 0
        %3536 = vmatpush1.bf16.msra.mxu0 0
        %3537 = vmatprep.subr.bf16.mxu0 0
        %3538 = vmatpush1.bf16.msra.mxu0 0
        %3539 = vmatprep.subr.bf16.mxu0 0
        %3540 = vmatpush1.bf16.msra.mxu0 0
        %3541 = vmatprep.subr.bf16.mxu0 0
        %3542 = vmatpush1.bf16.msra.mxu0 0
        %3543 = vmatprep.subr.bf16.mxu0 0
        %3544 = vmatpush1.bf16.msra.mxu0 0
        %3545 = vmatprep.subr.bf16.mxu0 0
        %3546 = vmatpush1.bf16.msra.mxu0 0
        %3547 = vmatprep.subr.bf16.mxu0 0
        %3548 = vmatpush1.bf16.msra.mxu0 0
        %3549 = vmatprep.subr.bf16.mxu0 0
        %3550 = vmatpush1.bf16.msra.mxu0 0
        %3551 = vmatprep.subr.bf16.mxu0 0
        %3552 = vmatpush1.bf16.msra.mxu0 0
        %3553 = vmatprep.subr.bf16.mxu0 0
        %3554 = vmatpush1.bf16.msra.mxu0 0
        %3555 = vmatprep.subr.bf16.mxu0 0
        %3556 = vmatpush1.bf16.msra.mxu0 0
        %3557 = vmatprep.mubr.bf16.mxu0 0
        %3558 = vmatmul.mubr.bf16.gmra.mrb[0].mxu0 %v3523
        %v3559 = vpop.f32.mrb[0].mxu0
        %v3560 = vadd.f32 0.0, %v3559
        %v3561 = vpop.f32.mrb[0].mxu0
        %v3562 = vpop.f32.mrb[0].mxu0
        %v3563 = vadd.f32 0.0, %v3562
        %v3564 = vpop.f32.mrb[0].mxu0
        %3565 = vdwg.mxu0
        %v3567 = vsel %vm3521, %v1842, 0
        %3569 = vmatprep.subr.bf16.mxu0 0
        %3570 = vmatpush1.bf16.msra.mxu0 %v3495
        %3571 = vmatprep.subr.bf16.mxu0 0
        %3572 = vmatpush1.bf16.msra.mxu0 %v3511
        %3573 = vmatprep.subr.bf16.mxu0 0
        %3574 = vmatpush1.bf16.msra.mxu0 0
        %3575 = vmatprep.subr.bf16.mxu0 0
        %3576 = vmatpush1.bf16.msra.mxu0 0
        %3577 = vmatprep.subr.bf16.mxu0 0
        %3578 = vmatpush1.bf16.msra.mxu0 0
        %3579 = vmatprep.subr.bf16.mxu0 0
        %3580 = vmatpush1.bf16.msra.mxu0 0
        %3581 = vmatprep.subr.bf16.mxu0 0
        %3582 = vmatpush1.bf16.msra.mxu0 0
        %3583 = vmatprep.subr.bf16.mxu0 0
        %3584 = vmatpush1.bf16.msra.mxu0 0
        %3585 = vmatprep.subr.bf16.mxu0 0
        %3586 = vmatpush1.bf16.msra.mxu0 0
        %3587 = vmatprep.subr.bf16.mxu0 0
        %3588 = vmatpush1.bf16.msra.mxu0 0
        %3589 = vmatprep.subr.bf16.mxu0 0
        %3590 = vmatpush1.bf16.msra.mxu0 0
        %3591 = vmatprep.subr.bf16.mxu0 0
        %3592 = vmatpush1.bf16.msra.mxu0 0
        %3593 = vmatprep.subr.bf16.mxu0 0
        %3594 = vmatpush1.bf16.msra.mxu0 0
        %3595 = vmatprep.subr.bf16.mxu0 0
        %3596 = vmatpush1.bf16.msra.mxu0 0
        %3597 = vmatprep.subr.bf16.mxu0 0
        %3598 = vmatpush1.bf16.msra.mxu0 0
        %3599 = vmatprep.subr.bf16.mxu0 0
        %3600 = vmatpush1.bf16.msra.mxu0 0
        %3601 = vmatprep.mubr.bf16.mxu0 0
        %3602 = vmatmul.mubr.bf16.gmra.mrb[0].mxu0 %v3567
        %v3603 = vpop.f32.mrb[0].mxu0
        %v3604 = vadd.f32 0.0, %v3603
        %v3605 = vpop.f32.mrb[0].mxu0
        %v3606 = vpop.f32.mrb[0].mxu0
        %v3607 = vadd.f32 0.0, %v3606
        %v3608 = vpop.f32.mrb[0].mxu0
        %3609 = vdwg.mxu0
        %v3611 = vsel %vm3521, %v1845, 0
        %3613 = vmatprep.subr.bf16.mxu0 0
        %3614 = vmatpush1.bf16.msra.mxu0 %v3499
        %3615 = vmatprep.subr.bf16.mxu0 0
        %3616 = vmatpush1.bf16.msra.mxu0 %v3515
        %3617 = vmatprep.subr.bf16.mxu0 0
        %3618 = vmatpush1.bf16.msra.mxu0 0
        %3619 = vmatprep.subr.bf16.mxu0 0
        %3620 = vmatpush1.bf16.msra.mxu0 0
        %3621 = vmatprep.subr.bf16.mxu0 0
        %3622 = vmatpush1.bf16.msra.mxu0 0
        %3623 = vmatprep.subr.bf16.mxu0 0
        %3624 = vmatpush1.bf16.msra.mxu0 0
        %3625 = vmatprep.subr.bf16.mxu0 0
        %3626 = vmatpush1.bf16.msra.mxu0 0
        %3627 = vmatprep.subr.bf16.mxu0 0
        %3628 = vmatpush1.bf16.msra.mxu0 0
        %3629 = vmatprep.subr.bf16.mxu0 0
        %3630 = vmatpush1.bf16.msra.mxu0 0
        %3631 = vmatprep.subr.bf16.mxu0 0
        %3632 = vmatpush1.bf16.msra.mxu0 0
        %3633 = vmatprep.subr.bf16.mxu0 0
        %3634 = vmatpush1.bf16.msra.mxu0 0
        %3635 = vmatprep.subr.bf16.mxu0 0
        %3636 = vmatpush1.bf16.msra.mxu0 0
        %3637 = vmatprep.subr.bf16.mxu0 0
        %3638 = vmatpush1.bf16.msra.mxu0 0
        %3639 = vmatprep.subr.bf16.mxu0 0
        %3640 = vmatpush1.bf16.msra.mxu0 0
        %3641 = vmatprep.subr.bf16.mxu0 0
        %3642 = vmatpush1.bf16.msra.mxu0 0
        %3643 = vmatprep.subr.bf16.mxu0 0
        %3644 = vmatpush1.bf16.msra.mxu0 0
        %3645 = vmatprep.mubr.bf16.mxu0 0
        %3646 = vmatmul.mubr.bf16.gmra.mrb[0].mxu0 %v3611
        %v3647 = vpop.f32.mrb[0].mxu0
        %v3648 = vadd.f32 0.0, %v3647
        %v3649 = vpop.f32.mrb[0].mxu0
        %v3650 = vpop.f32.mrb[0].mxu0
        %v3651 = vadd.f32 0.0, %v3650
        %v3652 = vpop.f32.mrb[0].mxu0
        %3653 = vdwg.mxu0
        %v3655 = vsel %vm3521, %v1848, 0
        %3657 = vmatprep.subr.bf16.mxu0 0
        %3658 = vmatpush1.bf16.msra.mxu0 %v3503
        %3659 = vmatprep.subr.bf16.mxu0 0
        %3660 = vmatpush1.bf16.msra.mxu0 %v3519
        %3661 = vmatprep.subr.bf16.mxu0 0
        %3662 = vmatpush1.bf16.msra.mxu0 0
        %3663 = vmatprep.subr.bf16.mxu0 0
        %3664 = vmatpush1.bf16.msra.mxu0 0
        %3665 = vmatprep.subr.bf16.mxu0 0
        %3666 = vmatpush1.bf16.msra.mxu0 0
        %3667 = vmatprep.subr.bf16.mxu0 0
        %3668 = vmatpush1.bf16.msra.mxu0 0
        %3669 = vmatprep.subr.bf16.mxu0 0
        %3670 = vmatpush1.bf16.msra.mxu0 0
        %3671 = vmatprep.subr.bf16.mxu0 0
        %3672 = vmatpush1.bf16.msra.mxu0 0
        %3673 = vmatprep.subr.bf16.mxu0 0
        %3674 = vmatpush1.bf16.msra.mxu0 0
        %3675 = vmatprep.subr.bf16.mxu0 0
        %3676 = vmatpush1.bf16.msra.mxu0 0
        %3677 = vmatprep.subr.bf16.mxu0 0
        %3678 = vmatpush1.bf16.msra.mxu0 0
        %3679 = vmatprep.subr.bf16.mxu0 0
        %3680 = vmatpush1.bf16.msra.mxu0 0
        %3681 = vmatprep.subr.bf16.mxu0 0
        %3682 = vmatpush1.bf16.msra.mxu0 0
        %3683 = vmatprep.subr.bf16.mxu0 0
        %3684 = vmatpush1.bf16.msra.mxu0 0
        %3685 = vmatprep.subr.bf16.mxu0 0
        %3686 = vmatpush1.bf16.msra.mxu0 0
        %3687 = vmatprep.subr.bf16.mxu0 0
        %3688 = vmatpush1.bf16.msra.mxu0 0
        %3689 = vmatprep.mubr.bf16.mxu0 0
        %3690 = vmatmul.mubr.bf16.gmra.mrb[0].mxu0 %v3655
        %v3691 = vpop.f32.mrb[0].mxu0
        %v3692 = vadd.f32 0.0, %v3691
        %v3693 = vpop.f32.mrb[0].mxu0
        %v3694 = vpop.f32.mrb[0].mxu0
        %v3695 = vadd.f32 0.0, %v3694
        %v3696 = vpop.f32.mrb[0].mxu0
        %3697 = vdwg.mxu0
        %v3698 = vmul.f32 %v3560, 0.17677669
        %v3699 = vmul.f32 %v3563, 0.17677669
        %v3700 = vmul.f32 %v3604, 0.17677669
        %v3701 = vmul.f32 %v3607, 0.17677669
        %v3702 = vmul.f32 %v3648, 0.17677669
        %v3703 = vmul.f32 %v3651, 0.17677669
        %v3704 = vmul.f32 %v3692, 0.17677669
        %v3705 = vmul.f32 %v3695, 0.17677669
        %vm3706 = vcmask 130048
        %v3707 = vsel %vm3706, %v3698, -inf
        %3708 = vmax.xlane.f32.xlu0 %v3707
        %v3709 = vpop.xlane.xlu0 %3708
        %v3710 = vsel %vm3706, %v3699, -inf
        %3711 = vmax.xlane.f32.xlu0 %v3710
        %v3712 = vpop.xlane.xlu0 %3711
        %v3713 = vsel %vm3706, %v3700, -inf
        %3714 = vmax.xlane.f32.xlu0 %v3713
        %v3715 = vpop.xlane.xlu0 %3714
        %v3716 = vsel %vm3706, %v3701, -inf
        %3717 = vmax.xlane.f32.xlu0 %v3716
        %v3718 = vpop.xlane.xlu0 %3717
        %v3719 = vsel %vm3706, %v3702, -inf
        %3720 = vmax.xlane.f32.xlu0 %v3719
        %v3721 = vpop.xlane.xlu0 %3720
        %v3722 = vsel %vm3706, %v3703, -inf
        %3723 = vmax.xlane.f32.xlu0 %v3722
        %v3724 = vpop.xlane.xlu0 %3723
        %v3725 = vsel %vm3706, %v3704, -inf
        %3726 = vmax.xlane.f32.xlu0 %v3725
        %v3727 = vpop.xlane.xlu0 %3726
        %v3728 = vsel %vm3706, %v3705, -inf
        %3729 = vmax.xlane.f32.xlu0 %v3728
        %v3730 = vpop.xlane.xlu0 %3729
        %v3731 = vsub.f32 %v3698, %v3709
        %v3732 = vsub.f32 %v3699, %v3712
        %v3733 = vsub.f32 %v3700, %v3715
        %v3734 = vsub.f32 %v3701, %v3718
        %v3735 = vsub.f32 %v3702, %v3721
        %v3736 = vsub.f32 %v3703, %v3724
        %v3737 = vsub.f32 %v3704, %v3727
        %v3738 = vsub.f32 %v3705, %v3730
        %v3739 = vmul.f32 %v3731, 1.442695
        %v3740 = vpow.pop %v3739
        %v3741 = vmul.f32 %v3732, 1.442695
        %v3742 = vpow.pop %v3741
        %v3743 = vmul.f32 %v3733, 1.442695
        %v3744 = vpow.pop %v3743
        %v3745 = vmul.f32 %v3734, 1.442695
        %v3746 = vpow.pop %v3745
        %v3747 = vmul.f32 %v3735, 1.442695
        %v3748 = vpow.pop %v3747
        %v3749 = vmul.f32 %v3736, 1.442695
        %v3750 = vpow.pop %v3749
        %v3751 = vmul.f32 %v3737, 1.442695
        %v3752 = vpow.pop %v3751
        %v3753 = vmul.f32 %v3738, 1.442695
        %v3754 = vpow.pop %v3753
        %v3755 = vsel %vm3706, %v3740, 0.0
        %3756 = vadd.xlane.f32.xlu0 %v3755
        %v3757 = vpop.xlane.xlu0 %3756
        %v3758 = vsel %vm3706, %v3742, 0.0
        %3759 = vadd.xlane.f32.xlu0 %v3758
        %v3760 = vpop.xlane.xlu0 %3759
        %v3761 = vsel %vm3706, %v3744, 0.0
        %3762 = vadd.xlane.f32.xlu0 %v3761
        %v3763 = vpop.xlane.xlu0 %3762
        %v3764 = vsel %vm3706, %v3746, 0.0
        %3765 = vadd.xlane.f32.xlu0 %v3764
        %v3766 = vpop.xlane.xlu0 %3765
        %v3767 = vsel %vm3706, %v3748, 0.0
        %3768 = vadd.xlane.f32.xlu0 %v3767
        %v3769 = vpop.xlane.xlu0 %3768
        %v3770 = vsel %vm3706, %v3750, 0.0
        %3771 = vadd.xlane.f32.xlu0 %v3770
        %v3772 = vpop.xlane.xlu0 %3771
        %v3773 = vsel %vm3706, %v3752, 0.0
        %3774 = vadd.xlane.f32.xlu0 %v3773
        %v3775 = vpop.xlane.xlu0 %3774
        %v3776 = vsel %vm3706, %v3754, 0.0
        %3777 = vadd.xlane.f32.xlu0 %v3776
        %v3778 = vpop.xlane.xlu0 %3777
        %v3779 = vrcp.pop %v3757
        %v3780 = vrcp.pop %v3760
        %v3781 = vrcp.pop %v3763
        %v3782 = vrcp.pop %v3766
        %v3783 = vrcp.pop %v3769
        %v3784 = vrcp.pop %v3772
        %v3785 = vrcp.pop %v3775
        %v3786 = vrcp.pop %v3778
        %v3787 = vmul.f32 %v3740, %v3779
        %v3788 = vmul.f32 %v3742, %v3780
        %v3789 = vmul.f32 %v3744, %v3781
        %v3790 = vmul.f32 %v3746, %v3782
        %v3791 = vmul.f32 %v3748, %v3783
        %v3792 = vmul.f32 %v3750, %v3784
        %v3793 = vmul.f32 %v3752, %v3785
        %v3794 = vmul.f32 %v3754, %v3786
        %v3795 = vpack.c.bf16 %v3788, %v3787
        %v3796 = vpack.c.bf16 %v3790, %v3789
        %v3797 = vpack.c.bf16 %v3792, %v3791
        %v3798 = vpack.c.bf16 %v3794, %v3793
        %v3799 = vpack.c.bf16 %v1609, %v1609
        %v3800 = vpack.c.bf16 %v1633, %v1633
        %v3801 = vpack.c.bf16 %v1616, %v1616
        %v3802 = vpack.c.bf16 %v1634, %v1634
        %v3803 = vpack.c.bf16 %v1625, %v1625
        %v3804 = vpack.c.bf16 %v1635, %v1635
        %v3805 = vpack.c.bf16 %v1632, %v1632
        %v3806 = vpack.c.bf16 %v1636, %v1636
        %v3807 = vpack.c.bf16 %v1677, %v1677
        %v3808 = vpack.c.bf16 %v1701, %v1701
        %v3809 = vpack.c.bf16 %v1684, %v1684
        %v3810 = vpack.c.bf16 %v1702, %v1702
        %v3811 = vpack.c.bf16 %v1693, %v1693
        %v3812 = vpack.c.bf16 %v1703, %v1703
        %v3813 = vpack.c.bf16 %v1700, %v1700
        %v3814 = vpack.c.bf16 %v1704, %v1704
        %3815 = vxpose.xlu0.c.b16.start [1/8] %v3799, 128
        %3816 = vxpose.xlu0.c.b16.cont [2/8] 0, 128
        %3817 = vxpose.xlu0.c.b16.cont [3/8] 0, 128
        %3818 = vxpose.xlu0.c.b16.cont [4/8] 0, 128
        %3819 = vxpose.xlu0.c.b16.cont [5/8] 0, 128
        %3820 = vxpose.xlu0.c.b16.cont [6/8] 0, 128
        %3821 = vxpose.xlu0.c.b16.cont [7/8] 0, 128
        %3822 = vxpose.xlu0.c.b16.end [8/8] 0, 128
        %v3823 = vpop.trf.xlu0
        %v3824 = vpop.trf.xlu0
        %v3825 = vpop.trf.xlu0
        %v3826 = vpop.trf.xlu0
        %v3827 = vpop.trf.xlu0
        %v3828 = vpop.trf.xlu0
        %v3829 = vpop.trf.xlu0
        %v3830 = vpop.trf.xlu0
        %3831 = vxpose.xlu0.c.b16.start [1/8] %v3800, 128
        %3832 = vxpose.xlu0.c.b16.cont [2/8] 0, 128
        %3833 = vxpose.xlu0.c.b16.cont [3/8] 0, 128
        %3834 = vxpose.xlu0.c.b16.cont [4/8] 0, 128
        %3835 = vxpose.xlu0.c.b16.cont [5/8] 0, 128
        %3836 = vxpose.xlu0.c.b16.cont [6/8] 0, 128
        %3837 = vxpose.xlu0.c.b16.cont [7/8] 0, 128
        %3838 = vxpose.xlu0.c.b16.end [8/8] 0, 128
        %v3839 = vpop.trf.xlu0
        %v3840 = vpop.trf.xlu0
        %v3841 = vpop.trf.xlu0
        %v3842 = vpop.trf.xlu0
        %v3843 = vpop.trf.xlu0
        %v3844 = vpop.trf.xlu0
        %v3845 = vpop.trf.xlu0
        %v3846 = vpop.trf.xlu0
        %3847 = vxpose.xlu0.c.b16.start [1/8] %v3801, 128
        %3848 = vxpose.xlu0.c.b16.cont [2/8] 0, 128
        %3849 = vxpose.xlu0.c.b16.cont [3/8] 0, 128
        %3850 = vxpose.xlu0.c.b16.cont [4/8] 0, 128
        %3851 = vxpose.xlu0.c.b16.cont [5/8] 0, 128
        %3852 = vxpose.xlu0.c.b16.cont [6/8] 0, 128
        %3853 = vxpose.xlu0.c.b16.cont [7/8] 0, 128
        %3854 = vxpose.xlu0.c.b16.end [8/8] 0, 128
        %v3855 = vpop.trf.xlu0
        %v3856 = vpop.trf.xlu0
        %v3857 = vpop.trf.xlu0
        %v3858 = vpop.trf.xlu0
        %v3859 = vpop.trf.xlu0
        %v3860 = vpop.trf.xlu0
        %v3861 = vpop.trf.xlu0
        %v3862 = vpop.trf.xlu0
        %3863 = vxpose.xlu0.c.b16.start [1/8] %v3802, 128
        %3864 = vxpose.xlu0.c.b16.cont [2/8] 0, 128
        %3865 = vxpose.xlu0.c.b16.cont [3/8] 0, 128
        %3866 = vxpose.xlu0.c.b16.cont [4/8] 0, 128
        %3867 = vxpose.xlu0.c.b16.cont [5/8] 0, 128
        %3868 = vxpose.xlu0.c.b16.cont [6/8] 0, 128
        %3869 = vxpose.xlu0.c.b16.cont [7/8] 0, 128
        %3870 = vxpose.xlu0.c.b16.end [8/8] 0, 128
        %v3871 = vpop.trf.xlu0
        %v3872 = vpop.trf.xlu0
        %v3873 = vpop.trf.xlu0
        %v3874 = vpop.trf.xlu0
        %v3875 = vpop.trf.xlu0
        %v3876 = vpop.trf.xlu0
        %v3877 = vpop.trf.xlu0
        %v3878 = vpop.trf.xlu0
        %3879 = vxpose.xlu0.c.b16.start [1/8] %v3803, 128
        %3880 = vxpose.xlu0.c.b16.cont [2/8] 0, 128
        %3881 = vxpose.xlu0.c.b16.cont [3/8] 0, 128
        %3882 = vxpose.xlu0.c.b16.cont [4/8] 0, 128
        %3883 = vxpose.xlu0.c.b16.cont [5/8] 0, 128
        %3884 = vxpose.xlu0.c.b16.cont [6/8] 0, 128
        %3885 = vxpose.xlu0.c.b16.cont [7/8] 0, 128
        %3886 = vxpose.xlu0.c.b16.end [8/8] 0, 128
        %v3887 = vpop.trf.xlu0
        %v3888 = vpop.trf.xlu0
        %v3889 = vpop.trf.xlu0
        %v3890 = vpop.trf.xlu0
        %v3891 = vpop.trf.xlu0
        %v3892 = vpop.trf.xlu0
        %v3893 = vpop.trf.xlu0
        %v3894 = vpop.trf.xlu0
        %3895 = vxpose.xlu0.c.b16.start [1/8] %v3804, 128
        %3896 = vxpose.xlu0.c.b16.cont [2/8] 0, 128
        %3897 = vxpose.xlu0.c.b16.cont [3/8] 0, 128
        %3898 = vxpose.xlu0.c.b16.cont [4/8] 0, 128
        %3899 = vxpose.xlu0.c.b16.cont [5/8] 0, 128
        %3900 = vxpose.xlu0.c.b16.cont [6/8] 0, 128
        %3901 = vxpose.xlu0.c.b16.cont [7/8] 0, 128
        %3902 = vxpose.xlu0.c.b16.end [8/8] 0, 128
        %v3903 = vpop.trf.xlu0
        %v3904 = vpop.trf.xlu0
        %v3905 = vpop.trf.xlu0
        %v3906 = vpop.trf.xlu0
        %v3907 = vpop.trf.xlu0
        %v3908 = vpop.trf.xlu0
        %v3909 = vpop.trf.xlu0
        %v3910 = vpop.trf.xlu0
        %3911 = vxpose.xlu0.c.b16.start [1/8] %v3805, 128
        %3912 = vxpose.xlu0.c.b16.cont [2/8] 0, 128
        %3913 = vxpose.xlu0.c.b16.cont [3/8] 0, 128
        %3914 = vxpose.xlu0.c.b16.cont [4/8] 0, 128
        %3915 = vxpose.xlu0.c.b16.cont [5/8] 0, 128
        %3916 = vxpose.xlu0.c.b16.cont [6/8] 0, 128
        %3917 = vxpose.xlu0.c.b16.cont [7/8] 0, 128
        %3918 = vxpose.xlu0.c.b16.end [8/8] 0, 128
        %v3919 = vpop.trf.xlu0
        %v3920 = vpop.trf.xlu0
        %v3921 = vpop.trf.xlu0
        %v3922 = vpop.trf.xlu0
        %v3923 = vpop.trf.xlu0
        %v3924 = vpop.trf.xlu0
        %v3925 = vpop.trf.xlu0
        %v3926 = vpop.trf.xlu0
        %3927 = vxpose.xlu0.c.b16.start [1/8] %v3806, 128
        %3928 = vxpose.xlu0.c.b16.cont [2/8] 0, 128
        %3929 = vxpose.xlu0.c.b16.cont [3/8] 0, 128
        %3930 = vxpose.xlu0.c.b16.cont [4/8] 0, 128
        %3931 = vxpose.xlu0.c.b16.cont [5/8] 0, 128
        %3932 = vxpose.xlu0.c.b16.cont [6/8] 0, 128
        %3933 = vxpose.xlu0.c.b16.cont [7/8] 0, 128
        %3934 = vxpose.xlu0.c.b16.end [8/8] 0, 128
        %v3935 = vpop.trf.xlu0
        %v3936 = vpop.trf.xlu0
        %v3937 = vpop.trf.xlu0
        %v3938 = vpop.trf.xlu0
        %v3939 = vpop.trf.xlu0
        %v3940 = vpop.trf.xlu0
        %v3941 = vpop.trf.xlu0
        %v3942 = vpop.trf.xlu0
        %3943 = vxpose.xlu0.c.b16.start [1/8] %v3807, 128
        %3944 = vxpose.xlu0.c.b16.cont [2/8] 0, 128
        %3945 = vxpose.xlu0.c.b16.cont [3/8] 0, 128
        %3946 = vxpose.xlu0.c.b16.cont [4/8] 0, 128
        %3947 = vxpose.xlu0.c.b16.cont [5/8] 0, 128
        %3948 = vxpose.xlu0.c.b16.cont [6/8] 0, 128
        %3949 = vxpose.xlu0.c.b16.cont [7/8] 0, 128
        %3950 = vxpose.xlu0.c.b16.end [8/8] 0, 128
        %v3951 = vpop.trf.xlu0
        %v3952 = vpop.trf.xlu0
        %v3953 = vpop.trf.xlu0
        %v3954 = vpop.trf.xlu0
        %v3955 = vpop.trf.xlu0
        %v3956 = vpop.trf.xlu0
        %v3957 = vpop.trf.xlu0
        %v3958 = vpop.trf.xlu0
        %3959 = vxpose.xlu0.c.b16.start [1/8] %v3808, 128
        %3960 = vxpose.xlu0.c.b16.cont [2/8] 0, 128
        %3961 = vxpose.xlu0.c.b16.cont [3/8] 0, 128
        %3962 = vxpose.xlu0.c.b16.cont [4/8] 0, 128
        %3963 = vxpose.xlu0.c.b16.cont [5/8] 0, 128
        %3964 = vxpose.xlu0.c.b16.cont [6/8] 0, 128
        %3965 = vxpose.xlu0.c.b16.cont [7/8] 0, 128
        %3966 = vxpose.xlu0.c.b16.end [8/8] 0, 128
        %v3967 = vpop.trf.xlu0
        %v3968 = vpop.trf.xlu0
        %v3969 = vpop.trf.xlu0
        %v3970 = vpop.trf.xlu0
        %v3971 = vpop.trf.xlu0
        %v3972 = vpop.trf.xlu0
        %v3973 = vpop.trf.xlu0
        %v3974 = vpop.trf.xlu0
        %3975 = vxpose.xlu0.c.b16.start [1/8] %v3809, 128
        %3976 = vxpose.xlu0.c.b16.cont [2/8] 0, 128
        %3977 = vxpose.xlu0.c.b16.cont [3/8] 0, 128
        %3978 = vxpose.xlu0.c.b16.cont [4/8] 0, 128
        %3979 = vxpose.xlu0.c.b16.cont [5/8] 0, 128
        %3980 = vxpose.xlu0.c.b16.cont [6/8] 0, 128
        %3981 = vxpose.xlu0.c.b16.cont [7/8] 0, 128
        %3982 = vxpose.xlu0.c.b16.end [8/8] 0, 128
        %v3983 = vpop.trf.xlu0
        %v3984 = vpop.trf.xlu0
        %v3985 = vpop.trf.xlu0
        %v3986 = vpop.trf.xlu0
        %v3987 = vpop.trf.xlu0
        %v3988 = vpop.trf.xlu0
        %v3989 = vpop.trf.xlu0
        %v3990 = vpop.trf.xlu0
        %3991 = vxpose.xlu0.c.b16.start [1/8] %v3810, 128
        %3992 = vxpose.xlu0.c.b16.cont [2/8] 0, 128
        %3993 = vxpose.xlu0.c.b16.cont [3/8] 0, 128
        %3994 = vxpose.xlu0.c.b16.cont [4/8] 0, 128
        %3995 = vxpose.xlu0.c.b16.cont [5/8] 0, 128
        %3996 = vxpose.xlu0.c.b16.cont [6/8] 0, 128
        %3997 = vxpose.xlu0.c.b16.cont [7/8] 0, 128
        %3998 = vxpose.xlu0.c.b16.end [8/8] 0, 128
        %v3999 = vpop.trf.xlu0
        %v4000 = vpop.trf.xlu0
        %v4001 = vpop.trf.xlu0
        %v4002 = vpop.trf.xlu0
        %v4003 = vpop.trf.xlu0
        %v4004 = vpop.trf.xlu0
        %v4005 = vpop.trf.xlu0
        %v4006 = vpop.trf.xlu0
        %4007 = vxpose.xlu0.c.b16.start [1/8] %v3811, 128
        %4008 = vxpose.xlu0.c.b16.cont [2/8] 0, 128
        %4009 = vxpose.xlu0.c.b16.cont [3/8] 0, 128
        %4010 = vxpose.xlu0.c.b16.cont [4/8] 0, 128
        %4011 = vxpose.xlu0.c.b16.cont [5/8] 0, 128
        %4012 = vxpose.xlu0.c.b16.cont [6/8] 0, 128
        %4013 = vxpose.xlu0.c.b16.cont [7/8] 0, 128
        %4014 = vxpose.xlu0.c.b16.end [8/8] 0, 128
        %v4015 = vpop.trf.xlu0
        %v4016 = vpop.trf.xlu0
        %v4017 = vpop.trf.xlu0
        %v4018 = vpop.trf.xlu0
        %v4019 = vpop.trf.xlu0
        %v4020 = vpop.trf.xlu0
        %v4021 = vpop.trf.xlu0
        %v4022 = vpop.trf.xlu0
        %4023 = vxpose.xlu0.c.b16.start [1/8] %v3812, 128
        %4024 = vxpose.xlu0.c.b16.cont [2/8] 0, 128
        %4025 = vxpose.xlu0.c.b16.cont [3/8] 0, 128
        %4026 = vxpose.xlu0.c.b16.cont [4/8] 0, 128
        %4027 = vxpose.xlu0.c.b16.cont [5/8] 0, 128
        %4028 = vxpose.xlu0.c.b16.cont [6/8] 0, 128
        %4029 = vxpose.xlu0.c.b16.cont [7/8] 0, 128
        %4030 = vxpose.xlu0.c.b16.end [8/8] 0, 128
        %v4031 = vpop.trf.xlu0
        %v4032 = vpop.trf.xlu0
        %v4033 = vpop.trf.xlu0
        %v4034 = vpop.trf.xlu0
        %v4035 = vpop.trf.xlu0
        %v4036 = vpop.trf.xlu0
        %v4037 = vpop.trf.xlu0
        %v4038 = vpop.trf.xlu0
        %4039 = vxpose.xlu0.c.b16.start [1/8] %v3813, 128
        %4040 = vxpose.xlu0.c.b16.cont [2/8] 0, 128
        %4041 = vxpose.xlu0.c.b16.cont [3/8] 0, 128
        %4042 = vxpose.xlu0.c.b16.cont [4/8] 0, 128
        %4043 = vxpose.xlu0.c.b16.cont [5/8] 0, 128
        %4044 = vxpose.xlu0.c.b16.cont [6/8] 0, 128
        %4045 = vxpose.xlu0.c.b16.cont [7/8] 0, 128
        %4046 = vxpose.xlu0.c.b16.end [8/8] 0, 128
        %v4047 = vpop.trf.xlu0
        %v4048 = vpop.trf.xlu0
        %v4049 = vpop.trf.xlu0
        %v4050 = vpop.trf.xlu0
        %v4051 = vpop.trf.xlu0
        %v4052 = vpop.trf.xlu0
        %v4053 = vpop.trf.xlu0
        %v4054 = vpop.trf.xlu0
        %4055 = vxpose.xlu0.c.b16.start [1/8] %v3814, 128
        %4056 = vxpose.xlu0.c.b16.cont [2/8] 0, 128
        %4057 = vxpose.xlu0.c.b16.cont [3/8] 0, 128
        %4058 = vxpose.xlu0.c.b16.cont [4/8] 0, 128
        %4059 = vxpose.xlu0.c.b16.cont [5/8] 0, 128
        %4060 = vxpose.xlu0.c.b16.cont [6/8] 0, 128
        %4061 = vxpose.xlu0.c.b16.cont [7/8] 0, 128
        %4062 = vxpose.xlu0.c.b16.end [8/8] 0, 128
        %v4063 = vpop.trf.xlu0
        %v4064 = vpop.trf.xlu0
        %v4065 = vpop.trf.xlu0
        %v4066 = vpop.trf.xlu0
        %v4067 = vpop.trf.xlu0
        %v4068 = vpop.trf.xlu0
        %v4069 = vpop.trf.xlu0
        %v4070 = vpop.trf.xlu0
        %v4071 = vcombine.low %v3823, %v3887
        %v4072 = vcombine.high %v3823, %v3887
        %v4074 = vunpack.c.l.s4 1983009808
        %v4075 = vunpack.c.0.s8 %v4074
        %v4076 = vlaneseq
        %v4077 = vshrl.u32 %v4076, 7
        %v4078 = vsub.s32 %v4075, %v4077
        %v4079 = vrot.slane %v4071, %v4078
        %v4081 = vunpack.c.l.s4 1983009808
        %v4082 = vunpack.c.0.s8 %v4081
        %v4083 = vlaneseq
        %v4084 = vshrl.u32 %v4083, 7
        %v4085 = vsub.s32 %v4082, %v4084
        %v4086 = vrot.slane %v4072, %v4085
        %v4087 = vcombine.low %v3855, %v3919
        %v4088 = vcombine.high %v3855, %v3919
        %v4090 = vunpack.c.l.s4 1983009808
        %v4091 = vunpack.c.0.s8 %v4090
        %v4092 = vlaneseq
        %v4093 = vshrl.u32 %v4092, 7
        %v4094 = vsub.s32 %v4091, %v4093
        %v4095 = vrot.slane %v4087, %v4094
        %v4097 = vunpack.c.l.s4 1983009808
        %v4098 = vunpack.c.0.s8 %v4097
        %v4099 = vlaneseq
        %v4100 = vshrl.u32 %v4099, 7
        %v4101 = vsub.s32 %v4098, %v4100
        %v4102 = vrot.slane %v4088, %v4101
        %v4103 = vcombine.low %v3951, %v4015
        %v4104 = vcombine.high %v3951, %v4015
        %v4106 = vunpack.c.l.s4 1983009808
        %v4107 = vunpack.c.0.s8 %v4106
        %v4108 = vlaneseq
        %v4109 = vshrl.u32 %v4108, 7
        %v4110 = vsub.s32 %v4107, %v4109
        %v4111 = vrot.slane %v4103, %v4110
        %v4113 = vunpack.c.l.s4 1983009808
        %v4114 = vunpack.c.0.s8 %v4113
        %v4115 = vlaneseq
        %v4116 = vshrl.u32 %v4115, 7
        %v4117 = vsub.s32 %v4114, %v4116
        %v4118 = vrot.slane %v4104, %v4117
        %v4119 = vcombine.low %v3983, %v4047
        %v4120 = vcombine.high %v3983, %v4047
        %v4122 = vunpack.c.l.s4 1983009808
        %v4123 = vunpack.c.0.s8 %v4122
        %v4124 = vlaneseq
        %v4125 = vshrl.u32 %v4124, 7
        %v4126 = vsub.s32 %v4123, %v4125
        %v4127 = vrot.slane %v4119, %v4126
        %v4129 = vunpack.c.l.s4 1983009808
        %v4130 = vunpack.c.0.s8 %v4129
        %v4131 = vlaneseq
        %v4132 = vshrl.u32 %v4131, 7
        %v4133 = vsub.s32 %v4130, %v4132
        %v4134 = vrot.slane %v4120, %v4133
        %v4135 = vcombine.low %v4079, %v4095
        %v4136 = vcombine.high %v4079, %v4095
        %v4138 = vunpack.c.l.s4 1934713408
        %v4139 = vunpack.c.0.s8 %v4138
        %v4140 = vlaneseq
        %v4141 = vshrl.u32 %v4140, 7
        %v4142 = vsub.s32 %v4139, %v4141
        %v4143 = vrot.slane %v4135, %v4142
        %v4145 = vunpack.c.l.s4 1934713408
        %v4146 = vunpack.c.0.s8 %v4145
        %v4147 = vlaneseq
        %v4148 = vshrl.u32 %v4147, 7
        %v4149 = vsub.s32 %v4146, %v4148
        %v4150 = vrot.slane %v4136, %v4149
        %v4151 = vcombine.low %v4086, %v4102
        %v4152 = vcombine.high %v4086, %v4102
        %v4154 = vunpack.c.l.s4 1934713408
        %v4155 = vunpack.c.0.s8 %v4154
        %v4156 = vlaneseq
        %v4157 = vshrl.u32 %v4156, 7
        %v4158 = vsub.s32 %v4155, %v4157
        %v4159 = vrot.slane %v4151, %v4158
        %v4161 = vunpack.c.l.s4 1934713408
        %v4162 = vunpack.c.0.s8 %v4161
        %v4163 = vlaneseq
        %v4164 = vshrl.u32 %v4163, 7
        %v4165 = vsub.s32 %v4162, %v4164
        %v4166 = vrot.slane %v4152, %v4165
        %v4167 = vcombine.low %v4111, %v4127
        %v4168 = vcombine.high %v4111, %v4127
        %v4170 = vunpack.c.l.s4 1934713408
        %v4171 = vunpack.c.0.s8 %v4170
        %v4172 = vlaneseq
        %v4173 = vshrl.u32 %v4172, 7
        %v4174 = vsub.s32 %v4171, %v4173
        %v4175 = vrot.slane %v4167, %v4174
        %v4177 = vunpack.c.l.s4 1934713408
        %v4178 = vunpack.c.0.s8 %v4177
        %v4179 = vlaneseq
        %v4180 = vshrl.u32 %v4179, 7
        %v4181 = vsub.s32 %v4178, %v4180
        %v4182 = vrot.slane %v4168, %v4181
        %v4183 = vcombine.low %v4118, %v4134
        %v4184 = vcombine.high %v4118, %v4134
        %v4186 = vunpack.c.l.s4 1934713408
        %v4187 = vunpack.c.0.s8 %v4186
        %v4188 = vlaneseq
        %v4189 = vshrl.u32 %v4188, 7
        %v4190 = vsub.s32 %v4187, %v4189
        %v4191 = vrot.slane %v4183, %v4190
        %v4193 = vunpack.c.l.s4 1934713408
        %v4194 = vunpack.c.0.s8 %v4193
        %v4195 = vlaneseq
        %v4196 = vshrl.u32 %v4195, 7
        %v4197 = vsub.s32 %v4194, %v4196
        %v4198 = vrot.slane %v4184, %v4197
        %v4199 = vcombine.low %v4143, %v4175
        %v4200 = vcombine.high %v4143, %v4175
        %v4201 = vcombine.low %v4150, %v4182
        %v4202 = vcombine.high %v4150, %v4182
        %v4203 = vcombine.low %v4159, %v4191
        %v4204 = vcombine.high %v4159, %v4191
        %v4205 = vcombine.low %v4166, %v4198
        %v4206 = vcombine.high %v4166, %v4198
        %v4207 = vcombine.low %v3839, %v3903
        %v4208 = vcombine.high %v3839, %v3903
        %v4210 = vunpack.c.l.s4 1983009808
        %v4211 = vunpack.c.0.s8 %v4210
        %v4212 = vlaneseq
        %v4213 = vshrl.u32 %v4212, 7
        %v4214 = vsub.s32 %v4211, %v4213
        %v4215 = vrot.slane %v4207, %v4214
        %v4217 = vunpack.c.l.s4 1983009808
        %v4218 = vunpack.c.0.s8 %v4217
        %v4219 = vlaneseq
        %v4220 = vshrl.u32 %v4219, 7
        %v4221 = vsub.s32 %v4218, %v4220
        %v4222 = vrot.slane %v4208, %v4221
        %v4223 = vcombine.low %v3871, %v3935
        %v4224 = vcombine.high %v3871, %v3935
        %v4226 = vunpack.c.l.s4 1983009808
        %v4227 = vunpack.c.0.s8 %v4226
        %v4228 = vlaneseq
        %v4229 = vshrl.u32 %v4228, 7
        %v4230 = vsub.s32 %v4227, %v4229
        %v4231 = vrot.slane %v4223, %v4230
        %v4233 = vunpack.c.l.s4 1983009808
        %v4234 = vunpack.c.0.s8 %v4233
        %v4235 = vlaneseq
        %v4236 = vshrl.u32 %v4235, 7
        %v4237 = vsub.s32 %v4234, %v4236
        %v4238 = vrot.slane %v4224, %v4237
        %v4239 = vcombine.low %v3967, %v4031
        %v4240 = vcombine.high %v3967, %v4031
        %v4242 = vunpack.c.l.s4 1983009808
        %v4243 = vunpack.c.0.s8 %v4242
        %v4244 = vlaneseq
        %v4245 = vshrl.u32 %v4244, 7
        %v4246 = vsub.s32 %v4243, %v4245
        %v4247 = vrot.slane %v4239, %v4246
        %v4249 = vunpack.c.l.s4 1983009808
        %v4250 = vunpack.c.0.s8 %v4249
        %v4251 = vlaneseq
        %v4252 = vshrl.u32 %v4251, 7
        %v4253 = vsub.s32 %v4250, %v4252
        %v4254 = vrot.slane %v4240, %v4253
        %v4255 = vcombine.low %v3999, %v4063
        %v4256 = vcombine.high %v3999, %v4063
        %v4258 = vunpack.c.l.s4 1983009808
        %v4259 = vunpack.c.0.s8 %v4258
        %v4260 = vlaneseq
        %v4261 = vshrl.u32 %v4260, 7
        %v4262 = vsub.s32 %v4259, %v4261
        %v4263 = vrot.slane %v4255, %v4262
        %v4265 = vunpack.c.l.s4 1983009808
        %v4266 = vunpack.c.0.s8 %v4265
        %v4267 = vlaneseq
        %v4268 = vshrl.u32 %v4267, 7
        %v4269 = vsub.s32 %v4266, %v4268
        %v4270 = vrot.slane %v4256, %v4269
        %v4271 = vcombine.low %v4215, %v4231
        %v4272 = vcombine.high %v4215, %v4231
        %v4274 = vunpack.c.l.s4 1934713408
        %v4275 = vunpack.c.0.s8 %v4274
        %v4276 = vlaneseq
        %v4277 = vshrl.u32 %v4276, 7
        %v4278 = vsub.s32 %v4275, %v4277
        %v4279 = vrot.slane %v4271, %v4278
        %v4281 = vunpack.c.l.s4 1934713408
        %v4282 = vunpack.c.0.s8 %v4281
        %v4283 = vlaneseq
        %v4284 = vshrl.u32 %v4283, 7
        %v4285 = vsub.s32 %v4282, %v4284
        %v4286 = vrot.slane %v4272, %v4285
        %v4287 = vcombine.low %v4222, %v4238
        %v4288 = vcombine.high %v4222, %v4238
        %v4290 = vunpack.c.l.s4 1934713408
        %v4291 = vunpack.c.0.s8 %v4290
        %v4292 = vlaneseq
        %v4293 = vshrl.u32 %v4292, 7
        %v4294 = vsub.s32 %v4291, %v4293
        %v4295 = vrot.slane %v4287, %v4294
        %v4297 = vunpack.c.l.s4 1934713408
        %v4298 = vunpack.c.0.s8 %v4297
        %v4299 = vlaneseq
        %v4300 = vshrl.u32 %v4299, 7
        %v4301 = vsub.s32 %v4298, %v4300
        %v4302 = vrot.slane %v4288, %v4301
        %v4303 = vcombine.low %v4247, %v4263
        %v4304 = vcombine.high %v4247, %v4263
        %v4306 = vunpack.c.l.s4 1934713408
        %v4307 = vunpack.c.0.s8 %v4306
        %v4308 = vlaneseq
        %v4309 = vshrl.u32 %v4308, 7
        %v4310 = vsub.s32 %v4307, %v4309
        %v4311 = vrot.slane %v4303, %v4310
        %v4313 = vunpack.c.l.s4 1934713408
        %v4314 = vunpack.c.0.s8 %v4313
        %v4315 = vlaneseq
        %v4316 = vshrl.u32 %v4315, 7
        %v4317 = vsub.s32 %v4314, %v4316
        %v4318 = vrot.slane %v4304, %v4317
        %v4319 = vcombine.low %v4254, %v4270
        %v4320 = vcombine.high %v4254, %v4270
        %v4322 = vunpack.c.l.s4 1934713408
        %v4323 = vunpack.c.0.s8 %v4322
        %v4324 = vlaneseq
        %v4325 = vshrl.u32 %v4324, 7
        %v4326 = vsub.s32 %v4323, %v4325
        %v4327 = vrot.slane %v4319, %v4326
        %v4329 = vunpack.c.l.s4 1934713408
        %v4330 = vunpack.c.0.s8 %v4329
        %v4331 = vlaneseq
        %v4332 = vshrl.u32 %v4331, 7
        %v4333 = vsub.s32 %v4330, %v4332
        %v4334 = vrot.slane %v4320, %v4333
        %v4335 = vcombine.low %v4279, %v4311
        %v4336 = vcombine.high %v4279, %v4311
        %v4337 = vcombine.low %v4286, %v4318
        %v4338 = vcombine.high %v4286, %v4318
        %v4339 = vcombine.low %v4295, %v4327
        %v4340 = vcombine.high %v4295, %v4327
        %v4341 = vcombine.low %v4302, %v4334
        %v4342 = vcombine.high %v4302, %v4334
        %v4343 = vcombine.low %v3824, %v3888
        %v4344 = vcombine.high %v3824, %v3888
        %v4346 = vunpack.c.l.s4 1983009808
        %v4347 = vunpack.c.0.s8 %v4346
        %v4348 = vlaneseq
        %v4349 = vshrl.u32 %v4348, 7
        %v4350 = vsub.s32 %v4347, %v4349
        %v4351 = vrot.slane %v4343, %v4350
        %v4353 = vunpack.c.l.s4 1983009808
        %v4354 = vunpack.c.0.s8 %v4353
        %v4355 = vlaneseq
        %v4356 = vshrl.u32 %v4355, 7
        %v4357 = vsub.s32 %v4354, %v4356
        %v4358 = vrot.slane %v4344, %v4357
        %v4359 = vcombine.low %v3856, %v3920
        %v4360 = vcombine.high %v3856, %v3920
        %v4362 = vunpack.c.l.s4 1983009808
        %v4363 = vunpack.c.0.s8 %v4362
        %v4364 = vlaneseq
        %v4365 = vshrl.u32 %v4364, 7
        %v4366 = vsub.s32 %v4363, %v4365
        %v4367 = vrot.slane %v4359, %v4366
        %v4369 = vunpack.c.l.s4 1983009808
        %v4370 = vunpack.c.0.s8 %v4369
        %v4371 = vlaneseq
        %v4372 = vshrl.u32 %v4371, 7
        %v4373 = vsub.s32 %v4370, %v4372
        %v4374 = vrot.slane %v4360, %v4373
        %v4375 = vcombine.low %v3952, %v4016
        %v4376 = vcombine.high %v3952, %v4016
        %v4378 = vunpack.c.l.s4 1983009808
        %v4379 = vunpack.c.0.s8 %v4378
        %v4380 = vlaneseq
        %v4381 = vshrl.u32 %v4380, 7
        %v4382 = vsub.s32 %v4379, %v4381
        %v4383 = vrot.slane %v4375, %v4382
        %v4385 = vunpack.c.l.s4 1983009808
        %v4386 = vunpack.c.0.s8 %v4385
        %v4387 = vlaneseq
        %v4388 = vshrl.u32 %v4387, 7
        %v4389 = vsub.s32 %v4386, %v4388
        %v4390 = vrot.slane %v4376, %v4389
        %v4391 = vcombine.low %v3984, %v4048
        %v4392 = vcombine.high %v3984, %v4048
        %v4394 = vunpack.c.l.s4 1983009808
        %v4395 = vunpack.c.0.s8 %v4394
        %v4396 = vlaneseq
        %v4397 = vshrl.u32 %v4396, 7
        %v4398 = vsub.s32 %v4395, %v4397
        %v4399 = vrot.slane %v4391, %v4398
        %v4401 = vunpack.c.l.s4 1983009808
        %v4402 = vunpack.c.0.s8 %v4401
        %v4403 = vlaneseq
        %v4404 = vshrl.u32 %v4403, 7
        %v4405 = vsub.s32 %v4402, %v4404
        %v4406 = vrot.slane %v4392, %v4405
        %v4407 = vcombine.low %v4351, %v4367
        %v4408 = vcombine.high %v4351, %v4367
        %v4410 = vunpack.c.l.s4 1934713408
        %v4411 = vunpack.c.0.s8 %v4410
        %v4412 = vlaneseq
        %v4413 = vshrl.u32 %v4412, 7
        %v4414 = vsub.s32 %v4411, %v4413
        %v4415 = vrot.slane %v4407, %v4414
        %v4417 = vunpack.c.l.s4 1934713408
        %v4418 = vunpack.c.0.s8 %v4417
        %v4419 = vlaneseq
        %v4420 = vshrl.u32 %v4419, 7
        %v4421 = vsub.s32 %v4418, %v4420
        %v4422 = vrot.slane %v4408, %v4421
        %v4423 = vcombine.low %v4358, %v4374
        %v4424 = vcombine.high %v4358, %v4374
        %v4426 = vunpack.c.l.s4 1934713408
        %v4427 = vunpack.c.0.s8 %v4426
        %v4428 = vlaneseq
        %v4429 = vshrl.u32 %v4428, 7
        %v4430 = vsub.s32 %v4427, %v4429
        %v4431 = vrot.slane %v4423, %v4430
        %v4433 = vunpack.c.l.s4 1934713408
        %v4434 = vunpack.c.0.s8 %v4433
        %v4435 = vlaneseq
        %v4436 = vshrl.u32 %v4435, 7
        %v4437 = vsub.s32 %v4434, %v4436
        %v4438 = vrot.slane %v4424, %v4437
        %v4439 = vcombine.low %v4383, %v4399
        %v4440 = vcombine.high %v4383, %v4399
        %v4442 = vunpack.c.l.s4 1934713408
        %v4443 = vunpack.c.0.s8 %v4442
        %v4444 = vlaneseq
        %v4445 = vshrl.u32 %v4444, 7
        %v4446 = vsub.s32 %v4443, %v4445
        %v4447 = vrot.slane %v4439, %v4446
        %v4449 = vunpack.c.l.s4 1934713408
        %v4450 = vunpack.c.0.s8 %v4449
        %v4451 = vlaneseq
        %v4452 = vshrl.u32 %v4451, 7
        %v4453 = vsub.s32 %v4450, %v4452
        %v4454 = vrot.slane %v4440, %v4453
        %v4455 = vcombine.low %v4390, %v4406
        %v4456 = vcombine.high %v4390, %v4406
        %v4458 = vunpack.c.l.s4 1934713408
        %v4459 = vunpack.c.0.s8 %v4458
        %v4460 = vlaneseq
        %v4461 = vshrl.u32 %v4460, 7
        %v4462 = vsub.s32 %v4459, %v4461
        %v4463 = vrot.slane %v4455, %v4462
        %v4465 = vunpack.c.l.s4 1934713408
        %v4466 = vunpack.c.0.s8 %v4465
        %v4467 = vlaneseq
        %v4468 = vshrl.u32 %v4467, 7
        %v4469 = vsub.s32 %v4466, %v4468
        %v4470 = vrot.slane %v4456, %v4469
        %v4471 = vcombine.low %v4415, %v4447
        %v4472 = vcombine.high %v4415, %v4447
        %v4473 = vcombine.low %v4422, %v4454
        %v4474 = vcombine.high %v4422, %v4454
        %v4475 = vcombine.low %v4431, %v4463
        %v4476 = vcombine.high %v4431, %v4463
        %v4477 = vcombine.low %v4438, %v4470
        %v4478 = vcombine.high %v4438, %v4470
        %v4479 = vcombine.low %v3840, %v3904
        %v4480 = vcombine.high %v3840, %v3904
        %v4482 = vunpack.c.l.s4 1983009808
        %v4483 = vunpack.c.0.s8 %v4482
        %v4484 = vlaneseq
        %v4485 = vshrl.u32 %v4484, 7
        %v4486 = vsub.s32 %v4483, %v4485
        %v4487 = vrot.slane %v4479, %v4486
        %v4489 = vunpack.c.l.s4 1983009808
        %v4490 = vunpack.c.0.s8 %v4489
        %v4491 = vlaneseq
        %v4492 = vshrl.u32 %v4491, 7
        %v4493 = vsub.s32 %v4490, %v4492
        %v4494 = vrot.slane %v4480, %v4493
        %v4495 = vcombine.low %v3872, %v3936
        %v4496 = vcombine.high %v3872, %v3936
        %v4498 = vunpack.c.l.s4 1983009808
        %v4499 = vunpack.c.0.s8 %v4498
        %v4500 = vlaneseq
        %v4501 = vshrl.u32 %v4500, 7
        %v4502 = vsub.s32 %v4499, %v4501
        %v4503 = vrot.slane %v4495, %v4502
        %v4505 = vunpack.c.l.s4 1983009808
        %v4506 = vunpack.c.0.s8 %v4505
        %v4507 = vlaneseq
        %v4508 = vshrl.u32 %v4507, 7
        %v4509 = vsub.s32 %v4506, %v4508
        %v4510 = vrot.slane %v4496, %v4509
        %v4511 = vcombine.low %v3968, %v4032
        %v4512 = vcombine.high %v3968, %v4032
        %v4514 = vunpack.c.l.s4 1983009808
        %v4515 = vunpack.c.0.s8 %v4514
        %v4516 = vlaneseq
        %v4517 = vshrl.u32 %v4516, 7
        %v4518 = vsub.s32 %v4515, %v4517
        %v4519 = vrot.slane %v4511, %v4518
        %v4521 = vunpack.c.l.s4 1983009808
        %v4522 = vunpack.c.0.s8 %v4521
        %v4523 = vlaneseq
        %v4524 = vshrl.u32 %v4523, 7
        %v4525 = vsub.s32 %v4522, %v4524
        %v4526 = vrot.slane %v4512, %v4525
        %v4527 = vcombine.low %v4000, %v4064
        %v4528 = vcombine.high %v4000, %v4064
        %v4530 = vunpack.c.l.s4 1983009808
        %v4531 = vunpack.c.0.s8 %v4530
        %v4532 = vlaneseq
        %v4533 = vshrl.u32 %v4532, 7
        %v4534 = vsub.s32 %v4531, %v4533
        %v4535 = vrot.slane %v4527, %v4534
        %v4537 = vunpack.c.l.s4 1983009808
        %v4538 = vunpack.c.0.s8 %v4537
        %v4539 = vlaneseq
        %v4540 = vshrl.u32 %v4539, 7
        %v4541 = vsub.s32 %v4538, %v4540
        %v4542 = vrot.slane %v4528, %v4541
        %v4543 = vcombine.low %v4487, %v4503
        %v4544 = vcombine.high %v4487, %v4503
        %v4546 = vunpack.c.l.s4 1934713408
        %v4547 = vunpack.c.0.s8 %v4546
        %v4548 = vlaneseq
        %v4549 = vshrl.u32 %v4548, 7
        %v4550 = vsub.s32 %v4547, %v4549
        %v4551 = vrot.slane %v4543, %v4550
        %v4553 = vunpack.c.l.s4 1934713408
        %v4554 = vunpack.c.0.s8 %v4553
        %v4555 = vlaneseq
        %v4556 = vshrl.u32 %v4555, 7
        %v4557 = vsub.s32 %v4554, %v4556
        %v4558 = vrot.slane %v4544, %v4557
        %v4559 = vcombine.low %v4494, %v4510
        %v4560 = vcombine.high %v4494, %v4510
        %v4562 = vunpack.c.l.s4 1934713408
        %v4563 = vunpack.c.0.s8 %v4562
        %v4564 = vlaneseq
        %v4565 = vshrl.u32 %v4564, 7
        %v4566 = vsub.s32 %v4563, %v4565
        %v4567 = vrot.slane %v4559, %v4566
        %v4569 = vunpack.c.l.s4 1934713408
        %v4570 = vunpack.c.0.s8 %v4569
        %v4571 = vlaneseq
        %v4572 = vshrl.u32 %v4571, 7
        %v4573 = vsub.s32 %v4570, %v4572
        %v4574 = vrot.slane %v4560, %v4573
        %v4575 = vcombine.low %v4519, %v4535
        %v4576 = vcombine.high %v4519, %v4535
        %v4578 = vunpack.c.l.s4 1934713408
        %v4579 = vunpack.c.0.s8 %v4578
        %v4580 = vlaneseq
        %v4581 = vshrl.u32 %v4580, 7
        %v4582 = vsub.s32 %v4579, %v4581
        %v4583 = vrot.slane %v4575, %v4582
        %v4585 = vunpack.c.l.s4 1934713408
        %v4586 = vunpack.c.0.s8 %v4585
        %v4587 = vlaneseq
        %v4588 = vshrl.u32 %v4587, 7
        %v4589 = vsub.s32 %v4586, %v4588
        %v4590 = vrot.slane %v4576, %v4589
        %v4591 = vcombine.low %v4526, %v4542
        %v4592 = vcombine.high %v4526, %v4542
        %v4594 = vunpack.c.l.s4 1934713408
        %v4595 = vunpack.c.0.s8 %v4594
        %v4596 = vlaneseq
        %v4597 = vshrl.u32 %v4596, 7
        %v4598 = vsub.s32 %v4595, %v4597
        %v4599 = vrot.slane %v4591, %v4598
        %v4601 = vunpack.c.l.s4 1934713408
        %v4602 = vunpack.c.0.s8 %v4601
        %v4603 = vlaneseq
        %v4604 = vshrl.u32 %v4603, 7
        %v4605 = vsub.s32 %v4602, %v4604
        %v4606 = vrot.slane %v4592, %v4605
        %v4607 = vcombine.low %v4551, %v4583
        %v4608 = vcombine.high %v4551, %v4583
        %v4609 = vcombine.low %v4558, %v4590
        %v4610 = vcombine.high %v4558, %v4590
        %v4611 = vcombine.low %v4567, %v4599
        %v4612 = vcombine.high %v4567, %v4599
        %v4613 = vcombine.low %v4574, %v4606
        %v4614 = vcombine.high %v4574, %v4606
        %v4617 = vpack.i.b16 %v4335, %v4199
        %v4619 = vshrl.u32 %v4199, 16
        %v4620 = vshrl.u32 %v4335, 16
        %v4621 = vpack.i.b16 %v4620, %v4619
        %v4625 = vpack.i.b16 %v4336, %v4200
        %v4627 = vshrl.u32 %v4200, 16
        %v4628 = vshrl.u32 %v4336, 16
        %v4629 = vpack.i.b16 %v4628, %v4627
        %v4633 = vpack.i.b16 %v4337, %v4201
        %v4635 = vshrl.u32 %v4201, 16
        %v4636 = vshrl.u32 %v4337, 16
        %v4637 = vpack.i.b16 %v4636, %v4635
        %v4641 = vpack.i.b16 %v4338, %v4202
        %v4643 = vshrl.u32 %v4202, 16
        %v4644 = vshrl.u32 %v4338, 16
        %v4645 = vpack.i.b16 %v4644, %v4643
        %v4649 = vpack.i.b16 %v4339, %v4203
        %v4651 = vshrl.u32 %v4203, 16
        %v4652 = vshrl.u32 %v4339, 16
        %v4653 = vpack.i.b16 %v4652, %v4651
        %v4657 = vpack.i.b16 %v4340, %v4204
        %v4659 = vshrl.u32 %v4204, 16
        %v4660 = vshrl.u32 %v4340, 16
        %v4661 = vpack.i.b16 %v4660, %v4659
        %v4665 = vpack.i.b16 %v4341, %v4205
        %v4667 = vshrl.u32 %v4205, 16
        %v4668 = vshrl.u32 %v4341, 16
        %v4669 = vpack.i.b16 %v4668, %v4667
        %v4673 = vpack.i.b16 %v4342, %v4206
        %v4675 = vshrl.u32 %v4206, 16
        %v4676 = vshrl.u32 %v4342, 16
        %v4677 = vpack.i.b16 %v4676, %v4675
        %v4681 = vpack.i.b16 %v4607, %v4471
        %v4683 = vshrl.u32 %v4471, 16
        %v4684 = vshrl.u32 %v4607, 16
        %v4685 = vpack.i.b16 %v4684, %v4683
        %v4689 = vpack.i.b16 %v4608, %v4472
        %v4691 = vshrl.u32 %v4472, 16
        %v4692 = vshrl.u32 %v4608, 16
        %v4693 = vpack.i.b16 %v4692, %v4691
        %v4697 = vpack.i.b16 %v4609, %v4473
        %v4699 = vshrl.u32 %v4473, 16
        %v4700 = vshrl.u32 %v4609, 16
        %v4701 = vpack.i.b16 %v4700, %v4699
        %v4705 = vpack.i.b16 %v4610, %v4474
        %v4707 = vshrl.u32 %v4474, 16
        %v4708 = vshrl.u32 %v4610, 16
        %v4709 = vpack.i.b16 %v4708, %v4707
        %v4713 = vpack.i.b16 %v4611, %v4475
        %v4715 = vshrl.u32 %v4475, 16
        %v4716 = vshrl.u32 %v4611, 16
        %v4717 = vpack.i.b16 %v4716, %v4715
        %v4721 = vpack.i.b16 %v4612, %v4476
        %v4723 = vshrl.u32 %v4476, 16
        %v4724 = vshrl.u32 %v4612, 16
        %v4725 = vpack.i.b16 %v4724, %v4723
        %v4729 = vpack.i.b16 %v4613, %v4477
        %v4731 = vshrl.u32 %v4477, 16
        %v4732 = vshrl.u32 %v4613, 16
        %v4733 = vpack.i.b16 %v4732, %v4731
        %v4737 = vpack.i.b16 %v4614, %v4478
        %v4739 = vshrl.u32 %v4478, 16
        %v4740 = vshrl.u32 %v4614, 16
        %v4741 = vpack.i.b16 %v4740, %v4739
        %4743 = vxpose.xlu0.c.b16.start [1/8] %v4617, 128
        %4744 = vxpose.xlu0.c.b16.cont [2/8] 0, 128
        %4745 = vxpose.xlu0.c.b16.cont [3/8] 0, 128
        %4746 = vxpose.xlu0.c.b16.cont [4/8] 0, 128
        %4747 = vxpose.xlu0.c.b16.cont [5/8] 0, 128
        %4748 = vxpose.xlu0.c.b16.cont [6/8] 0, 128
        %4749 = vxpose.xlu0.c.b16.cont [7/8] 0, 128
        %4750 = vxpose.xlu0.c.b16.end [8/8] 0, 128
        %v4751 = vpop.trf.xlu0
        %v4752 = vpop.trf.xlu0
        %v4753 = vpop.trf.xlu0
        %v4754 = vpop.trf.xlu0
        %v4755 = vpop.trf.xlu0
        %v4756 = vpop.trf.xlu0
        %v4757 = vpop.trf.xlu0
        %v4758 = vpop.trf.xlu0
        %4759 = vxpose.xlu0.c.b16.start [1/8] %v4621, 128
        %4760 = vxpose.xlu0.c.b16.cont [2/8] 0, 128
        %4761 = vxpose.xlu0.c.b16.cont [3/8] 0, 128
        %4762 = vxpose.xlu0.c.b16.cont [4/8] 0, 128
        %4763 = vxpose.xlu0.c.b16.cont [5/8] 0, 128
        %4764 = vxpose.xlu0.c.b16.cont [6/8] 0, 128
        %4765 = vxpose.xlu0.c.b16.cont [7/8] 0, 128
        %4766 = vxpose.xlu0.c.b16.end [8/8] 0, 128
        %v4767 = vpop.trf.xlu0
        %v4768 = vpop.trf.xlu0
        %v4769 = vpop.trf.xlu0
        %v4770 = vpop.trf.xlu0
        %v4771 = vpop.trf.xlu0
        %v4772 = vpop.trf.xlu0
        %v4773 = vpop.trf.xlu0
        %v4774 = vpop.trf.xlu0
        %4775 = vxpose.xlu0.c.b16.start [1/8] %v4625, 128
        %4776 = vxpose.xlu0.c.b16.cont [2/8] 0, 128
        %4777 = vxpose.xlu0.c.b16.cont [3/8] 0, 128
        %4778 = vxpose.xlu0.c.b16.cont [4/8] 0, 128
        %4779 = vxpose.xlu0.c.b16.cont [5/8] 0, 128
        %4780 = vxpose.xlu0.c.b16.cont [6/8] 0, 128
        %4781 = vxpose.xlu0.c.b16.cont [7/8] 0, 128
        %4782 = vxpose.xlu0.c.b16.end [8/8] 0, 128
        %v4783 = vpop.trf.xlu0
        %v4784 = vpop.trf.xlu0
        %v4785 = vpop.trf.xlu0
        %v4786 = vpop.trf.xlu0
        %v4787 = vpop.trf.xlu0
        %v4788 = vpop.trf.xlu0
        %v4789 = vpop.trf.xlu0
        %v4790 = vpop.trf.xlu0
        %4791 = vxpose.xlu0.c.b16.start [1/8] %v4629, 128
        %4792 = vxpose.xlu0.c.b16.cont [2/8] 0, 128
        %4793 = vxpose.xlu0.c.b16.cont [3/8] 0, 128
        %4794 = vxpose.xlu0.c.b16.cont [4/8] 0, 128
        %4795 = vxpose.xlu0.c.b16.cont [5/8] 0, 128
        %4796 = vxpose.xlu0.c.b16.cont [6/8] 0, 128
        %4797 = vxpose.xlu0.c.b16.cont [7/8] 0, 128
        %4798 = vxpose.xlu0.c.b16.end [8/8] 0, 128
        %v4799 = vpop.trf.xlu0
        %v4800 = vpop.trf.xlu0
        %v4801 = vpop.trf.xlu0
        %v4802 = vpop.trf.xlu0
        %v4803 = vpop.trf.xlu0
        %v4804 = vpop.trf.xlu0
        %v4805 = vpop.trf.xlu0
        %v4806 = vpop.trf.xlu0
        %4807 = vxpose.xlu0.c.b16.start [1/8] %v4633, 128
        %4808 = vxpose.xlu0.c.b16.cont [2/8] 0, 128
        %4809 = vxpose.xlu0.c.b16.cont [3/8] 0, 128
        %4810 = vxpose.xlu0.c.b16.cont [4/8] 0, 128
        %4811 = vxpose.xlu0.c.b16.cont [5/8] 0, 128
        %4812 = vxpose.xlu0.c.b16.cont [6/8] 0, 128
        %4813 = vxpose.xlu0.c.b16.cont [7/8] 0, 128
        %4814 = vxpose.xlu0.c.b16.end [8/8] 0, 128
        %v4815 = vpop.trf.xlu0
        %v4816 = vpop.trf.xlu0
        %v4817 = vpop.trf.xlu0
        %v4818 = vpop.trf.xlu0
        %v4819 = vpop.trf.xlu0
        %v4820 = vpop.trf.xlu0
        %v4821 = vpop.trf.xlu0
        %v4822 = vpop.trf.xlu0
        %4823 = vxpose.xlu0.c.b16.start [1/8] %v4637, 128
        %4824 = vxpose.xlu0.c.b16.cont [2/8] 0, 128
        %4825 = vxpose.xlu0.c.b16.cont [3/8] 0, 128
        %4826 = vxpose.xlu0.c.b16.cont [4/8] 0, 128
        %4827 = vxpose.xlu0.c.b16.cont [5/8] 0, 128
        %4828 = vxpose.xlu0.c.b16.cont [6/8] 0, 128
        %4829 = vxpose.xlu0.c.b16.cont [7/8] 0, 128
        %4830 = vxpose.xlu0.c.b16.end [8/8] 0, 128
        %v4831 = vpop.trf.xlu0
        %v4832 = vpop.trf.xlu0
        %v4833 = vpop.trf.xlu0
        %v4834 = vpop.trf.xlu0
        %v4835 = vpop.trf.xlu0
        %v4836 = vpop.trf.xlu0
        %v4837 = vpop.trf.xlu0
        %v4838 = vpop.trf.xlu0
        %4839 = vxpose.xlu0.c.b16.start [1/8] %v4641, 128
        %4840 = vxpose.xlu0.c.b16.cont [2/8] 0, 128
        %4841 = vxpose.xlu0.c.b16.cont [3/8] 0, 128
        %4842 = vxpose.xlu0.c.b16.cont [4/8] 0, 128
        %4843 = vxpose.xlu0.c.b16.cont [5/8] 0, 128
        %4844 = vxpose.xlu0.c.b16.cont [6/8] 0, 128
        %4845 = vxpose.xlu0.c.b16.cont [7/8] 0, 128
        %4846 = vxpose.xlu0.c.b16.end [8/8] 0, 128
        %v4847 = vpop.trf.xlu0
        %v4848 = vpop.trf.xlu0
        %v4849 = vpop.trf.xlu0
        %v4850 = vpop.trf.xlu0
        %v4851 = vpop.trf.xlu0
        %v4852 = vpop.trf.xlu0
        %v4853 = vpop.trf.xlu0
        %v4854 = vpop.trf.xlu0
        %4855 = vxpose.xlu0.c.b16.start [1/8] %v4645, 128
        %4856 = vxpose.xlu0.c.b16.cont [2/8] 0, 128
        %4857 = vxpose.xlu0.c.b16.cont [3/8] 0, 128
        %4858 = vxpose.xlu0.c.b16.cont [4/8] 0, 128
        %4859 = vxpose.xlu0.c.b16.cont [5/8] 0, 128
        %4860 = vxpose.xlu0.c.b16.cont [6/8] 0, 128
        %4861 = vxpose.xlu0.c.b16.cont [7/8] 0, 128
        %4862 = vxpose.xlu0.c.b16.end [8/8] 0, 128
        %v4863 = vpop.trf.xlu0
        %v4864 = vpop.trf.xlu0
        %v4865 = vpop.trf.xlu0
        %v4866 = vpop.trf.xlu0
        %v4867 = vpop.trf.xlu0
        %v4868 = vpop.trf.xlu0
        %v4869 = vpop.trf.xlu0
        %v4870 = vpop.trf.xlu0
        %4871 = vxpose.xlu0.c.b16.start [1/8] %v4649, 128
        %4872 = vxpose.xlu0.c.b16.cont [2/8] 0, 128
        %4873 = vxpose.xlu0.c.b16.cont [3/8] 0, 128
        %4874 = vxpose.xlu0.c.b16.cont [4/8] 0, 128
        %4875 = vxpose.xlu0.c.b16.cont [5/8] 0, 128
        %4876 = vxpose.xlu0.c.b16.cont [6/8] 0, 128
        %4877 = vxpose.xlu0.c.b16.cont [7/8] 0, 128
        %4878 = vxpose.xlu0.c.b16.end [8/8] 0, 128
        %v4879 = vpop.trf.xlu0
        %v4880 = vpop.trf.xlu0
        %v4881 = vpop.trf.xlu0
        %v4882 = vpop.trf.xlu0
        %v4883 = vpop.trf.xlu0
        %v4884 = vpop.trf.xlu0
        %v4885 = vpop.trf.xlu0
        %v4886 = vpop.trf.xlu0
        %4887 = vxpose.xlu0.c.b16.start [1/8] %v4653, 128
        %4888 = vxpose.xlu0.c.b16.cont [2/8] 0, 128
        %4889 = vxpose.xlu0.c.b16.cont [3/8] 0, 128
        %4890 = vxpose.xlu0.c.b16.cont [4/8] 0, 128
        %4891 = vxpose.xlu0.c.b16.cont [5/8] 0, 128
        %4892 = vxpose.xlu0.c.b16.cont [6/8] 0, 128
        %4893 = vxpose.xlu0.c.b16.cont [7/8] 0, 128
        %4894 = vxpose.xlu0.c.b16.end [8/8] 0, 128
        %v4895 = vpop.trf.xlu0
        %v4896 = vpop.trf.xlu0
        %v4897 = vpop.trf.xlu0
        %v4898 = vpop.trf.xlu0
        %v4899 = vpop.trf.xlu0
        %v4900 = vpop.trf.xlu0
        %v4901 = vpop.trf.xlu0
        %v4902 = vpop.trf.xlu0
        %4903 = vxpose.xlu0.c.b16.start [1/8] %v4657, 128
        %4904 = vxpose.xlu0.c.b16.cont [2/8] 0, 128
        %4905 = vxpose.xlu0.c.b16.cont [3/8] 0, 128
        %4906 = vxpose.xlu0.c.b16.cont [4/8] 0, 128
        %4907 = vxpose.xlu0.c.b16.cont [5/8] 0, 128
        %4908 = vxpose.xlu0.c.b16.cont [6/8] 0, 128
        %4909 = vxpose.xlu0.c.b16.cont [7/8] 0, 128
        %4910 = vxpose.xlu0.c.b16.end [8/8] 0, 128
        %v4911 = vpop.trf.xlu0
        %v4912 = vpop.trf.xlu0
        %v4913 = vpop.trf.xlu0
        %v4914 = vpop.trf.xlu0
        %v4915 = vpop.trf.xlu0
        %v4916 = vpop.trf.xlu0
        %v4917 = vpop.trf.xlu0
        %v4918 = vpop.trf.xlu0
        %4919 = vxpose.xlu0.c.b16.start [1/8] %v4661, 128
        %4920 = vxpose.xlu0.c.b16.cont [2/8] 0, 128
        %4921 = vxpose.xlu0.c.b16.cont [3/8] 0, 128
        %4922 = vxpose.xlu0.c.b16.cont [4/8] 0, 128
        %4923 = vxpose.xlu0.c.b16.cont [5/8] 0, 128
        %4924 = vxpose.xlu0.c.b16.cont [6/8] 0, 128
        %4925 = vxpose.xlu0.c.b16.cont [7/8] 0, 128
        %4926 = vxpose.xlu0.c.b16.end [8/8] 0, 128
        %v4927 = vpop.trf.xlu0
        %v4928 = vpop.trf.xlu0
        %v4929 = vpop.trf.xlu0
        %v4930 = vpop.trf.xlu0
        %v4931 = vpop.trf.xlu0
        %v4932 = vpop.trf.xlu0
        %v4933 = vpop.trf.xlu0
        %v4934 = vpop.trf.xlu0
        %4935 = vxpose.xlu0.c.b16.start [1/8] %v4665, 128
        %4936 = vxpose.xlu0.c.b16.cont [2/8] 0, 128
        %4937 = vxpose.xlu0.c.b16.cont [3/8] 0, 128
        %4938 = vxpose.xlu0.c.b16.cont [4/8] 0, 128
        %4939 = vxpose.xlu0.c.b16.cont [5/8] 0, 128
        %4940 = vxpose.xlu0.c.b16.cont [6/8] 0, 128
        %4941 = vxpose.xlu0.c.b16.cont [7/8] 0, 128
        %4942 = vxpose.xlu0.c.b16.end [8/8] 0, 128
        %v4943 = vpop.trf.xlu0
        %v4944 = vpop.trf.xlu0
        %v4945 = vpop.trf.xlu0
        %v4946 = vpop.trf.xlu0
        %v4947 = vpop.trf.xlu0
        %v4948 = vpop.trf.xlu0
        %v4949 = vpop.trf.xlu0
        %v4950 = vpop.trf.xlu0
        %4951 = vxpose.xlu0.c.b16.start [1/8] %v4669, 128
        %4952 = vxpose.xlu0.c.b16.cont [2/8] 0, 128
        %4953 = vxpose.xlu0.c.b16.cont [3/8] 0, 128
        %4954 = vxpose.xlu0.c.b16.cont [4/8] 0, 128
        %4955 = vxpose.xlu0.c.b16.cont [5/8] 0, 128
        %4956 = vxpose.xlu0.c.b16.cont [6/8] 0, 128
        %4957 = vxpose.xlu0.c.b16.cont [7/8] 0, 128
        %4958 = vxpose.xlu0.c.b16.end [8/8] 0, 128
        %v4959 = vpop.trf.xlu0
        %v4960 = vpop.trf.xlu0
        %v4961 = vpop.trf.xlu0
        %v4962 = vpop.trf.xlu0
        %v4963 = vpop.trf.xlu0
        %v4964 = vpop.trf.xlu0
        %v4965 = vpop.trf.xlu0
        %v4966 = vpop.trf.xlu0
        %4967 = vxpose.xlu0.c.b16.start [1/8] %v4673, 128
        %4968 = vxpose.xlu0.c.b16.cont [2/8] 0, 128
        %4969 = vxpose.xlu0.c.b16.cont [3/8] 0, 128
        %4970 = vxpose.xlu0.c.b16.cont [4/8] 0, 128
        %4971 = vxpose.xlu0.c.b16.cont [5/8] 0, 128
        %4972 = vxpose.xlu0.c.b16.cont [6/8] 0, 128
        %4973 = vxpose.xlu0.c.b16.cont [7/8] 0, 128
        %4974 = vxpose.xlu0.c.b16.end [8/8] 0, 128
        %v4975 = vpop.trf.xlu0
        %v4976 = vpop.trf.xlu0
        %v4977 = vpop.trf.xlu0
        %v4978 = vpop.trf.xlu0
        %v4979 = vpop.trf.xlu0
        %v4980 = vpop.trf.xlu0
        %v4981 = vpop.trf.xlu0
        %v4982 = vpop.trf.xlu0
        %4983 = vxpose.xlu0.c.b16.start [1/8] %v4677, 128
        %4984 = vxpose.xlu0.c.b16.cont [2/8] 0, 128
        %4985 = vxpose.xlu0.c.b16.cont [3/8] 0, 128
        %4986 = vxpose.xlu0.c.b16.cont [4/8] 0, 128
        %4987 = vxpose.xlu0.c.b16.cont [5/8] 0, 128
        %4988 = vxpose.xlu0.c.b16.cont [6/8] 0, 128
        %4989 = vxpose.xlu0.c.b16.cont [7/8] 0, 128
        %4990 = vxpose.xlu0.c.b16.end [8/8] 0, 128
        %v4991 = vpop.trf.xlu0
        %v4992 = vpop.trf.xlu0
        %v4993 = vpop.trf.xlu0
        %v4994 = vpop.trf.xlu0
        %v4995 = vpop.trf.xlu0
        %v4996 = vpop.trf.xlu0
        %v4997 = vpop.trf.xlu0
        %v4998 = vpop.trf.xlu0
        %4999 = vxpose.xlu0.c.b16.start [1/8] %v4681, 128
        %5000 = vxpose.xlu0.c.b16.cont [2/8] 0, 128
        %5001 = vxpose.xlu0.c.b16.cont [3/8] 0, 128
        %5002 = vxpose.xlu0.c.b16.cont [4/8] 0, 128
        %5003 = vxpose.xlu0.c.b16.cont [5/8] 0, 128
        %5004 = vxpose.xlu0.c.b16.cont [6/8] 0, 128
        %5005 = vxpose.xlu0.c.b16.cont [7/8] 0, 128
        %5006 = vxpose.xlu0.c.b16.end [8/8] 0, 128
        %v5007 = vpop.trf.xlu0
        %v5008 = vpop.trf.xlu0
        %v5009 = vpop.trf.xlu0
        %v5010 = vpop.trf.xlu0
        %v5011 = vpop.trf.xlu0
        %v5012 = vpop.trf.xlu0
        %v5013 = vpop.trf.xlu0
        %v5014 = vpop.trf.xlu0
        %5015 = vxpose.xlu0.c.b16.start [1/8] %v4685, 128
        %5016 = vxpose.xlu0.c.b16.cont [2/8] 0, 128
        %5017 = vxpose.xlu0.c.b16.cont [3/8] 0, 128
        %5018 = vxpose.xlu0.c.b16.cont [4/8] 0, 128
        %5019 = vxpose.xlu0.c.b16.cont [5/8] 0, 128
        %5020 = vxpose.xlu0.c.b16.cont [6/8] 0, 128
        %5021 = vxpose.xlu0.c.b16.cont [7/8] 0, 128
        %5022 = vxpose.xlu0.c.b16.end [8/8] 0, 128
        %v5023 = vpop.trf.xlu0
        %v5024 = vpop.trf.xlu0
        %v5025 = vpop.trf.xlu0
        %v5026 = vpop.trf.xlu0
        %v5027 = vpop.trf.xlu0
        %v5028 = vpop.trf.xlu0
        %v5029 = vpop.trf.xlu0
        %v5030 = vpop.trf.xlu0
        %5031 = vxpose.xlu0.c.b16.start [1/8] %v4689, 128
        %5032 = vxpose.xlu0.c.b16.cont [2/8] 0, 128
        %5033 = vxpose.xlu0.c.b16.cont [3/8] 0, 128
        %5034 = vxpose.xlu0.c.b16.cont [4/8] 0, 128
        %5035 = vxpose.xlu0.c.b16.cont [5/8] 0, 128
        %5036 = vxpose.xlu0.c.b16.cont [6/8] 0, 128
        %5037 = vxpose.xlu0.c.b16.cont [7/8] 0, 128
        %5038 = vxpose.xlu0.c.b16.end [8/8] 0, 128
        %v5039 = vpop.trf.xlu0
        %v5040 = vpop.trf.xlu0
        %v5041 = vpop.trf.xlu0
        %v5042 = vpop.trf.xlu0
        %v5043 = vpop.trf.xlu0
        %v5044 = vpop.trf.xlu0
        %v5045 = vpop.trf.xlu0
        %v5046 = vpop.trf.xlu0
        %5047 = vxpose.xlu0.c.b16.start [1/8] %v4693, 128
        %5048 = vxpose.xlu0.c.b16.cont [2/8] 0, 128
        %5049 = vxpose.xlu0.c.b16.cont [3/8] 0, 128
        %5050 = vxpose.xlu0.c.b16.cont [4/8] 0, 128
        %5051 = vxpose.xlu0.c.b16.cont [5/8] 0, 128
        %5052 = vxpose.xlu0.c.b16.cont [6/8] 0, 128
        %5053 = vxpose.xlu0.c.b16.cont [7/8] 0, 128
        %5054 = vxpose.xlu0.c.b16.end [8/8] 0, 128
        %v5055 = vpop.trf.xlu0
        %v5056 = vpop.trf.xlu0
        %v5057 = vpop.trf.xlu0
        %v5058 = vpop.trf.xlu0
        %v5059 = vpop.trf.xlu0
        %v5060 = vpop.trf.xlu0
        %v5061 = vpop.trf.xlu0
        %v5062 = vpop.trf.xlu0
        %5063 = vxpose.xlu0.c.b16.start [1/8] %v4697, 128
        %5064 = vxpose.xlu0.c.b16.cont [2/8] 0, 128
        %5065 = vxpose.xlu0.c.b16.cont [3/8] 0, 128
        %5066 = vxpose.xlu0.c.b16.cont [4/8] 0, 128
        %5067 = vxpose.xlu0.c.b16.cont [5/8] 0, 128
        %5068 = vxpose.xlu0.c.b16.cont [6/8] 0, 128
        %5069 = vxpose.xlu0.c.b16.cont [7/8] 0, 128
        %5070 = vxpose.xlu0.c.b16.end [8/8] 0, 128
        %v5071 = vpop.trf.xlu0
        %v5072 = vpop.trf.xlu0
        %v5073 = vpop.trf.xlu0
        %v5074 = vpop.trf.xlu0
        %v5075 = vpop.trf.xlu0
        %v5076 = vpop.trf.xlu0
        %v5077 = vpop.trf.xlu0
        %v5078 = vpop.trf.xlu0
        %5079 = vxpose.xlu0.c.b16.start [1/8] %v4701, 128
        %5080 = vxpose.xlu0.c.b16.cont [2/8] 0, 128
        %5081 = vxpose.xlu0.c.b16.cont [3/8] 0, 128
        %5082 = vxpose.xlu0.c.b16.cont [4/8] 0, 128
        %5083 = vxpose.xlu0.c.b16.cont [5/8] 0, 128
        %5084 = vxpose.xlu0.c.b16.cont [6/8] 0, 128
        %5085 = vxpose.xlu0.c.b16.cont [7/8] 0, 128
        %5086 = vxpose.xlu0.c.b16.end [8/8] 0, 128
        %v5087 = vpop.trf.xlu0
        %v5088 = vpop.trf.xlu0
        %v5089 = vpop.trf.xlu0
        %v5090 = vpop.trf.xlu0
        %v5091 = vpop.trf.xlu0
        %v5092 = vpop.trf.xlu0
        %v5093 = vpop.trf.xlu0
        %v5094 = vpop.trf.xlu0
        %5095 = vxpose.xlu0.c.b16.start [1/8] %v4705, 128
        %5096 = vxpose.xlu0.c.b16.cont [2/8] 0, 128
        %5097 = vxpose.xlu0.c.b16.cont [3/8] 0, 128
        %5098 = vxpose.xlu0.c.b16.cont [4/8] 0, 128
        %5099 = vxpose.xlu0.c.b16.cont [5/8] 0, 128
        %5100 = vxpose.xlu0.c.b16.cont [6/8] 0, 128
        %5101 = vxpose.xlu0.c.b16.cont [7/8] 0, 128
        %5102 = vxpose.xlu0.c.b16.end [8/8] 0, 128
        %v5103 = vpop.trf.xlu0
        %v5104 = vpop.trf.xlu0
        %v5105 = vpop.trf.xlu0
        %v5106 = vpop.trf.xlu0
        %v5107 = vpop.trf.xlu0
        %v5108 = vpop.trf.xlu0
        %v5109 = vpop.trf.xlu0
        %v5110 = vpop.trf.xlu0
        %5111 = vxpose.xlu0.c.b16.start [1/8] %v4709, 128
        %5112 = vxpose.xlu0.c.b16.cont [2/8] 0, 128
        %5113 = vxpose.xlu0.c.b16.cont [3/8] 0, 128
        %5114 = vxpose.xlu0.c.b16.cont [4/8] 0, 128
        %5115 = vxpose.xlu0.c.b16.cont [5/8] 0, 128
        %5116 = vxpose.xlu0.c.b16.cont [6/8] 0, 128
        %5117 = vxpose.xlu0.c.b16.cont [7/8] 0, 128
        %5118 = vxpose.xlu0.c.b16.end [8/8] 0, 128
        %v5119 = vpop.trf.xlu0
        %v5120 = vpop.trf.xlu0
        %v5121 = vpop.trf.xlu0
        %v5122 = vpop.trf.xlu0
        %v5123 = vpop.trf.xlu0
        %v5124 = vpop.trf.xlu0
        %v5125 = vpop.trf.xlu0
        %v5126 = vpop.trf.xlu0
        %5127 = vxpose.xlu0.c.b16.start [1/8] %v4713, 128
        %5128 = vxpose.xlu0.c.b16.cont [2/8] 0, 128
        %5129 = vxpose.xlu0.c.b16.cont [3/8] 0, 128
        %5130 = vxpose.xlu0.c.b16.cont [4/8] 0, 128
        %5131 = vxpose.xlu0.c.b16.cont [5/8] 0, 128
        %5132 = vxpose.xlu0.c.b16.cont [6/8] 0, 128
        %5133 = vxpose.xlu0.c.b16.cont [7/8] 0, 128
        %5134 = vxpose.xlu0.c.b16.end [8/8] 0, 128
        %v5135 = vpop.trf.xlu0
        %v5136 = vpop.trf.xlu0
        %v5137 = vpop.trf.xlu0
        %v5138 = vpop.trf.xlu0
        %v5139 = vpop.trf.xlu0
        %v5140 = vpop.trf.xlu0
        %v5141 = vpop.trf.xlu0
        %v5142 = vpop.trf.xlu0
        %5143 = vxpose.xlu0.c.b16.start [1/8] %v4717, 128
        %5144 = vxpose.xlu0.c.b16.cont [2/8] 0, 128
        %5145 = vxpose.xlu0.c.b16.cont [3/8] 0, 128
        %5146 = vxpose.xlu0.c.b16.cont [4/8] 0, 128
        %5147 = vxpose.xlu0.c.b16.cont [5/8] 0, 128
        %5148 = vxpose.xlu0.c.b16.cont [6/8] 0, 128
        %5149 = vxpose.xlu0.c.b16.cont [7/8] 0, 128
        %5150 = vxpose.xlu0.c.b16.end [8/8] 0, 128
        %v5151 = vpop.trf.xlu0
        %v5152 = vpop.trf.xlu0
        %v5153 = vpop.trf.xlu0
        %v5154 = vpop.trf.xlu0
        %v5155 = vpop.trf.xlu0
        %v5156 = vpop.trf.xlu0
        %v5157 = vpop.trf.xlu0
        %v5158 = vpop.trf.xlu0
        %5159 = vxpose.xlu0.c.b16.start [1/8] %v4721, 128
        %5160 = vxpose.xlu0.c.b16.cont [2/8] 0, 128
        %5161 = vxpose.xlu0.c.b16.cont [3/8] 0, 128
        %5162 = vxpose.xlu0.c.b16.cont [4/8] 0, 128
        %5163 = vxpose.xlu0.c.b16.cont [5/8] 0, 128
        %5164 = vxpose.xlu0.c.b16.cont [6/8] 0, 128
        %5165 = vxpose.xlu0.c.b16.cont [7/8] 0, 128
        %5166 = vxpose.xlu0.c.b16.end [8/8] 0, 128
        %v5167 = vpop.trf.xlu0
        %v5168 = vpop.trf.xlu0
        %v5169 = vpop.trf.xlu0
        %v5170 = vpop.trf.xlu0
        %v5171 = vpop.trf.xlu0
        %v5172 = vpop.trf.xlu0
        %v5173 = vpop.trf.xlu0
        %v5174 = vpop.trf.xlu0
        %5175 = vxpose.xlu0.c.b16.start [1/8] %v4725, 128
        %5176 = vxpose.xlu0.c.b16.cont [2/8] 0, 128
        %5177 = vxpose.xlu0.c.b16.cont [3/8] 0, 128
        %5178 = vxpose.xlu0.c.b16.cont [4/8] 0, 128
        %5179 = vxpose.xlu0.c.b16.cont [5/8] 0, 128
        %5180 = vxpose.xlu0.c.b16.cont [6/8] 0, 128
        %5181 = vxpose.xlu0.c.b16.cont [7/8] 0, 128
        %5182 = vxpose.xlu0.c.b16.end [8/8] 0, 128
        %v5183 = vpop.trf.xlu0
        %v5184 = vpop.trf.xlu0
        %v5185 = vpop.trf.xlu0
        %v5186 = vpop.trf.xlu0
        %v5187 = vpop.trf.xlu0
        %v5188 = vpop.trf.xlu0
        %v5189 = vpop.trf.xlu0
        %v5190 = vpop.trf.xlu0
        %5191 = vxpose.xlu0.c.b16.start [1/8] %v4729, 128
        %5192 = vxpose.xlu0.c.b16.cont [2/8] 0, 128
        %5193 = vxpose.xlu0.c.b16.cont [3/8] 0, 128
        %5194 = vxpose.xlu0.c.b16.cont [4/8] 0, 128
        %5195 = vxpose.xlu0.c.b16.cont [5/8] 0, 128
        %5196 = vxpose.xlu0.c.b16.cont [6/8] 0, 128
        %5197 = vxpose.xlu0.c.b16.cont [7/8] 0, 128
        %5198 = vxpose.xlu0.c.b16.end [8/8] 0, 128
        %v5199 = vpop.trf.xlu0
        %v5200 = vpop.trf.xlu0
        %v5201 = vpop.trf.xlu0
        %v5202 = vpop.trf.xlu0
        %v5203 = vpop.trf.xlu0
        %v5204 = vpop.trf.xlu0
        %v5205 = vpop.trf.xlu0
        %v5206 = vpop.trf.xlu0
        %5207 = vxpose.xlu0.c.b16.start [1/8] %v4733, 128
        %5208 = vxpose.xlu0.c.b16.cont [2/8] 0, 128
        %5209 = vxpose.xlu0.c.b16.cont [3/8] 0, 128
        %5210 = vxpose.xlu0.c.b16.cont [4/8] 0, 128
        %5211 = vxpose.xlu0.c.b16.cont [5/8] 0, 128
        %5212 = vxpose.xlu0.c.b16.cont [6/8] 0, 128
        %5213 = vxpose.xlu0.c.b16.cont [7/8] 0, 128
        %5214 = vxpose.xlu0.c.b16.end [8/8] 0, 128
        %v5215 = vpop.trf.xlu0
        %v5216 = vpop.trf.xlu0
        %v5217 = vpop.trf.xlu0
        %v5218 = vpop.trf.xlu0
        %v5219 = vpop.trf.xlu0
        %v5220 = vpop.trf.xlu0
        %v5221 = vpop.trf.xlu0
        %v5222 = vpop.trf.xlu0
        %5223 = vxpose.xlu0.c.b16.start [1/8] %v4737, 128
        %5224 = vxpose.xlu0.c.b16.cont [2/8] 0, 128
        %5225 = vxpose.xlu0.c.b16.cont [3/8] 0, 128
        %5226 = vxpose.xlu0.c.b16.cont [4/8] 0, 128
        %5227 = vxpose.xlu0.c.b16.cont [5/8] 0, 128
        %5228 = vxpose.xlu0.c.b16.cont [6/8] 0, 128
        %5229 = vxpose.xlu0.c.b16.cont [7/8] 0, 128
        %5230 = vxpose.xlu0.c.b16.end [8/8] 0, 128
        %v5231 = vpop.trf.xlu0
        %v5232 = vpop.trf.xlu0
        %v5233 = vpop.trf.xlu0
        %v5234 = vpop.trf.xlu0
        %v5235 = vpop.trf.xlu0
        %v5236 = vpop.trf.xlu0
        %v5237 = vpop.trf.xlu0
        %v5238 = vpop.trf.xlu0
        %5239 = vxpose.xlu0.c.b16.start [1/8] %v4741, 128
        %5240 = vxpose.xlu0.c.b16.cont [2/8] 0, 128
        %5241 = vxpose.xlu0.c.b16.cont [3/8] 0, 128
        %5242 = vxpose.xlu0.c.b16.cont [4/8] 0, 128
        %5243 = vxpose.xlu0.c.b16.cont [5/8] 0, 128
        %5244 = vxpose.xlu0.c.b16.cont [6/8] 0, 128
        %5245 = vxpose.xlu0.c.b16.cont [7/8] 0, 128
        %5246 = vxpose.xlu0.c.b16.end [8/8] 0, 128
        %v5247 = vpop.trf.xlu0
        %v5248 = vpop.trf.xlu0
        %v5249 = vpop.trf.xlu0
        %v5250 = vpop.trf.xlu0
        %v5251 = vpop.trf.xlu0
        %v5252 = vpop.trf.xlu0
        %v5253 = vpop.trf.xlu0
        %v5254 = vpop.trf.xlu0
        %v5255 = vcombine.low %v4751, %v4815
        %v5257 = vunpack.c.l.s4 1983009808
        %v5258 = vunpack.c.0.s8 %v5257
        %v5259 = vlaneseq
        %v5260 = vshrl.u32 %v5259, 7
        %v5261 = vsub.s32 %v5258, %v5260
        %v5262 = vrot.slane %v5255, %v5261
        %v5263 = vcombine.low %v4783, %v4847
        %v5265 = vunpack.c.l.s4 1983009808
        %v5266 = vunpack.c.0.s8 %v5265
        %v5267 = vlaneseq
        %v5268 = vshrl.u32 %v5267, 7
        %v5269 = vsub.s32 %v5266, %v5268
        %v5270 = vrot.slane %v5263, %v5269
        %v5271 = vcombine.low %v4879, %v4943
        %v5273 = vunpack.c.l.s4 1983009808
        %v5274 = vunpack.c.0.s8 %v5273
        %v5275 = vlaneseq
        %v5276 = vshrl.u32 %v5275, 7
        %v5277 = vsub.s32 %v5274, %v5276
        %v5278 = vrot.slane %v5271, %v5277
        %v5279 = vcombine.low %v4911, %v4975
        %v5281 = vunpack.c.l.s4 1983009808
        %v5282 = vunpack.c.0.s8 %v5281
        %v5283 = vlaneseq
        %v5284 = vshrl.u32 %v5283, 7
        %v5285 = vsub.s32 %v5282, %v5284
        %v5286 = vrot.slane %v5279, %v5285
        %v5287 = vcombine.low %v5262, %v5270
        %v5289 = vunpack.c.l.s4 1934713408
        %v5290 = vunpack.c.0.s8 %v5289
        %v5291 = vlaneseq
        %v5292 = vshrl.u32 %v5291, 7
        %v5293 = vsub.s32 %v5290, %v5292
        %v5294 = vrot.slane %v5287, %v5293
        %v5295 = vcombine.low %v5278, %v5286
        %v5297 = vunpack.c.l.s4 1934713408
        %v5298 = vunpack.c.0.s8 %v5297
        %v5299 = vlaneseq
        %v5300 = vshrl.u32 %v5299, 7
        %v5301 = vsub.s32 %v5298, %v5300
        %v5302 = vrot.slane %v5295, %v5301
        %v5303 = vcombine.low %v5294, %v5302
        %v5304 = vcombine.high %v5294, %v5302
        %v5305 = vcombine.low %v4767, %v4831
        %v5307 = vunpack.c.l.s4 1983009808
        %v5308 = vunpack.c.0.s8 %v5307
        %v5309 = vlaneseq
        %v5310 = vshrl.u32 %v5309, 7
        %v5311 = vsub.s32 %v5308, %v5310
        %v5312 = vrot.slane %v5305, %v5311
        %v5313 = vcombine.low %v4799, %v4863
        %v5315 = vunpack.c.l.s4 1983009808
        %v5316 = vunpack.c.0.s8 %v5315
        %v5317 = vlaneseq
        %v5318 = vshrl.u32 %v5317, 7
        %v5319 = vsub.s32 %v5316, %v5318
        %v5320 = vrot.slane %v5313, %v5319
        %v5321 = vcombine.low %v4895, %v4959
        %v5323 = vunpack.c.l.s4 1983009808
        %v5324 = vunpack.c.0.s8 %v5323
        %v5325 = vlaneseq
        %v5326 = vshrl.u32 %v5325, 7
        %v5327 = vsub.s32 %v5324, %v5326
        %v5328 = vrot.slane %v5321, %v5327
        %v5329 = vcombine.low %v4927, %v4991
        %v5331 = vunpack.c.l.s4 1983009808
        %v5332 = vunpack.c.0.s8 %v5331
        %v5333 = vlaneseq
        %v5334 = vshrl.u32 %v5333, 7
        %v5335 = vsub.s32 %v5332, %v5334
        %v5336 = vrot.slane %v5329, %v5335
        %v5337 = vcombine.low %v5312, %v5320
        %v5339 = vunpack.c.l.s4 1934713408
        %v5340 = vunpack.c.0.s8 %v5339
        %v5341 = vlaneseq
        %v5342 = vshrl.u32 %v5341, 7
        %v5343 = vsub.s32 %v5340, %v5342
        %v5344 = vrot.slane %v5337, %v5343
        %v5345 = vcombine.low %v5328, %v5336
        %v5347 = vunpack.c.l.s4 1934713408
        %v5348 = vunpack.c.0.s8 %v5347
        %v5349 = vlaneseq
        %v5350 = vshrl.u32 %v5349, 7
        %v5351 = vsub.s32 %v5348, %v5350
        %v5352 = vrot.slane %v5345, %v5351
        %v5353 = vcombine.low %v5344, %v5352
        %v5354 = vcombine.high %v5344, %v5352
        %v5355 = vcombine.low %v5007, %v5071
        %v5357 = vunpack.c.l.s4 1983009808
        %v5358 = vunpack.c.0.s8 %v5357
        %v5359 = vlaneseq
        %v5360 = vshrl.u32 %v5359, 7
        %v5361 = vsub.s32 %v5358, %v5360
        %v5362 = vrot.slane %v5355, %v5361
        %v5363 = vcombine.low %v5039, %v5103
        %v5365 = vunpack.c.l.s4 1983009808
        %v5366 = vunpack.c.0.s8 %v5365
        %v5367 = vlaneseq
        %v5368 = vshrl.u32 %v5367, 7
        %v5369 = vsub.s32 %v5366, %v5368
        %v5370 = vrot.slane %v5363, %v5369
        %v5371 = vcombine.low %v5135, %v5199
        %v5373 = vunpack.c.l.s4 1983009808
        %v5374 = vunpack.c.0.s8 %v5373
        %v5375 = vlaneseq
        %v5376 = vshrl.u32 %v5375, 7
        %v5377 = vsub.s32 %v5374, %v5376
        %v5378 = vrot.slane %v5371, %v5377
        %v5379 = vcombine.low %v5167, %v5231
        %v5381 = vunpack.c.l.s4 1983009808
        %v5382 = vunpack.c.0.s8 %v5381
        %v5383 = vlaneseq
        %v5384 = vshrl.u32 %v5383, 7
        %v5385 = vsub.s32 %v5382, %v5384
        %v5386 = vrot.slane %v5379, %v5385
        %v5387 = vcombine.low %v5362, %v5370
        %v5389 = vunpack.c.l.s4 1934713408
        %v5390 = vunpack.c.0.s8 %v5389
        %v5391 = vlaneseq
        %v5392 = vshrl.u32 %v5391, 7
        %v5393 = vsub.s32 %v5390, %v5392
        %v5394 = vrot.slane %v5387, %v5393
        %v5395 = vcombine.low %v5378, %v5386
        %v5397 = vunpack.c.l.s4 1934713408
        %v5398 = vunpack.c.0.s8 %v5397
        %v5399 = vlaneseq
        %v5400 = vshrl.u32 %v5399, 7
        %v5401 = vsub.s32 %v5398, %v5400
        %v5402 = vrot.slane %v5395, %v5401
        %v5403 = vcombine.low %v5394, %v5402
        %v5404 = vcombine.high %v5394, %v5402
        %v5405 = vcombine.low %v5023, %v5087
        %v5407 = vunpack.c.l.s4 1983009808
        %v5408 = vunpack.c.0.s8 %v5407
        %v5409 = vlaneseq
        %v5410 = vshrl.u32 %v5409, 7
        %v5411 = vsub.s32 %v5408, %v5410
        %v5412 = vrot.slane %v5405, %v5411
        %v5413 = vcombine.low %v5055, %v5119
        %v5415 = vunpack.c.l.s4 1983009808
        %v5416 = vunpack.c.0.s8 %v5415
        %v5417 = vlaneseq
        %v5418 = vshrl.u32 %v5417, 7
        %v5419 = vsub.s32 %v5416, %v5418
        %v5420 = vrot.slane %v5413, %v5419
        %v5421 = vcombine.low %v5151, %v5215
        %v5423 = vunpack.c.l.s4 1983009808
        %v5424 = vunpack.c.0.s8 %v5423
        %v5425 = vlaneseq
        %v5426 = vshrl.u32 %v5425, 7
        %v5427 = vsub.s32 %v5424, %v5426
        %v5428 = vrot.slane %v5421, %v5427
        %v5429 = vcombine.low %v5183, %v5247
        %v5431 = vunpack.c.l.s4 1983009808
        %v5432 = vunpack.c.0.s8 %v5431
        %v5433 = vlaneseq
        %v5434 = vshrl.u32 %v5433, 7
        %v5435 = vsub.s32 %v5432, %v5434
        %v5436 = vrot.slane %v5429, %v5435
        %v5437 = vcombine.low %v5412, %v5420
        %v5439 = vunpack.c.l.s4 1934713408
        %v5440 = vunpack.c.0.s8 %v5439
        %v5441 = vlaneseq
        %v5442 = vshrl.u32 %v5441, 7
        %v5443 = vsub.s32 %v5440, %v5442
        %v5444 = vrot.slane %v5437, %v5443
        %v5445 = vcombine.low %v5428, %v5436
        %v5447 = vunpack.c.l.s4 1934713408
        %v5448 = vunpack.c.0.s8 %v5447
        %v5449 = vlaneseq
        %v5450 = vshrl.u32 %v5449, 7
        %v5451 = vsub.s32 %v5448, %v5450
        %v5452 = vrot.slane %v5445, %v5451
        %v5453 = vcombine.low %v5444, %v5452
        %v5454 = vcombine.high %v5444, %v5452
        %v5457 = vpack.i.b16 %v5353, %v5303
        %v5458 = vshrl.u32 %v5303, 16
        %v5459 = vshrl.u32 %v5353, 16
        %v5460 = vpack.i.b16 %v5459, %v5458
        %v5463 = vpack.i.b16 %v5354, %v5304
        %v5464 = vshrl.u32 %v5304, 16
        %v5465 = vshrl.u32 %v5354, 16
        %v5466 = vpack.i.b16 %v5465, %v5464
        %v5469 = vpack.i.b16 %v5453, %v5403
        %v5470 = vshrl.u32 %v5403, 16
        %v5471 = vshrl.u32 %v5453, 16
        %v5472 = vpack.i.b16 %v5471, %v5470
        %v5475 = vpack.i.b16 %v5454, %v5404
        %v5476 = vshrl.u32 %v5404, 16
        %v5477 = vshrl.u32 %v5454, 16
        %v5478 = vpack.i.b16 %v5477, %v5476
        %v5480 = vsel %vm3706, %v5457, 0
        %v5483 = vsel %vm3706, %v5469, 0
        %v5486 = vsel %vm3706, %v3795, 0
        %5488 = vmatprep.subr.bf16.mxu0 0
        %5489 = vmatpush1.bf16.xpose.msra.mxu0 %v5486
        %5490 = vmatprep.subr.bf16.mxu0 0
        %5491 = vmatpush1.bf16.xpose.msra.mxu0 0
        %5492 = vmatprep.subr.bf16.mxu0 0
        %5493 = vmatpush1.bf16.xpose.msra.mxu0 0
        %5494 = vmatprep.subr.bf16.mxu0 0
        %5495 = vmatpush1.bf16.xpose.msra.mxu0 0
        %5496 = vmatprep.subr.bf16.mxu0 0
        %5497 = vmatpush1.bf16.xpose.msra.mxu0 0
        %5498 = vmatprep.subr.bf16.mxu0 0
        %5499 = vmatpush1.bf16.xpose.msra.mxu0 0
        %5500 = vmatprep.subr.bf16.mxu0 0
        %5501 = vmatpush1.bf16.xpose.msra.mxu0 0
        %5502 = vmatprep.subr.bf16.mxu0 0
        %5503 = vmatpush1.bf16.xpose.msra.mxu0 0
        %5504 = vmatprep.subr.bf16.mxu0 0
        %5505 = vmatpush1.bf16.xpose.msra.mxu0 0
        %5506 = vmatprep.subr.bf16.mxu0 0
        %5507 = vmatpush1.bf16.xpose.msra.mxu0 0
        %5508 = vmatprep.subr.bf16.mxu0 0
        %5509 = vmatpush1.bf16.xpose.msra.mxu0 0
        %5510 = vmatprep.subr.bf16.mxu0 0
        %5511 = vmatpush1.bf16.xpose.msra.mxu0 0
        %5512 = vmatprep.subr.bf16.mxu0 0
        %5513 = vmatpush1.bf16.xpose.msra.mxu0 0
        %5514 = vmatprep.subr.bf16.mxu0 0
        %5515 = vmatpush1.bf16.xpose.msra.mxu0 0
        %5516 = vmatprep.subr.bf16.mxu0 0
        %5517 = vmatpush1.bf16.xpose.msra.mxu0 0
        %5518 = vmatprep.subr.bf16.mxu0 0
        %5519 = vmatpush1.bf16.xpose.msra.mxu0 0
        %5520 = vmatprep.mubr.bf16.mxu0 0
        %5521 = vmatmul.mubr.bf16.gmra.mrb[0].mxu0 %v5480
        %v5522 = vpop.f32.mrb[0].mxu0
        %v5523 = vadd.f32 0.0, %v5522
        %v5524 = vpop.f32.mrb[0].mxu0
        %v5525 = vpop.f32.mrb[0].mxu0
        %v5526 = vadd.f32 0.0, %v5525
        %v5527 = vpop.f32.mrb[0].mxu0
        %5528 = vmatprep.mubr.bf16.mxu0 0
        %5529 = vmatmul.mubr.bf16.gmra.mrb[0].mxu0 %v5483
        %v5530 = vpop.f32.mrb[0].mxu0
        %v5531 = vadd.f32 0.0, %v5530
        %v5532 = vpop.f32.mrb[0].mxu0
        %v5533 = vpop.f32.mrb[0].mxu0
        %v5534 = vadd.f32 0.0, %v5533
        %v5535 = vpop.f32.mrb[0].mxu0
        %5536 = vdwg.mxu0
        %v5538 = vsel %vm3706, %v5460, 0
        %v5541 = vsel %vm3706, %v5472, 0
        %v5544 = vsel %vm3706, %v3796, 0
        %5546 = vmatprep.subr.bf16.mxu0 0
        %5547 = vmatpush1.bf16.xpose.msra.mxu0 %v5544
        %5548 = vmatprep.subr.bf16.mxu0 0
        %5549 = vmatpush1.bf16.xpose.msra.mxu0 0
        %5550 = vmatprep.subr.bf16.mxu0 0
        %5551 = vmatpush1.bf16.xpose.msra.mxu0 0
        %5552 = vmatprep.subr.bf16.mxu0 0
        %5553 = vmatpush1.bf16.xpose.msra.mxu0 0
        %5554 = vmatprep.subr.bf16.mxu0 0
        %5555 = vmatpush1.bf16.xpose.msra.mxu0 0
        %5556 = vmatprep.subr.bf16.mxu0 0
        %5557 = vmatpush1.bf16.xpose.msra.mxu0 0
        %5558 = vmatprep.subr.bf16.mxu0 0
        %5559 = vmatpush1.bf16.xpose.msra.mxu0 0
        %5560 = vmatprep.subr.bf16.mxu0 0
        %5561 = vmatpush1.bf16.xpose.msra.mxu0 0
        %5562 = vmatprep.subr.bf16.mxu0 0
        %5563 = vmatpush1.bf16.xpose.msra.mxu0 0
        %5564 = vmatprep.subr.bf16.mxu0 0
        %5565 = vmatpush1.bf16.xpose.msra.mxu0 0
        %5566 = vmatprep.subr.bf16.mxu0 0
        %5567 = vmatpush1.bf16.xpose.msra.mxu0 0
        %5568 = vmatprep.subr.bf16.mxu0 0
        %5569 = vmatpush1.bf16.xpose.msra.mxu0 0
        %5570 = vmatprep.subr.bf16.mxu0 0
        %5571 = vmatpush1.bf16.xpose.msra.mxu0 0
        %5572 = vmatprep.subr.bf16.mxu0 0
        %5573 = vmatpush1.bf16.xpose.msra.mxu0 0
        %5574 = vmatprep.subr.bf16.mxu0 0
        %5575 = vmatpush1.bf16.xpose.msra.mxu0 0
        %5576 = vmatprep.subr.bf16.mxu0 0
        %5577 = vmatpush1.bf16.xpose.msra.mxu0 0
        %5578 = vmatprep.mubr.bf16.mxu0 0
        %5579 = vmatmul.mubr.bf16.gmra.mrb[0].mxu0 %v5538
        %v5580 = vpop.f32.mrb[0].mxu0
        %v5581 = vadd.f32 0.0, %v5580
        %v5582 = vpop.f32.mrb[0].mxu0
        %v5583 = vpop.f32.mrb[0].mxu0
        %v5584 = vadd.f32 0.0, %v5583
        %v5585 = vpop.f32.mrb[0].mxu0
        %5586 = vmatprep.mubr.bf16.mxu0 0
        %5587 = vmatmul.mubr.bf16.gmra.mrb[0].mxu0 %v5541
        %v5588 = vpop.f32.mrb[0].mxu0
        %v5589 = vadd.f32 0.0, %v5588
        %v5590 = vpop.f32.mrb[0].mxu0
        %v5591 = vpop.f32.mrb[0].mxu0
        %v5592 = vadd.f32 0.0, %v5591
        %v5593 = vpop.f32.mrb[0].mxu0
        %5594 = vdwg.mxu0
        %v5596 = vsel %vm3706, %v5463, 0
        %v5599 = vsel %vm3706, %v5475, 0
        %v5602 = vsel %vm3706, %v3797, 0
        %5604 = vmatprep.subr.bf16.mxu0 0
        %5605 = vmatpush1.bf16.xpose.msra.mxu0 %v5602
        %5606 = vmatprep.subr.bf16.mxu0 0
        %5607 = vmatpush1.bf16.xpose.msra.mxu0 0
        %5608 = vmatprep.subr.bf16.mxu0 0
        %5609 = vmatpush1.bf16.xpose.msra.mxu0 0
        %5610 = vmatprep.subr.bf16.mxu0 0
        %5611 = vmatpush1.bf16.xpose.msra.mxu0 0
        %5612 = vmatprep.subr.bf16.mxu0 0
        %5613 = vmatpush1.bf16.xpose.msra.mxu0 0
        %5614 = vmatprep.subr.bf16.mxu0 0
        %5615 = vmatpush1.bf16.xpose.msra.mxu0 0
        %5616 = vmatprep.subr.bf16.mxu0 0
        %5617 = vmatpush1.bf16.xpose.msra.mxu0 0
        %5618 = vmatprep.subr.bf16.mxu0 0
        %5619 = vmatpush1.bf16.xpose.msra.mxu0 0
        %5620 = vmatprep.subr.bf16.mxu0 0
        %5621 = vmatpush1.bf16.xpose.msra.mxu0 0
        %5622 = vmatprep.subr.bf16.mxu0 0
        %5623 = vmatpush1.bf16.xpose.msra.mxu0 0
        %5624 = vmatprep.subr.bf16.mxu0 0
        %5625 = vmatpush1.bf16.xpose.msra.mxu0 0
        %5626 = vmatprep.subr.bf16.mxu0 0
        %5627 = vmatpush1.bf16.xpose.msra.mxu0 0
        %5628 = vmatprep.subr.bf16.mxu0 0
        %5629 = vmatpush1.bf16.xpose.msra.mxu0 0
        %5630 = vmatprep.subr.bf16.mxu0 0
        %5631 = vmatpush1.bf16.xpose.msra.mxu0 0
        %5632 = vmatprep.subr.bf16.mxu0 0
        %5633 = vmatpush1.bf16.xpose.msra.mxu0 0
        %5634 = vmatprep.subr.bf16.mxu0 0
        %5635 = vmatpush1.bf16.xpose.msra.mxu0 0
        %5636 = vmatprep.mubr.bf16.mxu0 0
        %5637 = vmatmul.mubr.bf16.gmra.mrb[0].mxu0 %v5596
        %v5638 = vpop.f32.mrb[0].mxu0
        %v5639 = vadd.f32 0.0, %v5638
        %v5640 = vpop.f32.mrb[0].mxu0
        %v5641 = vpop.f32.mrb[0].mxu0
        %v5642 = vadd.f32 0.0, %v5641
        %v5643 = vpop.f32.mrb[0].mxu0
        %5644 = vmatprep.mubr.bf16.mxu0 0
        %5645 = vmatmul.mubr.bf16.gmra.mrb[0].mxu0 %v5599
        %v5646 = vpop.f32.mrb[0].mxu0
        %v5647 = vadd.f32 0.0, %v5646
        %v5648 = vpop.f32.mrb[0].mxu0
        %v5649 = vpop.f32.mrb[0].mxu0
        %v5650 = vadd.f32 0.0, %v5649
        %v5651 = vpop.f32.mrb[0].mxu0
        %5652 = vdwg.mxu0
        %v5654 = vsel %vm3706, %v5466, 0
        %v5657 = vsel %vm3706, %v5478, 0
        %v5660 = vsel %vm3706, %v3798, 0
        %5662 = vmatprep.subr.bf16.mxu0 0
        %5663 = vmatpush1.bf16.xpose.msra.mxu0 %v5660
        %5664 = vmatprep.subr.bf16.mxu0 0
        %5665 = vmatpush1.bf16.xpose.msra.mxu0 0
        %5666 = vmatprep.subr.bf16.mxu0 0
        %5667 = vmatpush1.bf16.xpose.msra.mxu0 0
        %5668 = vmatprep.subr.bf16.mxu0 0
        %5669 = vmatpush1.bf16.xpose.msra.mxu0 0
        %5670 = vmatprep.subr.bf16.mxu0 0
        %5671 = vmatpush1.bf16.xpose.msra.mxu0 0
        %5672 = vmatprep.subr.bf16.mxu0 0
        %5673 = vmatpush1.bf16.xpose.msra.mxu0 0
        %5674 = vmatprep.subr.bf16.mxu0 0
        %5675 = vmatpush1.bf16.xpose.msra.mxu0 0
        %5676 = vmatprep.subr.bf16.mxu0 0
        %5677 = vmatpush1.bf16.xpose.msra.mxu0 0
        %5678 = vmatprep.subr.bf16.mxu0 0
        %5679 = vmatpush1.bf16.xpose.msra.mxu0 0
        %5680 = vmatprep.subr.bf16.mxu0 0
        %5681 = vmatpush1.bf16.xpose.msra.mxu0 0
        %5682 = vmatprep.subr.bf16.mxu0 0
        %5683 = vmatpush1.bf16.xpose.msra.mxu0 0
        %5684 = vmatprep.subr.bf16.mxu0 0
        %5685 = vmatpush1.bf16.xpose.msra.mxu0 0
        %5686 = vmatprep.subr.bf16.mxu0 0
        %5687 = vmatpush1.bf16.xpose.msra.mxu0 0
        %5688 = vmatprep.subr.bf16.mxu0 0
        %5689 = vmatpush1.bf16.xpose.msra.mxu0 0
        %5690 = vmatprep.subr.bf16.mxu0 0
        %5691 = vmatpush1.bf16.xpose.msra.mxu0 0
        %5692 = vmatprep.subr.bf16.mxu0 0
        %5693 = vmatpush1.bf16.xpose.msra.mxu0 0
        %5694 = vmatprep.mubr.bf16.mxu0 0
        %5695 = vmatmul.mubr.bf16.gmra.mrb[0].mxu0 %v5654
        %v5696 = vpop.f32.mrb[0].mxu0
        %v5697 = vadd.f32 0.0, %v5696
        %v5698 = vpop.f32.mrb[0].mxu0
        %v5699 = vpop.f32.mrb[0].mxu0
        %v5700 = vadd.f32 0.0, %v5699
        %v5701 = vpop.f32.mrb[0].mxu0
        %5702 = vmatprep.mubr.bf16.mxu0 0
        %5703 = vmatmul.mubr.bf16.gmra.mrb[0].mxu0 %v5657
        %v5704 = vpop.f32.mrb[0].mxu0
        %v5705 = vadd.f32 0.0, %v5704
        %v5706 = vpop.f32.mrb[0].mxu0
        %v5707 = vpop.f32.mrb[0].mxu0
        %v5708 = vadd.f32 0.0, %v5707
        %v5709 = vpop.f32.mrb[0].mxu0
        %5710 = vdwg.mxu0
        %5711 = vxpose.xlu0.b32.start [1/16] %v5523, 128
        %5712 = vxpose.xlu0.b32.cont [2/16] %v5526, 128
        %5713 = vxpose.xlu0.b32.cont [3/16] %v5531, 128
        %5714 = vxpose.xlu0.b32.cont [4/16] %v5534, 128
        %5715 = vxpose.xlu0.b32.cont [5/16] 0.0, 128
        %5716 = vxpose.xlu0.b32.cont [6/16] 0.0, 128
        %5717 = vxpose.xlu0.b32.cont [7/16] 0.0, 128
        %5718 = vxpose.xlu0.b32.cont [8/16] 0.0, 128
        %5719 = vxpose.xlu0.b32.cont [9/16] 0.0, 128
        %5720 = vxpose.xlu0.b32.cont [10/16] 0.0, 128
        %5721 = vxpose.xlu0.b32.cont [11/16] 0.0, 128
        %5722 = vxpose.xlu0.b32.cont [12/16] 0.0, 128
        %5723 = vxpose.xlu0.b32.cont [13/16] 0.0, 128
        %5724 = vxpose.xlu0.b32.cont [14/16] 0.0, 128
        %5725 = vxpose.xlu0.b32.cont [15/16] 0.0, 128
        %5726 = vxpose.xlu0.b32.end [16/16] 0.0, 128
        %v5727 = vpop.trf.xlu0
        %v5728 = vpop.trf.xlu0
        %v5729 = vpop.trf.xlu0
        %v5730 = vpop.trf.xlu0
        %v5731 = vpop.trf.xlu0
        %v5732 = vpop.trf.xlu0
        %v5733 = vpop.trf.xlu0
        %v5734 = vpop.trf.xlu0
        %v5735 = vpop.trf.xlu0
        %v5736 = vpop.trf.xlu0
        %v5737 = vpop.trf.xlu0
        %v5738 = vpop.trf.xlu0
        %v5739 = vpop.trf.xlu0
        %v5740 = vpop.trf.xlu0
        %v5741 = vpop.trf.xlu0
        %v5742 = vpop.trf.xlu0
        %5743 = vxpose.xlu0.b32.start [1/16] %v5581, 128
        %5744 = vxpose.xlu0.b32.cont [2/16] %v5584, 128
        %5745 = vxpose.xlu0.b32.cont [3/16] %v5589, 128
        %5746 = vxpose.xlu0.b32.cont [4/16] %v5592, 128
        %5747 = vxpose.xlu0.b32.cont [5/16] 0.0, 128
        %5748 = vxpose.xlu0.b32.cont [6/16] 0.0, 128
        %5749 = vxpose.xlu0.b32.cont [7/16] 0.0, 128
        %5750 = vxpose.xlu0.b32.cont [8/16] 0.0, 128
        %5751 = vxpose.xlu0.b32.cont [9/16] 0.0, 128
        %5752 = vxpose.xlu0.b32.cont [10/16] 0.0, 128
        %5753 = vxpose.xlu0.b32.cont [11/16] 0.0, 128
        %5754 = vxpose.xlu0.b32.cont [12/16] 0.0, 128
        %5755 = vxpose.xlu0.b32.cont [13/16] 0.0, 128
        %5756 = vxpose.xlu0.b32.cont [14/16] 0.0, 128
        %5757 = vxpose.xlu0.b32.cont [15/16] 0.0, 128
        %5758 = vxpose.xlu0.b32.end [16/16] 0.0, 128
        %v5759 = vpop.trf.xlu0
        %v5760 = vpop.trf.xlu0
        %v5761 = vpop.trf.xlu0
        %v5762 = vpop.trf.xlu0
        %v5763 = vpop.trf.xlu0
        %v5764 = vpop.trf.xlu0
        %v5765 = vpop.trf.xlu0
        %v5766 = vpop.trf.xlu0
        %v5767 = vpop.trf.xlu0
        %v5768 = vpop.trf.xlu0
        %v5769 = vpop.trf.xlu0
        %v5770 = vpop.trf.xlu0
        %v5771 = vpop.trf.xlu0
        %v5772 = vpop.trf.xlu0
        %v5773 = vpop.trf.xlu0
        %v5774 = vpop.trf.xlu0
        %5775 = vxpose.xlu0.b32.start [1/16] %v5639, 128
        %5776 = vxpose.xlu0.b32.cont [2/16] %v5642, 128
        %5777 = vxpose.xlu0.b32.cont [3/16] %v5647, 128
        %5778 = vxpose.xlu0.b32.cont [4/16] %v5650, 128
        %5779 = vxpose.xlu0.b32.cont [5/16] 0.0, 128
        %5780 = vxpose.xlu0.b32.cont [6/16] 0.0, 128
        %5781 = vxpose.xlu0.b32.cont [7/16] 0.0, 128
        %5782 = vxpose.xlu0.b32.cont [8/16] 0.0, 128
        %5783 = vxpose.xlu0.b32.cont [9/16] 0.0, 128
        %5784 = vxpose.xlu0.b32.cont [10/16] 0.0, 128
        %5785 = vxpose.xlu0.b32.cont [11/16] 0.0, 128
        %5786 = vxpose.xlu0.b32.cont [12/16] 0.0, 128
        %5787 = vxpose.xlu0.b32.cont [13/16] 0.0, 128
        %5788 = vxpose.xlu0.b32.cont [14/16] 0.0, 128
        %5789 = vxpose.xlu0.b32.cont [15/16] 0.0, 128
        %5790 = vxpose.xlu0.b32.end [16/16] 0.0, 128
        %v5791 = vpop.trf.xlu0
        %v5792 = vpop.trf.xlu0
        %v5793 = vpop.trf.xlu0
        %v5794 = vpop.trf.xlu0
        %v5795 = vpop.trf.xlu0
        %v5796 = vpop.trf.xlu0
        %v5797 = vpop.trf.xlu0
        %v5798 = vpop.trf.xlu0
        %v5799 = vpop.trf.xlu0
        %v5800 = vpop.trf.xlu0
        %v5801 = vpop.trf.xlu0
        %v5802 = vpop.trf.xlu0
        %v5803 = vpop.trf.xlu0
        %v5804 = vpop.trf.xlu0
        %v5805 = vpop.trf.xlu0
        %v5806 = vpop.trf.xlu0
        %5807 = vxpose.xlu0.b32.start [1/16] %v5697, 128
        %5808 = vxpose.xlu0.b32.cont [2/16] %v5700, 128
        %5809 = vxpose.xlu0.b32.cont [3/16] %v5705, 128
        %5810 = vxpose.xlu0.b32.cont [4/16] %v5708, 128
        %5811 = vxpose.xlu0.b32.cont [5/16] 0.0, 128
        %5812 = vxpose.xlu0.b32.cont [6/16] 0.0, 128
        %5813 = vxpose.xlu0.b32.cont [7/16] 0.0, 128
        %5814 = vxpose.xlu0.b32.cont [8/16] 0.0, 128
        %5815 = vxpose.xlu0.b32.cont [9/16] 0.0, 128
        %5816 = vxpose.xlu0.b32.cont [10/16] 0.0, 128
        %5817 = vxpose.xlu0.b32.cont [11/16] 0.0, 128
        %5818 = vxpose.xlu0.b32.cont [12/16] 0.0, 128
        %5819 = vxpose.xlu0.b32.cont [13/16] 0.0, 128
        %5820 = vxpose.xlu0.b32.cont [14/16] 0.0, 128
        %5821 = vxpose.xlu0.b32.cont [15/16] 0.0, 128
        %5822 = vxpose.xlu0.b32.end [16/16] 0.0, 128
        %v5823 = vpop.trf.xlu0
        %v5824 = vpop.trf.xlu0
        %v5825 = vpop.trf.xlu0
        %v5826 = vpop.trf.xlu0
        %v5827 = vpop.trf.xlu0
        %v5828 = vpop.trf.xlu0
        %v5829 = vpop.trf.xlu0
        %v5830 = vpop.trf.xlu0
        %v5831 = vpop.trf.xlu0
        %v5832 = vpop.trf.xlu0
        %v5833 = vpop.trf.xlu0
        %v5834 = vpop.trf.xlu0
        %v5835 = vpop.trf.xlu0
        %v5836 = vpop.trf.xlu0
        %v5837 = vpop.trf.xlu0
        %v5838 = vpop.trf.xlu0
        %v5839 = vcombine.low %v5727, %v5791
        %v5840 = vcombine.high %v5727, %v5791
        %v5842 = vunpack.c.l.s4 1983009808
        %v5843 = vunpack.c.0.s8 %v5842
        %v5844 = vlaneseq
        %v5845 = vshrl.u32 %v5844, 7
        %v5846 = vsub.s32 %v5843, %v5845
        %v5847 = vrot.slane %v5839, %v5846
        %v5849 = vunpack.c.l.s4 1983009808
        %v5850 = vunpack.c.0.s8 %v5849
        %v5851 = vlaneseq
        %v5852 = vshrl.u32 %v5851, 7
        %v5853 = vsub.s32 %v5850, %v5852
        %v5854 = vrot.slane %v5840, %v5853
        %v5855 = vcombine.low %v5759, %v5823
        %v5856 = vcombine.high %v5759, %v5823
        %v5858 = vunpack.c.l.s4 1983009808
        %v5859 = vunpack.c.0.s8 %v5858
        %v5860 = vlaneseq
        %v5861 = vshrl.u32 %v5860, 7
        %v5862 = vsub.s32 %v5859, %v5861
        %v5863 = vrot.slane %v5855, %v5862
        %v5865 = vunpack.c.l.s4 1983009808
        %v5866 = vunpack.c.0.s8 %v5865
        %v5867 = vlaneseq
        %v5868 = vshrl.u32 %v5867, 7
        %v5869 = vsub.s32 %v5866, %v5868
        %v5870 = vrot.slane %v5856, %v5869
        %v5871 = vcombine.low %v5847, %v5863
        %v5872 = vcombine.high %v5847, %v5863
        %v5874 = vunpack.c.l.s4 1934713408
        %v5875 = vunpack.c.0.s8 %v5874
        %v5876 = vlaneseq
        %v5877 = vshrl.u32 %v5876, 7
        %v5878 = vsub.s32 %v5875, %v5877
        %v5879 = vrot.slane %v5871, %v5878
        %v5881 = vunpack.c.l.s4 1934713408
        %v5882 = vunpack.c.0.s8 %v5881
        %v5883 = vlaneseq
        %v5884 = vshrl.u32 %v5883, 7
        %v5885 = vsub.s32 %v5882, %v5884
        %v5886 = vrot.slane %v5872, %v5885
        %v5887 = vcombine.low %v5854, %v5870
        %v5888 = vcombine.high %v5854, %v5870
        %v5890 = vunpack.c.l.s4 1934713408
        %v5891 = vunpack.c.0.s8 %v5890
        %v5892 = vlaneseq
        %v5893 = vshrl.u32 %v5892, 7
        %v5894 = vsub.s32 %v5891, %v5893
        %v5895 = vrot.slane %v5887, %v5894
        %v5897 = vunpack.c.l.s4 1934713408
        %v5898 = vunpack.c.0.s8 %v5897
        %v5899 = vlaneseq
        %v5900 = vshrl.u32 %v5899, 7
        %v5901 = vsub.s32 %v5898, %v5900
        %v5902 = vrot.slane %v5888, %v5901
        %v5903 = vcombine.high %v5879, 0.0
        %v5904 = vcombine.high %v5886, 0.0
        %v5905 = vcombine.high %v5895, 0.0
        %v5906 = vcombine.high %v5902, 0.0
        %v5907 = vcombine.low %v5728, %v5792
        %v5908 = vcombine.high %v5728, %v5792
        %v5910 = vunpack.c.l.s4 1983009808
        %v5911 = vunpack.c.0.s8 %v5910
        %v5912 = vlaneseq
        %v5913 = vshrl.u32 %v5912, 7
        %v5914 = vsub.s32 %v5911, %v5913
        %v5915 = vrot.slane %v5907, %v5914
        %v5917 = vunpack.c.l.s4 1983009808
        %v5918 = vunpack.c.0.s8 %v5917
        %v5919 = vlaneseq
        %v5920 = vshrl.u32 %v5919, 7
        %v5921 = vsub.s32 %v5918, %v5920
        %v5922 = vrot.slane %v5908, %v5921
        %v5923 = vcombine.low %v5760, %v5824
        %v5924 = vcombine.high %v5760, %v5824
        %v5926 = vunpack.c.l.s4 1983009808
        %v5927 = vunpack.c.0.s8 %v5926
        %v5928 = vlaneseq
        %v5929 = vshrl.u32 %v5928, 7
        %v5930 = vsub.s32 %v5927, %v5929
        %v5931 = vrot.slane %v5923, %v5930
        %v5933 = vunpack.c.l.s4 1983009808
        %v5934 = vunpack.c.0.s8 %v5933
        %v5935 = vlaneseq
        %v5936 = vshrl.u32 %v5935, 7
        %v5937 = vsub.s32 %v5934, %v5936
        %v5938 = vrot.slane %v5924, %v5937
        %v5939 = vcombine.low %v5915, %v5931
        %v5940 = vcombine.high %v5915, %v5931
        %v5942 = vunpack.c.l.s4 1934713408
        %v5943 = vunpack.c.0.s8 %v5942
        %v5944 = vlaneseq
        %v5945 = vshrl.u32 %v5944, 7
        %v5946 = vsub.s32 %v5943, %v5945
        %v5947 = vrot.slane %v5939, %v5946
        %v5949 = vunpack.c.l.s4 1934713408
        %v5950 = vunpack.c.0.s8 %v5949
        %v5951 = vlaneseq
        %v5952 = vshrl.u32 %v5951, 7
        %v5953 = vsub.s32 %v5950, %v5952
        %v5954 = vrot.slane %v5940, %v5953
        %v5955 = vcombine.low %v5922, %v5938
        %v5956 = vcombine.high %v5922, %v5938
        %v5958 = vunpack.c.l.s4 1934713408
        %v5959 = vunpack.c.0.s8 %v5958
        %v5960 = vlaneseq
        %v5961 = vshrl.u32 %v5960, 7
        %v5962 = vsub.s32 %v5959, %v5961
        %v5963 = vrot.slane %v5955, %v5962
        %v5965 = vunpack.c.l.s4 1934713408
        %v5966 = vunpack.c.0.s8 %v5965
        %v5967 = vlaneseq
        %v5968 = vshrl.u32 %v5967, 7
        %v5969 = vsub.s32 %v5966, %v5968
        %v5970 = vrot.slane %v5956, %v5969
        %v5971 = vcombine.high %v5947, 0.0
        %v5972 = vcombine.high %v5954, 0.0
        %v5973 = vcombine.high %v5963, 0.0
        %v5974 = vcombine.high %v5970, 0.0
        %v5975 = vcombine.low %v5879, %v5886
        %v5977 = vunpack.c.l.s4 1983009808
        %v5978 = vunpack.c.0.s8 %v5977
        %v5979 = vlaneseq
        %v5980 = vshrl.u32 %v5979, 7
        %v5981 = vsub.s32 %v5978, %v5980
        %v5982 = vrot.slane %v5975, %v5981
        %v5983 = vcombine.low %v5903, %v5904
        %v5985 = vunpack.c.l.s4 1983009808
        %v5986 = vunpack.c.0.s8 %v5985
        %v5987 = vlaneseq
        %v5988 = vshrl.u32 %v5987, 7
        %v5989 = vsub.s32 %v5986, %v5988
        %v5990 = vrot.slane %v5983, %v5989
        %v5991 = vcombine.low %v5895, %v5902
        %v5993 = vunpack.c.l.s4 1983009808
        %v5994 = vunpack.c.0.s8 %v5993
        %v5995 = vlaneseq
        %v5996 = vshrl.u32 %v5995, 7
        %v5997 = vsub.s32 %v5994, %v5996
        %v5998 = vrot.slane %v5991, %v5997
        %v5999 = vcombine.low %v5905, %v5906
        %v6001 = vunpack.c.l.s4 1983009808
        %v6002 = vunpack.c.0.s8 %v6001
        %v6003 = vlaneseq
        %v6004 = vshrl.u32 %v6003, 7
        %v6005 = vsub.s32 %v6002, %v6004
        %v6006 = vrot.slane %v5999, %v6005
        %v6007 = vcombine.low %v5982, %v5990
        %v6008 = vcombine.high %v5982, %v5990
        %v6010 = vunpack.c.l.s4 1934713408
        %v6011 = vunpack.c.0.s8 %v6010
        %v6012 = vlaneseq
        %v6013 = vshrl.u32 %v6012, 7
        %v6014 = vsub.s32 %v6011, %v6013
        %v6015 = vrot.slane %v6007, %v6014
        %v6017 = vunpack.c.l.s4 1934713408
        %v6018 = vunpack.c.0.s8 %v6017
        %v6019 = vlaneseq
        %v6020 = vshrl.u32 %v6019, 7
        %v6021 = vsub.s32 %v6018, %v6020
        %v6022 = vrot.slane %v6008, %v6021
        %v6023 = vcombine.low %v5998, %v6006
        %v6024 = vcombine.high %v5998, %v6006
        %v6026 = vunpack.c.l.s4 1934713408
        %v6027 = vunpack.c.0.s8 %v6026
        %v6028 = vlaneseq
        %v6029 = vshrl.u32 %v6028, 7
        %v6030 = vsub.s32 %v6027, %v6029
        %v6031 = vrot.slane %v6023, %v6030
        %v6033 = vunpack.c.l.s4 1934713408
        %v6034 = vunpack.c.0.s8 %v6033
        %v6035 = vlaneseq
        %v6036 = vshrl.u32 %v6035, 7
        %v6037 = vsub.s32 %v6034, %v6036
        %v6038 = vrot.slane %v6024, %v6037
        %v6039 = vcombine.low %v6015, %v6031
        %v6040 = vcombine.high %v6015, %v6031
        %v6041 = vcombine.low %v6022, %v6038
        %v6042 = vcombine.high %v6022, %v6038
        %v6043 = vcombine.low %v5947, %v5954
        %v6045 = vunpack.c.l.s4 1983009808
        %v6046 = vunpack.c.0.s8 %v6045
        %v6047 = vlaneseq
        %v6048 = vshrl.u32 %v6047, 7
        %v6049 = vsub.s32 %v6046, %v6048
        %v6050 = vrot.slane %v6043, %v6049
        %v6051 = vcombine.low %v5971, %v5972
        %v6053 = vunpack.c.l.s4 1983009808
        %v6054 = vunpack.c.0.s8 %v6053
        %v6055 = vlaneseq
        %v6056 = vshrl.u32 %v6055, 7
        %v6057 = vsub.s32 %v6054, %v6056
        %v6058 = vrot.slane %v6051, %v6057
        %v6059 = vcombine.low %v5963, %v5970
        %v6061 = vunpack.c.l.s4 1983009808
        %v6062 = vunpack.c.0.s8 %v6061
        %v6063 = vlaneseq
        %v6064 = vshrl.u32 %v6063, 7
        %v6065 = vsub.s32 %v6062, %v6064
        %v6066 = vrot.slane %v6059, %v6065
        %v6067 = vcombine.low %v5973, %v5974
        %v6069 = vunpack.c.l.s4 1983009808
        %v6070 = vunpack.c.0.s8 %v6069
        %v6071 = vlaneseq
        %v6072 = vshrl.u32 %v6071, 7
        %v6073 = vsub.s32 %v6070, %v6072
        %v6074 = vrot.slane %v6067, %v6073
        %v6075 = vcombine.low %v6050, %v6058
        %v6076 = vcombine.high %v6050, %v6058
        %v6078 = vunpack.c.l.s4 1934713408
        %v6079 = vunpack.c.0.s8 %v6078
        %v6080 = vlaneseq
        %v6081 = vshrl.u32 %v6080, 7
        %v6082 = vsub.s32 %v6079, %v6081
        %v6083 = vrot.slane %v6075, %v6082
        %v6085 = vunpack.c.l.s4 1934713408
        %v6086 = vunpack.c.0.s8 %v6085
        %v6087 = vlaneseq
        %v6088 = vshrl.u32 %v6087, 7
        %v6089 = vsub.s32 %v6086, %v6088
        %v6090 = vrot.slane %v6076, %v6089
        %v6091 = vcombine.low %v6066, %v6074
        %v6092 = vcombine.high %v6066, %v6074
        %v6094 = vunpack.c.l.s4 1934713408
        %v6095 = vunpack.c.0.s8 %v6094
        %v6096 = vlaneseq
        %v6097 = vshrl.u32 %v6096, 7
        %v6098 = vsub.s32 %v6095, %v6097
        %v6099 = vrot.slane %v6091, %v6098
        %v6101 = vunpack.c.l.s4 1934713408
        %v6102 = vunpack.c.0.s8 %v6101
        %v6103 = vlaneseq
        %v6104 = vshrl.u32 %v6103, 7
        %v6105 = vsub.s32 %v6102, %v6104
        %v6106 = vrot.slane %v6092, %v6105
        %v6107 = vcombine.low %v6083, %v6099
        %v6108 = vcombine.high %v6083, %v6099
        %v6109 = vcombine.low %v6090, %v6106
        %v6110 = vcombine.high %v6090, %v6106
        %6113 = vrot.lane.b32.xlu0 %v6040, 32
        %v6114 = vpop.permute.xlu0 %6113
        %6115 = vrot.lane.b32.xlu0 %v6108, 32
        %v6116 = vpop.permute.xlu0 %6115
        %6121 = vrot.lane.b32.xlu0 %v6041, 64
        %v6122 = vpop.permute.xlu0 %6121
        %6123 = vrot.lane.b32.xlu0 %v6109, 64
        %v6124 = vpop.permute.xlu0 %6123
        %6129 = vrot.lane.b32.xlu0 %v6042, 96
        %v6130 = vpop.permute.xlu0 %6129
        %6131 = vrot.lane.b32.xlu0 %v6110, 96
        %v6132 = vpop.permute.xlu0 %6131
        %v6135 = vsel %vm3521, %v6039, %v6114
        %v6136 = vsel %vm3521, %v6107, %v6116
        %vm6137 = vcmask 523264
        %v6138 = vsel %vm6137, %v6135, %v6122
        %v6139 = vsel %vm6137, %v6136, %v6124
        %vm6140 = vcmask 785408
        %v6141 = vsel %vm6140, %v6138, %v6130
        %v6142 = vsel %vm6140, %v6139, %v6132
        %v6143 = vpack.c.bf16 %v6142, %v6141
        %v6145 = vlaneseq
        %v6146 = vshrl.u32 %v6145, 7
        %v6147 = vsub.s32 0, %v6146
        %v6148 = vrot.slane %v953, %v6147
        %v6166 = vunpack.c.l.b16 %v937
        %v6167 = vunpack.c.l.b16 %v938
        %v6168 = vunpack.c.l.b16 %v939
        %v6169 = vunpack.c.l.b16 %v940
        %v6170 = vunpack.c.l.b16 %v941
        %v6171 = vunpack.c.l.b16 %v942
        %v6172 = vunpack.c.l.b16 %v943
        %v6173 = vunpack.c.l.b16 %v944
        %v6174 = vunpack.c.l.b16 %v945
        %v6175 = vunpack.c.l.b16 %v946
        %v6176 = vunpack.c.l.b16 %v947
        %v6177 = vunpack.c.l.b16 %v948
        %v6178 = vunpack.c.l.b16 %v949
        %v6179 = vunpack.c.l.b16 %v950
        %v6180 = vunpack.c.l.b16 %v951
        %v6181 = vunpack.c.l.b16 %v952
        %v6182 = vpack.c.b16 %v6167, %v6166
        %v6183 = vpack.c.b16 %v6169, %v6168
        %v6184 = vpack.c.b16 %v6171, %v6170
        %v6185 = vpack.c.b16 %v6173, %v6172
        %v6186 = vpack.c.b16 %v6175, %v6174
        %v6187 = vpack.c.b16 %v6177, %v6176
        %v6188 = vpack.c.b16 %v6179, %v6178
        %v6189 = vpack.c.b16 %v6181, %v6180
        %6198 = vmatprep.subr.bf16.mxu0 0
        %6199 = vmatpush1.bf16.msra.mxu0 %v6182
        %6200 = vmatprep.subr.bf16.mxu0 0
        %6201 = vmatpush1.bf16.msra.mxu0 %v6183
        %6202 = vmatprep.subr.bf16.mxu0 0
        %6203 = vmatpush1.bf16.msra.mxu0 %v6184
        %6204 = vmatprep.subr.bf16.mxu0 0
        %6205 = vmatpush1.bf16.msra.mxu0 %v6185
        %6206 = vmatprep.subr.bf16.mxu0 0
        %6207 = vmatpush1.bf16.msra.mxu0 %v6186
        %6208 = vmatprep.subr.bf16.mxu0 0
        %6209 = vmatpush1.bf16.msra.mxu0 %v6187
        %6210 = vmatprep.subr.bf16.mxu0 0
        %6211 = vmatpush1.bf16.msra.mxu0 %v6188
        %6212 = vmatprep.subr.bf16.mxu0 0
        %6213 = vmatpush1.bf16.msra.mxu0 %v6189
        %6214 = vmatprep.subr.bf16.mxu0 0
        %6215 = vmatpush1.bf16.msra.mxu0 0
        %6216 = vmatprep.subr.bf16.mxu0 0
        %6217 = vmatpush1.bf16.msra.mxu0 0
        %6218 = vmatprep.subr.bf16.mxu0 0
        %6219 = vmatpush1.bf16.msra.mxu0 0
        %6220 = vmatprep.subr.bf16.mxu0 0
        %6221 = vmatpush1.bf16.msra.mxu0 0
        %6222 = vmatprep.subr.bf16.mxu0 0
        %6223 = vmatpush1.bf16.msra.mxu0 0
        %6224 = vmatprep.subr.bf16.mxu0 0
        %6225 = vmatpush1.bf16.msra.mxu0 0
        %6226 = vmatprep.subr.bf16.mxu0 0
        %6227 = vmatpush1.bf16.msra.mxu0 0
        %6228 = vmatprep.subr.bf16.mxu0 0
        %6229 = vmatpush1.bf16.msra.mxu0 0
        %6230 = vmatprep.mubr.bf16.mxu0 0
        %6231 = vmatmul.mubr.bf16.gmra.mrb[0].mxu0 %v6143
        %v6232 = vpop.f32.mrb[0].mxu0
        %v6233 = vadd.f32 %v6148, %v6232
        %v6234 = vpop.f32.mrb[0].mxu0
        %v6235 = vpop.f32.mrb[0].mxu0
        %v6236 = vadd.f32 %v6148, %v6235
        %v6237 = vpop.f32.mrb[0].mxu0
        %6238 = vdwg.mxu0
        %v6239 = vadd.f32 %v902, %v6233
        %v6240 = vadd.f32 %v903, %v6236
        %6241 = vadd.xlane.f32.xlu0 %v6239
        %v6242 = vpop.xlane.xlu0 %6241
        %6243 = vadd.xlane.f32.xlu0 %v6240
        %v6244 = vpop.xlane.xlu0 %6243
        %v6245 = vrcp.pop 128.0
        %v6246 = vmul.f32 %v6242, %v6245
        %v6247 = vmul.f32 %v6244, %v6245
        %v6248 = vsub.f32 %v6239, %v6246
        %v6249 = vsub.f32 %v6240, %v6247
        %v6250 = vmul.f32 %v6248, %v6248
        %v6251 = vmul.f32 %v6249, %v6249
        %6252 = vadd.xlane.f32.xlu0 %v6250
        %v6253 = vpop.xlane.xlu0 %6252
        %6254 = vadd.xlane.f32.xlu0 %v6251
        %v6255 = vpop.xlane.xlu0 %6254
        %v6256 = vmul.f32 %v6253, %v6245
        %v6257 = vmul.f32 %v6255, %v6245
        %v6258 = vadd.f32 %v6256, 1e-05
        %v6259 = vadd.f32 %v6257, 1e-05
        %v6260 = vrsqrt.pop %v6258
        %v6261 = vrsqrt.pop %v6259
        %v6262 = vmul.f32 %v6248, %v6260
        %v6263 = vmul.f32 %v6249, %v6261
        %v6265 = vlaneseq
        %v6266 = vshrl.u32 %v6265, 7
        %v6267 = vsub.s32 0, %v6266
        %v6268 = vrot.slane %v954, %v6267
        %v6270 = vmul.f32 %v6262, %v6268
        %v6271 = vmul.f32 %v6263, %v6268
        %v6273 = vlaneseq
        %v6274 = vshrl.u32 %v6273, 7
        %v6275 = vsub.s32 0, %v6274
        %v6276 = vrot.slane %v955, %v6275
        %v6278 = vadd.f32 %v6270, %v6276
        %v6279 = vadd.f32 %v6271, %v6276
        %v6280 = vpack.c.bf16 %v6279, %v6278
        %v6282 = vlaneseq
        %v6283 = vshrl.u32 %v6282, 7
        %v6284 = vsub.s32 0, %v6283
        %v6285 = vrot.slane %v972, %v6284
        %v6286 = vlaneseq
        %v6287 = vshrl.u32 %v6286, 7
        %v6288 = vsub.s32 1, %v6287
        %v6289 = vrot.slane %v972, %v6288
        %v6308 = vunpack.c.l.b16 %v956
        %v6309 = vunpack.c.h.b16 %v956
        %v6310 = vunpack.c.l.b16 %v957
        %v6311 = vunpack.c.h.b16 %v957
        %v6312 = vunpack.c.l.b16 %v958
        %v6313 = vunpack.c.h.b16 %v958
        %v6314 = vunpack.c.l.b16 %v959
        %v6315 = vunpack.c.h.b16 %v959
        %v6316 = vunpack.c.l.b16 %v960
        %v6317 = vunpack.c.h.b16 %v960
        %v6318 = vunpack.c.l.b16 %v961
        %v6319 = vunpack.c.h.b16 %v961
        %v6320 = vunpack.c.l.b16 %v962
        %v6321 = vunpack.c.h.b16 %v962
        %v6322 = vunpack.c.l.b16 %v963
        %v6323 = vunpack.c.h.b16 %v963
        %v6324 = vunpack.c.l.b16 %v964
        %v6325 = vunpack.c.h.b16 %v964
        %v6326 = vunpack.c.l.b16 %v965
        %v6327 = vunpack.c.h.b16 %v965
        %v6328 = vunpack.c.l.b16 %v966
        %v6329 = vunpack.c.h.b16 %v966
        %v6330 = vunpack.c.l.b16 %v967
        %v6331 = vunpack.c.h.b16 %v967
        %v6332 = vunpack.c.l.b16 %v968
        %v6333 = vunpack.c.h.b16 %v968
        %v6334 = vunpack.c.l.b16 %v969
        %v6335 = vunpack.c.h.b16 %v969
        %v6336 = vunpack.c.l.b16 %v970
        %v6337 = vunpack.c.h.b16 %v970
        %v6338 = vunpack.c.l.b16 %v971
        %v6339 = vunpack.c.h.b16 %v971
        %v6340 = vpack.c.b16 %v6310, %v6308
        %v6341 = vpack.c.b16 %v6311, %v6309
        %v6342 = vpack.c.b16 %v6314, %v6312
        %v6343 = vpack.c.b16 %v6315, %v6313
        %v6344 = vpack.c.b16 %v6318, %v6316
        %v6345 = vpack.c.b16 %v6319, %v6317
        %v6346 = vpack.c.b16 %v6322, %v6320
        %v6347 = vpack.c.b16 %v6323, %v6321
        %v6348 = vpack.c.b16 %v6326, %v6324
        %v6349 = vpack.c.b16 %v6327, %v6325
        %v6350 = vpack.c.b16 %v6330, %v6328
        %v6351 = vpack.c.b16 %v6331, %v6329
        %v6352 = vpack.c.b16 %v6334, %v6332
        %v6353 = vpack.c.b16 %v6335, %v6333
        %v6354 = vpack.c.b16 %v6338, %v6336
        %v6355 = vpack.c.b16 %v6339, %v6337
        %6372 = vmatprep.subr.bf16.mxu0 %v6341
        %6373 = vmatpush1.bf16.msra.mxu0 %v6340
        %6374 = vmatprep.subr.bf16.mxu0 %v6343
        %6375 = vmatpush1.bf16.msra.mxu0 %v6342
        %6376 = vmatprep.subr.bf16.mxu0 %v6345
        %6377 = vmatpush1.bf16.msra.mxu0 %v6344
        %6378 = vmatprep.subr.bf16.mxu0 %v6347
        %6379 = vmatpush1.bf16.msra.mxu0 %v6346
        %6380 = vmatprep.subr.bf16.mxu0 %v6349
        %6381 = vmatpush1.bf16.msra.mxu0 %v6348
        %6382 = vmatprep.subr.bf16.mxu0 %v6351
        %6383 = vmatpush1.bf16.msra.mxu0 %v6350
        %6384 = vmatprep.subr.bf16.mxu0 %v6353
        %6385 = vmatpush1.bf16.msra.mxu0 %v6352
        %6386 = vmatprep.subr.bf16.mxu0 %v6355
        %6387 = vmatpush1.bf16.msra.mxu0 %v6354
        %6388 = vmatprep.subr.bf16.mxu0 0
        %6389 = vmatpush1.bf16.msra.mxu0 0
        %6390 = vmatprep.subr.bf16.mxu0 0
        %6391 = vmatpush1.bf16.msra.mxu0 0
        %6392 = vmatprep.subr.bf16.mxu0 0
        %6393 = vmatpush1.bf16.msra.mxu0 0
        %6394 = vmatprep.subr.bf16.mxu0 0
        %6395 = vmatpush1.bf16.msra.mxu0 0
        %6396 = vmatprep.subr.bf16.mxu0 0
        %6397 = vmatpush1.bf16.msra.mxu0 0
        %6398 = vmatprep.subr.bf16.mxu0 0
        %6399 = vmatpush1.bf16.msra.mxu0 0
        %6400 = vmatprep.subr.bf16.mxu0 0
        %6401 = vmatpush1.bf16.msra.mxu0 0
        %6402 = vmatprep.subr.bf16.mxu0 0
        %6403 = vmatpush1.bf16.msra.mxu0 0
        %6404 = vmatprep.mubr.bf16.mxu0 0
        %6405 = vmatmul.mubr.bf16.gmra.mrb[0].mxu0 %v6280
        %v6406 = vpop.f32.mrb[0].mxu0
        %v6407 = vadd.f32 %v6285, %v6406
        %v6408 = vpop.f32.mrb[0].mxu0
        %v6409 = vadd.f32 %v6289, %v6408
        %v6410 = vpop.f32.mrb[0].mxu0
        %v6411 = vadd.f32 %v6285, %v6410
        %v6412 = vpop.f32.mrb[0].mxu0
        %v6413 = vadd.f32 %v6289, %v6412
        %6414 = vdwg.mxu0
        %v6415 = vmax.f32 %v6407, 0.0
        %v6416 = vmax.f32 %v6409, 0.0
        %v6417 = vmax.f32 %v6411, 0.0
        %v6418 = vmax.f32 %v6413, 0.0
        %v6419 = vpack.c.bf16 %v6417, %v6415
        %v6420 = vpack.c.bf16 %v6418, %v6416
        %v6422 = vlaneseq
        %v6423 = vshrl.u32 %v6422, 7
        %v6424 = vsub.s32 0, %v6423
        %v6425 = vrot.slane %v1005, %v6424
        %v6459 = vunpack.c.l.b16 %v973
        %v6460 = vunpack.c.l.b16 %v974
        %v6461 = vunpack.c.l.b16 %v975
        %v6462 = vunpack.c.l.b16 %v976
        %v6463 = vunpack.c.l.b16 %v977
        %v6464 = vunpack.c.l.b16 %v978
        %v6465 = vunpack.c.l.b16 %v979
        %v6466 = vunpack.c.l.b16 %v980
        %v6467 = vunpack.c.l.b16 %v981
        %v6468 = vunpack.c.l.b16 %v982
        %v6469 = vunpack.c.l.b16 %v983
        %v6470 = vunpack.c.l.b16 %v984
        %v6471 = vunpack.c.l.b16 %v985
        %v6472 = vunpack.c.l.b16 %v986
        %v6473 = vunpack.c.l.b16 %v987
        %v6474 = vunpack.c.l.b16 %v988
        %v6475 = vunpack.c.l.b16 %v989
        %v6476 = vunpack.c.l.b16 %v990
        %v6477 = vunpack.c.l.b16 %v991
        %v6478 = vunpack.c.l.b16 %v992
        %v6479 = vunpack.c.l.b16 %v993
        %v6480 = vunpack.c.l.b16 %v994
        %v6481 = vunpack.c.l.b16 %v995
        %v6482 = vunpack.c.l.b16 %v996
        %v6483 = vunpack.c.l.b16 %v997
        %v6484 = vunpack.c.l.b16 %v998
        %v6485 = vunpack.c.l.b16 %v999
        %v6486 = vunpack.c.l.b16 %v1000
        %v6487 = vunpack.c.l.b16 %v1001
        %v6488 = vunpack.c.l.b16 %v1002
        %v6489 = vunpack.c.l.b16 %v1003
        %v6490 = vunpack.c.l.b16 %v1004
        %v6491 = vpack.c.b16 %v6460, %v6459
        %v6492 = vpack.c.b16 %v6462, %v6461
        %v6493 = vpack.c.b16 %v6464, %v6463
        %v6494 = vpack.c.b16 %v6466, %v6465
        %v6495 = vpack.c.b16 %v6468, %v6467
        %v6496 = vpack.c.b16 %v6470, %v6469
        %v6497 = vpack.c.b16 %v6472, %v6471
        %v6498 = vpack.c.b16 %v6474, %v6473
        %v6499 = vpack.c.b16 %v6476, %v6475
        %v6500 = vpack.c.b16 %v6478, %v6477
        %v6501 = vpack.c.b16 %v6480, %v6479
        %v6502 = vpack.c.b16 %v6482, %v6481
        %v6503 = vpack.c.b16 %v6484, %v6483
        %v6504 = vpack.c.b16 %v6486, %v6485
        %v6505 = vpack.c.b16 %v6488, %v6487
        %v6506 = vpack.c.b16 %v6490, %v6489
        %6523 = vmatprep.subr.bf16.mxu0 0
        %6524 = vmatpush1.bf16.msra.mxu0 %v6491
        %6525 = vmatprep.subr.bf16.mxu0 0
        %6526 = vmatpush1.bf16.msra.mxu0 %v6492
        %6527 = vmatprep.subr.bf16.mxu0 0
        %6528 = vmatpush1.bf16.msra.mxu0 %v6493
        %6529 = vmatprep.subr.bf16.mxu0 0
        %6530 = vmatpush1.bf16.msra.mxu0 %v6494
        %6531 = vmatprep.subr.bf16.mxu0 0
        %6532 = vmatpush1.bf16.msra.mxu0 %v6495
        %6533 = vmatprep.subr.bf16.mxu0 0
        %6534 = vmatpush1.bf16.msra.mxu0 %v6496
        %6535 = vmatprep.subr.bf16.mxu0 0
        %6536 = vmatpush1.bf16.msra.mxu0 %v6497
        %6537 = vmatprep.subr.bf16.mxu0 0
        %6538 = vmatpush1.bf16.msra.mxu0 %v6498
        %6539 = vmatprep.subr.bf16.mxu0 0
        %6540 = vmatpush1.bf16.msra.mxu0 %v6499
        %6541 = vmatprep.subr.bf16.mxu0 0
        %6542 = vmatpush1.bf16.msra.mxu0 %v6500
        %6543 = vmatprep.subr.bf16.mxu0 0
        %6544 = vmatpush1.bf16.msra.mxu0 %v6501
        %6545 = vmatprep.subr.bf16.mxu0 0
        %6546 = vmatpush1.bf16.msra.mxu0 %v6502
        %6547 = vmatprep.subr.bf16.mxu0 0
        %6548 = vmatpush1.bf16.msra.mxu0 %v6503
        %6549 = vmatprep.subr.bf16.mxu0 0
        %6550 = vmatpush1.bf16.msra.mxu0 %v6504
        %6551 = vmatprep.subr.bf16.mxu0 0
        %6552 = vmatpush1.bf16.msra.mxu0 %v6505
        %6553 = vmatprep.subr.bf16.mxu0 0
        %6554 = vmatpush1.bf16.msra.mxu0 %v6506
        %6555 = vmatprep.mubr.bf16.mxu0 %v6420
        %6556 = vmatmul.mubr.bf16.gmra.mrb[0].mxu0 %v6419
        %v6557 = vpop.f32.mrb[0].mxu0
        %v6558 = vadd.f32 %v6425, %v6557
        %v6559 = vpop.f32.mrb[0].mxu0
        %v6560 = vpop.f32.mrb[0].mxu0
        %v6561 = vadd.f32 %v6425, %v6560
        %v6562 = vpop.f32.mrb[0].mxu0
        %6563 = vdwg.mxu0
        %v6564 = vadd.f32 %v6278, %v6558
        %v6565 = vadd.f32 %v6279, %v6561
        %6566 = vadd.xlane.f32.xlu0 %v6564
        %v6567 = vpop.xlane.xlu0 %6566
        %6568 = vadd.xlane.f32.xlu0 %v6565
        %v6569 = vpop.xlane.xlu0 %6568
        %v6570 = vmul.f32 %v6567, %v6245
        %v6571 = vmul.f32 %v6569, %v6245
        %v6572 = vsub.f32 %v6564, %v6570
        %v6573 = vsub.f32 %v6565, %v6571
        %v6574 = vmul.f32 %v6572, %v6572
        %v6575 = vmul.f32 %v6573, %v6573
        %6576 = vadd.xlane.f32.xlu0 %v6574
        %v6577 = vpop.xlane.xlu0 %6576
        %6578 = vadd.xlane.f32.xlu0 %v6575
        %v6579 = vpop.xlane.xlu0 %6578
        %v6580 = vmul.f32 %v6577, %v6245
        %v6581 = vmul.f32 %v6579, %v6245
        %v6582 = vadd.f32 %v6580, 1e-05
        %v6583 = vadd.f32 %v6581, 1e-05
        %v6584 = vrsqrt.pop %v6582
        %v6585 = vrsqrt.pop %v6583
        %v6586 = vmul.f32 %v6572, %v6584
        %v6587 = vmul.f32 %v6573, %v6585
        %v6589 = vlaneseq
        %v6590 = vshrl.u32 %v6589, 7
        %v6591 = vsub.s32 0, %v6590
        %v6592 = vrot.slane %v1006, %v6591
        %v6594 = vmul.f32 %v6586, %v6592
        %v6595 = vmul.f32 %v6587, %v6592
        %v6597 = vlaneseq
        %v6598 = vshrl.u32 %v6597, 7
        %v6599 = vsub.s32 0, %v6598
        %v6600 = vrot.slane %v1007, %v6599
        %v6602 = vadd.f32 %v6594, %v6600
        %v6603 = vadd.f32 %v6595, %v6600
        %6604 = vst [vmem:[#allocation2] sm:$0xff] %v6602
        %6605 = vst [vmem:[#allocation2 + $0x8] sm:$0xff] %v6603
        %p6606 = scmp.eq.s32.totalorder %s54, 1
        // Predicated region
        $region117: #{transformer_encoder_forward.1} parent=79 // pred_check
          %p6607 = pneg %p6606
        $region118: #{transformer_encoder_forward.1} parent=79 // pred_check_branch
          %6609 = sbr.rel (%p6607) target = $region120
        $region119: #{transformer_encoder_forward.1} parent=79 // pred_region
          %v6610 = vrcp.pop %v3757
          %v6611 = vmul.f32 %v3740, %v6610
          %v6612 = vrcp.pop %v3760
          %v6613 = vmul.f32 %v3742, %v6612
          %v6614 = vrcp.pop %v3763
          %v6615 = vmul.f32 %v3744, %v6614
          %v6616 = vrcp.pop %v3766
          %v6617 = vmul.f32 %v3746, %v6616
          %v6618 = vrcp.pop %v3769
          %v6619 = vmul.f32 %v3748, %v6618
          %v6620 = vrcp.pop %v3772
          %v6621 = vmul.f32 %v3750, %v6620
          %v6622 = vrcp.pop %v3775
          %v6623 = vmul.f32 %v3752, %v6622
          %v6624 = vrcp.pop %v3778
          %v6625 = vmul.f32 %v3754, %v6624
          %6626 = vst.msk [vmem:[%s876] sm:$0xff] %vm3706, %v6611
          %6627 = vst.msk [vmem:[%s876 + $0x8] sm:$0xff] %vm3706, %v6613
          %6628 = vst.msk [vmem:[%s876 + $0x10] sm:$0xff] %vm3706, %v6615
          %6629 = vst.msk [vmem:[%s876 + $0x18] sm:$0xff] %vm3706, %v6617
          %6630 = vst.msk [vmem:[%s876 + $0x20] sm:$0xff] %vm3706, %v6619
          %6631 = vst.msk [vmem:[%s876 + $0x28] sm:$0xff] %vm3706, %v6621
          %6632 = vst.msk [vmem:[%s876 + $0x30] sm:$0xff] %vm3706, %v6623
          %6633 = vst.msk [vmem:[%s876 + $0x38] sm:$0xff] %vm3706, %v6625
          %v6634 = vld [vmem:[%s13] sm:$0x1]
          %v6635 = vld [vmem:[%s14] sm:$0x1]
          %6636 = vadd.xlane.f32.xlu0 %v6602
          %v6637 = vpop.xlane.xlu0 %6636
          %6638 = vadd.xlane.f32.xlu0 %v6603
          %v6639 = vpop.xlane.xlu0 %6638
          %v6640 = vmul.f32 %v6637, %v6245
          %v6641 = vmul.f32 %v6639, %v6245
          %v6642 = vsub.f32 %v6602, %v6640
          %v6643 = vsub.f32 %v6603, %v6641
          %v6644 = vmul.f32 %v6642, %v6642
          %v6645 = vmul.f32 %v6643, %v6643
          %6646 = vadd.xlane.f32.xlu0 %v6644
          %v6647 = vpop.xlane.xlu0 %6646
          %6648 = vadd.xlane.f32.xlu0 %v6645
          %v6649 = vpop.xlane.xlu0 %6648
          %v6650 = vmul.f32 %v6647, %v6245
          %v6651 = vmul.f32 %v6649, %v6245
          %v6652 = vadd.f32 %v6650, 1e-05
          %v6653 = vadd.f32 %v6651, 1e-05
          %v6654 = vrsqrt.pop %v6652
          %v6655 = vrsqrt.pop %v6653
          %v6656 = vmul.f32 %v6642, %v6654
          %v6657 = vmul.f32 %v6643, %v6655
          %v6659 = vlaneseq
          %v6660 = vshrl.u32 %v6659, 7
          %v6661 = vsub.s32 0, %v6660
          %v6662 = vrot.slane %v6634, %v6661
          %v6664 = vmul.f32 %v6656, %v6662
          %v6665 = vmul.f32 %v6657, %v6662
          %v6667 = vlaneseq
          %v6668 = vshrl.u32 %v6667, 7
          %v6669 = vsub.s32 0, %v6668
          %v6670 = vrot.slane %v6635, %v6669
          %v6672 = vadd.f32 %v6664, %v6670
          %v6673 = vadd.f32 %v6665, %v6670
          %6674 = vst [vmem:[%s869] sm:$0xff] %v6672
          %6675 = vst [vmem:[%s869 + $0x8] sm:$0xff] %v6673
        $region120: #{transformer_encoder_forward.1} parent=79 // pred_fallthru
          _
        %s6676 = sand.u32 %s449, 1
        %s6677 = scalar_lea.sflag [#allocation5], %s6676
        %s6678 = sand.u32 %s449, 1
        %s6679 = smul.addr %s6678, 16
        %s6680 = scalar_lea.vmem [#allocation17], %s6679
        %s6681 = sand.u32 %s475, 1
        %s6682 = scalar_lea.sflag [#allocation19], %s6681
        %s6683 = sand.u32 %s475, 1
        %s6684 = smul.addr %s6683, 64
        %s6685 = scalar_lea.vmem [#allocation18], %s6684
        // Predicated region
        $region121: #{transformer_encoder_forward.1} parent=79 // pred_check
          %p6686 = pneg %p459
        $region122: #{transformer_encoder_forward.1} parent=79 // pred_check_branch
          %6688 = sbr.rel (%p6686) target = $region124
        $region123: #{transformer_encoder_forward.1} parent=79 // pred_region
          %s6690 = ssub.s32 256, 256
          %6691 = vsyncadd %s6677, %s6690
          %s6692 = smul.addr %s53, 2
          %s6693 = smul.addr %s6692, 128
          %s6694 = scalar_lea.hbm %s15, %s6693
          %s6695 = sshll.u32 %s6680, 4
          %s6696 = int_to_ptr.vmem [resolvable:$true] %s6695
          %6701 = dma.vmem_to_hbm [thread:$0]  %s6696, 256, %s6694, %s6677, 128, 128, 8
        $region124: #{transformer_encoder_forward.1} parent=79 // pred_fallthru
          _
        // Predicated region
        $region125: #{transformer_encoder_forward.1} parent=79 // pred_check
          %p6702 = pneg %p485
        $region126: #{transformer_encoder_forward.1} parent=79 // pred_check_branch
          %6704 = sbr.rel (%p6702) target = $region128
        $region127: #{transformer_encoder_forward.1} parent=79 // pred_region
          %s6706 = ssub.s32 1024, 1024
          %6707 = vsyncadd %s6682, %s6706
          %s6708 = smul.addr %s53, 8
          %s6709 = smul.addr %s6708, 128
          %s6710 = scalar_lea.hbm %s16, %s6709
          %s6711 = sshll.u32 %s6685, 4
          %s6712 = int_to_ptr.vmem [resolvable:$true] %s6711
          %6717 = dma.vmem_to_hbm [thread:$0]  %s6712, 1024, %s6710, %s6682, 128, 128, 8
        $region128: #{transformer_encoder_forward.1} parent=79 // pred_fallthru
          _
      $region80: #{transformer_encoder_forward.1} parent=5 // pred_fallthru
        _
      %p6718 = scmp.le.s32.totalorder 2, %s44
      // Predicated region
      $region129: #{transformer_encoder_forward.1} parent=5 // pred_check
        %p6719 = pneg %p6718
      $region130: #{transformer_encoder_forward.1} parent=5 // pred_check_branch
        %6721 = sbr.rel (%p6719) target = $region132
      $region131: #{transformer_encoder_forward.1} parent=5 // pred_region
        %s6722 = ssub.s32 %s44, 2
        // Predicated region
        $region133: #{transformer_encoder_forward.1} parent=131 // pred_check
          %p6723 = pneg %p465
        $region134: #{transformer_encoder_forward.1} parent=131 // pred_check_branch
          %6725 = sbr.rel (%p6723) target = $region136
        $region135: #{transformer_encoder_forward.1} parent=131 // pred_region
          %s6726 = sand.u32 %s450, 1
          %s6727 = scalar_lea.sflag [#allocation5], %s6726
          %s6728 = sand.u32 %s450, 1
          %s6729 = smul.addr %s6728, 16
          %s6730 = scalar_lea.vmem [#allocation17], %s6729
          %6731 = dma.done %s6727, 256
        $region136: #{transformer_encoder_forward.1} parent=131 // pred_fallthru
          _
        // Predicated region
        $region137: #{transformer_encoder_forward.1} parent=131 // pred_check
          %p6732 = pneg %p491
        $region138: #{transformer_encoder_forward.1} parent=131 // pred_check_branch
          %6734 = sbr.rel (%p6732) target = $region140
        $region139: #{transformer_encoder_forward.1} parent=131 // pred_region
          %s6735 = sand.u32 %s476, 1
          %s6736 = scalar_lea.sflag [#allocation19], %s6735
          %s6737 = sand.u32 %s476, 1
          %s6738 = smul.addr %s6737, 64
          %s6739 = scalar_lea.vmem [#allocation18], %s6738
          %6740 = dma.done %s6736, 1024
        $region140: #{transformer_encoder_forward.1} parent=131 // pred_fallthru
          _
      $region132: #{transformer_encoder_forward.1} parent=5 // pred_fallthru
        _
    $region6: #{transformer_encoder_forward.1} parent=1 // loop_footer
      %s48 = sadd.s32 1, %s44
    $region7: #{transformer_encoder_forward.1} parent=1 // loop_footer_branch
      %43 = sbr.rel target = $region3
    $region8: #{transformer_encoder_forward.1} parent=1 // loop_exit
      _
    %6741 = vsyncpa [#allocation4], 1
    %s6742 = scalar_lea.sflag [#allocation4], 1
    %6743 = vsyncpa %s6742, 1
    %6744 = vsyncpa [#allocation7], 1
    %s6745 = scalar_lea.sflag [#allocation7], 1
    %6746 = vsyncpa %s6745, 1
    %6747 = vsyncpa [#allocation10], 1
    %s6748 = scalar_lea.sflag [#allocation10], 1
    %6749 = vsyncpa %s6748, 1
    %6750 = vsyncpa [#allocation13], 1
    %s6751 = scalar_lea.sflag [#allocation13], 1
    %6752 = vsyncpa %s6751, 1
    %6753 = vsyncpa [#allocation16], 1
    %s6754 = scalar_lea.sflag [#allocation16], 1
    %6755 = vsyncpa %s6754, 1
    %6756 = vsyncpa [#allocation5], 1
    %s6757 = scalar_lea.sflag [#allocation5], 1
    %6758 = vsyncpa %s6757, 1
    %6759 = vsyncpa [#allocation19], 1
    %s6760 = scalar_lea.sflag [#allocation19], 1
    %6761 = vsyncpa %s6760, 1

</llo_original>
